<compile_context>
chip_gen: v5e
topology: v5e:2x2
jax: 0.10.0
libtpu: 0.0.40
codegen_flags: <defaults>
</compile_context>

<pallas_src>
import functools

import jax
import jax.numpy as jnp
from jax.experimental import pallas as pl
from jax.experimental.pallas import tpu as pltpu

EPS = 1e-5
GAMMA = 0.05          # GaussianKernel gamma parameter (initialized to 0.05)
EXPANSION = 4

VMEM_LIMIT = 32 * 1024 * 1024        # explicit scoped-VMEM limit (safe on v5e/v6e/v7x)
TILE_BYTE_BUDGET = 12 * 1024 * 1024  # target double-buffered working set per grid step


def _choose_l_tile(L, row_bytes, budget=TILE_BYTE_BUDGET):
    """Largest tile along L (divisor of L, lane/sublane friendly) whose
    double-buffered working set fits the byte budget."""
    cap = max(8, budget // max(1, 2 * row_bytes))
    if L <= cap:
        return L
    for step in (128, 8):
        t = (cap // step) * step
        while t >= step:
            if L % t == 0:
                return t
            t -= step
    # TODO(synk): pad L to a tileable size instead of a full-extent fallback.
    return L


# ----------------------------------------------------------------------------
# Pallas kernel #1: Gaussian kervolution, matmul form (used by 1x1 convs and
# the im2col fallback).  e = -gamma*|x|^2 + (-gamma*|w|^2) + x.(2*gamma*w)
# ----------------------------------------------------------------------------
def _gaussian_mm_kernel(neg_gamma, x_ref, w_ref, b_ref, o_ref):
    x = x_ref[...]                                               # (Lt, K) f32
    xw = jnp.dot(x.astype(jnp.bfloat16), w_ref[...],
                 preferred_element_type=jnp.float32)             # (Lt, O) on the MXU
    xsq = jnp.sum(x * x, axis=-1, keepdims=True)                 # (Lt, 1) f32
    e = jnp.minimum(b_ref[...] + neg_gamma * xsq + xw, 0.0)      # exact value is <= 0
    o_ref[...] = jnp.exp(e)                                      # EUP


def gaussian_pairwise(x_cl, w2_ko, b, neg_gamma):
    """x_cl: (N, L, K) f32; w2_ko: (K, O) bf16 (= 2*gamma*w); b: (1, O) = -gamma*|w|^2."""
    N, L, K = x_cl.shape
    O = w2_ko.shape[1]
    lt = _choose_l_tile(L, 4 * (K + O))
    return pl.pallas_call(
        functools.partial(_gaussian_mm_kernel, neg_gamma),
        out_shape=jax.ShapeDtypeStruct((N, L, O), jnp.float32),
        grid=(N, L // lt),
        in_specs=[pl.BlockSpec((None, lt, K), lambda n, l: (n, l, 0)),
                  pl.BlockSpec((K, O), lambda n, l: (0, 0)),
                  pl.BlockSpec((1, O), lambda n, l: (0, 0))],
        out_specs=pl.BlockSpec((None, lt, O), lambda n, l: (n, l, 0)),
        compiler_params=pltpu.CompilerParams(
            dimension_semantics=("parallel", "parallel"),
            vmem_limit_bytes=VMEM_LIMIT),
    )(x_cl, w2_ko, b)


# ----------------------------------------------------------------------------
# Pallas kernel #2: fused stride-1 kervolution (no im2col buffer in HBM).
# Reads the padded NHWC image once per batch element and accumulates the
# kh*kw tap matmuls + |x|^2 partial sums in VMEM.
# ----------------------------------------------------------------------------
def _gaussian_conv_fused_kernel(neg_gamma, oh, ow, kh, kw, xp_ref, w_ref, b_ref, o_ref):
    xp = xp_ref[...]                             # (Hp, Wp, C) f32 padded image
    w = w_ref[...]                               # (kh*kw, C, O) bf16 (= 2*gamma*w taps)
    C = xp.shape[-1]
    O = w.shape[-1]
    L = oh * ow
    xw = jnp.zeros((L, O), jnp.float32)
    xsq = jnp.zeros((L, 1), jnp.float32)
    for i in range(kh):
        for j in range(kw):
            win = xp[i:i + oh, j:j + ow, :].reshape(L, C)          # shifted window
            xsq = xsq + jnp.sum(win * win, axis=-1, keepdims=True)
            xw = xw + jnp.dot(win.astype(jnp.bfloat16), w[i * kw + j],
                              preferred_element_type=jnp.float32)
    e = jnp.minimum(b_ref[...] + neg_gamma * xsq + xw, 0.0)
    o_ref[...] = jnp.exp(e)


def gaussian_conv_fused(x_nhwc, w_taps, b, neg_gamma, kh, kw, ph, pw):
    N, H, W, C = x_nhwc.shape
    O = w_taps.shape[-1]
    oh, ow = H + 2 * ph - kh + 1, W + 2 * pw - kw + 1
    L = oh * ow
    xp = jnp.pad(x_nhwc, ((0, 0), (ph, ph), (pw, pw), (0, 0)))
    Hp, Wp = H + 2 * ph, W + 2 * pw
    out = pl.pallas_call(
        functools.partial(_gaussian_conv_fused_kernel, neg_gamma, oh, ow, kh, kw),
        out_shape=jax.ShapeDtypeStruct((N, L, O), jnp.float32),
        grid=(N,),
        in_specs=[pl.BlockSpec((None, Hp, Wp, C), lambda n: (n, 0, 0, 0)),
                  pl.BlockSpec((kh * kw, C, O), lambda n: (0, 0, 0)),
                  pl.BlockSpec((1, O), lambda n: (0, 0))],
        out_specs=pl.BlockSpec((None, L, O), lambda n: (n, 0, 0)),
        compiler_params=pltpu.CompilerParams(
            dimension_semantics=("parallel",),
            vmem_limit_bytes=VMEM_LIMIT),
    )(xp, w_taps, b)
    return out, oh, ow


# ----------------------------------------------------------------------------
# Fallback im2col (only for strided / oversized non-1x1 kervolutions).
# ----------------------------------------------------------------------------
def unfold_nhwc(x_nhwc, kernel_size, stride, padding):
    """torch.nn.functional.unfold ordering: channel slowest, then kh, then kw."""
    N, H, W, C = x_nhwc.shape
    kh, kw = kernel_size
    sh, sw = stride
    ph, pw = padding
    oh = (H + 2 * ph - kh) // sh + 1
    ow = (W + 2 * pw - kw) // sw + 1
    xp = jnp.pad(x_nhwc, ((0, 0), (ph, ph), (pw, pw), (0, 0)))
    patches = []
    for i in range(kh):
        for j in range(kw):
            patches.append(xp[:, i:i + sh * oh:sh, j:j + sw * ow:sw, :])  # (N,oh,ow,C)
    u = jnp.stack(patches, axis=-1)              # (N, oh, ow, C, kh*kw)
    u = u.reshape(N, oh * ow, C * kh * kw)       # K index = c*kh*kw + i*kw + j
    return u, oh, ow


def kernel_conv2d_nhwc(x_nhwc, weight, gamma, kernel_size, stride=(1, 1), padding=(0, 0)):
    """KernelConv2d(GaussianKernel) forward, bias-free.  Returns (t, oh, ow) where
    t is the raw (N, L, O) GaussianKernel output; PyTorch's `.view(N, -1, h, w)`
    scramble is a free reinterpretation of t's flat buffer (consumed as such by
    batchnorm_act)."""
    N, H, W, Cin = x_nhwc.shape
    kh, kw = kernel_size
    sh, sw = stride
    ph, pw = padding
    O = weight.shape[0]
    K = weight.shape[1] * kh * kw
    oh = (H + 2 * ph - kh) // sh + 1
    ow = (W + 2 * pw - kw) // sw + 1

    # w.view(w.size(0), -1) flattened, then viewed as (K, O): a raw row-major
    # reinterpretation of the flat weight buffer (faithful to the PyTorch code).
    w_ko = weight.reshape(-1).reshape(K, O)
    b = (-gamma) * jnp.sum(w_ko * w_ko, axis=0, keepdims=True)    # (1, O) f32
    w2 = ((2.0 * gamma) * w_ko).astype(jnp.bfloat16)              # folded constants
    neg_gamma = -gamma

    if kh == 1 and kw == 1:
        xs = x_nhwc if (sh, sw) == (1, 1) else x_nhwc[:, ::sh, ::sw, :]
        t = gaussian_pairwise(xs.reshape(N, oh * ow, Cin), w2, b, neg_gamma)
        return t, oh, ow

    fused_bytes = 2 * 4 * ((H + 2 * ph) * (W + 2 * pw) * Cin + oh * ow * O)
    if (sh, sw) == (1, 1) and fused_bytes <= TILE_BYTE_BUDGET:
        # (K, O) with K = c*kh*kw + ij  ->  (kh*kw, C, O) per-tap weights.
        w_taps = jnp.transpose(w2.reshape(weight.shape[1], kh * kw, O), (1, 0, 2))
        return gaussian_conv_fused(x_nhwc, w_taps, b, neg_gamma, kh, kw, ph, pw)

    # TODO(synk): halo-tiled manual-DMA path for strided / very large kervolutions;
    # until then fall back to the im2col formulation.
    x_unf, oh, ow = unfold_nhwc(x_nhwc, kernel_size, stride, padding)
    t = gaussian_pairwise(x_unf, w2, b, neg_gamma)
    return t, oh, ow


# ----------------------------------------------------------------------------
# Pallas kernels #3/#4: BatchNorm2d (training-mode batch stats) on the scrambled
# (N, C, L) view + fused residual / ReLU / channel-last conversion.
# ----------------------------------------------------------------------------
def _bn_stats_kernel(x_ref, s_ref, ss_ref):
    @pl.when(pl.program_id(1) == 0)
    def _():
        s_ref[...] = jnp.zeros_like(s_ref)
        ss_ref[...] = jnp.zeros_like(ss_ref)
    x = x_ref[...]                                       # (C, Lt)
    s_ref[...] += jnp.sum(x, axis=1, keepdims=True)      # (C, 1)
    ss_ref[...] += jnp.sum(x * x, axis=1, keepdims=True)


def _bn_apply_kernel(has_res, relu, *refs):
    if has_res:
        x_ref, r_ref, scale_ref, shift_ref, o_ref = refs
    else:
        x_ref, scale_ref, shift_ref, o_ref = refs
        r_ref = None
    y = x_ref[...] * scale_ref[...] + shift_ref[...]     # (C, Lt) per-channel affine
    y = jnp.transpose(y)                                 # (Lt, C): channel-last (XLU)
    if has_res:
        y = y + r_ref[...]
    if relu:
        y = jnp.maximum(y, 0.0)
    o_ref[...] = y


def batchnorm_act(t, bn_w, bn_b, residual=None, relu=True):
    """t: raw kervolution output (N, L, C) f32, whose flat buffer *is* PyTorch's
    scrambled `.view(N, C, h, w)` NCHW tensor.  Returns the channel-last
    (N, L, C) BN(+residual)(+ReLU) output (no standalone XLA transpose)."""
    N, L, C = t.shape
    M = N * L
    y_scr = t.reshape(N, C, L)          # free reinterpretation == the .view scramble

    row_bytes = 4 * C * (3 if residual is not None else 2)
    lt = _choose_l_tile(L, row_bytes)

    # Phase 1: per-(batch-element, channel) partial sums; "parallel" over N so a
    # second TensorCore (v7x megacore) can take half the read; reduced over L tiles.
    sp, ssp = pl.pallas_call(
        _bn_stats_kernel,
        out_shape=(jax.ShapeDtypeStruct((N, C, 1), jnp.float32),
                   jax.ShapeDtypeStruct((N, C, 1), jnp.float32)),
        grid=(N, L // lt),
        in_specs=[pl.BlockSpec((None, C, lt), lambda n, l: (n, 0, l))],
        out_specs=(pl.BlockSpec((None, C, 1), lambda n, l: (n, 0, 0)),
                   pl.BlockSpec((None, C, 1), lambda n, l: (n, 0, 0))),
        compiler_params=pltpu.CompilerParams(
            dimension_semantics=("parallel", "arbitrary"),
            vmem_limit_bytes=VMEM_LIMIT),
    )(y_scr)

    s = jnp.sum(sp, axis=0)                                  # (C, 1)
    ss = jnp.sum(ssp, axis=0)                                # (C, 1)
    mean = s / M
    var = jnp.maximum(ss / M - mean * mean, 0.0)             # biased variance (torch BN)
    scale = bn_w[:, None] * jax.lax.rsqrt(var + EPS)
    shift = bn_b[:, None] - mean * scale

    # Phase 2: normalize (+ residual) (+ ReLU), converting scrambled-NCHW tiles to
    # channel-last in-kernel.
    args = [y_scr]
    in_specs = [pl.BlockSpec((None, C, lt), lambda n, l: (n, 0, l))]
    if residual is not None:
        args.append(residual)
        in_specs.append(pl.BlockSpec((None, lt, C), lambda n, l: (n, l, 0)))
    args += [scale, shift]
    in_specs += [pl.BlockSpec((C, 1), lambda n, l: (0, 0)),
                 pl.BlockSpec((C, 1), lambda n, l: (0, 0))]

    out = pl.pallas_call(
        functools.partial(_bn_apply_kernel, residual is not None, relu),
        out_shape=jax.ShapeDtypeStruct((N, L, C), jnp.float32),
        grid=(N, L // lt),
        in_specs=in_specs,
        out_specs=pl.BlockSpec((None, lt, C), lambda n, l: (n, l, 0)),
        compiler_params=pltpu.CompilerParams(
            dimension_semantics=("parallel", "parallel"),
            vmem_limit_bytes=VMEM_LIMIT),
    )(*args)
    return out


# ----------------------------------------------------------------------------
# Bottleneck forward
# ----------------------------------------------------------------------------
def init_bottleneck_params(key, in_planes, planes):
    k1, k2, k3, k4 = jax.random.split(key, 4)
    scale = 0.1
    return {
        "w1": scale * jax.random.normal(k1, (planes, in_planes, 1, 1), jnp.float32),
        "w2": scale * jax.random.normal(k2, (planes, planes, 3, 3), jnp.float32),
        "w3": scale * jax.random.normal(k3, (EXPANSION * planes, planes, 1, 1), jnp.float32),
        "bn1_w": jnp.ones((planes,), jnp.float32),
        "bn1_b": jnp.zeros((planes,), jnp.float32),
        "bn2_w": jnp.ones((planes,), jnp.float32),
        "bn2_b": jnp.zeros((planes,), jnp.float32),
        "bn3_w": jnp.ones((EXPANSION * planes,), jnp.float32),
        "bn3_b": jnp.zeros((EXPANSION * planes,), jnp.float32),
        "ws": scale * jax.random.normal(k4, (EXPANSION * planes, in_planes, 1, 1), jnp.float32),
        "bns_w": jnp.ones((EXPANSION * planes,), jnp.float32),
        "bns_b": jnp.zeros((EXPANSION * planes,), jnp.float32),
    }


def bottleneck_forward(params, x_nchw, stride=1):
    N, Cin, H, W = x_nchw.shape
    c_out = params["w3"].shape[0]
    x_nhwc = jnp.transpose(x_nchw, (0, 2, 3, 1))     # single layout change at input

    # conv1 (1x1) -> bn1 -> relu
    t1, h1, w1 = kernel_conv2d_nhwc(x_nhwc, params["w1"], GAMMA, (1, 1))
    y1 = batchnorm_act(t1, params["bn1_w"], params["bn1_b"], relu=True)

    # conv2 (3x3, pad 1, stride) -> bn2 -> relu
    t2, h2, w2 = kernel_conv2d_nhwc(y1.reshape(N, h1, w1, -1), params["w2"], GAMMA,
                                    (3, 3), (stride, stride), (1, 1))
    y2 = batchnorm_act(t2, params["bn2_w"], params["bn2_b"], relu=True)

    # shortcut
    if stride != 1 or Cin != c_out:
        ts, _, _ = kernel_conv2d_nhwc(x_nhwc, params["ws"], GAMMA,
                                      (1, 1), (stride, stride), (0, 0))
        sc = batchnorm_act(ts, params["bns_w"], params["bns_b"], relu=False)
    else:
        sc = x_nhwc.reshape(N, H * W, Cin)

    # conv3 (1x1) -> bn3 + shortcut + relu (residual/relu fused in the BN apply pass)
    t3, h3, w3 = kernel_conv2d_nhwc(y2.reshape(N, h2, w2, -1), params["w3"], GAMMA, (1, 1))
    out = batchnorm_act(t3, params["bn3_w"], params["bn3_b"], residual=sc, relu=True)

    # back to NCHW only at the module boundary
    return jnp.transpose(out.reshape(N, h3, w3, -1), (0, 3, 1, 2))


# ----------------------------------------------------------------------------
# Pure-JAX reference (direct per-element formulas, NCHW, torch-ordered unfold)
# ----------------------------------------------------------------------------
def _ref_unfold_nchw(x, kernel_size, stride, padding):
    N, C, H, W = x.shape
    kh, kw = kernel_size
    sh, sw = stride
    ph, pw = padding
    oh = (H + 2 * ph - kh) // sh + 1
    ow = (W + 2 * pw - kw) // sw + 1
    xp = jnp.pad(x, ((0, 0), (0, 0), (ph, ph), (pw, pw)))
    cols = []
    for i in range(kh):
        for j in range(kw):
            cols.append(xp[:, :, i:i + sh * oh:sh, j:j + sw * ow:sw])
    u = jnp.stack(cols, axis=2)                 # (N, C, kh*kw, oh, ow)
    return u.reshape(N, C * kh * kw, oh * ow), oh, ow


def _ref_kconv(x, weight, gamma, ks, stride, padding):
    N = x.shape[0]
    O = weight.shape[0]
    K = weight.shape[1] * ks[0] * ks[1]
    xu, oh, ow = _ref_unfold_nchw(x, ks, stride, padding)   # (N, K, L)
    xt = jnp.transpose(xu, (0, 2, 1))                       # (N, L, K)
    w_ko = weight.reshape(-1).reshape(K, O)
    diff = xt[:, :, :, None] - w_ko[None, None, :, :]       # (N, L, K, O)
    t = jnp.exp(-gamma * jnp.sum(diff * diff, axis=2))      # (N, L, O)
    return t.reshape(N, -1, oh, ow)                         # PyTorch .view scrambling


def _ref_bn(x, w, b, residual=None, relu=True):
    mean = jnp.mean(x, axis=(0, 2, 3), keepdims=True)
    var = jnp.mean((x - mean) ** 2, axis=(0, 2, 3), keepdims=True)
    y = (x - mean) * jax.lax.rsqrt(var + EPS) * w[None, :, None, None] + b[None, :, None, None]
    if residual is not None:
        y = y + residual
    if relu:
        y = jnp.maximum(y, 0.0)
    return y


def _ref_bottleneck(p, x, stride=1):
    Cin = x.shape[1]
    c_out = p["w3"].shape[0]
    y1 = _ref_bn(_ref_kconv(x, p["w1"], GAMMA, (1, 1), (1, 1), (0, 0)), p["bn1_w"], p["bn1_b"])
    y2 = _ref_bn(_ref_kconv(y1, p["w2"], GAMMA, (3, 3), (stride, stride), (1, 1)), p["bn2_w"], p["bn2_b"])
    if stride != 1 or Cin != c_out:
        sc = _ref_bn(_ref_kconv(x, p["ws"], GAMMA, (1, 1), (stride, stride), (0, 0)),
                     p["bns_w"], p["bns_b"], relu=False)
    else:
        sc = x
    return _ref_bn(_ref_kconv(y2, p["w3"], GAMMA, (1, 1), (1, 1), (0, 0)), p["bn3_w"], p["bn3_b"],
                   residual=sc, relu=True)


if __name__ == "__main__":
    key = jax.random.PRNGKey(0)
    kx, kp = jax.random.split(key)

    in_planes, planes, stride = 8, 8, 1
    x = jax.random.normal(kx, (2, in_planes, 16, 16), jnp.float32)   # NCHW
    params = init_bottleneck_params(kp, in_planes, planes)

    fwd = jax.jit(functools.partial(bottleneck_forward, stride=stride))
    out = jax.block_until_ready(fwd(params, x))
    assert out.shape == (2, EXPANSION * planes, 16, 16), out.shape

    ref = jax.block_until_ready(_ref_bottleneck(params, x, stride=stride))
    # bf16 MXU operands (f32 accumulation) vs. the all-f32 reference => relaxed tol.
    err = float(jnp.max(jnp.abs(out - ref)))
    assert jnp.allclose(out, ref, atol=2e-2, rtol=2e-2), err

    print("KERNEL_OK")
</pallas_src>

<mosaic_0001>
module attributes {stable_mosaic.version = 11 : i64} {
  func.func @_bn_stats_kernel(%arg0: i32, %arg1: i32, %arg2: memref<1x8x256xf32, #tpu.memory_space<vmem>>, %arg3: memref<1x8x1xf32, #tpu.memory_space<vmem>>, %arg4: memref<1x8x1xf32, #tpu.memory_space<vmem>>) attributes {dimension_semantics = [#tpu.dimension_semantics<parallel>, #tpu.dimension_semantics<arbitrary>], iteration_bounds = array<i64: 2, 1>, scalar_prefetch = 0 : i64, scratch_operands = 0 : i64, tpu.core_type = #tpu.core_type<tc>, window_params = [{transform_indices = @transform_0, window_bounds = array<i64: 1, 8, 256>}, {transform_indices = @transform_1, window_bounds = array<i64: 1, 8, 1>}, {transform_indices = @transform_2, window_bounds = array<i64: 1, 8, 1>}]} {
    %c0_i32 = arith.constant 0 : i32
    %0 = arith.cmpi eq, %arg1, %c0_i32 : i32
    %1 = arith.extui %0 : i1 to i32
    %c0_i32_0 = arith.constant 0 : i32
    %2 = arith.cmpi ne, %1, %c0_i32_0 : i32
    scf.if %2 {
      %cst_16 = arith.constant 0.000000e+00 : f32
      %22 = vector.broadcast %cst_16 : f32 to vector<8x1xf32>
      %c0_17 = arith.constant 0 : index
      %c0_18 = arith.constant 0 : index
      %c0_19 = arith.constant 0 : index
      %23 = vector.load %arg3[%c0_17, %c0_18, %c0_19] : memref<1x8x1xf32, #tpu.memory_space<vmem>>, vector<1x8x1xf32>
      %24 = vector.shape_cast %23 : vector<1x8x1xf32> to vector<8x1xf32>
      %25 = vector.shape_cast %22 : vector<8x1xf32> to vector<1x8x1xf32>
      tpu.vector_store %arg3[%c0_17, %c0_18, %c0_19], %25 {strides = array<i32>} : memref<1x8x1xf32, #tpu.memory_space<vmem>>, vector<1x8x1xf32>,
      %cst_20 = arith.constant 0.000000e+00 : f32
      %26 = vector.broadcast %cst_20 : f32 to vector<8x1xf32>
      %c0_21 = arith.constant 0 : index
      %c0_22 = arith.constant 0 : index
      %c0_23 = arith.constant 0 : index
      %27 = vector.load %arg4[%c0_21, %c0_22, %c0_23] : memref<1x8x1xf32, #tpu.memory_space<vmem>>, vector<1x8x1xf32>
      %28 = vector.shape_cast %27 : vector<1x8x1xf32> to vector<8x1xf32>
      %29 = vector.shape_cast %26 : vector<8x1xf32> to vector<1x8x1xf32>
      tpu.vector_store %arg4[%c0_21, %c0_22, %c0_23], %29 {strides = array<i32>} : memref<1x8x1xf32, #tpu.memory_space<vmem>>, vector<1x8x1xf32>,
    } else {
    }
    %c0 = arith.constant 0 : index
    %c0_1 = arith.constant 0 : index
    %c0_2 = arith.constant 0 : index
    %3 = vector.load %arg2[%c0, %c0_1, %c0_2] : memref<1x8x256xf32, #tpu.memory_space<vmem>>, vector<1x8x256xf32>
    %4 = vector.shape_cast %3 : vector<1x8x256xf32> to vector<8x256xf32>
    %c0_3 = arith.constant 0 : index
    %c0_4 = arith.constant 0 : index
    %c0_5 = arith.constant 0 : index
    %5 = vector.load %arg3[%c0_3, %c0_4, %c0_5] : memref<1x8x1xf32, #tpu.memory_space<vmem>>, vector<1x8x1xf32>
    %6 = vector.shape_cast %5 : vector<1x8x1xf32> to vector<8x1xf32>
    %cst = arith.constant dense<0.000000e+00> : vector<8xf32>
    %7 = vector.multi_reduction <add>, %4, %cst [1] : vector<8x256xf32> to vector<8xf32>
    %8 = vector.shape_cast %7 : vector<8xf32> to vector<8x1xf32>
    %9 = arith.addf %6, %8 : vector<8x1xf32>
    %c0_6 = arith.constant 0 : index
    %c0_7 = arith.constant 0 : index
    %c0_8 = arith.constant 0 : index
    %10 = vector.load %arg3[%c0_6, %c0_7, %c0_8] : memref<1x8x1xf32, #tpu.memory_space<vmem>>, vector<1x8x1xf32>
    %11 = vector.shape_cast %10 : vector<1x8x1xf32> to vector<8x1xf32>
    %12 = vector.shape_cast %9 : vector<8x1xf32> to vector<1x8x1xf32>
    tpu.vector_store %arg3[%c0_6, %c0_7, %c0_8], %12 {strides = array<i32>} : memref<1x8x1xf32, #tpu.memory_space<vmem>>, vector<1x8x1xf32>,
    %c0_9 = arith.constant 0 : index
    %c0_10 = arith.constant 0 : index
    %c0_11 = arith.constant 0 : index
    %13 = vector.load %arg4[%c0_9, %c0_10, %c0_11] : memref<1x8x1xf32, #tpu.memory_space<vmem>>, vector<1x8x1xf32>
    %14 = vector.shape_cast %13 : vector<1x8x1xf32> to vector<8x1xf32>
    %15 = arith.mulf %4, %4 : vector<8x256xf32>
    %cst_12 = arith.constant dense<0.000000e+00> : vector<8xf32>
    %16 = vector.multi_reduction <add>, %15, %cst_12 [1] : vector<8x256xf32> to vector<8xf32>
    %17 = vector.shape_cast %16 : vector<8xf32> to vector<8x1xf32>
    %18 = arith.addf %14, %17 : vector<8x1xf32>
    %c0_13 = arith.constant 0 : index
    %c0_14 = arith.constant 0 : index
    %c0_15 = arith.constant 0 : index
    %19 = vector.load %arg4[%c0_13, %c0_14, %c0_15] : memref<1x8x1xf32, #tpu.memory_space<vmem>>, vector<1x8x1xf32>
    %20 = vector.shape_cast %19 : vector<1x8x1xf32> to vector<8x1xf32>
    %21 = vector.shape_cast %18 : vector<8x1xf32> to vector<1x8x1xf32>
    tpu.vector_store %arg4[%c0_13, %c0_14, %c0_15], %21 {strides = array<i32>} : memref<1x8x1xf32, #tpu.memory_space<vmem>>, vector<1x8x1xf32>,
    return
  }
  func.func @transform_0(%arg0: i32, %arg1: i32) -> (i32, i32, i32) {
    %c0_i32 = arith.constant 0 : i32
    %c0_i32_0 = arith.constant 0 : i32
    return %arg0, %c0_i32, %arg1 : i32, i32, i32
  }
  func.func @transform_1(%arg0: i32, %arg1: i32) -> (i32, i32, i32) {
    %c0_i32 = arith.constant 0 : i32
    %c0_i32_0 = arith.constant 0 : i32
    %c0_i32_1 = arith.constant 0 : i32
    return %arg0, %c0_i32, %c0_i32_0 : i32, i32, i32
  }
  func.func @transform_2(%arg0: i32, %arg1: i32) -> (i32, i32, i32) {
    %c0_i32 = arith.constant 0 : i32
    %c0_i32_0 = arith.constant 0 : i32
    %c0_i32_1 = arith.constant 0 : i32
    return %arg0, %c0_i32, %c0_i32_0 : i32, i32, i32
  }
}

module attributes {stable_mosaic.version = 11 : i64} {
  func.func @_gaussian_mm_kernel(%arg0: i32, %arg1: i32, %arg2: memref<1x256x8xf32, #tpu.memory_space<vmem>>, %arg3: memref<8x8xbf16, #tpu.memory_space<vmem>>, %arg4: memref<1x8xf32, #tpu.memory_space<vmem>>, %arg5: memref<1x256x8xf32, #tpu.memory_space<vmem>>) attributes {dimension_semantics = [#tpu.dimension_semantics<parallel>, #tpu.dimension_semantics<parallel>], iteration_bounds = array<i64: 2, 1>, scalar_prefetch = 0 : i64, scratch_operands = 0 : i64, tpu.core_type = #tpu.core_type<tc>, window_params = [{transform_indices = @transform_0, window_bounds = array<i64: 1, 256, 8>}, {pipeline_mode = #tpu.pipeline_mode<synchronous>, transform_indices = @transform_1, window_bounds = array<i64: 8, 8>}, {pipeline_mode = #tpu.pipeline_mode<synchronous>, transform_indices = @transform_2, window_bounds = array<i64: 1, 8>}, {transform_indices = @transform_3, window_bounds = array<i64: 1, 256, 8>}]} {
    %c0 = arith.constant 0 : index
    %c0_0 = arith.constant 0 : index
    %c0_1 = arith.constant 0 : index
    %0 = vector.load %arg2[%c0, %c0_0, %c0_1] : memref<1x256x8xf32, #tpu.memory_space<vmem>>, vector<1x256x8xf32>
    %1 = vector.shape_cast %0 : vector<1x256x8xf32> to vector<256x8xf32>
    %2 = arith.truncf %1 : vector<256x8xf32> to vector<256x8xbf16>
    %c0_2 = arith.constant 0 : index
    %c0_3 = arith.constant 0 : index
    %3 = vector.load %arg3[%c0_2, %c0_3] : memref<8x8xbf16, #tpu.memory_space<vmem>>, vector<8x8xbf16>
    %cst = arith.constant dense<0.000000e+00> : vector<256x8xf32>
    %4 = tpu.matmul %2, %3, %cst {dimension_numbers = #tpu.dot_dimension_numbers<[1], [0], [0], [1], [0, 0, 1, 1], [], []>} : vector<256x8xbf16>, vector<8x8xbf16>, vector<256x8xf32> -> vector<256x8xf32>
    %5 = arith.mulf %1, %1 : vector<256x8xf32>
    %cst_4 = arith.constant dense<0.000000e+00> : vector<256xf32>
    %6 = vector.multi_reduction <add>, %5, %cst_4 [1] : vector<256x8xf32> to vector<256xf32>
    %7 = vector.shape_cast %6 : vector<256xf32> to vector<256x1xf32>
    %c0_5 = arith.constant 0 : index
    %c0_6 = arith.constant 0 : index
    %8 = vector.load %arg4[%c0_5, %c0_6] : memref<1x8xf32, #tpu.memory_space<vmem>>, vector<1x8xf32>
    %cst_7 = arith.constant -5.000000e-02 : f32
    %9 = vector.broadcast %cst_7 : f32 to vector<256x1xf32>
    %10 = arith.mulf %9, %7 : vector<256x1xf32>
    %11 = vector.broadcast %8 : vector<1x8xf32> to vector<256x8xf32>
    %12 = vector.broadcast %10 : vector<256x1xf32> to vector<256x8xf32>
    %13 = arith.addf %11, %12 : vector<256x8xf32>
    %14 = arith.addf %13, %4 : vector<256x8xf32>
    %cst_8 = arith.constant 0.000000e+00 : f32
    %15 = vector.broadcast %cst_8 : f32 to vector<256x8xf32>
    %16 = arith.minimumf %14, %15 : vector<256x8xf32>
    %17 = math.exp %16 : vector<256x8xf32>
    %c0_9 = arith.constant 0 : index
    %c0_10 = arith.constant 0 : index
    %c0_11 = arith.constant 0 : index
    %18 = vector.load %arg5[%c0_9, %c0_10, %c0_11] : memref<1x256x8xf32, #tpu.memory_space<vmem>>, vector<1x256x8xf32>
    %19 = vector.shape_cast %18 : vector<1x256x8xf32> to vector<256x8xf32>
    %20 = vector.shape_cast %17 : vector<256x8xf32> to vector<1x256x8xf32>
    tpu.vector_store %arg5[%c0_9, %c0_10, %c0_11], %20 {strides = array<i32>} : memref<1x256x8xf32, #tpu.memory_space<vmem>>, vector<1x256x8xf32>,
    return
  }
  func.func @transform_0(%arg0: i32, %arg1: i32) -> (i32, i32, i32) {
    %c0_i32 = arith.constant 0 : i32
    %c0_i32_0 = arith.constant 0 : i32
    return %arg0, %arg1, %c0_i32 : i32, i32, i32
  }
  func.func @transform_1(%arg0: i32, %arg1: i32) -> (i32, i32) {
    %c0_i32 = arith.constant 0 : i32
    %c0_i32_0 = arith.constant 0 : i32
    %c0_i32_1 = arith.constant 0 : i32
    return %c0_i32, %c0_i32_0 : i32, i32
  }
  func.func @transform_2(%arg0: i32, %arg1: i32) -> (i32, i32) {
    %c0_i32 = arith.constant 0 : i32
    %c0_i32_0 = arith.constant 0 : i32
    %c0_i32_1 = arith.constant 0 : i32
    return %c0_i32, %c0_i32_0 : i32, i32
  }
  func.func @transform_3(%arg0: i32, %arg1: i32) -> (i32, i32, i32) {
    %c0_i32 = arith.constant 0 : i32
    %c0_i32_0 = arith.constant 0 : i32
    return %arg0, %arg1, %c0_i32 : i32, i32, i32
  }
}

module attributes {stable_mosaic.version = 11 : i64} {
  func.func @_bn_apply_kernel(%arg0: i32, %arg1: i32, %arg2: memref<1x8x256xf32, #tpu.memory_space<vmem>>, %arg3: memref<8x1xf32, #tpu.memory_space<vmem>>, %arg4: memref<8x1xf32, #tpu.memory_space<vmem>>, %arg5: memref<1x256x8xf32, #tpu.memory_space<vmem>>) attributes {dimension_semantics = [#tpu.dimension_semantics<parallel>, #tpu.dimension_semantics<parallel>], iteration_bounds = array<i64: 2, 1>, scalar_prefetch = 0 : i64, scratch_operands = 0 : i64, tpu.core_type = #tpu.core_type<tc>, window_params = [{transform_indices = @transform_0, window_bounds = array<i64: 1, 8, 256>}, {pipeline_mode = #tpu.pipeline_mode<synchronous>, transform_indices = @transform_1, window_bounds = array<i64: 8, 1>}, {pipeline_mode = #tpu.pipeline_mode<synchronous>, transform_indices = @transform_2, window_bounds = array<i64: 8, 1>}, {transform_indices = @transform_3, window_bounds = array<i64: 1, 256, 8>}]} {
    %c0 = arith.constant 0 : index
    %c0_0 = arith.constant 0 : index
    %c0_1 = arith.constant 0 : index
    %0 = vector.load %arg2[%c0, %c0_0, %c0_1] : memref<1x8x256xf32, #tpu.memory_space<vmem>>, vector<1x8x256xf32>
    %1 = vector.shape_cast %0 : vector<1x8x256xf32> to vector<8x256xf32>
    %c0_2 = arith.constant 0 : index
    %c0_3 = arith.constant 0 : index
    %2 = vector.load %arg3[%c0_2, %c0_3] : memref<8x1xf32, #tpu.memory_space<vmem>>, vector<8x1xf32>
    %3 = vector.broadcast %2 : vector<8x1xf32> to vector<8x256xf32>
    %4 = arith.mulf %1, %3 : vector<8x256xf32>
    %c0_4 = arith.constant 0 : index
    %c0_5 = arith.constant 0 : index
    %5 = vector.load %arg4[%c0_4, %c0_5] : memref<8x1xf32, #tpu.memory_space<vmem>>, vector<8x1xf32>
    %6 = vector.broadcast %5 : vector<8x1xf32> to vector<8x256xf32>
    %7 = arith.addf %4, %6 : vector<8x256xf32>
    %8 = tpu.transpose %7, [1, 0] : vector<8x256xf32> -> vector<256x8xf32>
    %cst = arith.constant 0.000000e+00 : f32
    %9 = vector.broadcast %cst : f32 to vector<256x8xf32>
    %10 = arith.maximumf %8, %9 : vector<256x8xf32>
    %c0_6 = arith.constant 0 : index
    %c0_7 = arith.constant 0 : index
    %c0_8 = arith.constant 0 : index
    %11 = vector.load %arg5[%c0_6, %c0_7, %c0_8] : memref<1x256x8xf32, #tpu.memory_space<vmem>>, vector<1x256x8xf32>
    %12 = vector.shape_cast %11 : vector<1x256x8xf32> to vector<256x8xf32>
    %13 = vector.shape_cast %10 : vector<256x8xf32> to vector<1x256x8xf32>
    tpu.vector_store %arg5[%c0_6, %c0_7, %c0_8], %13 {strides = array<i32>} : memref<1x256x8xf32, #tpu.memory_space<vmem>>, vector<1x256x8xf32>,
    return
  }
  func.func @transform_0(%arg0: i32, %arg1: i32) -> (i32, i32, i32) {
    %c0_i32 = arith.constant 0 : i32
    %c0_i32_0 = arith.constant 0 : i32
    return %arg0, %c0_i32, %arg1 : i32, i32, i32
  }
  func.func @transform_1(%arg0: i32, %arg1: i32) -> (i32, i32) {
    %c0_i32 = arith.constant 0 : i32
    %c0_i32_0 = arith.constant 0 : i32
    %c0_i32_1 = arith.constant 0 : i32
    return %c0_i32, %c0_i32_0 : i32, i32
  }
  func.func @transform_2(%arg0: i32, %arg1: i32) -> (i32, i32) {
    %c0_i32 = arith.constant 0 : i32
    %c0_i32_0 = arith.constant 0 : i32
    %c0_i32_1 = arith.constant 0 : i32
    return %c0_i32, %c0_i32_0 : i32, i32
  }
  func.func @transform_3(%arg0: i32, %arg1: i32) -> (i32, i32, i32) {
    %c0_i32 = arith.constant 0 : i32
    %c0_i32_0 = arith.constant 0 : i32
    return %arg0, %arg1, %c0_i32 : i32, i32, i32
  }
}

module attributes {stable_mosaic.version = 11 : i64} {
  func.func @_gaussian_conv_fused_kernel(%arg0: i32, %arg1: memref<1x18x18x8xf32, #tpu.memory_space<vmem>>, %arg2: memref<9x8x8xbf16, #tpu.memory_space<vmem>>, %arg3: memref<1x8xf32, #tpu.memory_space<vmem>>, %arg4: memref<1x256x8xf32, #tpu.memory_space<vmem>>) attributes {dimension_semantics = [#tpu.dimension_semantics<parallel>], iteration_bounds = array<i64: 2>, scalar_prefetch = 0 : i64, scratch_operands = 0 : i64, tpu.core_type = #tpu.core_type<tc>, window_params = [{transform_indices = @transform_0, window_bounds = array<i64: 1, 18, 18, 8>}, {pipeline_mode = #tpu.pipeline_mode<synchronous>, transform_indices = @transform_1, window_bounds = array<i64: 9, 8, 8>}, {pipeline_mode = #tpu.pipeline_mode<synchronous>, transform_indices = @transform_2, window_bounds = array<i64: 1, 8>}, {transform_indices = @transform_3, window_bounds = array<i64: 1, 256, 8>}]} {
    %c0 = arith.constant 0 : index
    %c0_0 = arith.constant 0 : index
    %c0_1 = arith.constant 0 : index
    %c0_2 = arith.constant 0 : index
    %0 = vector.load %arg1[%c0, %c0_0, %c0_1, %c0_2] : memref<1x18x18x8xf32, #tpu.memory_space<vmem>>, vector<1x18x18x8xf32>
    %1 = vector.shape_cast %0 : vector<1x18x18x8xf32> to vector<18x18x8xf32>
    %c0_3 = arith.constant 0 : index
    %c0_4 = arith.constant 0 : index
    %c0_5 = arith.constant 0 : index
    %2 = vector.load %arg2[%c0_3, %c0_4, %c0_5] : memref<9x8x8xbf16, #tpu.memory_space<vmem>>, vector<9x8x8xbf16>
    %cst = arith.constant 0.000000e+00 : f32
    %3 = vector.broadcast %cst : f32 to vector<256x8xf32>
    %cst_6 = arith.constant 0.000000e+00 : f32
    %4 = vector.broadcast %cst_6 : f32 to vector<256x1xf32>
    %5 = vector.extract_strided_slice %1 {offsets = [0, 0, 0], sizes = [16, 16, 8], strides = [1, 1, 1]} : vector<18x18x8xf32> to vector<16x16x8xf32>
    %6 = vector.shape_cast %5 : vector<16x16x8xf32> to vector<256x8xf32>
    %7 = arith.mulf %6, %6 : vector<256x8xf32>
    %cst_7 = arith.constant dense<0.000000e+00> : vector<256xf32>
    %8 = vector.multi_reduction <add>, %7, %cst_7 [1] : vector<256x8xf32> to vector<256xf32>
    %9 = vector.shape_cast %8 : vector<256xf32> to vector<256x1xf32>
    %10 = arith.addf %4, %9 : vector<256x1xf32>
    %11 = arith.truncf %6 : vector<256x8xf32> to vector<256x8xbf16>
    %12 = vector.extract_strided_slice %2 {offsets = [0, 0, 0], sizes = [1, 8, 8], strides = [1, 1, 1]} : vector<9x8x8xbf16> to vector<1x8x8xbf16>
    %13 = vector.shape_cast %12 : vector<1x8x8xbf16> to vector<8x8xbf16>
    %cst_8 = arith.constant dense<0.000000e+00> : vector<256x8xf32>
    %14 = tpu.matmul %11, %13, %cst_8 {dimension_numbers = #tpu.dot_dimension_numbers<[1], [0], [0], [1], [0, 0, 1, 1], [], []>} : vector<256x8xbf16>, vector<8x8xbf16>, vector<256x8xf32> -> vector<256x8xf32>
    %15 = arith.addf %3, %14 : vector<256x8xf32>
    %16 = vector.extract_strided_slice %1 {offsets = [0, 1, 0], sizes = [16, 16, 8], strides = [1, 1, 1]} : vector<18x18x8xf32> to vector<16x16x8xf32>
    %17 = vector.shape_cast %16 : vector<16x16x8xf32> to vector<256x8xf32>
    %18 = arith.mulf %17, %17 : vector<256x8xf32>
    %cst_9 = arith.constant dense<0.000000e+00> : vector<256xf32>
    %19 = vector.multi_reduction <add>, %18, %cst_9 [1] : vector<256x8xf32> to vector<256xf32>
    %20 = vector.shape_cast %19 : vector<256xf32> to vector<256x1xf32>
    %21 = arith.addf %10, %20 : vector<256x1xf32>
    %22 = arith.truncf %17 : vector<256x8xf32> to vector<256x8xbf16>
    %23 = vector.extract_strided_slice %2 {offsets = [1, 0, 0], sizes = [1, 8, 8], strides = [1, 1, 1]} : vector<9x8x8xbf16> to vector<1x8x8xbf16>
    %24 = vector.shape_cast %23 : vector<1x8x8xbf16> to vector<8x8xbf16>
    %cst_10 = arith.constant dense<0.000000e+00> : vector<256x8xf32>
    %25 = tpu.matmul %22, %24, %cst_10 {dimension_numbers = #tpu.dot_dimension_numbers<[1], [0], [0], [1], [0, 0, 1, 1], [], []>} : vector<256x8xbf16>, vector<8x8xbf16>, vector<256x8xf32> -> vector<256x8xf32>
    %26 = arith.addf %15, %25 : vector<256x8xf32>
    %27 = vector.extract_strided_slice %1 {offsets = [0, 2, 0], sizes = [16, 16, 8], strides = [1, 1, 1]} : vector<18x18x8xf32> to vector<16x16x8xf32>
    %28 = vector.shape_cast %27 : vector<16x16x8xf32> to vector<256x8xf32>
    %29 = arith.mulf %28, %28 : vector<256x8xf32>
    %cst_11 = arith.constant dense<0.000000e+00> : vector<256xf32>
    %30 = vector.multi_reduction <add>, %29, %cst_11 [1] : vector<256x8xf32> to vector<256xf32>
    %31 = vector.shape_cast %30 : vector<256xf32> to vector<256x1xf32>
    %32 = arith.addf %21, %31 : vector<256x1xf32>
    %33 = arith.truncf %28 : vector<256x8xf32> to vector<256x8xbf16>
    %34 = vector.extract_strided_slice %2 {offsets = [2, 0, 0], sizes = [1, 8, 8], strides = [1, 1, 1]} : vector<9x8x8xbf16> to vector<1x8x8xbf16>
    %35 = vector.shape_cast %34 : vector<1x8x8xbf16> to vector<8x8xbf16>
    %cst_12 = arith.constant dense<0.000000e+00> : vector<256x8xf32>
    %36 = tpu.matmul %33, %35, %cst_12 {dimension_numbers = #tpu.dot_dimension_numbers<[1], [0], [0], [1], [0, 0, 1, 1], [], []>} : vector<256x8xbf16>, vector<8x8xbf16>, vector<256x8xf32> -> vector<256x8xf32>
    %37 = arith.addf %26, %36 : vector<256x8xf32>
    %38 = vector.extract_strided_slice %1 {offsets = [1, 0, 0], sizes = [16, 16, 8], strides = [1, 1, 1]} : vector<18x18x8xf32> to vector<16x16x8xf32>
    %39 = vector.shape_cast %38 : vector<16x16x8xf32> to vector<256x8xf32>
    %40 = arith.mulf %39, %39 : vector<256x8xf32>
    %cst_13 = arith.constant dense<0.000000e+00> : vector<256xf32>
    %41 = vector.multi_reduction <add>, %40, %cst_13 [1] : vector<256x8xf32> to vector<256xf32>
    %42 = vector.shape_cast %41 : vector<256xf32> to vector<256x1xf32>
    %43 = arith.addf %32, %42 : vector<256x1xf32>
    %44 = arith.truncf %39 : vector<256x8xf32> to vector<256x8xbf16>
    %45 = vector.extract_strided_slice %2 {offsets = [3, 0, 0], sizes = [1, 8, 8], strides = [1, 1, 1]} : vector<9x8x8xbf16> to vector<1x8x8xbf16>
    %46 = vector.shape_cast %45 : vector<1x8x8xbf16> to vector<8x8xbf16>
    %cst_14 = arith.constant dense<0.000000e+00> : vector<256x8xf32>
    %47 = tpu.matmul %44, %46, %cst_14 {dimension_numbers = #tpu.dot_dimension_numbers<[1], [0], [0], [1], [0, 0, 1, 1], [], []>} : vector<256x8xbf16>, vector<8x8xbf16>, vector<256x8xf32> -> vector<256x8xf32>
    %48 = arith.addf %37, %47 : vector<256x8xf32>
    %49 = vector.extract_strided_slice %1 {offsets = [1, 1, 0], sizes = [16, 16, 8], strides = [1, 1, 1]} : vector<18x18x8xf32> to vector<16x16x8xf32>
    %50 = vector.shape_cast %49 : vector<16x16x8xf32> to vector<256x8xf32>
    %51 = arith.mulf %50, %50 : vector<256x8xf32>
    %cst_15 = arith.constant dense<0.000000e+00> : vector<256xf32>
    %52 = vector.multi_reduction <add>, %51, %cst_15 [1] : vector<256x8xf32> to vector<256xf32>
    %53 = vector.shape_cast %52 : vector<256xf32> to vector<256x1xf32>
    %54 = arith.addf %43, %53 : vector<256x1xf32>
    %55 = arith.truncf %50 : vector<256x8xf32> to vector<256x8xbf16>
    %56 = vector.extract_strided_slice %2 {offsets = [4, 0, 0], sizes = [1, 8, 8], strides = [1, 1, 1]} : vector<9x8x8xbf16> to vector<1x8x8xbf16>
    %57 = vector.shape_cast %56 : vector<1x8x8xbf16> to vector<8x8xbf16>
    %cst_16 = arith.constant dense<0.000000e+00> : vector<256x8xf32>
    %58 = tpu.matmul %55, %57, %cst_16 {dimension_numbers = #tpu.dot_dimension_numbers<[1], [0], [0], [1], [0, 0, 1, 1], [], []>} : vector<256x8xbf16>, vector<8x8xbf16>, vector<256x8xf32> -> vector<256x8xf32>
    %59 = arith.addf %48, %58 : vector<256x8xf32>
    %60 = vector.extract_strided_slice %1 {offsets = [1, 2, 0], sizes = [16, 16, 8], strides = [1, 1, 1]} : vector<18x18x8xf32> to vector<16x16x8xf32>
    %61 = vector.shape_cast %60 : vector<16x16x8xf32> to vector<256x8xf32>
    %62 = arith.mulf %61, %61 : vector<256x8xf32>
    %cst_17 = arith.constant dense<0.000000e+00> : vector<256xf32>
    %63 = vector.multi_reduction <add>, %62, %cst_17 [1] : vector<256x8xf32> to vector<256xf32>
    %64 = vector.shape_cast %63 : vector<256xf32> to vector<256x1xf32>
    %65 = arith.addf %54, %64 : vector<256x1xf32>
    %66 = arith.truncf %61 : vector<256x8xf32> to vector<256x8xbf16>
    %67 = vector.extract_strided_slice %2 {offsets = [5, 0, 0], sizes = [1, 8, 8], strides = [1, 1, 1]} : vector<9x8x8xbf16> to vector<1x8x8xbf16>
    %68 = vector.shape_cast %67 : vector<1x8x8xbf16> to vector<8x8xbf16>
    %cst_18 = arith.constant dense<0.000000e+00> : vector<256x8xf32>
    %69 = tpu.matmul %66, %68, %cst_18 {dimension_numbers = #tpu.dot_dimension_numbers<[1], [0], [0], [1], [0, 0, 1, 1], [], []>} : vector<256x8xbf16>, vector<8x8xbf16>, vector<256x8xf32> -> vector<256x8xf32>
    %70 = arith.addf %59, %69 : vector<256x8xf32>
    %71 = vector.extract_strided_slice %1 {offsets = [2, 0, 0], sizes = [16, 16, 8], strides = [1, 1, 1]} : vector<18x18x8xf32> to vector<16x16x8xf32>
    %72 = vector.shape_cast %71 : vector<16x16x8xf32> to vector<256x8xf32>
    %73 = arith.mulf %72, %72 : vector<256x8xf32>
    %cst_19 = arith.constant dense<0.000000e+00> : vector<256xf32>
    %74 = vector.multi_reduction <add>, %73, %cst_19 [1] : vector<256x8xf32> to vector<256xf32>
    %75 = vector.shape_cast %74 : vector<256xf32> to vector<256x1xf32>
    %76 = arith.addf %65, %75 : vector<256x1xf32>
    %77 = arith.truncf %72 : vector<256x8xf32> to vector<256x8xbf16>
    %78 = vector.extract_strided_slice %2 {offsets = [6, 0, 0], sizes = [1, 8, 8], strides = [1, 1, 1]} : vector<9x8x8xbf16> to vector<1x8x8xbf16>
    %79 = vector.shape_cast %78 : vector<1x8x8xbf16> to vector<8x8xbf16>
    %cst_20 = arith.constant dense<0.000000e+00> : vector<256x8xf32>
    %80 = tpu.matmul %77, %79, %cst_20 {dimension_numbers = #tpu.dot_dimension_numbers<[1], [0], [0], [1], [0, 0, 1, 1], [], []>} : vector<256x8xbf16>, vector<8x8xbf16>, vector<256x8xf32> -> vector<256x8xf32>
    %81 = arith.addf %70, %80 : vector<256x8xf32>
    %82 = vector.extract_strided_slice %1 {offsets = [2, 1, 0], sizes = [16, 16, 8], strides = [1, 1, 1]} : vector<18x18x8xf32> to vector<16x16x8xf32>
    %83 = vector.shape_cast %82 : vector<16x16x8xf32> to vector<256x8xf32>
    %84 = arith.mulf %83, %83 : vector<256x8xf32>
    %cst_21 = arith.constant dense<0.000000e+00> : vector<256xf32>
    %85 = vector.multi_reduction <add>, %84, %cst_21 [1] : vector<256x8xf32> to vector<256xf32>
    %86 = vector.shape_cast %85 : vector<256xf32> to vector<256x1xf32>
    %87 = arith.addf %76, %86 : vector<256x1xf32>
    %88 = arith.truncf %83 : vector<256x8xf32> to vector<256x8xbf16>
    %89 = vector.extract_strided_slice %2 {offsets = [7, 0, 0], sizes = [1, 8, 8], strides = [1, 1, 1]} : vector<9x8x8xbf16> to vector<1x8x8xbf16>
    %90 = vector.shape_cast %89 : vector<1x8x8xbf16> to vector<8x8xbf16>
    %cst_22 = arith.constant dense<0.000000e+00> : vector<256x8xf32>
    %91 = tpu.matmul %88, %90, %cst_22 {dimension_numbers = #tpu.dot_dimension_numbers<[1], [0], [0], [1], [0, 0, 1, 1], [], []>} : vector<256x8xbf16>, vector<8x8xbf16>, vector<256x8xf32> -> vector<256x8xf32>
    %92 = arith.addf %81, %91 : vector<256x8xf32>
    %93 = vector.extract_strided_slice %1 {offsets = [2, 2, 0], sizes = [16, 16, 8], strides = [1, 1, 1]} : vector<18x18x8xf32> to vector<16x16x8xf32>
    %94 = vector.shape_cast %93 : vector<16x16x8xf32> to vector<256x8xf32>
    %95 = arith.mulf %94, %94 : vector<256x8xf32>
    %cst_23 = arith.constant dense<0.000000e+00> : vector<256xf32>
    %96 = vector.multi_reduction <add>, %95, %cst_23 [1] : vector<256x8xf32> to vector<256xf32>
    %97 = vector.shape_cast %96 : vector<256xf32> to vector<256x1xf32>
    %98 = arith.addf %87, %97 : vector<256x1xf32>
    %99 = arith.truncf %94 : vector<256x8xf32> to vector<256x8xbf16>
    %100 = vector.extract_strided_slice %2 {offsets = [8, 0, 0], sizes = [1, 8, 8], strides = [1, 1, 1]} : vector<9x8x8xbf16> to vector<1x8x8xbf16>
    %101 = vector.shape_cast %100 : vector<1x8x8xbf16> to vector<8x8xbf16>
    %cst_24 = arith.constant dense<0.000000e+00> : vector<256x8xf32>
    %102 = tpu.matmul %99, %101, %cst_24 {dimension_numbers = #tpu.dot_dimension_numbers<[1], [0], [0], [1], [0, 0, 1, 1], [], []>} : vector<256x8xbf16>, vector<8x8xbf16>, vector<256x8xf32> -> vector<256x8xf32>
    %103 = arith.addf %92, %102 : vector<256x8xf32>
    %c0_25 = arith.constant 0 : index
    %c0_26 = arith.constant 0 : index
    %104 = vector.load %arg3[%c0_25, %c0_26] : memref<1x8xf32, #tpu.memory_space<vmem>>, vector<1x8xf32>
    %cst_27 = arith.constant -5.000000e-02 : f32
    %105 = vector.broadcast %cst_27 : f32 to vector<256x1xf32>
    %106 = arith.mulf %105, %98 : vector<256x1xf32>
    %107 = vector.broadcast %104 : vector<1x8xf32> to vector<256x8xf32>
    %108 = vector.broadcast %106 : vector<256x1xf32> to vector<256x8xf32>
    %109 = arith.addf %107, %108 : vector<256x8xf32>
    %110 = arith.addf %109, %103 : vector<256x8xf32>
    %cst_28 = arith.constant 0.000000e+00 : f32
    %111 = vector.broadcast %cst_28 : f32 to vector<256x8xf32>
    %112 = arith.minimumf %110, %111 : vector<256x8xf32>
    %113 = math.exp %112 : vector<256x8xf32>
    %c0_29 = arith.constant 0 : index
    %c0_30 = arith.constant 0 : index
    %c0_31 = arith.constant 0 : index
    %114 = vector.load %arg4[%c0_29, %c0_30, %c0_31] : memref<1x256x8xf32, #tpu.memory_space<vmem>>, vector<1x256x8xf32>
    %115 = vector.shape_cast %114 : vector<1x256x8xf32> to vector<256x8xf32>
    %116 = vector.shape_cast %113 : vector<256x8xf32> to vector<1x256x8xf32>
    tpu.vector_store %arg4[%c0_29, %c0_30, %c0_31], %116 {strides = array<i32>} : memref<1x256x8xf32, #tpu.memory_space<vmem>>, vector<1x256x8xf32>,
    return
  }
  func.func @transform_0(%arg0: i32) -> (i32, i32, i32, i32) {
    %c0_i32 = arith.constant 0 : i32
    %c0_i32_0 = arith.constant 0 : i32
    %c0_i32_1 = arith.constant 0 : i32
    %c0_i32_2 = arith.constant 0 : i32
    return %arg0, %c0_i32, %c0_i32_0, %c0_i32_1 : i32, i32, i32, i32
  }
  func.func @transform_1(%arg0: i32) -> (i32, i32, i32) {
    %c0_i32 = arith.constant 0 : i32
    %c0_i32_0 = arith.constant 0 : i32
    %c0_i32_1 = arith.constant 0 : i32
    %c0_i32_2 = arith.constant 0 : i32
    return %c0_i32, %c0_i32_0, %c0_i32_1 : i32, i32, i32
  }
  func.func @transform_2(%arg0: i32) -> (i32, i32) {
    %c0_i32 = arith.constant 0 : i32
    %c0_i32_0 = arith.constant 0 : i32
    %c0_i32_1 = arith.constant 0 : i32
    return %c0_i32, %c0_i32_0 : i32, i32
  }
  func.func @transform_3(%arg0: i32) -> (i32, i32, i32) {
    %c0_i32 = arith.constant 0 : i32
    %c0_i32_0 = arith.constant 0 : i32
    %c0_i32_1 = arith.constant 0 : i32
    return %arg0, %c0_i32, %c0_i32_0 : i32, i32, i32
  }
}

module attributes {stable_mosaic.version = 11 : i64} {
  func.func @_gaussian_mm_kernel(%arg0: i32, %arg1: i32, %arg2: memref<1x256x8xf32, #tpu.memory_space<vmem>>, %arg3: memref<8x32xbf16, #tpu.memory_space<vmem>>, %arg4: memref<1x32xf32, #tpu.memory_space<vmem>>, %arg5: memref<1x256x32xf32, #tpu.memory_space<vmem>>) attributes {dimension_semantics = [#tpu.dimension_semantics<parallel>, #tpu.dimension_semantics<parallel>], iteration_bounds = array<i64: 2, 1>, scalar_prefetch = 0 : i64, scratch_operands = 0 : i64, tpu.core_type = #tpu.core_type<tc>, window_params = [{transform_indices = @transform_0, window_bounds = array<i64: 1, 256, 8>}, {pipeline_mode = #tpu.pipeline_mode<synchronous>, transform_indices = @transform_1, window_bounds = array<i64: 8, 32>}, {pipeline_mode = #tpu.pipeline_mode<synchronous>, transform_indices = @transform_2, window_bounds = array<i64: 1, 32>}, {transform_indices = @transform_3, window_bounds = array<i64: 1, 256, 32>}]} {
    %c0 = arith.constant 0 : index
    %c0_0 = arith.constant 0 : index
    %c0_1 = arith.constant 0 : index
    %0 = vector.load %arg2[%c0, %c0_0, %c0_1] : memref<1x256x8xf32, #tpu.memory_space<vmem>>, vector<1x256x8xf32>
    %1 = vector.shape_cast %0 : vector<1x256x8xf32> to vector<256x8xf32>
    %2 = arith.truncf %1 : vector<256x8xf32> to vector<256x8xbf16>
    %c0_2 = arith.constant 0 : index
    %c0_3 = arith.constant 0 : index
    %3 = vector.load %arg3[%c0_2, %c0_3] : memref<8x32xbf16, #tpu.memory_space<vmem>>, vector<8x32xbf16>
    %cst = arith.constant dense<0.000000e+00> : vector<256x32xf32>
    %4 = tpu.matmul %2, %3, %cst {dimension_numbers = #tpu.dot_dimension_numbers<[1], [0], [0], [1], [0, 0, 1, 1], [], []>} : vector<256x8xbf16>, vector<8x32xbf16>, vector<256x32xf32> -> vector<256x32xf32>
    %5 = arith.mulf %1, %1 : vector<256x8xf32>
    %cst_4 = arith.constant dense<0.000000e+00> : vector<256xf32>
    %6 = vector.multi_reduction <add>, %5, %cst_4 [1] : vector<256x8xf32> to vector<256xf32>
    %7 = vector.shape_cast %6 : vector<256xf32> to vector<256x1xf32>
    %c0_5 = arith.constant 0 : index
    %c0_6 = arith.constant 0 : index
    %8 = vector.load %arg4[%c0_5, %c0_6] : memref<1x32xf32, #tpu.memory_space<vmem>>, vector<1x32xf32>
    %cst_7 = arith.constant -5.000000e-02 : f32
    %9 = vector.broadcast %cst_7 : f32 to vector<256x1xf32>
    %10 = arith.mulf %9, %7 : vector<256x1xf32>
    %11 = vector.broadcast %8 : vector<1x32xf32> to vector<256x32xf32>
    %12 = vector.broadcast %10 : vector<256x1xf32> to vector<256x32xf32>
    %13 = arith.addf %11, %12 : vector<256x32xf32>
    %14 = arith.addf %13, %4 : vector<256x32xf32>
    %cst_8 = arith.constant 0.000000e+00 : f32
    %15 = vector.broadcast %cst_8 : f32 to vector<256x32xf32>
    %16 = arith.minimumf %14, %15 : vector<256x32xf32>
    %17 = math.exp %16 : vector<256x32xf32>
    %c0_9 = arith.constant 0 : index
    %c0_10 = arith.constant 0 : index
    %c0_11 = arith.constant 0 : index
    %18 = vector.load %arg5[%c0_9, %c0_10, %c0_11] : memref<1x256x32xf32, #tpu.memory_space<vmem>>, vector<1x256x32xf32>
    %19 = vector.shape_cast %18 : vector<1x256x32xf32> to vector<256x32xf32>
    %20 = vector.shape_cast %17 : vector<256x32xf32> to vector<1x256x32xf32>
    tpu.vector_store %arg5[%c0_9, %c0_10, %c0_11], %20 {strides = array<i32>} : memref<1x256x32xf32, #tpu.memory_space<vmem>>, vector<1x256x32xf32>,
    return
  }
  func.func @transform_0(%arg0: i32, %arg1: i32) -> (i32, i32, i32) {
    %c0_i32 = arith.constant 0 : i32
    %c0_i32_0 = arith.constant 0 : i32
    return %arg0, %arg1, %c0_i32 : i32, i32, i32
  }
  func.func @transform_1(%arg0: i32, %arg1: i32) -> (i32, i32) {
    %c0_i32 = arith.constant 0 : i32
    %c0_i32_0 = arith.constant 0 : i32
    %c0_i32_1 = arith.constant 0 : i32
    return %c0_i32, %c0_i32_0 : i32, i32
  }
  func.func @transform_2(%arg0: i32, %arg1: i32) -> (i32, i32) {
    %c0_i32 = arith.constant 0 : i32
    %c0_i32_0 = arith.constant 0 : i32
    %c0_i32_1 = arith.constant 0 : i32
    return %c0_i32, %c0_i32_0 : i32, i32
  }
  func.func @transform_3(%arg0: i32, %arg1: i32) -> (i32, i32, i32) {
    %c0_i32 = arith.constant 0 : i32
    %c0_i32_0 = arith.constant 0 : i32
    return %arg0, %arg1, %c0_i32 : i32, i32, i32
  }
}

module attributes {stable_mosaic.version = 11 : i64} {
  func.func @_bn_stats_kernel(%arg0: i32, %arg1: i32, %arg2: memref<1x32x256xf32, #tpu.memory_space<vmem>>, %arg3: memref<1x32x1xf32, #tpu.memory_space<vmem>>, %arg4: memref<1x32x1xf32, #tpu.memory_space<vmem>>) attributes {dimension_semantics = [#tpu.dimension_semantics<parallel>, #tpu.dimension_semantics<arbitrary>], iteration_bounds = array<i64: 2, 1>, scalar_prefetch = 0 : i64, scratch_operands = 0 : i64, tpu.core_type = #tpu.core_type<tc>, window_params = [{transform_indices = @transform_0, window_bounds = array<i64: 1, 32, 256>}, {transform_indices = @transform_1, window_bounds = array<i64: 1, 32, 1>}, {transform_indices = @transform_2, window_bounds = array<i64: 1, 32, 1>}]} {
    %c0_i32 = arith.constant 0 : i32
    %0 = arith.cmpi eq, %arg1, %c0_i32 : i32
    %1 = arith.extui %0 : i1 to i32
    %c0_i32_0 = arith.constant 0 : i32
    %2 = arith.cmpi ne, %1, %c0_i32_0 : i32
    scf.if %2 {
      %cst_16 = arith.constant 0.000000e+00 : f32
      %22 = vector.broadcast %cst_16 : f32 to vector<32x1xf32>
      %c0_17 = arith.constant 0 : index
      %c0_18 = arith.constant 0 : index
      %c0_19 = arith.constant 0 : index
      %23 = vector.load %arg3[%c0_17, %c0_18, %c0_19] : memref<1x32x1xf32, #tpu.memory_space<vmem>>, vector<1x32x1xf32>
      %24 = vector.shape_cast %23 : vector<1x32x1xf32> to vector<32x1xf32>
      %25 = vector.shape_cast %22 : vector<32x1xf32> to vector<1x32x1xf32>
      tpu.vector_store %arg3[%c0_17, %c0_18, %c0_19], %25 {strides = array<i32>} : memref<1x32x1xf32, #tpu.memory_space<vmem>>, vector<1x32x1xf32>,
      %cst_20 = arith.constant 0.000000e+00 : f32
      %26 = vector.broadcast %cst_20 : f32 to vector<32x1xf32>
      %c0_21 = arith.constant 0 : index
      %c0_22 = arith.constant 0 : index
      %c0_23 = arith.constant 0 : index
      %27 = vector.load %arg4[%c0_21, %c0_22, %c0_23] : memref<1x32x1xf32, #tpu.memory_space<vmem>>, vector<1x32x1xf32>
      %28 = vector.shape_cast %27 : vector<1x32x1xf32> to vector<32x1xf32>
      %29 = vector.shape_cast %26 : vector<32x1xf32> to vector<1x32x1xf32>
      tpu.vector_store %arg4[%c0_21, %c0_22, %c0_23], %29 {strides = array<i32>} : memref<1x32x1xf32, #tpu.memory_space<vmem>>, vector<1x32x1xf32>,
    } else {
    }
    %c0 = arith.constant 0 : index
    %c0_1 = arith.constant 0 : index
    %c0_2 = arith.constant 0 : index
    %3 = vector.load %arg2[%c0, %c0_1, %c0_2] : memref<1x32x256xf32, #tpu.memory_space<vmem>>, vector<1x32x256xf32>
    %4 = vector.shape_cast %3 : vector<1x32x256xf32> to vector<32x256xf32>
    %c0_3 = arith.constant 0 : index
    %c0_4 = arith.constant 0 : index
    %c0_5 = arith.constant 0 : index
    %5 = vector.load %arg3[%c0_3, %c0_4, %c0_5] : memref<1x32x1xf32, #tpu.memory_space<vmem>>, vector<1x32x1xf32>
    %6 = vector.shape_cast %5 : vector<1x32x1xf32> to vector<32x1xf32>
    %cst = arith.constant dense<0.000000e+00> : vector<32xf32>
    %7 = vector.multi_reduction <add>, %4, %cst [1] : vector<32x256xf32> to vector<32xf32>
    %8 = vector.shape_cast %7 : vector<32xf32> to vector<32x1xf32>
    %9 = arith.addf %6, %8 : vector<32x1xf32>
    %c0_6 = arith.constant 0 : index
    %c0_7 = arith.constant 0 : index
    %c0_8 = arith.constant 0 : index
    %10 = vector.load %arg3[%c0_6, %c0_7, %c0_8] : memref<1x32x1xf32, #tpu.memory_space<vmem>>, vector<1x32x1xf32>
    %11 = vector.shape_cast %10 : vector<1x32x1xf32> to vector<32x1xf32>
    %12 = vector.shape_cast %9 : vector<32x1xf32> to vector<1x32x1xf32>
    tpu.vector_store %arg3[%c0_6, %c0_7, %c0_8], %12 {strides = array<i32>} : memref<1x32x1xf32, #tpu.memory_space<vmem>>, vector<1x32x1xf32>,
    %c0_9 = arith.constant 0 : index
    %c0_10 = arith.constant 0 : index
    %c0_11 = arith.constant 0 : index
    %13 = vector.load %arg4[%c0_9, %c0_10, %c0_11] : memref<1x32x1xf32, #tpu.memory_space<vmem>>, vector<1x32x1xf32>
    %14 = vector.shape_cast %13 : vector<1x32x1xf32> to vector<32x1xf32>
    %15 = arith.mulf %4, %4 : vector<32x256xf32>
    %cst_12 = arith.constant dense<0.000000e+00> : vector<32xf32>
    %16 = vector.multi_reduction <add>, %15, %cst_12 [1] : vector<32x256xf32> to vector<32xf32>
    %17 = vector.shape_cast %16 : vector<32xf32> to vector<32x1xf32>
    %18 = arith.addf %14, %17 : vector<32x1xf32>
    %c0_13 = arith.constant 0 : index
    %c0_14 = arith.constant 0 : index
    %c0_15 = arith.constant 0 : index
    %19 = vector.load %arg4[%c0_13, %c0_14, %c0_15] : memref<1x32x1xf32, #tpu.memory_space<vmem>>, vector<1x32x1xf32>
    %20 = vector.shape_cast %19 : vector<1x32x1xf32> to vector<32x1xf32>
    %21 = vector.shape_cast %18 : vector<32x1xf32> to vector<1x32x1xf32>
    tpu.vector_store %arg4[%c0_13, %c0_14, %c0_15], %21 {strides = array<i32>} : memref<1x32x1xf32, #tpu.memory_space<vmem>>, vector<1x32x1xf32>,
    return
  }
  func.func @transform_0(%arg0: i32, %arg1: i32) -> (i32, i32, i32) {
    %c0_i32 = arith.constant 0 : i32
    %c0_i32_0 = arith.constant 0 : i32
    return %arg0, %c0_i32, %arg1 : i32, i32, i32
  }
  func.func @transform_1(%arg0: i32, %arg1: i32) -> (i32, i32, i32) {
    %c0_i32 = arith.constant 0 : i32
    %c0_i32_0 = arith.constant 0 : i32
    %c0_i32_1 = arith.constant 0 : i32
    return %arg0, %c0_i32, %c0_i32_0 : i32, i32, i32
  }
  func.func @transform_2(%arg0: i32, %arg1: i32) -> (i32, i32, i32) {
    %c0_i32 = arith.constant 0 : i32
    %c0_i32_0 = arith.constant 0 : i32
    %c0_i32_1 = arith.constant 0 : i32
    return %arg0, %c0_i32, %c0_i32_0 : i32, i32, i32
  }
}

module attributes {stable_mosaic.version = 11 : i64} {
  func.func @_bn_apply_kernel(%arg0: i32, %arg1: i32, %arg2: memref<1x32x256xf32, #tpu.memory_space<vmem>>, %arg3: memref<32x1xf32, #tpu.memory_space<vmem>>, %arg4: memref<32x1xf32, #tpu.memory_space<vmem>>, %arg5: memref<1x256x32xf32, #tpu.memory_space<vmem>>) attributes {dimension_semantics = [#tpu.dimension_semantics<parallel>, #tpu.dimension_semantics<parallel>], iteration_bounds = array<i64: 2, 1>, scalar_prefetch = 0 : i64, scratch_operands = 0 : i64, tpu.core_type = #tpu.core_type<tc>, window_params = [{transform_indices = @transform_0, window_bounds = array<i64: 1, 32, 256>}, {pipeline_mode = #tpu.pipeline_mode<synchronous>, transform_indices = @transform_1, window_bounds = array<i64: 32, 1>}, {pipeline_mode = #tpu.pipeline_mode<synchronous>, transform_indices = @transform_2, window_bounds = array<i64: 32, 1>}, {transform_indices = @transform_3, window_bounds = array<i64: 1, 256, 32>}]} {
    %c0 = arith.constant 0 : index
    %c0_0 = arith.constant 0 : index
    %c0_1 = arith.constant 0 : index
    %0 = vector.load %arg2[%c0, %c0_0, %c0_1] : memref<1x32x256xf32, #tpu.memory_space<vmem>>, vector<1x32x256xf32>
    %1 = vector.shape_cast %0 : vector<1x32x256xf32> to vector<32x256xf32>
    %c0_2 = arith.constant 0 : index
    %c0_3 = arith.constant 0 : index
    %2 = vector.load %arg3[%c0_2, %c0_3] : memref<32x1xf32, #tpu.memory_space<vmem>>, vector<32x1xf32>
    %3 = vector.broadcast %2 : vector<32x1xf32> to vector<32x256xf32>
    %4 = arith.mulf %1, %3 : vector<32x256xf32>
    %c0_4 = arith.constant 0 : index
    %c0_5 = arith.constant 0 : index
    %5 = vector.load %arg4[%c0_4, %c0_5] : memref<32x1xf32, #tpu.memory_space<vmem>>, vector<32x1xf32>
    %6 = vector.broadcast %5 : vector<32x1xf32> to vector<32x256xf32>
    %7 = arith.addf %4, %6 : vector<32x256xf32>
    %8 = tpu.transpose %7, [1, 0] : vector<32x256xf32> -> vector<256x32xf32>
    %c0_6 = arith.constant 0 : index
    %c0_7 = arith.constant 0 : index
    %c0_8 = arith.constant 0 : index
    %9 = vector.load %arg5[%c0_6, %c0_7, %c0_8] : memref<1x256x32xf32, #tpu.memory_space<vmem>>, vector<1x256x32xf32>
    %10 = vector.shape_cast %9 : vector<1x256x32xf32> to vector<256x32xf32>
    %11 = vector.shape_cast %8 : vector<256x32xf32> to vector<1x256x32xf32>
    tpu.vector_store %arg5[%c0_6, %c0_7, %c0_8], %11 {strides = array<i32>} : memref<1x256x32xf32, #tpu.memory_space<vmem>>, vector<1x256x32xf32>,
    return
  }
  func.func @transform_0(%arg0: i32, %arg1: i32) -> (i32, i32, i32) {
    %c0_i32 = arith.constant 0 : i32
    %c0_i32_0 = arith.constant 0 : i32
    return %arg0, %c0_i32, %arg1 : i32, i32, i32
  }
  func.func @transform_1(%arg0: i32, %arg1: i32) -> (i32, i32) {
    %c0_i32 = arith.constant 0 : i32
    %c0_i32_0 = arith.constant 0 : i32
    %c0_i32_1 = arith.constant 0 : i32
    return %c0_i32, %c0_i32_0 : i32, i32
  }
  func.func @transform_2(%arg0: i32, %arg1: i32) -> (i32, i32) {
    %c0_i32 = arith.constant 0 : i32
    %c0_i32_0 = arith.constant 0 : i32
    %c0_i32_1 = arith.constant 0 : i32
    return %c0_i32, %c0_i32_0 : i32, i32
  }
  func.func @transform_3(%arg0: i32, %arg1: i32) -> (i32, i32, i32) {
    %c0_i32 = arith.constant 0 : i32
    %c0_i32_0 = arith.constant 0 : i32
    return %arg0, %arg1, %c0_i32 : i32, i32, i32
  }
}

module attributes {stable_mosaic.version = 11 : i64} {
  func.func @_bn_apply_kernel(%arg0: i32, %arg1: i32, %arg2: memref<1x32x256xf32, #tpu.memory_space<vmem>>, %arg3: memref<1x256x32xf32, #tpu.memory_space<vmem>>, %arg4: memref<32x1xf32, #tpu.memory_space<vmem>>, %arg5: memref<32x1xf32, #tpu.memory_space<vmem>>, %arg6: memref<1x256x32xf32, #tpu.memory_space<vmem>>) attributes {dimension_semantics = [#tpu.dimension_semantics<parallel>, #tpu.dimension_semantics<parallel>], iteration_bounds = array<i64: 2, 1>, scalar_prefetch = 0 : i64, scratch_operands = 0 : i64, tpu.core_type = #tpu.core_type<tc>, window_params = [{transform_indices = @transform_0, window_bounds = array<i64: 1, 32, 256>}, {transform_indices = @transform_1, window_bounds = array<i64: 1, 256, 32>}, {pipeline_mode = #tpu.pipeline_mode<synchronous>, transform_indices = @transform_2, window_bounds = array<i64: 32, 1>}, {pipeline_mode = #tpu.pipeline_mode<synchronous>, transform_indices = @transform_3, window_bounds = array<i64: 32, 1>}, {transform_indices = @transform_4, window_bounds = array<i64: 1, 256, 32>}]} {
    %c0 = arith.constant 0 : index
    %c0_0 = arith.constant 0 : index
    %c0_1 = arith.constant 0 : index
    %0 = vector.load %arg2[%c0, %c0_0, %c0_1] : memref<1x32x256xf32, #tpu.memory_space<vmem>>, vector<1x32x256xf32>
    %1 = vector.shape_cast %0 : vector<1x32x256xf32> to vector<32x256xf32>
    %c0_2 = arith.constant 0 : index
    %c0_3 = arith.constant 0 : index
    %2 = vector.load %arg4[%c0_2, %c0_3] : memref<32x1xf32, #tpu.memory_space<vmem>>, vector<32x1xf32>
    %3 = vector.broadcast %2 : vector<32x1xf32> to vector<32x256xf32>
    %4 = arith.mulf %1, %3 : vector<32x256xf32>
    %c0_4 = arith.constant 0 : index
    %c0_5 = arith.constant 0 : index
    %5 = vector.load %arg5[%c0_4, %c0_5] : memref<32x1xf32, #tpu.memory_space<vmem>>, vector<32x1xf32>
    %6 = vector.broadcast %5 : vector<32x1xf32> to vector<32x256xf32>
    %7 = arith.addf %4, %6 : vector<32x256xf32>
    %8 = tpu.transpose %7, [1, 0] : vector<32x256xf32> -> vector<256x32xf32>
    %c0_6 = arith.constant 0 : index
    %c0_7 = arith.constant 0 : index
    %c0_8 = arith.constant 0 : index
    %9 = vector.load %arg3[%c0_6, %c0_7, %c0_8] : memref<1x256x32xf32, #tpu.memory_space<vmem>>, vector<1x256x32xf32>
    %10 = vector.shape_cast %9 : vector<1x256x32xf32> to vector<256x32xf32>
    %11 = arith.addf %8, %10 : vector<256x32xf32>
    %cst = arith.constant 0.000000e+00 : f32
    %12 = vector.broadcast %cst : f32 to vector<256x32xf32>
    %13 = arith.maximumf %11, %12 : vector<256x32xf32>
    %c0_9 = arith.constant 0 : index
    %c0_10 = arith.constant 0 : index
    %c0_11 = arith.constant 0 : index
    %14 = vector.load %arg6[%c0_9, %c0_10, %c0_11] : memref<1x256x32xf32, #tpu.memory_space<vmem>>, vector<1x256x32xf32>
    %15 = vector.shape_cast %14 : vector<1x256x32xf32> to vector<256x32xf32>
    %16 = vector.shape_cast %13 : vector<256x32xf32> to vector<1x256x32xf32>
    tpu.vector_store %arg6[%c0_9, %c0_10, %c0_11], %16 {strides = array<i32>} : memref<1x256x32xf32, #tpu.memory_space<vmem>>, vector<1x256x32xf32>,
    return
  }
  func.func @transform_0(%arg0: i32, %arg1: i32) -> (i32, i32, i32) {
    %c0_i32 = arith.constant 0 : i32
    %c0_i32_0 = arith.constant 0 : i32
    return %arg0, %c0_i32, %arg1 : i32, i32, i32
  }
  func.func @transform_1(%arg0: i32, %arg1: i32) -> (i32, i32, i32) {
    %c0_i32 = arith.constant 0 : i32
    %c0_i32_0 = arith.constant 0 : i32
    return %arg0, %arg1, %c0_i32 : i32, i32, i32
  }
  func.func @transform_2(%arg0: i32, %arg1: i32) -> (i32, i32) {
    %c0_i32 = arith.constant 0 : i32
    %c0_i32_0 = arith.constant 0 : i32
    %c0_i32_1 = arith.constant 0 : i32
    return %c0_i32, %c0_i32_0 : i32, i32
  }
  func.func @transform_3(%arg0: i32, %arg1: i32) -> (i32, i32) {
    %c0_i32 = arith.constant 0 : i32
    %c0_i32_0 = arith.constant 0 : i32
    %c0_i32_1 = arith.constant 0 : i32
    return %c0_i32, %c0_i32_0 : i32, i32
  }
  func.func @transform_4(%arg0: i32, %arg1: i32) -> (i32, i32, i32) {
    %c0_i32 = arith.constant 0 : i32
    %c0_i32_0 = arith.constant 0 : i32
    return %arg0, %arg1, %c0_i32 : i32, i32, i32
  }
}

</mosaic_0001>

<llo_original>
// kernel: bottleneck_forward.14
$region0: #{bottleneck_forward.14}
  #allocation0 [shape = 'u32[]', space=smem, size = 0x4, offset = 0x4, fixed_abs, tag = 'smem constant byte address 0x4 - core index']
  #allocation1 [shape = 'u32[72,128]{1,0:T(1,128)}', space=vmem, size = 0x9000, scoped, tag = 'internal scratch']
  %s0 = inlined_call_operand.vmem [shape: f32[2,8,256], index: 0, kind: input, shape index: {}]
  %s1 = inlined_call_operand.vmem [shape: f32[8,1], index: 1, kind: input, shape index: {}]
  %s2 = inlined_call_operand.vmem [shape: f32[8,1], index: 2, kind: input, shape index: {}]
  %s3 = inlined_call_operand.vmem [shape: f32[2,256,8], index: 3, kind: output, shape index: {}]
  %s4 = sld [smem:[#allocation0]]
  $region45: #{bottleneck_forward.14} parent=0
    _
  %s6 = ssub.s32 1, %s4
  %s7 = scalar_select 0, %s6, %s4
  loop: start=0, step=1, limit=4
  $region2: #{bottleneck_forward.14} parent=0 // loop_pre_header
    _
  $region3: #{bottleneck_forward.14} parent=0 // loop_header
    %s9 = sphi 0, %s13
    %p10 = scmp.ge.s32.totalorder %s9, 4
    %s16 = sphi 0, %s28
    %s17 = sphi 0, %s24
    %s18 = sphi 0, %s16
    %s19 = sphi 0, %s17
    %s20 = sphi 0, %s18
    %s21 = sphi 0, %s19
    %s33 = sphi 0, %s35
    %s36 = sphi 0, %s33
    %s37 = sphi 0, %s36
    %s53 = sphi 0, %s37
    %s57 = sphi 0, %s57
    %s59 = sphi 0, %s57
    %s60 = sphi 0, %s59
    %s74 = sphi 0, %s60
    %s78 = sphi 0, %s78
    %s80 = sphi 0, %s78
    %s81 = sphi 0, %s80
    %s95 = sphi 0, %s81
    %s103 = sphi 0, %s105
    %s106 = sphi 0, %s103
    %s107 = sphi 0, %s106
    %s123 = sphi 0, %s107
  $region4: #{bottleneck_forward.14} parent=0 // loop_header_branch
    %12 = sbr.rel (%p10) target = $region8
  $region5: #{bottleneck_forward.14} parent=0 // loop_body
    %s14 = ssub.s32 %s9, 1
    %s15 = ssub.s32 %s9, 2
    %s22 = sadd.s32 1, %s17
    %p23 = scmp.ge.s32.totalorder %s22, 1
    %s24 = scalar_select %p23, 0, %s22
    %s25 = sadd.s32 1, %s16
    %s26 = scalar_select %p23, %s25, %s16
    %p27 = scmp.ge.s32.totalorder %s26, 2
    %s28 = scalar_select %p27, 0, %s26
    %s29 = ssub.s32 %s16, %s28
    %s30 = ssub.s32 %s17, %s24
    %s31 = sor.u32 %s29, %s30
    %p32 = scmp.eq.s32.totalorder %s31, 0
    %s34 = sadd.s32 %s33, 1
    %s35 = scalar_select %p32, %s33, %s34
    %p38 = pneg %p32
    %p39 = scmp.eq.s32.totalorder %s9, 1
    %p40 = por %p38, %p39
    %p41 = scmp.ne.s32.totalorder %s33, %s36
    %p42 = scmp.eq.s32.totalorder %s9, 0
    %p43 = por %p41, %p42
    %p44 = scmp.ne.s32.totalorder %s33, %s36
    %p45 = scmp.eq.s32.totalorder %s14, 1
    %p46 = por %p44, %p45
    %p47 = scmp.ne.s32.totalorder %s36, %s37
    %p48 = scmp.eq.s32.totalorder %s14, 0
    %p49 = por %p47, %p48
    %p50 = scmp.ne.s32.totalorder %s36, %s37
    %p51 = scmp.eq.s32.totalorder %s15, 1
    %p52 = por %p50, %p51
    %p54 = scmp.ne.s32.totalorder %s37, %s53
    %p55 = scmp.eq.s32.totalorder %s15, 0
    %p56 = por %p54, %p55
    %s58 = sadd.s32 %s57, 1
    %p61 = scmp.eq.s32.totalorder %s9, 1
    %p62 = scmp.ne.s32.totalorder %s57, %s59
    %p63 = scmp.eq.s32.totalorder %s9, 0
    %p64 = por %p62, %p63
    %p65 = scmp.ne.s32.totalorder %s57, %s59
    %p66 = scmp.eq.s32.totalorder %s14, 1
    %p67 = por %p65, %p66
    %p68 = scmp.ne.s32.totalorder %s59, %s60
    %p69 = scmp.eq.s32.totalorder %s14, 0
    %p70 = por %p68, %p69
    %p71 = scmp.ne.s32.totalorder %s59, %s60
    %p72 = scmp.eq.s32.totalorder %s15, 1
    %p73 = por %p71, %p72
    %p75 = scmp.ne.s32.totalorder %s60, %s74
    %p76 = scmp.eq.s32.totalorder %s15, 0
    %p77 = por %p75, %p76
    %s79 = sadd.s32 %s78, 1
    %p82 = scmp.eq.s32.totalorder %s9, 1
    %p83 = scmp.ne.s32.totalorder %s78, %s80
    %p84 = scmp.eq.s32.totalorder %s9, 0
    %p85 = por %p83, %p84
    %p86 = scmp.ne.s32.totalorder %s78, %s80
    %p87 = scmp.eq.s32.totalorder %s14, 1
    %p88 = por %p86, %p87
    %p89 = scmp.ne.s32.totalorder %s80, %s81
    %p90 = scmp.eq.s32.totalorder %s14, 0
    %p91 = por %p89, %p90
    %p92 = scmp.ne.s32.totalorder %s80, %s81
    %p93 = scmp.eq.s32.totalorder %s15, 1
    %p94 = por %p92, %p93
    %p96 = scmp.ne.s32.totalorder %s81, %s95
    %p97 = scmp.eq.s32.totalorder %s15, 0
    %p98 = por %p96, %p97
    %s99 = ssub.s32 %s16, %s28
    %s100 = ssub.s32 %s17, %s24
    %s101 = sor.u32 %s99, %s100
    %p102 = scmp.eq.s32.totalorder %s101, 0
    %s104 = sadd.s32 %s103, 1
    %s105 = scalar_select %p102, %s103, %s104
    %p108 = pneg %p102
    %p109 = scmp.eq.s32.totalorder %s9, 1
    %p110 = por %p108, %p109
    %p111 = scmp.ne.s32.totalorder %s103, %s106
    %p112 = scmp.eq.s32.totalorder %s9, 0
    %p113 = por %p111, %p112
    %p114 = scmp.ne.s32.totalorder %s103, %s106
    %p115 = scmp.eq.s32.totalorder %s14, 1
    %p116 = por %p114, %p115
    %p117 = scmp.ne.s32.totalorder %s106, %s107
    %p118 = scmp.eq.s32.totalorder %s14, 0
    %p119 = por %p117, %p118
    %p120 = scmp.ne.s32.totalorder %s106, %s107
    %p121 = scmp.eq.s32.totalorder %s15, 1
    %p122 = por %p120, %p121
    %p124 = scmp.ne.s32.totalorder %s107, %s123
    %p125 = scmp.eq.s32.totalorder %s15, 0
    %p126 = por %p124, %p125
    %p127 = scmp.le.s32.totalorder 1, %s9
    %p128 = scmp.lt.s32.totalorder %s9, 3
    %p129 = pnand %p127, %p128
    %p130 = pneg %p129
    // Predicated region
    $region9: #{bottleneck_forward.14} parent=5 // pred_check
      _
    $region10: #{bottleneck_forward.14} parent=5 // pred_check_branch
      %132 = sbr.rel (%p129) target = $region12
    $region11: #{bottleneck_forward.14} parent=5 // pred_region
      %s133 = ssub.s32 %s9, 1
      // Predicated region
      $region13: #{bottleneck_forward.14} parent=11 // pred_check
        %p134 = pneg %p70
      $region14: #{bottleneck_forward.14} parent=11 // pred_check_branch
        %136 = sbr.rel (%p134) target = $region16
      $region15: #{bottleneck_forward.14} parent=11 // pred_region
        _
      $region16: #{bottleneck_forward.14} parent=11 // pred_fallthru
        _
      // Predicated region
      $region17: #{bottleneck_forward.14} parent=11 // pred_check
        %p137 = pneg %p91
      $region18: #{bottleneck_forward.14} parent=11 // pred_check_branch
        %139 = sbr.rel (%p137) target = $region20
      $region19: #{bottleneck_forward.14} parent=11 // pred_region
        _
      $region20: #{bottleneck_forward.14} parent=11 // pred_fallthru
        _
    $region12: #{bottleneck_forward.14} parent=5 // pred_fallthru
      _
    %p140 = scmp.lt.s32.totalorder %s9, 2
    // Predicated region
    $region21: #{bottleneck_forward.14} parent=5 // pred_check
      %p141 = pneg %p140
    $region22: #{bottleneck_forward.14} parent=5 // pred_check_branch
      %143 = sbr.rel (%p141) target = $region24
    $region23: #{bottleneck_forward.14} parent=5 // pred_region
      // Predicated region
      $region25: #{bottleneck_forward.14} parent=23 // pred_check
        %p144 = pneg %p43
      $region26: #{bottleneck_forward.14} parent=23 // pred_check_branch
        %146 = sbr.rel (%p144) target = $region28
      $region27: #{bottleneck_forward.14} parent=23 // pred_region
        %s147 = smul.u32 2, %s17
        %p148 = scmp.lt.s32.totalorder %s16, 1
        %s149 = scalar_select %p148, %s16, 1
        %p150 = scmp.lt.s32.totalorder %s147, 1
        %s151 = scalar_select %p150, %s147, 1
        %s152 = smul.addr %s149, 2
        %s153 = sadd.s32 %s151, %s152
        %s154 = smul.addr %s153, 8
        %s155 = scalar_lea.vmem %s0, %s154
        %s156 = smul.u32 2, %s17
      $region28: #{bottleneck_forward.14} parent=23 // pred_fallthru
        _
    $region24: #{bottleneck_forward.14} parent=5 // pred_fallthru
      _
    %p157 = scmp.le.s32.totalorder 1, %s9
    %p158 = scmp.lt.s32.totalorder %s9, 3
    %p159 = pnand %p157, %p158
    %p160 = pneg %p159
    // Predicated region
    $region29: #{bottleneck_forward.14} parent=5 // pred_check
      _
    $region30: #{bottleneck_forward.14} parent=5 // pred_check_branch
      %162 = sbr.rel (%p159) target = $region32
    $region31: #{bottleneck_forward.14} parent=5 // pred_region
      %s163 = ssub.s32 %s9, 1
      %s164 = smul.u32 2, %s19
      %p165 = scmp.lt.s32.totalorder %s18, 1
      %s166 = scalar_select %p165, %s18, 1
      %p167 = scmp.lt.s32.totalorder %s164, 1
      %s168 = scalar_select %p167, %s164, 1
      %s169 = smul.addr %s166, 2
      %s170 = sadd.s32 %s168, %s169
      %s171 = smul.addr %s170, 8
      %s172 = scalar_lea.vmem %s0, %s171
      %p173 = pneg %p49
      %p174 = pneg %p46
      %p175 = pneg %p70
      %p176 = pneg %p67
      %p177 = pneg %p91
      %p178 = pneg %p88
      %p179 = pneg %p119
      %p180 = pneg %p116
      %s181 = smul.u32 32, %s19
      %p182 = scmp.lt.s32.totalorder %s18, 1
      %s183 = scalar_select %p182, %s18, 1
      %p184 = scmp.lt.s32.totalorder %s181, 31
      %s185 = scalar_select %p184, %s181, 31
      %s186 = smul.addr %s183, 32
      %s187 = sadd.s32 %s185, %s186
      %s188 = smul.addr %s187, 8
      %s189 = scalar_lea.vmem %s3, %s188
      %s190 = smul.u32 2, %s19
      %p191 = scmp.lt.s32.totalorder %s18, 1
      %s192 = scalar_select %p191, %s18, 1
      %p193 = scmp.lt.s32.totalorder %s190, 1
      %s194 = scalar_select %p193, %s190, 1
      %s195 = smul.addr %s192, 2
      %s196 = sadd.s32 %s194, %s195
      %s197 = smul.addr %s196, 8
      %s198 = scalar_lea.vmem %s0, %s197
      %s199 = smul.u32 2, %s19
      %s200 = smul.u32 32, %s19
      %p201 = scmp.lt.s32.totalorder %s18, 1
      %s202 = scalar_select %p201, %s18, 1
      %p203 = scmp.lt.s32.totalorder %s200, 31
      %s204 = scalar_select %p203, %s200, 31
      %s205 = smul.addr %s202, 32
      %s206 = sadd.s32 %s204, %s205
      %s207 = smul.addr %s206, 8
      %s208 = scalar_lea.vmem %s3, %s207
      %s209 = smul.u32 32, %s19
      %v210 = vld [vmem:[%s198] sm:$0xff]
      %v211 = vld [vmem:[%s198 + $0x8] sm:$0xff]
      %v212 = vld [vmem:[%s1] sm:$0xff]
      %214 = vset.pattern.permute.xlu0 0
      %215 = vperm.xlu0 %214, %v212
      %v216 = vpop.permute.xlu0 %215
      %v218 = vmul.f32 %v210, %v216
      %v219 = vmul.f32 %v211, %v216
      %v220 = vld [vmem:[%s2] sm:$0xff]
      %222 = vset.pattern.permute.xlu0 0
      %223 = vperm.xlu0 %222, %v220
      %v224 = vpop.permute.xlu0 %223
      %v226 = vadd.f32 %v218, %v224
      %v227 = vadd.f32 %v219, %v224
      %228 = vxpose.xlu0.b32.start [1/16] %v226, 128
      %229 = vxpose.xlu0.b32.cont [2/16] 0.0, 128
      %230 = vxpose.xlu0.b32.cont [3/16] 0.0, 128
      %231 = vxpose.xlu0.b32.cont [4/16] 0.0, 128
      %232 = vxpose.xlu0.b32.cont [5/16] 0.0, 128
      %233 = vxpose.xlu0.b32.cont [6/16] 0.0, 128
      %234 = vxpose.xlu0.b32.cont [7/16] 0.0, 128
      %235 = vxpose.xlu0.b32.cont [8/16] 0.0, 128
      %236 = vxpose.xlu0.b32.cont [9/16] 0.0, 128
      %237 = vxpose.xlu0.b32.cont [10/16] 0.0, 128
      %238 = vxpose.xlu0.b32.cont [11/16] 0.0, 128
      %239 = vxpose.xlu0.b32.cont [12/16] 0.0, 128
      %240 = vxpose.xlu0.b32.cont [13/16] 0.0, 128
      %241 = vxpose.xlu0.b32.cont [14/16] 0.0, 128
      %242 = vxpose.xlu0.b32.cont [15/16] 0.0, 128
      %243 = vxpose.xlu0.b32.end [16/16] 0.0, 128
      %v244 = vpop.trf.xlu0
      %v245 = vpop.trf.xlu0
      %v246 = vpop.trf.xlu0
      %v247 = vpop.trf.xlu0
      %v248 = vpop.trf.xlu0
      %v249 = vpop.trf.xlu0
      %v250 = vpop.trf.xlu0
      %v251 = vpop.trf.xlu0
      %v252 = vpop.trf.xlu0
      %v253 = vpop.trf.xlu0
      %v254 = vpop.trf.xlu0
      %v255 = vpop.trf.xlu0
      %v256 = vpop.trf.xlu0
      %v257 = vpop.trf.xlu0
      %v258 = vpop.trf.xlu0
      %v259 = vpop.trf.xlu0
      %260 = vxpose.xlu0.b32.start [1/16] %v227, 128
      %261 = vxpose.xlu0.b32.cont [2/16] 0.0, 128
      %262 = vxpose.xlu0.b32.cont [3/16] 0.0, 128
      %263 = vxpose.xlu0.b32.cont [4/16] 0.0, 128
      %264 = vxpose.xlu0.b32.cont [5/16] 0.0, 128
      %265 = vxpose.xlu0.b32.cont [6/16] 0.0, 128
      %266 = vxpose.xlu0.b32.cont [7/16] 0.0, 128
      %267 = vxpose.xlu0.b32.cont [8/16] 0.0, 128
      %268 = vxpose.xlu0.b32.cont [9/16] 0.0, 128
      %269 = vxpose.xlu0.b32.cont [10/16] 0.0, 128
      %270 = vxpose.xlu0.b32.cont [11/16] 0.0, 128
      %271 = vxpose.xlu0.b32.cont [12/16] 0.0, 128
      %272 = vxpose.xlu0.b32.cont [13/16] 0.0, 128
      %273 = vxpose.xlu0.b32.cont [14/16] 0.0, 128
      %274 = vxpose.xlu0.b32.cont [15/16] 0.0, 128
      %275 = vxpose.xlu0.b32.end [16/16] 0.0, 128
      %v276 = vpop.trf.xlu0
      %v277 = vpop.trf.xlu0
      %v278 = vpop.trf.xlu0
      %v279 = vpop.trf.xlu0
      %v280 = vpop.trf.xlu0
      %v281 = vpop.trf.xlu0
      %v282 = vpop.trf.xlu0
      %v283 = vpop.trf.xlu0
      %v284 = vpop.trf.xlu0
      %v285 = vpop.trf.xlu0
      %v286 = vpop.trf.xlu0
      %v287 = vpop.trf.xlu0
      %v288 = vpop.trf.xlu0
      %v289 = vpop.trf.xlu0
      %v290 = vpop.trf.xlu0
      %v291 = vpop.trf.xlu0
      %v292 = vmax.f32 %v244, 0.0
      %v293 = vmax.f32 %v245, 0.0
      %v294 = vmax.f32 %v246, 0.0
      %v295 = vmax.f32 %v247, 0.0
      %v296 = vmax.f32 %v248, 0.0
      %v297 = vmax.f32 %v249, 0.0
      %v298 = vmax.f32 %v250, 0.0
      %v299 = vmax.f32 %v251, 0.0
      %v300 = vmax.f32 %v252, 0.0
      %v301 = vmax.f32 %v253, 0.0
      %v302 = vmax.f32 %v254, 0.0
      %v303 = vmax.f32 %v255, 0.0
      %v304 = vmax.f32 %v256, 0.0
      %v305 = vmax.f32 %v257, 0.0
      %v306 = vmax.f32 %v258, 0.0
      %v307 = vmax.f32 %v259, 0.0
      %v308 = vmax.f32 %v276, 0.0
      %v309 = vmax.f32 %v277, 0.0
      %v310 = vmax.f32 %v278, 0.0
      %v311 = vmax.f32 %v279, 0.0
      %v312 = vmax.f32 %v280, 0.0
      %v313 = vmax.f32 %v281, 0.0
      %v314 = vmax.f32 %v282, 0.0
      %v315 = vmax.f32 %v283, 0.0
      %v316 = vmax.f32 %v284, 0.0
      %v317 = vmax.f32 %v285, 0.0
      %v318 = vmax.f32 %v286, 0.0
      %v319 = vmax.f32 %v287, 0.0
      %v320 = vmax.f32 %v288, 0.0
      %v321 = vmax.f32 %v289, 0.0
      %v322 = vmax.f32 %v290, 0.0
      %v323 = vmax.f32 %v291, 0.0
      %vm324 = vcmask 64512
      %325 = vst.msk [vmem:[%s208] sm:$0xff] %vm324, %v292
      %326 = vst.msk [vmem:[%s208 + $0x8] sm:$0xff] %vm324, %v293
      %327 = vst.msk [vmem:[%s208 + $0x10] sm:$0xff] %vm324, %v294
      %328 = vst.msk [vmem:[%s208 + $0x18] sm:$0xff] %vm324, %v295
      %329 = vst.msk [vmem:[%s208 + $0x20] sm:$0xff] %vm324, %v296
      %330 = vst.msk [vmem:[%s208 + $0x28] sm:$0xff] %vm324, %v297
      %331 = vst.msk [vmem:[%s208 + $0x30] sm:$0xff] %vm324, %v298
      %332 = vst.msk [vmem:[%s208 + $0x38] sm:$0xff] %vm324, %v299
      %333 = vst.msk [vmem:[%s208 + $0x40] sm:$0xff] %vm324, %v300
      %334 = vst.msk [vmem:[%s208 + $0x48] sm:$0xff] %vm324, %v301
      %335 = vst.msk [vmem:[%s208 + $0x50] sm:$0xff] %vm324, %v302
      %336 = vst.msk [vmem:[%s208 + $0x58] sm:$0xff] %vm324, %v303
      %337 = vst.msk [vmem:[%s208 + $0x60] sm:$0xff] %vm324, %v304
      %338 = vst.msk [vmem:[%s208 + $0x68] sm:$0xff] %vm324, %v305
      %339 = vst.msk [vmem:[%s208 + $0x70] sm:$0xff] %vm324, %v306
      %340 = vst.msk [vmem:[%s208 + $0x78] sm:$0xff] %vm324, %v307
      %341 = vst.msk [vmem:[%s208 + $0x80] sm:$0xff] %vm324, %v308
      %342 = vst.msk [vmem:[%s208 + $0x88] sm:$0xff] %vm324, %v309
      %343 = vst.msk [vmem:[%s208 + $0x90] sm:$0xff] %vm324, %v310
      %344 = vst.msk [vmem:[%s208 + $0x98] sm:$0xff] %vm324, %v311
      %345 = vst.msk [vmem:[%s208 + $0xa0] sm:$0xff] %vm324, %v312
      %346 = vst.msk [vmem:[%s208 + $0xa8] sm:$0xff] %vm324, %v313
      %347 = vst.msk [vmem:[%s208 + $0xb0] sm:$0xff] %vm324, %v314
      %348 = vst.msk [vmem:[%s208 + $0xb8] sm:$0xff] %vm324, %v315
      %349 = vst.msk [vmem:[%s208 + $0xc0] sm:$0xff] %vm324, %v316
      %350 = vst.msk [vmem:[%s208 + $0xc8] sm:$0xff] %vm324, %v317
      %351 = vst.msk [vmem:[%s208 + $0xd0] sm:$0xff] %vm324, %v318
      %352 = vst.msk [vmem:[%s208 + $0xd8] sm:$0xff] %vm324, %v319
      %353 = vst.msk [vmem:[%s208 + $0xe0] sm:$0xff] %vm324, %v320
      %354 = vst.msk [vmem:[%s208 + $0xe8] sm:$0xff] %vm324, %v321
      %355 = vst.msk [vmem:[%s208 + $0xf0] sm:$0xff] %vm324, %v322
      %356 = vst.msk [vmem:[%s208 + $0xf8] sm:$0xff] %vm324, %v323
      %s357 = smul.u32 32, %s19
      %p358 = scmp.lt.s32.totalorder %s18, 1
      %s359 = scalar_select %p358, %s18, 1
      %p360 = scmp.lt.s32.totalorder %s357, 31
      %s361 = scalar_select %p360, %s357, 31
      %s362 = smul.addr %s359, 32
      %s363 = sadd.s32 %s361, %s362
      %s364 = smul.addr %s363, 8
      %s365 = scalar_lea.vmem %s3, %s364
      // Predicated region
      $region33: #{bottleneck_forward.14} parent=31 // pred_check
        %p366 = pneg %p116
      $region34: #{bottleneck_forward.14} parent=31 // pred_check_branch
        %368 = sbr.rel (%p366) target = $region36
      $region35: #{bottleneck_forward.14} parent=31 // pred_region
        %s369 = smul.u32 32, %s19
      $region36: #{bottleneck_forward.14} parent=31 // pred_fallthru
        _
    $region32: #{bottleneck_forward.14} parent=5 // pred_fallthru
      _
    %p370 = scmp.le.s32.totalorder 2, %s9
    // Predicated region
    $region37: #{bottleneck_forward.14} parent=5 // pred_check
      %p371 = pneg %p370
    $region38: #{bottleneck_forward.14} parent=5 // pred_check_branch
      %373 = sbr.rel (%p371) target = $region40
    $region39: #{bottleneck_forward.14} parent=5 // pred_region
      %s374 = ssub.s32 %s9, 2
      // Predicated region
      $region41: #{bottleneck_forward.14} parent=39 // pred_check
        %p375 = pneg %p122
      $region42: #{bottleneck_forward.14} parent=39 // pred_check_branch
        %377 = sbr.rel (%p375) target = $region44
      $region43: #{bottleneck_forward.14} parent=39 // pred_region
        %s378 = smul.u32 32, %s21
        %p379 = scmp.lt.s32.totalorder %s20, 1
        %s380 = scalar_select %p379, %s20, 1
        %p381 = scmp.lt.s32.totalorder %s378, 31
        %s382 = scalar_select %p381, %s378, 31
        %s383 = smul.addr %s380, 32
        %s384 = sadd.s32 %s382, %s383
        %s385 = smul.addr %s384, 8
        %s386 = scalar_lea.vmem %s3, %s385
      $region44: #{bottleneck_forward.14} parent=39 // pred_fallthru
        _
    $region40: #{bottleneck_forward.14} parent=5 // pred_fallthru
      _
  $region6: #{bottleneck_forward.14} parent=0 // loop_footer
    %s13 = sadd.s32 1, %s9
  $region7: #{bottleneck_forward.14} parent=0 // loop_footer_branch
    %8 = sbr.rel target = $region3
  $region8: #{bottleneck_forward.14} parent=0 // loop_exit
    _

// kernel: bottleneck_forward.13
$region0: #{bottleneck_forward.13}
  #allocation0 [shape = 'u32[]', space=smem, size = 0x4, offset = 0x4, fixed_abs, tag = 'smem constant byte address 0x4 - core index']
  #allocation1 [shape = 'u32[72,128]{1,0:T(1,128)}', space=vmem, size = 0x9000, scoped, tag = 'internal scratch']
  %s0 = inlined_call_operand.vmem [shape: f32[2,8,256], index: 0, kind: input, shape index: {}]
  %s1 = inlined_call_operand.vmem [shape: f32[2,8,1], index: 1, kind: output, shape index: {0}]
  %s2 = inlined_call_operand.vmem [shape: f32[2,8,1], index: 2, kind: output, shape index: {1}]
  %3 = xla_tuple %s1, %s2
  %s4 = sld [smem:[#allocation0]]
  $region49: #{bottleneck_forward.13} parent=0
    _
  %s6 = ssub.s32 1, %s4
  %s7 = scalar_select 0, %s6, %s4
  loop: start=0, step=1, limit=4
  $region2: #{bottleneck_forward.13} parent=0 // loop_pre_header
    _
  $region3: #{bottleneck_forward.13} parent=0 // loop_header
    %s9 = sphi 0, %s13
    %p10 = scmp.ge.s32.totalorder %s9, 4
    %s16 = sphi 0, %s28
    %s17 = sphi 0, %s24
    %s18 = sphi 0, %s16
    %s19 = sphi 0, %s17
    %s20 = sphi 0, %s18
    %s21 = sphi 0, %s19
    %s33 = sphi 0, %s35
    %s36 = sphi 0, %s33
    %s37 = sphi 0, %s36
    %s53 = sphi 0, %s37
    %s59 = sphi 0, %s61
    %s62 = sphi 0, %s59
    %s63 = sphi 0, %s62
    %s79 = sphi 0, %s63
    %s85 = sphi 0, %s87
    %s88 = sphi 0, %s85
    %s89 = sphi 0, %s88
    %s105 = sphi 0, %s89
  $region4: #{bottleneck_forward.13} parent=0 // loop_header_branch
    %12 = sbr.rel (%p10) target = $region8
  $region5: #{bottleneck_forward.13} parent=0 // loop_body
    %s14 = ssub.s32 %s9, 1
    %s15 = ssub.s32 %s9, 2
    %s22 = sadd.s32 1, %s17
    %p23 = scmp.ge.s32.totalorder %s22, 1
    %s24 = scalar_select %p23, 0, %s22
    %s25 = sadd.s32 1, %s16
    %s26 = scalar_select %p23, %s25, %s16
    %p27 = scmp.ge.s32.totalorder %s26, 2
    %s28 = scalar_select %p27, 0, %s26
    %s29 = ssub.s32 %s16, %s28
    %s30 = ssub.s32 %s17, %s24
    %s31 = sor.u32 %s29, %s30
    %p32 = scmp.eq.s32.totalorder %s31, 0
    %s34 = sadd.s32 %s33, 1
    %s35 = scalar_select %p32, %s33, %s34
    %p38 = pneg %p32
    %p39 = scmp.eq.s32.totalorder %s9, 1
    %p40 = por %p38, %p39
    %p41 = scmp.ne.s32.totalorder %s33, %s36
    %p42 = scmp.eq.s32.totalorder %s9, 0
    %p43 = por %p41, %p42
    %p44 = scmp.ne.s32.totalorder %s33, %s36
    %p45 = scmp.eq.s32.totalorder %s14, 1
    %p46 = por %p44, %p45
    %p47 = scmp.ne.s32.totalorder %s36, %s37
    %p48 = scmp.eq.s32.totalorder %s14, 0
    %p49 = por %p47, %p48
    %p50 = scmp.ne.s32.totalorder %s36, %s37
    %p51 = scmp.eq.s32.totalorder %s15, 1
    %p52 = por %p50, %p51
    %p54 = scmp.ne.s32.totalorder %s37, %s53
    %p55 = scmp.eq.s32.totalorder %s15, 0
    %p56 = por %p54, %p55
    %s57 = ssub.s32 %s16, %s28
    %p58 = scmp.eq.s32.totalorder %s57, 0
    %s60 = sadd.s32 %s59, 1
    %s61 = scalar_select %p58, %s59, %s60
    %p64 = pneg %p58
    %p65 = scmp.eq.s32.totalorder %s9, 1
    %p66 = por %p64, %p65
    %p67 = scmp.ne.s32.totalorder %s59, %s62
    %p68 = scmp.eq.s32.totalorder %s9, 0
    %p69 = por %p67, %p68
    %p70 = scmp.ne.s32.totalorder %s59, %s62
    %p71 = scmp.eq.s32.totalorder %s14, 1
    %p72 = por %p70, %p71
    %p73 = scmp.ne.s32.totalorder %s62, %s63
    %p74 = scmp.eq.s32.totalorder %s14, 0
    %p75 = por %p73, %p74
    %p76 = scmp.ne.s32.totalorder %s62, %s63
    %p77 = scmp.eq.s32.totalorder %s15, 1
    %p78 = por %p76, %p77
    %p80 = scmp.ne.s32.totalorder %s63, %s79
    %p81 = scmp.eq.s32.totalorder %s15, 0
    %p82 = por %p80, %p81
    %s83 = ssub.s32 %s16, %s28
    %p84 = scmp.eq.s32.totalorder %s83, 0
    %s86 = sadd.s32 %s85, 1
    %s87 = scalar_select %p84, %s85, %s86
    %p90 = pneg %p84
    %p91 = scmp.eq.s32.totalorder %s9, 1
    %p92 = por %p90, %p91
    %p93 = scmp.ne.s32.totalorder %s85, %s88
    %p94 = scmp.eq.s32.totalorder %s9, 0
    %p95 = por %p93, %p94
    %p96 = scmp.ne.s32.totalorder %s85, %s88
    %p97 = scmp.eq.s32.totalorder %s14, 1
    %p98 = por %p96, %p97
    %p99 = scmp.ne.s32.totalorder %s88, %s89
    %p100 = scmp.eq.s32.totalorder %s14, 0
    %p101 = por %p99, %p100
    %p102 = scmp.ne.s32.totalorder %s88, %s89
    %p103 = scmp.eq.s32.totalorder %s15, 1
    %p104 = por %p102, %p103
    %p106 = scmp.ne.s32.totalorder %s89, %s105
    %p107 = scmp.eq.s32.totalorder %s15, 0
    %p108 = por %p106, %p107
    %p109 = scmp.le.s32.totalorder 1, %s9
    %p110 = scmp.lt.s32.totalorder %s9, 3
    %p111 = pnand %p109, %p110
    %p112 = pneg %p111
    // Predicated region
    $region9: #{bottleneck_forward.13} parent=5 // pred_check
      _
    $region10: #{bottleneck_forward.13} parent=5 // pred_check_branch
      %114 = sbr.rel (%p111) target = $region12
    $region11: #{bottleneck_forward.13} parent=5 // pred_region
      %s115 = ssub.s32 %s9, 1
    $region12: #{bottleneck_forward.13} parent=5 // pred_fallthru
      _
    %p116 = scmp.lt.s32.totalorder %s9, 2
    // Predicated region
    $region13: #{bottleneck_forward.13} parent=5 // pred_check
      %p117 = pneg %p116
    $region14: #{bottleneck_forward.13} parent=5 // pred_check_branch
      %119 = sbr.rel (%p117) target = $region16
    $region15: #{bottleneck_forward.13} parent=5 // pred_region
      // Predicated region
      $region17: #{bottleneck_forward.13} parent=15 // pred_check
        %p120 = pneg %p43
      $region18: #{bottleneck_forward.13} parent=15 // pred_check_branch
        %122 = sbr.rel (%p120) target = $region20
      $region19: #{bottleneck_forward.13} parent=15 // pred_region
        %s123 = smul.u32 2, %s17
        %p124 = scmp.lt.s32.totalorder %s16, 1
        %s125 = scalar_select %p124, %s16, 1
        %p126 = scmp.lt.s32.totalorder %s123, 1
        %s127 = scalar_select %p126, %s123, 1
        %s128 = smul.addr %s125, 2
        %s129 = sadd.s32 %s127, %s128
        %s130 = smul.addr %s129, 8
        %s131 = scalar_lea.vmem %s0, %s130
        %s132 = smul.u32 2, %s17
      $region20: #{bottleneck_forward.13} parent=15 // pred_fallthru
        _
    $region16: #{bottleneck_forward.13} parent=5 // pred_fallthru
      _
    %p133 = scmp.le.s32.totalorder 1, %s9
    %p134 = scmp.lt.s32.totalorder %s9, 3
    %p135 = pnand %p133, %p134
    %p136 = pneg %p135
    // Predicated region
    $region21: #{bottleneck_forward.13} parent=5 // pred_check
      _
    $region22: #{bottleneck_forward.13} parent=5 // pred_check_branch
      %138 = sbr.rel (%p135) target = $region24
    $region23: #{bottleneck_forward.13} parent=5 // pred_region
      %s139 = ssub.s32 %s9, 1
      %s140 = smul.u32 2, %s19
      %p141 = scmp.lt.s32.totalorder %s18, 1
      %s142 = scalar_select %p141, %s18, 1
      %p143 = scmp.lt.s32.totalorder %s140, 1
      %s144 = scalar_select %p143, %s140, 1
      %s145 = smul.addr %s142, 2
      %s146 = sadd.s32 %s144, %s145
      %s147 = smul.addr %s146, 8
      %s148 = scalar_lea.vmem %s0, %s147
      %p149 = pneg %p49
      %p150 = pneg %p46
      %p151 = pneg %p75
      %p152 = pneg %p72
      %p153 = scmp.lt.s32.totalorder %s18, 1
      %s154 = scalar_select %p153, %s18, 1
      %s155 = smul.addr %s154, 8
      %s156 = scalar_lea.vmem %s1, %s155
      %p157 = pneg %p101
      %p158 = pneg %p98
      %p159 = scmp.lt.s32.totalorder %s18, 1
      %s160 = scalar_select %p159, %s18, 1
      %s161 = smul.addr %s160, 8
      %s162 = scalar_lea.vmem %s2, %s161
      %s163 = smul.u32 2, %s19
      %p164 = scmp.lt.s32.totalorder %s18, 1
      %s165 = scalar_select %p164, %s18, 1
      %p166 = scmp.lt.s32.totalorder %s163, 1
      %s167 = scalar_select %p166, %s163, 1
      %s168 = smul.addr %s165, 2
      %s169 = sadd.s32 %s167, %s168
      %s170 = smul.addr %s169, 8
      %s171 = scalar_lea.vmem %s0, %s170
      %s172 = smul.u32 2, %s19
      %p173 = scmp.lt.s32.totalorder %s18, 1
      %s174 = scalar_select %p173, %s18, 1
      %s175 = smul.addr %s174, 8
      %s176 = scalar_lea.vmem %s1, %s175
      %p177 = scmp.lt.s32.totalorder %s18, 1
      %s178 = scalar_select %p177, %s18, 1
      %s179 = smul.addr %s178, 8
      %s180 = scalar_lea.vmem %s2, %s179
      %p181 = scmp.eq.s32.totalorder %s19, 0
      // Predicated region
      $region25: #{bottleneck_forward.13} parent=23 // pred_check
        %p182 = pneg %p181
      $region26: #{bottleneck_forward.13} parent=23 // pred_check_branch
        %184 = sbr.rel (%p182) target = $region28
      $region27: #{bottleneck_forward.13} parent=23 // pred_region
        %vm185 = vcmask 7168
        %186 = vst.msk [vmem:[%s176] sm:$0xff] %vm185, 0.0
        %187 = vst.msk [vmem:[%s180] sm:$0xff] %vm185, 0.0
      $region28: #{bottleneck_forward.13} parent=23 // pred_fallthru
        _
      %v188 = vld [vmem:[%s171] sm:$0xff]
      %v189 = vld [vmem:[%s171 + $0x8] sm:$0xff]
      %v190 = vld [vmem:[%s176] sm:$0xff]
      %v191 = vadd.f32 %v188, %v189
      %192 = vadd.xlane.f32.xlu0 %v191
      %v193 = vpop.xlane.xlu0 %192
      %v194 = vadd.f32 %v190, %v193
      %vm195 = vcmask 7168
      %196 = vst.msk [vmem:[%s176] sm:$0xff] %vm195, %v194
      %v197 = vld [vmem:[%s180] sm:$0xff]
      %v198 = vmul.f32 %v188, %v188
      %v199 = vmul.f32 %v189, %v189
      %v200 = vadd.f32 %v198, %v199
      %201 = vadd.xlane.f32.xlu0 %v200
      %v202 = vpop.xlane.xlu0 %201
      %v203 = vadd.f32 %v197, %v202
      %204 = vst.msk [vmem:[%s180] sm:$0xff] %vm195, %v203
      %p205 = scmp.lt.s32.totalorder %s18, 1
      %s206 = scalar_select %p205, %s18, 1
      %s207 = smul.addr %s206, 8
      %s208 = scalar_lea.vmem %s1, %s207
      %p209 = scmp.lt.s32.totalorder %s18, 1
      %s210 = scalar_select %p209, %s18, 1
      %s211 = smul.addr %s210, 8
      %s212 = scalar_lea.vmem %s2, %s211
      // Predicated region
      $region29: #{bottleneck_forward.13} parent=23 // pred_check
        %p213 = pneg %p72
      $region30: #{bottleneck_forward.13} parent=23 // pred_check_branch
        %215 = sbr.rel (%p213) target = $region32
      $region31: #{bottleneck_forward.13} parent=23 // pred_region
        _
      $region32: #{bottleneck_forward.13} parent=23 // pred_fallthru
        _
      // Predicated region
      $region33: #{bottleneck_forward.13} parent=23 // pred_check
        %p216 = pneg %p98
      $region34: #{bottleneck_forward.13} parent=23 // pred_check_branch
        %218 = sbr.rel (%p216) target = $region36
      $region35: #{bottleneck_forward.13} parent=23 // pred_region
        _
      $region36: #{bottleneck_forward.13} parent=23 // pred_fallthru
        _
    $region24: #{bottleneck_forward.13} parent=5 // pred_fallthru
      _
    %p219 = scmp.le.s32.totalorder 2, %s9
    // Predicated region
    $region37: #{bottleneck_forward.13} parent=5 // pred_check
      %p220 = pneg %p219
    $region38: #{bottleneck_forward.13} parent=5 // pred_check_branch
      %222 = sbr.rel (%p220) target = $region40
    $region39: #{bottleneck_forward.13} parent=5 // pred_region
      %s223 = ssub.s32 %s9, 2
      // Predicated region
      $region41: #{bottleneck_forward.13} parent=39 // pred_check
        %p224 = pneg %p78
      $region42: #{bottleneck_forward.13} parent=39 // pred_check_branch
        %226 = sbr.rel (%p224) target = $region44
      $region43: #{bottleneck_forward.13} parent=39 // pred_region
        %p227 = scmp.lt.s32.totalorder %s20, 1
        %s228 = scalar_select %p227, %s20, 1
        %s229 = smul.addr %s228, 8
        %s230 = scalar_lea.vmem %s1, %s229
      $region44: #{bottleneck_forward.13} parent=39 // pred_fallthru
        _
      // Predicated region
      $region45: #{bottleneck_forward.13} parent=39 // pred_check
        %p231 = pneg %p104
      $region46: #{bottleneck_forward.13} parent=39 // pred_check_branch
        %233 = sbr.rel (%p231) target = $region48
      $region47: #{bottleneck_forward.13} parent=39 // pred_region
        %p234 = scmp.lt.s32.totalorder %s20, 1
        %s235 = scalar_select %p234, %s20, 1
        %s236 = smul.addr %s235, 8
        %s237 = scalar_lea.vmem %s2, %s236
      $region48: #{bottleneck_forward.13} parent=39 // pred_fallthru
        _
    $region40: #{bottleneck_forward.13} parent=5 // pred_fallthru
      _
  $region6: #{bottleneck_forward.13} parent=0 // loop_footer
    %s13 = sadd.s32 1, %s9
  $region7: #{bottleneck_forward.13} parent=0 // loop_footer_branch
    %8 = sbr.rel target = $region3
  $region8: #{bottleneck_forward.13} parent=0 // loop_exit
    _

// kernel: bottleneck_forward.12
$region0: #{bottleneck_forward.12}
  #allocation0 [shape = 'u32[]', space=smem, size = 0x4, offset = 0x4, fixed_abs, tag = 'smem constant byte address 0x4 - core index']
  #allocation1 [shape = 'u32[72,128]{1,0:T(1,128)}', space=vmem, size = 0x9000, scoped, tag = 'internal scratch']
  %s0 = inlined_call_operand.vmem [shape: f32[2,256,8], index: 0, kind: input, shape index: {}]
  %s1 = inlined_call_operand.vmem [shape: bf16[8,8], index: 1, kind: input, shape index: {}]
  %s2 = inlined_call_operand.vmem [shape: f32[1,8], index: 2, kind: input, shape index: {}]
  %s3 = inlined_call_operand.vmem [shape: f32[2,256,8], index: 3, kind: output, shape index: {}]
  %s4 = sld [smem:[#allocation0]]
  $region45: #{bottleneck_forward.12} parent=0
    _
  %s6 = ssub.s32 1, %s4
  %s7 = scalar_select 0, %s6, %s4
  loop: start=0, step=1, limit=4
  $region2: #{bottleneck_forward.12} parent=0 // loop_pre_header
    _
  $region3: #{bottleneck_forward.12} parent=0 // loop_header
    %s9 = sphi 0, %s13
    %p10 = scmp.ge.s32.totalorder %s9, 4
    %s16 = sphi 0, %s28
    %s17 = sphi 0, %s24
    %s18 = sphi 0, %s16
    %s19 = sphi 0, %s17
    %s20 = sphi 0, %s18
    %s21 = sphi 0, %s19
    %s33 = sphi 0, %s35
    %s36 = sphi 0, %s33
    %s37 = sphi 0, %s36
    %s53 = sphi 0, %s37
    %s57 = sphi 0, %s57
    %s59 = sphi 0, %s57
    %s60 = sphi 0, %s59
    %s74 = sphi 0, %s60
    %s78 = sphi 0, %s78
    %s80 = sphi 0, %s78
    %s81 = sphi 0, %s80
    %s95 = sphi 0, %s81
    %s103 = sphi 0, %s105
    %s106 = sphi 0, %s103
    %s107 = sphi 0, %s106
    %s123 = sphi 0, %s107
  $region4: #{bottleneck_forward.12} parent=0 // loop_header_branch
    %12 = sbr.rel (%p10) target = $region8
  $region5: #{bottleneck_forward.12} parent=0 // loop_body
    %s14 = ssub.s32 %s9, 1
    %s15 = ssub.s32 %s9, 2
    %s22 = sadd.s32 1, %s17
    %p23 = scmp.ge.s32.totalorder %s22, 1
    %s24 = scalar_select %p23, 0, %s22
    %s25 = sadd.s32 1, %s16
    %s26 = scalar_select %p23, %s25, %s16
    %p27 = scmp.ge.s32.totalorder %s26, 2
    %s28 = scalar_select %p27, 0, %s26
    %s29 = ssub.s32 %s16, %s28
    %s30 = ssub.s32 %s17, %s24
    %s31 = sor.u32 %s29, %s30
    %p32 = scmp.eq.s32.totalorder %s31, 0
    %s34 = sadd.s32 %s33, 1
    %s35 = scalar_select %p32, %s33, %s34
    %p38 = pneg %p32
    %p39 = scmp.eq.s32.totalorder %s9, 1
    %p40 = por %p38, %p39
    %p41 = scmp.ne.s32.totalorder %s33, %s36
    %p42 = scmp.eq.s32.totalorder %s9, 0
    %p43 = por %p41, %p42
    %p44 = scmp.ne.s32.totalorder %s33, %s36
    %p45 = scmp.eq.s32.totalorder %s14, 1
    %p46 = por %p44, %p45
    %p47 = scmp.ne.s32.totalorder %s36, %s37
    %p48 = scmp.eq.s32.totalorder %s14, 0
    %p49 = por %p47, %p48
    %p50 = scmp.ne.s32.totalorder %s36, %s37
    %p51 = scmp.eq.s32.totalorder %s15, 1
    %p52 = por %p50, %p51
    %p54 = scmp.ne.s32.totalorder %s37, %s53
    %p55 = scmp.eq.s32.totalorder %s15, 0
    %p56 = por %p54, %p55
    %s58 = sadd.s32 %s57, 1
    %p61 = scmp.eq.s32.totalorder %s9, 1
    %p62 = scmp.ne.s32.totalorder %s57, %s59
    %p63 = scmp.eq.s32.totalorder %s9, 0
    %p64 = por %p62, %p63
    %p65 = scmp.ne.s32.totalorder %s57, %s59
    %p66 = scmp.eq.s32.totalorder %s14, 1
    %p67 = por %p65, %p66
    %p68 = scmp.ne.s32.totalorder %s59, %s60
    %p69 = scmp.eq.s32.totalorder %s14, 0
    %p70 = por %p68, %p69
    %p71 = scmp.ne.s32.totalorder %s59, %s60
    %p72 = scmp.eq.s32.totalorder %s15, 1
    %p73 = por %p71, %p72
    %p75 = scmp.ne.s32.totalorder %s60, %s74
    %p76 = scmp.eq.s32.totalorder %s15, 0
    %p77 = por %p75, %p76
    %s79 = sadd.s32 %s78, 1
    %p82 = scmp.eq.s32.totalorder %s9, 1
    %p83 = scmp.ne.s32.totalorder %s78, %s80
    %p84 = scmp.eq.s32.totalorder %s9, 0
    %p85 = por %p83, %p84
    %p86 = scmp.ne.s32.totalorder %s78, %s80
    %p87 = scmp.eq.s32.totalorder %s14, 1
    %p88 = por %p86, %p87
    %p89 = scmp.ne.s32.totalorder %s80, %s81
    %p90 = scmp.eq.s32.totalorder %s14, 0
    %p91 = por %p89, %p90
    %p92 = scmp.ne.s32.totalorder %s80, %s81
    %p93 = scmp.eq.s32.totalorder %s15, 1
    %p94 = por %p92, %p93
    %p96 = scmp.ne.s32.totalorder %s81, %s95
    %p97 = scmp.eq.s32.totalorder %s15, 0
    %p98 = por %p96, %p97
    %s99 = ssub.s32 %s16, %s28
    %s100 = ssub.s32 %s17, %s24
    %s101 = sor.u32 %s99, %s100
    %p102 = scmp.eq.s32.totalorder %s101, 0
    %s104 = sadd.s32 %s103, 1
    %s105 = scalar_select %p102, %s103, %s104
    %p108 = pneg %p102
    %p109 = scmp.eq.s32.totalorder %s9, 1
    %p110 = por %p108, %p109
    %p111 = scmp.ne.s32.totalorder %s103, %s106
    %p112 = scmp.eq.s32.totalorder %s9, 0
    %p113 = por %p111, %p112
    %p114 = scmp.ne.s32.totalorder %s103, %s106
    %p115 = scmp.eq.s32.totalorder %s14, 1
    %p116 = por %p114, %p115
    %p117 = scmp.ne.s32.totalorder %s106, %s107
    %p118 = scmp.eq.s32.totalorder %s14, 0
    %p119 = por %p117, %p118
    %p120 = scmp.ne.s32.totalorder %s106, %s107
    %p121 = scmp.eq.s32.totalorder %s15, 1
    %p122 = por %p120, %p121
    %p124 = scmp.ne.s32.totalorder %s107, %s123
    %p125 = scmp.eq.s32.totalorder %s15, 0
    %p126 = por %p124, %p125
    %p127 = scmp.le.s32.totalorder 1, %s9
    %p128 = scmp.lt.s32.totalorder %s9, 3
    %p129 = pnand %p127, %p128
    %p130 = pneg %p129
    // Predicated region
    $region9: #{bottleneck_forward.12} parent=5 // pred_check
      _
    $region10: #{bottleneck_forward.12} parent=5 // pred_check_branch
      %132 = sbr.rel (%p129) target = $region12
    $region11: #{bottleneck_forward.12} parent=5 // pred_region
      %s133 = ssub.s32 %s9, 1
      // Predicated region
      $region13: #{bottleneck_forward.12} parent=11 // pred_check
        %p134 = pneg %p70
      $region14: #{bottleneck_forward.12} parent=11 // pred_check_branch
        %136 = sbr.rel (%p134) target = $region16
      $region15: #{bottleneck_forward.12} parent=11 // pred_region
        _
      $region16: #{bottleneck_forward.12} parent=11 // pred_fallthru
        _
      // Predicated region
      $region17: #{bottleneck_forward.12} parent=11 // pred_check
        %p137 = pneg %p91
      $region18: #{bottleneck_forward.12} parent=11 // pred_check_branch
        %139 = sbr.rel (%p137) target = $region20
      $region19: #{bottleneck_forward.12} parent=11 // pred_region
        _
      $region20: #{bottleneck_forward.12} parent=11 // pred_fallthru
        _
    $region12: #{bottleneck_forward.12} parent=5 // pred_fallthru
      _
    %p140 = scmp.lt.s32.totalorder %s9, 2
    // Predicated region
    $region21: #{bottleneck_forward.12} parent=5 // pred_check
      %p141 = pneg %p140
    $region22: #{bottleneck_forward.12} parent=5 // pred_check_branch
      %143 = sbr.rel (%p141) target = $region24
    $region23: #{bottleneck_forward.12} parent=5 // pred_region
      // Predicated region
      $region25: #{bottleneck_forward.12} parent=23 // pred_check
        %p144 = pneg %p43
      $region26: #{bottleneck_forward.12} parent=23 // pred_check_branch
        %146 = sbr.rel (%p144) target = $region28
      $region27: #{bottleneck_forward.12} parent=23 // pred_region
        %s147 = smul.u32 32, %s17
        %p148 = scmp.lt.s32.totalorder %s16, 1
        %s149 = scalar_select %p148, %s16, 1
        %p150 = scmp.lt.s32.totalorder %s147, 31
        %s151 = scalar_select %p150, %s147, 31
        %s152 = smul.addr %s149, 32
        %s153 = sadd.s32 %s151, %s152
        %s154 = smul.addr %s153, 8
        %s155 = scalar_lea.vmem %s0, %s154
        %s156 = smul.u32 32, %s17
      $region28: #{bottleneck_forward.12} parent=23 // pred_fallthru
        _
    $region24: #{bottleneck_forward.12} parent=5 // pred_fallthru
      _
    %p157 = scmp.le.s32.totalorder 1, %s9
    %p158 = scmp.lt.s32.totalorder %s9, 3
    %p159 = pnand %p157, %p158
    %p160 = pneg %p159
    // Predicated region
    $region29: #{bottleneck_forward.12} parent=5 // pred_check
      _
    $region30: #{bottleneck_forward.12} parent=5 // pred_check_branch
      %162 = sbr.rel (%p159) target = $region32
    $region31: #{bottleneck_forward.12} parent=5 // pred_region
      %s163 = ssub.s32 %s9, 1
      %s164 = smul.u32 32, %s19
      %p165 = scmp.lt.s32.totalorder %s18, 1
      %s166 = scalar_select %p165, %s18, 1
      %p167 = scmp.lt.s32.totalorder %s164, 31
      %s168 = scalar_select %p167, %s164, 31
      %s169 = smul.addr %s166, 32
      %s170 = sadd.s32 %s168, %s169
      %s171 = smul.addr %s170, 8
      %s172 = scalar_lea.vmem %s0, %s171
      %p173 = pneg %p49
      %p174 = pneg %p46
      %p175 = pneg %p70
      %p176 = pneg %p67
      %p177 = pneg %p91
      %p178 = pneg %p88
      %p179 = pneg %p119
      %p180 = pneg %p116
      %s181 = smul.u32 32, %s19
      %p182 = scmp.lt.s32.totalorder %s18, 1
      %s183 = scalar_select %p182, %s18, 1
      %p184 = scmp.lt.s32.totalorder %s181, 31
      %s185 = scalar_select %p184, %s181, 31
      %s186 = smul.addr %s183, 32
      %s187 = sadd.s32 %s185, %s186
      %s188 = smul.addr %s187, 8
      %s189 = scalar_lea.vmem %s3, %s188
      %s190 = smul.u32 32, %s19
      %p191 = scmp.lt.s32.totalorder %s18, 1
      %s192 = scalar_select %p191, %s18, 1
      %p193 = scmp.lt.s32.totalorder %s190, 31
      %s194 = scalar_select %p193, %s190, 31
      %s195 = smul.addr %s192, 32
      %s196 = sadd.s32 %s194, %s195
      %s197 = smul.addr %s196, 8
      %s198 = scalar_lea.vmem %s0, %s197
      %s199 = smul.u32 32, %s19
      %s200 = smul.u32 32, %s19
      %p201 = scmp.lt.s32.totalorder %s18, 1
      %s202 = scalar_select %p201, %s18, 1
      %p203 = scmp.lt.s32.totalorder %s200, 31
      %s204 = scalar_select %p203, %s200, 31
      %s205 = smul.addr %s202, 32
      %s206 = sadd.s32 %s204, %s205
      %s207 = smul.addr %s206, 8
      %s208 = scalar_lea.vmem %s3, %s207
      %s209 = smul.u32 32, %s19
      %v211 = vld [vmem:[%s198] sm:$0xff]
      %v212 = vld [vmem:[%s198 + $0x8] sm:$0xff]
      %v213 = vld [vmem:[%s198 + $0x10] sm:$0xff]
      %v214 = vld [vmem:[%s198 + $0x18] sm:$0xff]
      %v215 = vld [vmem:[%s198 + $0x20] sm:$0xff]
      %v216 = vld [vmem:[%s198 + $0x28] sm:$0xff]
      %v217 = vld [vmem:[%s198 + $0x30] sm:$0xff]
      %v218 = vld [vmem:[%s198 + $0x38] sm:$0xff]
      %v219 = vld [vmem:[%s198 + $0x40] sm:$0xff]
      %v220 = vld [vmem:[%s198 + $0x48] sm:$0xff]
      %v221 = vld [vmem:[%s198 + $0x50] sm:$0xff]
      %v222 = vld [vmem:[%s198 + $0x58] sm:$0xff]
      %v223 = vld [vmem:[%s198 + $0x60] sm:$0xff]
      %v224 = vld [vmem:[%s198 + $0x68] sm:$0xff]
      %v225 = vld [vmem:[%s198 + $0x70] sm:$0xff]
      %v226 = vld [vmem:[%s198 + $0x78] sm:$0xff]
      %v227 = vld [vmem:[%s198 + $0x80] sm:$0xff]
      %v228 = vld [vmem:[%s198 + $0x88] sm:$0xff]
      %v229 = vld [vmem:[%s198 + $0x90] sm:$0xff]
      %v230 = vld [vmem:[%s198 + $0x98] sm:$0xff]
      %v231 = vld [vmem:[%s198 + $0xa0] sm:$0xff]
      %v232 = vld [vmem:[%s198 + $0xa8] sm:$0xff]
      %v233 = vld [vmem:[%s198 + $0xb0] sm:$0xff]
      %v234 = vld [vmem:[%s198 + $0xb8] sm:$0xff]
      %v235 = vld [vmem:[%s198 + $0xc0] sm:$0xff]
      %v236 = vld [vmem:[%s198 + $0xc8] sm:$0xff]
      %v237 = vld [vmem:[%s198 + $0xd0] sm:$0xff]
      %v238 = vld [vmem:[%s198 + $0xd8] sm:$0xff]
      %v239 = vld [vmem:[%s198 + $0xe0] sm:$0xff]
      %v240 = vld [vmem:[%s198 + $0xe8] sm:$0xff]
      %v241 = vld [vmem:[%s198 + $0xf0] sm:$0xff]
      %v242 = vld [vmem:[%s198 + $0xf8] sm:$0xff]
      %v243 = vpack.c.bf16 %v212, %v211
      %v244 = vpack.c.bf16 %v214, %v213
      %v245 = vpack.c.bf16 %v216, %v215
      %v246 = vpack.c.bf16 %v218, %v217
      %v247 = vpack.c.bf16 %v220, %v219
      %v248 = vpack.c.bf16 %v222, %v221
      %v249 = vpack.c.bf16 %v224, %v223
      %v250 = vpack.c.bf16 %v226, %v225
      %v251 = vpack.c.bf16 %v228, %v227
      %v252 = vpack.c.bf16 %v230, %v229
      %v253 = vpack.c.bf16 %v232, %v231
      %v254 = vpack.c.bf16 %v234, %v233
      %v255 = vpack.c.bf16 %v236, %v235
      %v256 = vpack.c.bf16 %v238, %v237
      %v257 = vpack.c.bf16 %v240, %v239
      %v258 = vpack.c.bf16 %v242, %v241
      %v259 = vld [vmem:[%s1] sm:$0xf]
      %vm260 = vcmask 64512
      %v262 = vsel %vm260, %v243, 0
      %v265 = vsel %vm260, %v244, 0
      %v268 = vsel %vm260, %v245, 0
      %v271 = vsel %vm260, %v246, 0
      %v274 = vsel %vm260, %v247, 0
      %v277 = vsel %vm260, %v248, 0
      %v280 = vsel %vm260, %v249, 0
      %v283 = vsel %vm260, %v250, 0
      %v286 = vsel %vm260, %v251, 0
      %v289 = vsel %vm260, %v252, 0
      %v292 = vsel %vm260, %v253, 0
      %v295 = vsel %vm260, %v254, 0
      %v298 = vsel %vm260, %v255, 0
      %v301 = vsel %vm260, %v256, 0
      %v304 = vsel %vm260, %v257, 0
      %v307 = vsel %vm260, %v258, 0
      %vm309 = vcmask 1043456
      %v311 = vsel %vm309, %v259, 0
      %313 = vmatpush.bf16.msra.mxu0 0
      %314 = vmatpush.bf16.msra.mxu0 0
      %315 = vmatpush.bf16.msra.mxu0 0
      %316 = vmatpush.bf16.msra.mxu0 0
      %317 = vmatpush.bf16.msra.mxu0 0
      %318 = vmatpush.bf16.msra.mxu0 0
      %319 = vmatpush.bf16.msra.mxu0 0
      %320 = vmatpush.bf16.msra.mxu0 %v311
      %321 = vmatmul.bf16.gmra.mxu0 %v262
      %v322 = vpop.f32.mrf.mxu0
      %v323 = vadd.f32 0.0, %v322
      %v324 = vpop.f32.mrf.mxu0
      %v325 = vadd.f32 0.0, %v324
      %326 = vmatmul.bf16.gmra.mxu0 %v265
      %v327 = vpop.f32.mrf.mxu0
      %v328 = vadd.f32 0.0, %v327
      %v329 = vpop.f32.mrf.mxu0
      %v330 = vadd.f32 0.0, %v329
      %331 = vmatmul.bf16.gmra.mxu0 %v268
      %v332 = vpop.f32.mrf.mxu0
      %v333 = vadd.f32 0.0, %v332
      %v334 = vpop.f32.mrf.mxu0
      %v335 = vadd.f32 0.0, %v334
      %336 = vmatmul.bf16.gmra.mxu0 %v271
      %v337 = vpop.f32.mrf.mxu0
      %v338 = vadd.f32 0.0, %v337
      %v339 = vpop.f32.mrf.mxu0
      %v340 = vadd.f32 0.0, %v339
      %341 = vmatmul.bf16.gmra.mxu0 %v274
      %v342 = vpop.f32.mrf.mxu0
      %v343 = vadd.f32 0.0, %v342
      %v344 = vpop.f32.mrf.mxu0
      %v345 = vadd.f32 0.0, %v344
      %346 = vmatmul.bf16.gmra.mxu0 %v277
      %v347 = vpop.f32.mrf.mxu0
      %v348 = vadd.f32 0.0, %v347
      %v349 = vpop.f32.mrf.mxu0
      %v350 = vadd.f32 0.0, %v349
      %351 = vmatmul.bf16.gmra.mxu0 %v280
      %v352 = vpop.f32.mrf.mxu0
      %v353 = vadd.f32 0.0, %v352
      %v354 = vpop.f32.mrf.mxu0
      %v355 = vadd.f32 0.0, %v354
      %356 = vmatmul.bf16.gmra.mxu0 %v283
      %v357 = vpop.f32.mrf.mxu0
      %v358 = vadd.f32 0.0, %v357
      %v359 = vpop.f32.mrf.mxu0
      %v360 = vadd.f32 0.0, %v359
      %361 = vmatmul.bf16.gmra.mxu0 %v286
      %v362 = vpop.f32.mrf.mxu0
      %v363 = vadd.f32 0.0, %v362
      %v364 = vpop.f32.mrf.mxu0
      %v365 = vadd.f32 0.0, %v364
      %366 = vmatmul.bf16.gmra.mxu0 %v289
      %v367 = vpop.f32.mrf.mxu0
      %v368 = vadd.f32 0.0, %v367
      %v369 = vpop.f32.mrf.mxu0
      %v370 = vadd.f32 0.0, %v369
      %371 = vmatmul.bf16.gmra.mxu0 %v292
      %v372 = vpop.f32.mrf.mxu0
      %v373 = vadd.f32 0.0, %v372
      %v374 = vpop.f32.mrf.mxu0
      %v375 = vadd.f32 0.0, %v374
      %376 = vmatmul.bf16.gmra.mxu0 %v295
      %v377 = vpop.f32.mrf.mxu0
      %v378 = vadd.f32 0.0, %v377
      %v379 = vpop.f32.mrf.mxu0
      %v380 = vadd.f32 0.0, %v379
      %381 = vmatmul.bf16.gmra.mxu0 %v298
      %v382 = vpop.f32.mrf.mxu0
      %v383 = vadd.f32 0.0, %v382
      %v384 = vpop.f32.mrf.mxu0
      %v385 = vadd.f32 0.0, %v384
      %386 = vmatmul.bf16.gmra.mxu0 %v301
      %v387 = vpop.f32.mrf.mxu0
      %v388 = vadd.f32 0.0, %v387
      %v389 = vpop.f32.mrf.mxu0
      %v390 = vadd.f32 0.0, %v389
      %391 = vmatmul.bf16.gmra.mxu0 %v304
      %v392 = vpop.f32.mrf.mxu0
      %v393 = vadd.f32 0.0, %v392
      %v394 = vpop.f32.mrf.mxu0
      %v395 = vadd.f32 0.0, %v394
      %396 = vmatmul.bf16.gmra.mxu0 %v307
      %v397 = vpop.f32.mrf.mxu0
      %v398 = vadd.f32 0.0, %v397
      %v399 = vpop.f32.mrf.mxu0
      %v400 = vadd.f32 0.0, %v399
      %401 = vdwg.mxu0
      %v402 = vmul.f32 %v211, %v211
      %v403 = vmul.f32 %v212, %v212
      %v404 = vmul.f32 %v213, %v213
      %v405 = vmul.f32 %v214, %v214
      %v406 = vmul.f32 %v215, %v215
      %v407 = vmul.f32 %v216, %v216
      %v408 = vmul.f32 %v217, %v217
      %v409 = vmul.f32 %v218, %v218
      %v410 = vmul.f32 %v219, %v219
      %v411 = vmul.f32 %v220, %v220
      %v412 = vmul.f32 %v221, %v221
      %v413 = vmul.f32 %v222, %v222
      %v414 = vmul.f32 %v223, %v223
      %v415 = vmul.f32 %v224, %v224
      %v416 = vmul.f32 %v225, %v225
      %v417 = vmul.f32 %v226, %v226
      %v418 = vmul.f32 %v227, %v227
      %v419 = vmul.f32 %v228, %v228
      %v420 = vmul.f32 %v229, %v229
      %v421 = vmul.f32 %v230, %v230
      %v422 = vmul.f32 %v231, %v231
      %v423 = vmul.f32 %v232, %v232
      %v424 = vmul.f32 %v233, %v233
      %v425 = vmul.f32 %v234, %v234
      %v426 = vmul.f32 %v235, %v235
      %v427 = vmul.f32 %v236, %v236
      %v428 = vmul.f32 %v237, %v237
      %v429 = vmul.f32 %v238, %v238
      %v430 = vmul.f32 %v239, %v239
      %v431 = vmul.f32 %v240, %v240
      %v432 = vmul.f32 %v241, %v241
      %v433 = vmul.f32 %v242, %v242
      %v434 = vsel %vm260, %v402, 0.0
      %435 = vadd.xlane.f32.xlu0 %v434
      %v436 = vpop.xlane.xlu0 %435
      %v437 = vsel %vm260, %v403, 0.0
      %438 = vadd.xlane.f32.xlu0 %v437
      %v439 = vpop.xlane.xlu0 %438
      %v440 = vsel %vm260, %v404, 0.0
      %441 = vadd.xlane.f32.xlu0 %v440
      %v442 = vpop.xlane.xlu0 %441
      %v443 = vsel %vm260, %v405, 0.0
      %444 = vadd.xlane.f32.xlu0 %v443
      %v445 = vpop.xlane.xlu0 %444
      %v446 = vsel %vm260, %v406, 0.0
      %447 = vadd.xlane.f32.xlu0 %v446
      %v448 = vpop.xlane.xlu0 %447
      %v449 = vsel %vm260, %v407, 0.0
      %450 = vadd.xlane.f32.xlu0 %v449
      %v451 = vpop.xlane.xlu0 %450
      %v452 = vsel %vm260, %v408, 0.0
      %453 = vadd.xlane.f32.xlu0 %v452
      %v454 = vpop.xlane.xlu0 %453
      %v455 = vsel %vm260, %v409, 0.0
      %456 = vadd.xlane.f32.xlu0 %v455
      %v457 = vpop.xlane.xlu0 %456
      %v458 = vsel %vm260, %v410, 0.0
      %459 = vadd.xlane.f32.xlu0 %v458
      %v460 = vpop.xlane.xlu0 %459
      %v461 = vsel %vm260, %v411, 0.0
      %462 = vadd.xlane.f32.xlu0 %v461
      %v463 = vpop.xlane.xlu0 %462
      %v464 = vsel %vm260, %v412, 0.0
      %465 = vadd.xlane.f32.xlu0 %v464
      %v466 = vpop.xlane.xlu0 %465
      %v467 = vsel %vm260, %v413, 0.0
      %468 = vadd.xlane.f32.xlu0 %v467
      %v469 = vpop.xlane.xlu0 %468
      %v470 = vsel %vm260, %v414, 0.0
      %471 = vadd.xlane.f32.xlu0 %v470
      %v472 = vpop.xlane.xlu0 %471
      %v473 = vsel %vm260, %v415, 0.0
      %474 = vadd.xlane.f32.xlu0 %v473
      %v475 = vpop.xlane.xlu0 %474
      %v476 = vsel %vm260, %v416, 0.0
      %477 = vadd.xlane.f32.xlu0 %v476
      %v478 = vpop.xlane.xlu0 %477
      %v479 = vsel %vm260, %v417, 0.0
      %480 = vadd.xlane.f32.xlu0 %v479
      %v481 = vpop.xlane.xlu0 %480
      %v482 = vsel %vm260, %v418, 0.0
      %483 = vadd.xlane.f32.xlu0 %v482
      %v484 = vpop.xlane.xlu0 %483
      %v485 = vsel %vm260, %v419, 0.0
      %486 = vadd.xlane.f32.xlu0 %v485
      %v487 = vpop.xlane.xlu0 %486
      %v488 = vsel %vm260, %v420, 0.0
      %489 = vadd.xlane.f32.xlu0 %v488
      %v490 = vpop.xlane.xlu0 %489
      %v491 = vsel %vm260, %v421, 0.0
      %492 = vadd.xlane.f32.xlu0 %v491
      %v493 = vpop.xlane.xlu0 %492
      %v494 = vsel %vm260, %v422, 0.0
      %495 = vadd.xlane.f32.xlu0 %v494
      %v496 = vpop.xlane.xlu0 %495
      %v497 = vsel %vm260, %v423, 0.0
      %498 = vadd.xlane.f32.xlu0 %v497
      %v499 = vpop.xlane.xlu0 %498
      %v500 = vsel %vm260, %v424, 0.0
      %501 = vadd.xlane.f32.xlu0 %v500
      %v502 = vpop.xlane.xlu0 %501
      %v503 = vsel %vm260, %v425, 0.0
      %504 = vadd.xlane.f32.xlu0 %v503
      %v505 = vpop.xlane.xlu0 %504
      %v506 = vsel %vm260, %v426, 0.0
      %507 = vadd.xlane.f32.xlu0 %v506
      %v508 = vpop.xlane.xlu0 %507
      %v509 = vsel %vm260, %v427, 0.0
      %510 = vadd.xlane.f32.xlu0 %v509
      %v511 = vpop.xlane.xlu0 %510
      %v512 = vsel %vm260, %v428, 0.0
      %513 = vadd.xlane.f32.xlu0 %v512
      %v514 = vpop.xlane.xlu0 %513
      %v515 = vsel %vm260, %v429, 0.0
      %516 = vadd.xlane.f32.xlu0 %v515
      %v517 = vpop.xlane.xlu0 %516
      %v518 = vsel %vm260, %v430, 0.0
      %519 = vadd.xlane.f32.xlu0 %v518
      %v520 = vpop.xlane.xlu0 %519
      %v521 = vsel %vm260, %v431, 0.0
      %522 = vadd.xlane.f32.xlu0 %v521
      %v523 = vpop.xlane.xlu0 %522
      %v524 = vsel %vm260, %v432, 0.0
      %525 = vadd.xlane.f32.xlu0 %v524
      %v526 = vpop.xlane.xlu0 %525
      %v527 = vsel %vm260, %v433, 0.0
      %528 = vadd.xlane.f32.xlu0 %v527
      %v529 = vpop.xlane.xlu0 %528
      %v530 = vld [vmem:[%s2] sm:$0x1]
      %v531 = vmul.f32 %v436, -0.05
      %v532 = vmul.f32 %v439, -0.05
      %v533 = vmul.f32 %v442, -0.05
      %v534 = vmul.f32 %v445, -0.05
      %v535 = vmul.f32 %v448, -0.05
      %v536 = vmul.f32 %v451, -0.05
      %v537 = vmul.f32 %v454, -0.05
      %v538 = vmul.f32 %v457, -0.05
      %v539 = vmul.f32 %v460, -0.05
      %v540 = vmul.f32 %v463, -0.05
      %v541 = vmul.f32 %v466, -0.05
      %v542 = vmul.f32 %v469, -0.05
      %v543 = vmul.f32 %v472, -0.05
      %v544 = vmul.f32 %v475, -0.05
      %v545 = vmul.f32 %v478, -0.05
      %v546 = vmul.f32 %v481, -0.05
      %v547 = vmul.f32 %v484, -0.05
      %v548 = vmul.f32 %v487, -0.05
      %v549 = vmul.f32 %v490, -0.05
      %v550 = vmul.f32 %v493, -0.05
      %v551 = vmul.f32 %v496, -0.05
      %v552 = vmul.f32 %v499, -0.05
      %v553 = vmul.f32 %v502, -0.05
      %v554 = vmul.f32 %v505, -0.05
      %v555 = vmul.f32 %v508, -0.05
      %v556 = vmul.f32 %v511, -0.05
      %v557 = vmul.f32 %v514, -0.05
      %v558 = vmul.f32 %v517, -0.05
      %v559 = vmul.f32 %v520, -0.05
      %v560 = vmul.f32 %v523, -0.05
      %v561 = vmul.f32 %v526, -0.05
      %v562 = vmul.f32 %v529, -0.05
      %v564 = vperm.slane %v530, 0
      %v566 = vadd.f32 %v564, %v531
      %v567 = vadd.f32 %v564, %v532
      %v568 = vadd.f32 %v564, %v533
      %v569 = vadd.f32 %v564, %v534
      %v570 = vadd.f32 %v564, %v535
      %v571 = vadd.f32 %v564, %v536
      %v572 = vadd.f32 %v564, %v537
      %v573 = vadd.f32 %v564, %v538
      %v574 = vadd.f32 %v564, %v539
      %v575 = vadd.f32 %v564, %v540
      %v576 = vadd.f32 %v564, %v541
      %v577 = vadd.f32 %v564, %v542
      %v578 = vadd.f32 %v564, %v543
      %v579 = vadd.f32 %v564, %v544
      %v580 = vadd.f32 %v564, %v545
      %v581 = vadd.f32 %v564, %v546
      %v582 = vadd.f32 %v564, %v547
      %v583 = vadd.f32 %v564, %v548
      %v584 = vadd.f32 %v564, %v549
      %v585 = vadd.f32 %v564, %v550
      %v586 = vadd.f32 %v564, %v551
      %v587 = vadd.f32 %v564, %v552
      %v588 = vadd.f32 %v564, %v553
      %v589 = vadd.f32 %v564, %v554
      %v590 = vadd.f32 %v564, %v555
      %v591 = vadd.f32 %v564, %v556
      %v592 = vadd.f32 %v564, %v557
      %v593 = vadd.f32 %v564, %v558
      %v594 = vadd.f32 %v564, %v559
      %v595 = vadd.f32 %v564, %v560
      %v596 = vadd.f32 %v564, %v561
      %v597 = vadd.f32 %v564, %v562
      %v598 = vadd.f32 %v566, %v323
      %v599 = vadd.f32 %v567, %v325
      %v600 = vadd.f32 %v568, %v328
      %v601 = vadd.f32 %v569, %v330
      %v602 = vadd.f32 %v570, %v333
      %v603 = vadd.f32 %v571, %v335
      %v604 = vadd.f32 %v572, %v338
      %v605 = vadd.f32 %v573, %v340
      %v606 = vadd.f32 %v574, %v343
      %v607 = vadd.f32 %v575, %v345
      %v608 = vadd.f32 %v576, %v348
      %v609 = vadd.f32 %v577, %v350
      %v610 = vadd.f32 %v578, %v353
      %v611 = vadd.f32 %v579, %v355
      %v612 = vadd.f32 %v580, %v358
      %v613 = vadd.f32 %v581, %v360
      %v614 = vadd.f32 %v582, %v363
      %v615 = vadd.f32 %v583, %v365
      %v616 = vadd.f32 %v584, %v368
      %v617 = vadd.f32 %v585, %v370
      %v618 = vadd.f32 %v586, %v373
      %v619 = vadd.f32 %v587, %v375
      %v620 = vadd.f32 %v588, %v378
      %v621 = vadd.f32 %v589, %v380
      %v622 = vadd.f32 %v590, %v383
      %v623 = vadd.f32 %v591, %v385
      %v624 = vadd.f32 %v592, %v388
      %v625 = vadd.f32 %v593, %v390
      %v626 = vadd.f32 %v594, %v393
      %v627 = vadd.f32 %v595, %v395
      %v628 = vadd.f32 %v596, %v398
      %v629 = vadd.f32 %v597, %v400
      %v630 = vmin.f32 %v598, 0.0
      %v631 = vmin.f32 %v599, 0.0
      %v632 = vmin.f32 %v600, 0.0
      %v633 = vmin.f32 %v601, 0.0
      %v634 = vmin.f32 %v602, 0.0
      %v635 = vmin.f32 %v603, 0.0
      %v636 = vmin.f32 %v604, 0.0
      %v637 = vmin.f32 %v605, 0.0
      %v638 = vmin.f32 %v606, 0.0
      %v639 = vmin.f32 %v607, 0.0
      %v640 = vmin.f32 %v608, 0.0
      %v641 = vmin.f32 %v609, 0.0
      %v642 = vmin.f32 %v610, 0.0
      %v643 = vmin.f32 %v611, 0.0
      %v644 = vmin.f32 %v612, 0.0
      %v645 = vmin.f32 %v613, 0.0
      %v646 = vmin.f32 %v614, 0.0
      %v647 = vmin.f32 %v615, 0.0
      %v648 = vmin.f32 %v616, 0.0
      %v649 = vmin.f32 %v617, 0.0
      %v650 = vmin.f32 %v618, 0.0
      %v651 = vmin.f32 %v619, 0.0
      %v652 = vmin.f32 %v620, 0.0
      %v653 = vmin.f32 %v621, 0.0
      %v654 = vmin.f32 %v622, 0.0
      %v655 = vmin.f32 %v623, 0.0
      %v656 = vmin.f32 %v624, 0.0
      %v657 = vmin.f32 %v625, 0.0
      %v658 = vmin.f32 %v626, 0.0
      %v659 = vmin.f32 %v627, 0.0
      %v660 = vmin.f32 %v628, 0.0
      %v661 = vmin.f32 %v629, 0.0
      %v662 = vmul.f32 %v630, 1.442695
      %v663 = vpow.pop %v662
      %v664 = vmul.f32 %v631, 1.442695
      %v665 = vpow.pop %v664
      %v666 = vmul.f32 %v632, 1.442695
      %v667 = vpow.pop %v666
      %v668 = vmul.f32 %v633, 1.442695
      %v669 = vpow.pop %v668
      %v670 = vmul.f32 %v634, 1.442695
      %v671 = vpow.pop %v670
      %v672 = vmul.f32 %v635, 1.442695
      %v673 = vpow.pop %v672
      %v674 = vmul.f32 %v636, 1.442695
      %v675 = vpow.pop %v674
      %v676 = vmul.f32 %v637, 1.442695
      %v677 = vpow.pop %v676
      %v678 = vmul.f32 %v638, 1.442695
      %v679 = vpow.pop %v678
      %v680 = vmul.f32 %v639, 1.442695
      %v681 = vpow.pop %v680
      %v682 = vmul.f32 %v640, 1.442695
      %v683 = vpow.pop %v682
      %v684 = vmul.f32 %v641, 1.442695
      %v685 = vpow.pop %v684
      %v686 = vmul.f32 %v642, 1.442695
      %v687 = vpow.pop %v686
      %v688 = vmul.f32 %v643, 1.442695
      %v689 = vpow.pop %v688
      %v690 = vmul.f32 %v644, 1.442695
      %v691 = vpow.pop %v690
      %v692 = vmul.f32 %v645, 1.442695
      %v693 = vpow.pop %v692
      %v694 = vmul.f32 %v646, 1.442695
      %v695 = vpow.pop %v694
      %v696 = vmul.f32 %v647, 1.442695
      %v697 = vpow.pop %v696
      %v698 = vmul.f32 %v648, 1.442695
      %v699 = vpow.pop %v698
      %v700 = vmul.f32 %v649, 1.442695
      %v701 = vpow.pop %v700
      %v702 = vmul.f32 %v650, 1.442695
      %v703 = vpow.pop %v702
      %v704 = vmul.f32 %v651, 1.442695
      %v705 = vpow.pop %v704
      %v706 = vmul.f32 %v652, 1.442695
      %v707 = vpow.pop %v706
      %v708 = vmul.f32 %v653, 1.442695
      %v709 = vpow.pop %v708
      %v710 = vmul.f32 %v654, 1.442695
      %v711 = vpow.pop %v710
      %v712 = vmul.f32 %v655, 1.442695
      %v713 = vpow.pop %v712
      %v714 = vmul.f32 %v656, 1.442695
      %v715 = vpow.pop %v714
      %v716 = vmul.f32 %v657, 1.442695
      %v717 = vpow.pop %v716
      %v718 = vmul.f32 %v658, 1.442695
      %v719 = vpow.pop %v718
      %v720 = vmul.f32 %v659, 1.442695
      %v721 = vpow.pop %v720
      %v722 = vmul.f32 %v660, 1.442695
      %v723 = vpow.pop %v722
      %v724 = vmul.f32 %v661, 1.442695
      %v725 = vpow.pop %v724
      %726 = vst.msk [vmem:[%s208] sm:$0xff] %vm260, %v663
      %727 = vst.msk [vmem:[%s208 + $0x8] sm:$0xff] %vm260, %v665
      %728 = vst.msk [vmem:[%s208 + $0x10] sm:$0xff] %vm260, %v667
      %729 = vst.msk [vmem:[%s208 + $0x18] sm:$0xff] %vm260, %v669
      %730 = vst.msk [vmem:[%s208 + $0x20] sm:$0xff] %vm260, %v671
      %731 = vst.msk [vmem:[%s208 + $0x28] sm:$0xff] %vm260, %v673
      %732 = vst.msk [vmem:[%s208 + $0x30] sm:$0xff] %vm260, %v675
      %733 = vst.msk [vmem:[%s208 + $0x38] sm:$0xff] %vm260, %v677
      %734 = vst.msk [vmem:[%s208 + $0x40] sm:$0xff] %vm260, %v679
      %735 = vst.msk [vmem:[%s208 + $0x48] sm:$0xff] %vm260, %v681
      %736 = vst.msk [vmem:[%s208 + $0x50] sm:$0xff] %vm260, %v683
      %737 = vst.msk [vmem:[%s208 + $0x58] sm:$0xff] %vm260, %v685
      %738 = vst.msk [vmem:[%s208 + $0x60] sm:$0xff] %vm260, %v687
      %739 = vst.msk [vmem:[%s208 + $0x68] sm:$0xff] %vm260, %v689
      %740 = vst.msk [vmem:[%s208 + $0x70] sm:$0xff] %vm260, %v691
      %741 = vst.msk [vmem:[%s208 + $0x78] sm:$0xff] %vm260, %v693
      %742 = vst.msk [vmem:[%s208 + $0x80] sm:$0xff] %vm260, %v695
      %743 = vst.msk [vmem:[%s208 + $0x88] sm:$0xff] %vm260, %v697
      %744 = vst.msk [vmem:[%s208 + $0x90] sm:$0xff] %vm260, %v699
      %745 = vst.msk [vmem:[%s208 + $0x98] sm:$0xff] %vm260, %v701
      %746 = vst.msk [vmem:[%s208 + $0xa0] sm:$0xff] %vm260, %v703
      %747 = vst.msk [vmem:[%s208 + $0xa8] sm:$0xff] %vm260, %v705
      %748 = vst.msk [vmem:[%s208 + $0xb0] sm:$0xff] %vm260, %v707
      %749 = vst.msk [vmem:[%s208 + $0xb8] sm:$0xff] %vm260, %v709
      %750 = vst.msk [vmem:[%s208 + $0xc0] sm:$0xff] %vm260, %v711
      %751 = vst.msk [vmem:[%s208 + $0xc8] sm:$0xff] %vm260, %v713
      %752 = vst.msk [vmem:[%s208 + $0xd0] sm:$0xff] %vm260, %v715
      %753 = vst.msk [vmem:[%s208 + $0xd8] sm:$0xff] %vm260, %v717
      %754 = vst.msk [vmem:[%s208 + $0xe0] sm:$0xff] %vm260, %v719
      %755 = vst.msk [vmem:[%s208 + $0xe8] sm:$0xff] %vm260, %v721
      %756 = vst.msk [vmem:[%s208 + $0xf0] sm:$0xff] %vm260, %v723
      %757 = vst.msk [vmem:[%s208 + $0xf8] sm:$0xff] %vm260, %v725
      %s758 = smul.u32 32, %s19
      %p759 = scmp.lt.s32.totalorder %s18, 1
      %s760 = scalar_select %p759, %s18, 1
      %p761 = scmp.lt.s32.totalorder %s758, 31
      %s762 = scalar_select %p761, %s758, 31
      %s763 = smul.addr %s760, 32
      %s764 = sadd.s32 %s762, %s763
      %s765 = smul.addr %s764, 8
      %s766 = scalar_lea.vmem %s3, %s765
      // Predicated region
      $region33: #{bottleneck_forward.12} parent=31 // pred_check
        %p767 = pneg %p116
      $region34: #{bottleneck_forward.12} parent=31 // pred_check_branch
        %769 = sbr.rel (%p767) target = $region36
      $region35: #{bottleneck_forward.12} parent=31 // pred_region
        %s770 = smul.u32 32, %s19
      $region36: #{bottleneck_forward.12} parent=31 // pred_fallthru
        _
    $region32: #{bottleneck_forward.12} parent=5 // pred_fallthru
      _
    %p771 = scmp.le.s32.totalorder 2, %s9
    // Predicated region
    $region37: #{bottleneck_forward.12} parent=5 // pred_check
      %p772 = pneg %p771
    $region38: #{bottleneck_forward.12} parent=5 // pred_check_branch
      %774 = sbr.rel (%p772) target = $region40
    $region39: #{bottleneck_forward.12} parent=5 // pred_region
      %s775 = ssub.s32 %s9, 2
      // Predicated region
      $region41: #{bottleneck_forward.12} parent=39 // pred_check
        %p776 = pneg %p122
      $region42: #{bottleneck_forward.12} parent=39 // pred_check_branch
        %778 = sbr.rel (%p776) target = $region44
      $region43: #{bottleneck_forward.12} parent=39 // pred_region
        %s779 = smul.u32 32, %s21
        %p780 = scmp.lt.s32.totalorder %s20, 1
        %s781 = scalar_select %p780, %s20, 1
        %p782 = scmp.lt.s32.totalorder %s779, 31
        %s783 = scalar_select %p782, %s779, 31
        %s784 = smul.addr %s781, 32
        %s785 = sadd.s32 %s783, %s784
        %s786 = smul.addr %s785, 8
        %s787 = scalar_lea.vmem %s3, %s786
      $region44: #{bottleneck_forward.12} parent=39 // pred_fallthru
        _
    $region40: #{bottleneck_forward.12} parent=5 // pred_fallthru
      _
  $region6: #{bottleneck_forward.12} parent=0 // loop_footer
    %s13 = sadd.s32 1, %s9
  $region7: #{bottleneck_forward.12} parent=0 // loop_footer_branch
    %8 = sbr.rel target = $region3
  $region8: #{bottleneck_forward.12} parent=0 // loop_exit
    _

// kernel: bottleneck_forward.21
$region0: #{bottleneck_forward.21}
  #allocation0 [shape = 'u32[]', space=smem, size = 0x4, offset = 0x4, fixed_abs, tag = 'smem constant byte address 0x4 - core index']
  #allocation1 [shape = 'u32[72,128]{1,0:T(1,128)}', space=vmem, size = 0x9000, scoped, tag = 'internal scratch']
  %s0 = inlined_call_operand.vmem [shape: f32[2,256,8], index: 0, kind: input, shape index: {}]
  %s1 = inlined_call_operand.vmem [shape: bf16[8,32], index: 1, kind: input, shape index: {}]
  %s2 = inlined_call_operand.vmem [shape: f32[1,32], index: 2, kind: input, shape index: {}]
  %s3 = inlined_call_operand.vmem [shape: f32[2,256,32], index: 3, kind: output, shape index: {}]
  %s4 = sld [smem:[#allocation0]]
  $region45: #{bottleneck_forward.21} parent=0
    _
  %s6 = ssub.s32 1, %s4
  %s7 = scalar_select 0, %s6, %s4
  loop: start=0, step=1, limit=4
  $region2: #{bottleneck_forward.21} parent=0 // loop_pre_header
    _
  $region3: #{bottleneck_forward.21} parent=0 // loop_header
    %s9 = sphi 0, %s13
    %p10 = scmp.ge.s32.totalorder %s9, 4
    %s16 = sphi 0, %s28
    %s17 = sphi 0, %s24
    %s18 = sphi 0, %s16
    %s19 = sphi 0, %s17
    %s20 = sphi 0, %s18
    %s21 = sphi 0, %s19
    %s33 = sphi 0, %s35
    %s36 = sphi 0, %s33
    %s37 = sphi 0, %s36
    %s53 = sphi 0, %s37
    %s57 = sphi 0, %s57
    %s59 = sphi 0, %s57
    %s60 = sphi 0, %s59
    %s74 = sphi 0, %s60
    %s78 = sphi 0, %s78
    %s80 = sphi 0, %s78
    %s81 = sphi 0, %s80
    %s95 = sphi 0, %s81
    %s103 = sphi 0, %s105
    %s106 = sphi 0, %s103
    %s107 = sphi 0, %s106
    %s123 = sphi 0, %s107
  $region4: #{bottleneck_forward.21} parent=0 // loop_header_branch
    %12 = sbr.rel (%p10) target = $region8
  $region5: #{bottleneck_forward.21} parent=0 // loop_body
    %s14 = ssub.s32 %s9, 1
    %s15 = ssub.s32 %s9, 2
    %s22 = sadd.s32 1, %s17
    %p23 = scmp.ge.s32.totalorder %s22, 1
    %s24 = scalar_select %p23, 0, %s22
    %s25 = sadd.s32 1, %s16
    %s26 = scalar_select %p23, %s25, %s16
    %p27 = scmp.ge.s32.totalorder %s26, 2
    %s28 = scalar_select %p27, 0, %s26
    %s29 = ssub.s32 %s16, %s28
    %s30 = ssub.s32 %s17, %s24
    %s31 = sor.u32 %s29, %s30
    %p32 = scmp.eq.s32.totalorder %s31, 0
    %s34 = sadd.s32 %s33, 1
    %s35 = scalar_select %p32, %s33, %s34
    %p38 = pneg %p32
    %p39 = scmp.eq.s32.totalorder %s9, 1
    %p40 = por %p38, %p39
    %p41 = scmp.ne.s32.totalorder %s33, %s36
    %p42 = scmp.eq.s32.totalorder %s9, 0
    %p43 = por %p41, %p42
    %p44 = scmp.ne.s32.totalorder %s33, %s36
    %p45 = scmp.eq.s32.totalorder %s14, 1
    %p46 = por %p44, %p45
    %p47 = scmp.ne.s32.totalorder %s36, %s37
    %p48 = scmp.eq.s32.totalorder %s14, 0
    %p49 = por %p47, %p48
    %p50 = scmp.ne.s32.totalorder %s36, %s37
    %p51 = scmp.eq.s32.totalorder %s15, 1
    %p52 = por %p50, %p51
    %p54 = scmp.ne.s32.totalorder %s37, %s53
    %p55 = scmp.eq.s32.totalorder %s15, 0
    %p56 = por %p54, %p55
    %s58 = sadd.s32 %s57, 1
    %p61 = scmp.eq.s32.totalorder %s9, 1
    %p62 = scmp.ne.s32.totalorder %s57, %s59
    %p63 = scmp.eq.s32.totalorder %s9, 0
    %p64 = por %p62, %p63
    %p65 = scmp.ne.s32.totalorder %s57, %s59
    %p66 = scmp.eq.s32.totalorder %s14, 1
    %p67 = por %p65, %p66
    %p68 = scmp.ne.s32.totalorder %s59, %s60
    %p69 = scmp.eq.s32.totalorder %s14, 0
    %p70 = por %p68, %p69
    %p71 = scmp.ne.s32.totalorder %s59, %s60
    %p72 = scmp.eq.s32.totalorder %s15, 1
    %p73 = por %p71, %p72
    %p75 = scmp.ne.s32.totalorder %s60, %s74
    %p76 = scmp.eq.s32.totalorder %s15, 0
    %p77 = por %p75, %p76
    %s79 = sadd.s32 %s78, 1
    %p82 = scmp.eq.s32.totalorder %s9, 1
    %p83 = scmp.ne.s32.totalorder %s78, %s80
    %p84 = scmp.eq.s32.totalorder %s9, 0
    %p85 = por %p83, %p84
    %p86 = scmp.ne.s32.totalorder %s78, %s80
    %p87 = scmp.eq.s32.totalorder %s14, 1
    %p88 = por %p86, %p87
    %p89 = scmp.ne.s32.totalorder %s80, %s81
    %p90 = scmp.eq.s32.totalorder %s14, 0
    %p91 = por %p89, %p90
    %p92 = scmp.ne.s32.totalorder %s80, %s81
    %p93 = scmp.eq.s32.totalorder %s15, 1
    %p94 = por %p92, %p93
    %p96 = scmp.ne.s32.totalorder %s81, %s95
    %p97 = scmp.eq.s32.totalorder %s15, 0
    %p98 = por %p96, %p97
    %s99 = ssub.s32 %s16, %s28
    %s100 = ssub.s32 %s17, %s24
    %s101 = sor.u32 %s99, %s100
    %p102 = scmp.eq.s32.totalorder %s101, 0
    %s104 = sadd.s32 %s103, 1
    %s105 = scalar_select %p102, %s103, %s104
    %p108 = pneg %p102
    %p109 = scmp.eq.s32.totalorder %s9, 1
    %p110 = por %p108, %p109
    %p111 = scmp.ne.s32.totalorder %s103, %s106
    %p112 = scmp.eq.s32.totalorder %s9, 0
    %p113 = por %p111, %p112
    %p114 = scmp.ne.s32.totalorder %s103, %s106
    %p115 = scmp.eq.s32.totalorder %s14, 1
    %p116 = por %p114, %p115
    %p117 = scmp.ne.s32.totalorder %s106, %s107
    %p118 = scmp.eq.s32.totalorder %s14, 0
    %p119 = por %p117, %p118
    %p120 = scmp.ne.s32.totalorder %s106, %s107
    %p121 = scmp.eq.s32.totalorder %s15, 1
    %p122 = por %p120, %p121
    %p124 = scmp.ne.s32.totalorder %s107, %s123
    %p125 = scmp.eq.s32.totalorder %s15, 0
    %p126 = por %p124, %p125
    %p127 = scmp.le.s32.totalorder 1, %s9
    %p128 = scmp.lt.s32.totalorder %s9, 3
    %p129 = pnand %p127, %p128
    %p130 = pneg %p129
    // Predicated region
    $region9: #{bottleneck_forward.21} parent=5 // pred_check
      _
    $region10: #{bottleneck_forward.21} parent=5 // pred_check_branch
      %132 = sbr.rel (%p129) target = $region12
    $region11: #{bottleneck_forward.21} parent=5 // pred_region
      %s133 = ssub.s32 %s9, 1
      // Predicated region
      $region13: #{bottleneck_forward.21} parent=11 // pred_check
        %p134 = pneg %p70
      $region14: #{bottleneck_forward.21} parent=11 // pred_check_branch
        %136 = sbr.rel (%p134) target = $region16
      $region15: #{bottleneck_forward.21} parent=11 // pred_region
        _
      $region16: #{bottleneck_forward.21} parent=11 // pred_fallthru
        _
      // Predicated region
      $region17: #{bottleneck_forward.21} parent=11 // pred_check
        %p137 = pneg %p91
      $region18: #{bottleneck_forward.21} parent=11 // pred_check_branch
        %139 = sbr.rel (%p137) target = $region20
      $region19: #{bottleneck_forward.21} parent=11 // pred_region
        _
      $region20: #{bottleneck_forward.21} parent=11 // pred_fallthru
        _
    $region12: #{bottleneck_forward.21} parent=5 // pred_fallthru
      _
    %p140 = scmp.lt.s32.totalorder %s9, 2
    // Predicated region
    $region21: #{bottleneck_forward.21} parent=5 // pred_check
      %p141 = pneg %p140
    $region22: #{bottleneck_forward.21} parent=5 // pred_check_branch
      %143 = sbr.rel (%p141) target = $region24
    $region23: #{bottleneck_forward.21} parent=5 // pred_region
      // Predicated region
      $region25: #{bottleneck_forward.21} parent=23 // pred_check
        %p144 = pneg %p43
      $region26: #{bottleneck_forward.21} parent=23 // pred_check_branch
        %146 = sbr.rel (%p144) target = $region28
      $region27: #{bottleneck_forward.21} parent=23 // pred_region
        %s147 = smul.u32 32, %s17
        %p148 = scmp.lt.s32.totalorder %s16, 1
        %s149 = scalar_select %p148, %s16, 1
        %p150 = scmp.lt.s32.totalorder %s147, 31
        %s151 = scalar_select %p150, %s147, 31
        %s152 = smul.addr %s149, 32
        %s153 = sadd.s32 %s151, %s152
        %s154 = smul.addr %s153, 8
        %s155 = scalar_lea.vmem %s0, %s154
        %s156 = smul.u32 32, %s17
      $region28: #{bottleneck_forward.21} parent=23 // pred_fallthru
        _
    $region24: #{bottleneck_forward.21} parent=5 // pred_fallthru
      _
    %p157 = scmp.le.s32.totalorder 1, %s9
    %p158 = scmp.lt.s32.totalorder %s9, 3
    %p159 = pnand %p157, %p158
    %p160 = pneg %p159
    // Predicated region
    $region29: #{bottleneck_forward.21} parent=5 // pred_check
      _
    $region30: #{bottleneck_forward.21} parent=5 // pred_check_branch
      %162 = sbr.rel (%p159) target = $region32
    $region31: #{bottleneck_forward.21} parent=5 // pred_region
      %s163 = ssub.s32 %s9, 1
      %s164 = smul.u32 32, %s19
      %p165 = scmp.lt.s32.totalorder %s18, 1
      %s166 = scalar_select %p165, %s18, 1
      %p167 = scmp.lt.s32.totalorder %s164, 31
      %s168 = scalar_select %p167, %s164, 31
      %s169 = smul.addr %s166, 32
      %s170 = sadd.s32 %s168, %s169
      %s171 = smul.addr %s170, 8
      %s172 = scalar_lea.vmem %s0, %s171
      %p173 = pneg %p49
      %p174 = pneg %p46
      %p175 = pneg %p70
      %p176 = pneg %p67
      %p177 = pneg %p91
      %p178 = pneg %p88
      %p179 = pneg %p119
      %p180 = pneg %p116
      %s181 = smul.u32 32, %s19
      %p182 = scmp.lt.s32.totalorder %s18, 1
      %s183 = scalar_select %p182, %s18, 1
      %p184 = scmp.lt.s32.totalorder %s181, 31
      %s185 = scalar_select %p184, %s181, 31
      %s186 = smul.addr %s183, 32
      %s187 = sadd.s32 %s185, %s186
      %s188 = smul.addr %s187, 8
      %s189 = scalar_lea.vmem %s3, %s188
      %s190 = smul.u32 32, %s19
      %p191 = scmp.lt.s32.totalorder %s18, 1
      %s192 = scalar_select %p191, %s18, 1
      %p193 = scmp.lt.s32.totalorder %s190, 31
      %s194 = scalar_select %p193, %s190, 31
      %s195 = smul.addr %s192, 32
      %s196 = sadd.s32 %s194, %s195
      %s197 = smul.addr %s196, 8
      %s198 = scalar_lea.vmem %s0, %s197
      %s199 = smul.u32 32, %s19
      %s200 = smul.u32 32, %s19
      %p201 = scmp.lt.s32.totalorder %s18, 1
      %s202 = scalar_select %p201, %s18, 1
      %p203 = scmp.lt.s32.totalorder %s200, 31
      %s204 = scalar_select %p203, %s200, 31
      %s205 = smul.addr %s202, 32
      %s206 = sadd.s32 %s204, %s205
      %s207 = smul.addr %s206, 8
      %s208 = scalar_lea.vmem %s3, %s207
      %s209 = smul.u32 32, %s19
      %v211 = vld [vmem:[%s198] sm:$0xff]
      %v212 = vld [vmem:[%s198 + $0x8] sm:$0xff]
      %v213 = vld [vmem:[%s198 + $0x10] sm:$0xff]
      %v214 = vld [vmem:[%s198 + $0x18] sm:$0xff]
      %v215 = vld [vmem:[%s198 + $0x20] sm:$0xff]
      %v216 = vld [vmem:[%s198 + $0x28] sm:$0xff]
      %v217 = vld [vmem:[%s198 + $0x30] sm:$0xff]
      %v218 = vld [vmem:[%s198 + $0x38] sm:$0xff]
      %v219 = vld [vmem:[%s198 + $0x40] sm:$0xff]
      %v220 = vld [vmem:[%s198 + $0x48] sm:$0xff]
      %v221 = vld [vmem:[%s198 + $0x50] sm:$0xff]
      %v222 = vld [vmem:[%s198 + $0x58] sm:$0xff]
      %v223 = vld [vmem:[%s198 + $0x60] sm:$0xff]
      %v224 = vld [vmem:[%s198 + $0x68] sm:$0xff]
      %v225 = vld [vmem:[%s198 + $0x70] sm:$0xff]
      %v226 = vld [vmem:[%s198 + $0x78] sm:$0xff]
      %v227 = vld [vmem:[%s198 + $0x80] sm:$0xff]
      %v228 = vld [vmem:[%s198 + $0x88] sm:$0xff]
      %v229 = vld [vmem:[%s198 + $0x90] sm:$0xff]
      %v230 = vld [vmem:[%s198 + $0x98] sm:$0xff]
      %v231 = vld [vmem:[%s198 + $0xa0] sm:$0xff]
      %v232 = vld [vmem:[%s198 + $0xa8] sm:$0xff]
      %v233 = vld [vmem:[%s198 + $0xb0] sm:$0xff]
      %v234 = vld [vmem:[%s198 + $0xb8] sm:$0xff]
      %v235 = vld [vmem:[%s198 + $0xc0] sm:$0xff]
      %v236 = vld [vmem:[%s198 + $0xc8] sm:$0xff]
      %v237 = vld [vmem:[%s198 + $0xd0] sm:$0xff]
      %v238 = vld [vmem:[%s198 + $0xd8] sm:$0xff]
      %v239 = vld [vmem:[%s198 + $0xe0] sm:$0xff]
      %v240 = vld [vmem:[%s198 + $0xe8] sm:$0xff]
      %v241 = vld [vmem:[%s198 + $0xf0] sm:$0xff]
      %v242 = vld [vmem:[%s198 + $0xf8] sm:$0xff]
      %v243 = vpack.c.bf16 %v212, %v211
      %v244 = vpack.c.bf16 %v214, %v213
      %v245 = vpack.c.bf16 %v216, %v215
      %v246 = vpack.c.bf16 %v218, %v217
      %v247 = vpack.c.bf16 %v220, %v219
      %v248 = vpack.c.bf16 %v222, %v221
      %v249 = vpack.c.bf16 %v224, %v223
      %v250 = vpack.c.bf16 %v226, %v225
      %v251 = vpack.c.bf16 %v228, %v227
      %v252 = vpack.c.bf16 %v230, %v229
      %v253 = vpack.c.bf16 %v232, %v231
      %v254 = vpack.c.bf16 %v234, %v233
      %v255 = vpack.c.bf16 %v236, %v235
      %v256 = vpack.c.bf16 %v238, %v237
      %v257 = vpack.c.bf16 %v240, %v239
      %v258 = vpack.c.bf16 %v242, %v241
      %v259 = vld [vmem:[%s1] sm:$0xf]
      %vm260 = vcmask 64512
      %v262 = vsel %vm260, %v243, 0
      %v265 = vsel %vm260, %v244, 0
      %v268 = vsel %vm260, %v245, 0
      %v271 = vsel %vm260, %v246, 0
      %v274 = vsel %vm260, %v247, 0
      %v277 = vsel %vm260, %v248, 0
      %v280 = vsel %vm260, %v249, 0
      %v283 = vsel %vm260, %v250, 0
      %v286 = vsel %vm260, %v251, 0
      %v289 = vsel %vm260, %v252, 0
      %v292 = vsel %vm260, %v253, 0
      %v295 = vsel %vm260, %v254, 0
      %v298 = vsel %vm260, %v255, 0
      %v301 = vsel %vm260, %v256, 0
      %v304 = vsel %vm260, %v257, 0
      %v307 = vsel %vm260, %v258, 0
      %vm309 = vcmask 1043456
      %v311 = vsel %vm309, %v259, 0
      %313 = vmatpush.bf16.msra.mxu0 0
      %314 = vmatpush.bf16.msra.mxu0 0
      %315 = vmatpush.bf16.msra.mxu0 0
      %316 = vmatpush.bf16.msra.mxu0 0
      %317 = vmatpush.bf16.msra.mxu0 0
      %318 = vmatpush.bf16.msra.mxu0 0
      %319 = vmatpush.bf16.msra.mxu0 0
      %320 = vmatpush.bf16.msra.mxu0 %v311
      %321 = vmatmul.bf16.gmra.mxu0 %v262
      %v322 = vpop.f32.mrf.mxu0
      %v323 = vadd.f32 0.0, %v322
      %v324 = vpop.f32.mrf.mxu0
      %v325 = vadd.f32 0.0, %v324
      %326 = vmatmul.bf16.gmra.mxu0 %v265
      %v327 = vpop.f32.mrf.mxu0
      %v328 = vadd.f32 0.0, %v327
      %v329 = vpop.f32.mrf.mxu0
      %v330 = vadd.f32 0.0, %v329
      %331 = vmatmul.bf16.gmra.mxu0 %v268
      %v332 = vpop.f32.mrf.mxu0
      %v333 = vadd.f32 0.0, %v332
      %v334 = vpop.f32.mrf.mxu0
      %v335 = vadd.f32 0.0, %v334
      %336 = vmatmul.bf16.gmra.mxu0 %v271
      %v337 = vpop.f32.mrf.mxu0
      %v338 = vadd.f32 0.0, %v337
      %v339 = vpop.f32.mrf.mxu0
      %v340 = vadd.f32 0.0, %v339
      %341 = vmatmul.bf16.gmra.mxu0 %v274
      %v342 = vpop.f32.mrf.mxu0
      %v343 = vadd.f32 0.0, %v342
      %v344 = vpop.f32.mrf.mxu0
      %v345 = vadd.f32 0.0, %v344
      %346 = vmatmul.bf16.gmra.mxu0 %v277
      %v347 = vpop.f32.mrf.mxu0
      %v348 = vadd.f32 0.0, %v347
      %v349 = vpop.f32.mrf.mxu0
      %v350 = vadd.f32 0.0, %v349
      %351 = vmatmul.bf16.gmra.mxu0 %v280
      %v352 = vpop.f32.mrf.mxu0
      %v353 = vadd.f32 0.0, %v352
      %v354 = vpop.f32.mrf.mxu0
      %v355 = vadd.f32 0.0, %v354
      %356 = vmatmul.bf16.gmra.mxu0 %v283
      %v357 = vpop.f32.mrf.mxu0
      %v358 = vadd.f32 0.0, %v357
      %v359 = vpop.f32.mrf.mxu0
      %v360 = vadd.f32 0.0, %v359
      %361 = vmatmul.bf16.gmra.mxu0 %v286
      %v362 = vpop.f32.mrf.mxu0
      %v363 = vadd.f32 0.0, %v362
      %v364 = vpop.f32.mrf.mxu0
      %v365 = vadd.f32 0.0, %v364
      %366 = vmatmul.bf16.gmra.mxu0 %v289
      %v367 = vpop.f32.mrf.mxu0
      %v368 = vadd.f32 0.0, %v367
      %v369 = vpop.f32.mrf.mxu0
      %v370 = vadd.f32 0.0, %v369
      %371 = vmatmul.bf16.gmra.mxu0 %v292
      %v372 = vpop.f32.mrf.mxu0
      %v373 = vadd.f32 0.0, %v372
      %v374 = vpop.f32.mrf.mxu0
      %v375 = vadd.f32 0.0, %v374
      %376 = vmatmul.bf16.gmra.mxu0 %v295
      %v377 = vpop.f32.mrf.mxu0
      %v378 = vadd.f32 0.0, %v377
      %v379 = vpop.f32.mrf.mxu0
      %v380 = vadd.f32 0.0, %v379
      %381 = vmatmul.bf16.gmra.mxu0 %v298
      %v382 = vpop.f32.mrf.mxu0
      %v383 = vadd.f32 0.0, %v382
      %v384 = vpop.f32.mrf.mxu0
      %v385 = vadd.f32 0.0, %v384
      %386 = vmatmul.bf16.gmra.mxu0 %v301
      %v387 = vpop.f32.mrf.mxu0
      %v388 = vadd.f32 0.0, %v387
      %v389 = vpop.f32.mrf.mxu0
      %v390 = vadd.f32 0.0, %v389
      %391 = vmatmul.bf16.gmra.mxu0 %v304
      %v392 = vpop.f32.mrf.mxu0
      %v393 = vadd.f32 0.0, %v392
      %v394 = vpop.f32.mrf.mxu0
      %v395 = vadd.f32 0.0, %v394
      %396 = vmatmul.bf16.gmra.mxu0 %v307
      %v397 = vpop.f32.mrf.mxu0
      %v398 = vadd.f32 0.0, %v397
      %v399 = vpop.f32.mrf.mxu0
      %v400 = vadd.f32 0.0, %v399
      %401 = vdwg.mxu0
      %v402 = vmul.f32 %v211, %v211
      %v403 = vmul.f32 %v212, %v212
      %v404 = vmul.f32 %v213, %v213
      %v405 = vmul.f32 %v214, %v214
      %v406 = vmul.f32 %v215, %v215
      %v407 = vmul.f32 %v216, %v216
      %v408 = vmul.f32 %v217, %v217
      %v409 = vmul.f32 %v218, %v218
      %v410 = vmul.f32 %v219, %v219
      %v411 = vmul.f32 %v220, %v220
      %v412 = vmul.f32 %v221, %v221
      %v413 = vmul.f32 %v222, %v222
      %v414 = vmul.f32 %v223, %v223
      %v415 = vmul.f32 %v224, %v224
      %v416 = vmul.f32 %v225, %v225
      %v417 = vmul.f32 %v226, %v226
      %v418 = vmul.f32 %v227, %v227
      %v419 = vmul.f32 %v228, %v228
      %v420 = vmul.f32 %v229, %v229
      %v421 = vmul.f32 %v230, %v230
      %v422 = vmul.f32 %v231, %v231
      %v423 = vmul.f32 %v232, %v232
      %v424 = vmul.f32 %v233, %v233
      %v425 = vmul.f32 %v234, %v234
      %v426 = vmul.f32 %v235, %v235
      %v427 = vmul.f32 %v236, %v236
      %v428 = vmul.f32 %v237, %v237
      %v429 = vmul.f32 %v238, %v238
      %v430 = vmul.f32 %v239, %v239
      %v431 = vmul.f32 %v240, %v240
      %v432 = vmul.f32 %v241, %v241
      %v433 = vmul.f32 %v242, %v242
      %v434 = vsel %vm260, %v402, 0.0
      %435 = vadd.xlane.f32.xlu0 %v434
      %v436 = vpop.xlane.xlu0 %435
      %v437 = vsel %vm260, %v403, 0.0
      %438 = vadd.xlane.f32.xlu0 %v437
      %v439 = vpop.xlane.xlu0 %438
      %v440 = vsel %vm260, %v404, 0.0
      %441 = vadd.xlane.f32.xlu0 %v440
      %v442 = vpop.xlane.xlu0 %441
      %v443 = vsel %vm260, %v405, 0.0
      %444 = vadd.xlane.f32.xlu0 %v443
      %v445 = vpop.xlane.xlu0 %444
      %v446 = vsel %vm260, %v406, 0.0
      %447 = vadd.xlane.f32.xlu0 %v446
      %v448 = vpop.xlane.xlu0 %447
      %v449 = vsel %vm260, %v407, 0.0
      %450 = vadd.xlane.f32.xlu0 %v449
      %v451 = vpop.xlane.xlu0 %450
      %v452 = vsel %vm260, %v408, 0.0
      %453 = vadd.xlane.f32.xlu0 %v452
      %v454 = vpop.xlane.xlu0 %453
      %v455 = vsel %vm260, %v409, 0.0
      %456 = vadd.xlane.f32.xlu0 %v455
      %v457 = vpop.xlane.xlu0 %456
      %v458 = vsel %vm260, %v410, 0.0
      %459 = vadd.xlane.f32.xlu0 %v458
      %v460 = vpop.xlane.xlu0 %459
      %v461 = vsel %vm260, %v411, 0.0
      %462 = vadd.xlane.f32.xlu0 %v461
      %v463 = vpop.xlane.xlu0 %462
      %v464 = vsel %vm260, %v412, 0.0
      %465 = vadd.xlane.f32.xlu0 %v464
      %v466 = vpop.xlane.xlu0 %465
      %v467 = vsel %vm260, %v413, 0.0
      %468 = vadd.xlane.f32.xlu0 %v467
      %v469 = vpop.xlane.xlu0 %468
      %v470 = vsel %vm260, %v414, 0.0
      %471 = vadd.xlane.f32.xlu0 %v470
      %v472 = vpop.xlane.xlu0 %471
      %v473 = vsel %vm260, %v415, 0.0
      %474 = vadd.xlane.f32.xlu0 %v473
      %v475 = vpop.xlane.xlu0 %474
      %v476 = vsel %vm260, %v416, 0.0
      %477 = vadd.xlane.f32.xlu0 %v476
      %v478 = vpop.xlane.xlu0 %477
      %v479 = vsel %vm260, %v417, 0.0
      %480 = vadd.xlane.f32.xlu0 %v479
      %v481 = vpop.xlane.xlu0 %480
      %v482 = vsel %vm260, %v418, 0.0
      %483 = vadd.xlane.f32.xlu0 %v482
      %v484 = vpop.xlane.xlu0 %483
      %v485 = vsel %vm260, %v419, 0.0
      %486 = vadd.xlane.f32.xlu0 %v485
      %v487 = vpop.xlane.xlu0 %486
      %v488 = vsel %vm260, %v420, 0.0
      %489 = vadd.xlane.f32.xlu0 %v488
      %v490 = vpop.xlane.xlu0 %489
      %v491 = vsel %vm260, %v421, 0.0
      %492 = vadd.xlane.f32.xlu0 %v491
      %v493 = vpop.xlane.xlu0 %492
      %v494 = vsel %vm260, %v422, 0.0
      %495 = vadd.xlane.f32.xlu0 %v494
      %v496 = vpop.xlane.xlu0 %495
      %v497 = vsel %vm260, %v423, 0.0
      %498 = vadd.xlane.f32.xlu0 %v497
      %v499 = vpop.xlane.xlu0 %498
      %v500 = vsel %vm260, %v424, 0.0
      %501 = vadd.xlane.f32.xlu0 %v500
      %v502 = vpop.xlane.xlu0 %501
      %v503 = vsel %vm260, %v425, 0.0
      %504 = vadd.xlane.f32.xlu0 %v503
      %v505 = vpop.xlane.xlu0 %504
      %v506 = vsel %vm260, %v426, 0.0
      %507 = vadd.xlane.f32.xlu0 %v506
      %v508 = vpop.xlane.xlu0 %507
      %v509 = vsel %vm260, %v427, 0.0
      %510 = vadd.xlane.f32.xlu0 %v509
      %v511 = vpop.xlane.xlu0 %510
      %v512 = vsel %vm260, %v428, 0.0
      %513 = vadd.xlane.f32.xlu0 %v512
      %v514 = vpop.xlane.xlu0 %513
      %v515 = vsel %vm260, %v429, 0.0
      %516 = vadd.xlane.f32.xlu0 %v515
      %v517 = vpop.xlane.xlu0 %516
      %v518 = vsel %vm260, %v430, 0.0
      %519 = vadd.xlane.f32.xlu0 %v518
      %v520 = vpop.xlane.xlu0 %519
      %v521 = vsel %vm260, %v431, 0.0
      %522 = vadd.xlane.f32.xlu0 %v521
      %v523 = vpop.xlane.xlu0 %522
      %v524 = vsel %vm260, %v432, 0.0
      %525 = vadd.xlane.f32.xlu0 %v524
      %v526 = vpop.xlane.xlu0 %525
      %v527 = vsel %vm260, %v433, 0.0
      %528 = vadd.xlane.f32.xlu0 %v527
      %v529 = vpop.xlane.xlu0 %528
      %v530 = vld [vmem:[%s2] sm:$0x1]
      %v531 = vmul.f32 %v436, -0.05
      %v532 = vmul.f32 %v439, -0.05
      %v533 = vmul.f32 %v442, -0.05
      %v534 = vmul.f32 %v445, -0.05
      %v535 = vmul.f32 %v448, -0.05
      %v536 = vmul.f32 %v451, -0.05
      %v537 = vmul.f32 %v454, -0.05
      %v538 = vmul.f32 %v457, -0.05
      %v539 = vmul.f32 %v460, -0.05
      %v540 = vmul.f32 %v463, -0.05
      %v541 = vmul.f32 %v466, -0.05
      %v542 = vmul.f32 %v469, -0.05
      %v543 = vmul.f32 %v472, -0.05
      %v544 = vmul.f32 %v475, -0.05
      %v545 = vmul.f32 %v478, -0.05
      %v546 = vmul.f32 %v481, -0.05
      %v547 = vmul.f32 %v484, -0.05
      %v548 = vmul.f32 %v487, -0.05
      %v549 = vmul.f32 %v490, -0.05
      %v550 = vmul.f32 %v493, -0.05
      %v551 = vmul.f32 %v496, -0.05
      %v552 = vmul.f32 %v499, -0.05
      %v553 = vmul.f32 %v502, -0.05
      %v554 = vmul.f32 %v505, -0.05
      %v555 = vmul.f32 %v508, -0.05
      %v556 = vmul.f32 %v511, -0.05
      %v557 = vmul.f32 %v514, -0.05
      %v558 = vmul.f32 %v517, -0.05
      %v559 = vmul.f32 %v520, -0.05
      %v560 = vmul.f32 %v523, -0.05
      %v561 = vmul.f32 %v526, -0.05
      %v562 = vmul.f32 %v529, -0.05
      %v564 = vperm.slane %v530, 0
      %v566 = vadd.f32 %v564, %v531
      %v567 = vadd.f32 %v564, %v532
      %v568 = vadd.f32 %v564, %v533
      %v569 = vadd.f32 %v564, %v534
      %v570 = vadd.f32 %v564, %v535
      %v571 = vadd.f32 %v564, %v536
      %v572 = vadd.f32 %v564, %v537
      %v573 = vadd.f32 %v564, %v538
      %v574 = vadd.f32 %v564, %v539
      %v575 = vadd.f32 %v564, %v540
      %v576 = vadd.f32 %v564, %v541
      %v577 = vadd.f32 %v564, %v542
      %v578 = vadd.f32 %v564, %v543
      %v579 = vadd.f32 %v564, %v544
      %v580 = vadd.f32 %v564, %v545
      %v581 = vadd.f32 %v564, %v546
      %v582 = vadd.f32 %v564, %v547
      %v583 = vadd.f32 %v564, %v548
      %v584 = vadd.f32 %v564, %v549
      %v585 = vadd.f32 %v564, %v550
      %v586 = vadd.f32 %v564, %v551
      %v587 = vadd.f32 %v564, %v552
      %v588 = vadd.f32 %v564, %v553
      %v589 = vadd.f32 %v564, %v554
      %v590 = vadd.f32 %v564, %v555
      %v591 = vadd.f32 %v564, %v556
      %v592 = vadd.f32 %v564, %v557
      %v593 = vadd.f32 %v564, %v558
      %v594 = vadd.f32 %v564, %v559
      %v595 = vadd.f32 %v564, %v560
      %v596 = vadd.f32 %v564, %v561
      %v597 = vadd.f32 %v564, %v562
      %v598 = vadd.f32 %v566, %v323
      %v599 = vadd.f32 %v567, %v325
      %v600 = vadd.f32 %v568, %v328
      %v601 = vadd.f32 %v569, %v330
      %v602 = vadd.f32 %v570, %v333
      %v603 = vadd.f32 %v571, %v335
      %v604 = vadd.f32 %v572, %v338
      %v605 = vadd.f32 %v573, %v340
      %v606 = vadd.f32 %v574, %v343
      %v607 = vadd.f32 %v575, %v345
      %v608 = vadd.f32 %v576, %v348
      %v609 = vadd.f32 %v577, %v350
      %v610 = vadd.f32 %v578, %v353
      %v611 = vadd.f32 %v579, %v355
      %v612 = vadd.f32 %v580, %v358
      %v613 = vadd.f32 %v581, %v360
      %v614 = vadd.f32 %v582, %v363
      %v615 = vadd.f32 %v583, %v365
      %v616 = vadd.f32 %v584, %v368
      %v617 = vadd.f32 %v585, %v370
      %v618 = vadd.f32 %v586, %v373
      %v619 = vadd.f32 %v587, %v375
      %v620 = vadd.f32 %v588, %v378
      %v621 = vadd.f32 %v589, %v380
      %v622 = vadd.f32 %v590, %v383
      %v623 = vadd.f32 %v591, %v385
      %v624 = vadd.f32 %v592, %v388
      %v625 = vadd.f32 %v593, %v390
      %v626 = vadd.f32 %v594, %v393
      %v627 = vadd.f32 %v595, %v395
      %v628 = vadd.f32 %v596, %v398
      %v629 = vadd.f32 %v597, %v400
      %v630 = vmin.f32 %v598, 0.0
      %v631 = vmin.f32 %v599, 0.0
      %v632 = vmin.f32 %v600, 0.0
      %v633 = vmin.f32 %v601, 0.0
      %v634 = vmin.f32 %v602, 0.0
      %v635 = vmin.f32 %v603, 0.0
      %v636 = vmin.f32 %v604, 0.0
      %v637 = vmin.f32 %v605, 0.0
      %v638 = vmin.f32 %v606, 0.0
      %v639 = vmin.f32 %v607, 0.0
      %v640 = vmin.f32 %v608, 0.0
      %v641 = vmin.f32 %v609, 0.0
      %v642 = vmin.f32 %v610, 0.0
      %v643 = vmin.f32 %v611, 0.0
      %v644 = vmin.f32 %v612, 0.0
      %v645 = vmin.f32 %v613, 0.0
      %v646 = vmin.f32 %v614, 0.0
      %v647 = vmin.f32 %v615, 0.0
      %v648 = vmin.f32 %v616, 0.0
      %v649 = vmin.f32 %v617, 0.0
      %v650 = vmin.f32 %v618, 0.0
      %v651 = vmin.f32 %v619, 0.0
      %v652 = vmin.f32 %v620, 0.0
      %v653 = vmin.f32 %v621, 0.0
      %v654 = vmin.f32 %v622, 0.0
      %v655 = vmin.f32 %v623, 0.0
      %v656 = vmin.f32 %v624, 0.0
      %v657 = vmin.f32 %v625, 0.0
      %v658 = vmin.f32 %v626, 0.0
      %v659 = vmin.f32 %v627, 0.0
      %v660 = vmin.f32 %v628, 0.0
      %v661 = vmin.f32 %v629, 0.0
      %v662 = vmul.f32 %v630, 1.442695
      %v663 = vpow.pop %v662
      %v664 = vmul.f32 %v631, 1.442695
      %v665 = vpow.pop %v664
      %v666 = vmul.f32 %v632, 1.442695
      %v667 = vpow.pop %v666
      %v668 = vmul.f32 %v633, 1.442695
      %v669 = vpow.pop %v668
      %v670 = vmul.f32 %v634, 1.442695
      %v671 = vpow.pop %v670
      %v672 = vmul.f32 %v635, 1.442695
      %v673 = vpow.pop %v672
      %v674 = vmul.f32 %v636, 1.442695
      %v675 = vpow.pop %v674
      %v676 = vmul.f32 %v637, 1.442695
      %v677 = vpow.pop %v676
      %v678 = vmul.f32 %v638, 1.442695
      %v679 = vpow.pop %v678
      %v680 = vmul.f32 %v639, 1.442695
      %v681 = vpow.pop %v680
      %v682 = vmul.f32 %v640, 1.442695
      %v683 = vpow.pop %v682
      %v684 = vmul.f32 %v641, 1.442695
      %v685 = vpow.pop %v684
      %v686 = vmul.f32 %v642, 1.442695
      %v687 = vpow.pop %v686
      %v688 = vmul.f32 %v643, 1.442695
      %v689 = vpow.pop %v688
      %v690 = vmul.f32 %v644, 1.442695
      %v691 = vpow.pop %v690
      %v692 = vmul.f32 %v645, 1.442695
      %v693 = vpow.pop %v692
      %v694 = vmul.f32 %v646, 1.442695
      %v695 = vpow.pop %v694
      %v696 = vmul.f32 %v647, 1.442695
      %v697 = vpow.pop %v696
      %v698 = vmul.f32 %v648, 1.442695
      %v699 = vpow.pop %v698
      %v700 = vmul.f32 %v649, 1.442695
      %v701 = vpow.pop %v700
      %v702 = vmul.f32 %v650, 1.442695
      %v703 = vpow.pop %v702
      %v704 = vmul.f32 %v651, 1.442695
      %v705 = vpow.pop %v704
      %v706 = vmul.f32 %v652, 1.442695
      %v707 = vpow.pop %v706
      %v708 = vmul.f32 %v653, 1.442695
      %v709 = vpow.pop %v708
      %v710 = vmul.f32 %v654, 1.442695
      %v711 = vpow.pop %v710
      %v712 = vmul.f32 %v655, 1.442695
      %v713 = vpow.pop %v712
      %v714 = vmul.f32 %v656, 1.442695
      %v715 = vpow.pop %v714
      %v716 = vmul.f32 %v657, 1.442695
      %v717 = vpow.pop %v716
      %v718 = vmul.f32 %v658, 1.442695
      %v719 = vpow.pop %v718
      %v720 = vmul.f32 %v659, 1.442695
      %v721 = vpow.pop %v720
      %v722 = vmul.f32 %v660, 1.442695
      %v723 = vpow.pop %v722
      %v724 = vmul.f32 %v661, 1.442695
      %v725 = vpow.pop %v724
      %vm726 = vcmask 261120
      %727 = vst.msk [vmem:[%s208] sm:$0xff] %vm726, %v663
      %728 = vst.msk [vmem:[%s208 + $0x8] sm:$0xff] %vm726, %v665
      %729 = vst.msk [vmem:[%s208 + $0x10] sm:$0xff] %vm726, %v667
      %730 = vst.msk [vmem:[%s208 + $0x18] sm:$0xff] %vm726, %v669
      %731 = vst.msk [vmem:[%s208 + $0x20] sm:$0xff] %vm726, %v671
      %732 = vst.msk [vmem:[%s208 + $0x28] sm:$0xff] %vm726, %v673
      %733 = vst.msk [vmem:[%s208 + $0x30] sm:$0xff] %vm726, %v675
      %734 = vst.msk [vmem:[%s208 + $0x38] sm:$0xff] %vm726, %v677
      %735 = vst.msk [vmem:[%s208 + $0x40] sm:$0xff] %vm726, %v679
      %736 = vst.msk [vmem:[%s208 + $0x48] sm:$0xff] %vm726, %v681
      %737 = vst.msk [vmem:[%s208 + $0x50] sm:$0xff] %vm726, %v683
      %738 = vst.msk [vmem:[%s208 + $0x58] sm:$0xff] %vm726, %v685
      %739 = vst.msk [vmem:[%s208 + $0x60] sm:$0xff] %vm726, %v687
      %740 = vst.msk [vmem:[%s208 + $0x68] sm:$0xff] %vm726, %v689
      %741 = vst.msk [vmem:[%s208 + $0x70] sm:$0xff] %vm726, %v691
      %742 = vst.msk [vmem:[%s208 + $0x78] sm:$0xff] %vm726, %v693
      %743 = vst.msk [vmem:[%s208 + $0x80] sm:$0xff] %vm726, %v695
      %744 = vst.msk [vmem:[%s208 + $0x88] sm:$0xff] %vm726, %v697
      %745 = vst.msk [vmem:[%s208 + $0x90] sm:$0xff] %vm726, %v699
      %746 = vst.msk [vmem:[%s208 + $0x98] sm:$0xff] %vm726, %v701
      %747 = vst.msk [vmem:[%s208 + $0xa0] sm:$0xff] %vm726, %v703
      %748 = vst.msk [vmem:[%s208 + $0xa8] sm:$0xff] %vm726, %v705
      %749 = vst.msk [vmem:[%s208 + $0xb0] sm:$0xff] %vm726, %v707
      %750 = vst.msk [vmem:[%s208 + $0xb8] sm:$0xff] %vm726, %v709
      %751 = vst.msk [vmem:[%s208 + $0xc0] sm:$0xff] %vm726, %v711
      %752 = vst.msk [vmem:[%s208 + $0xc8] sm:$0xff] %vm726, %v713
      %753 = vst.msk [vmem:[%s208 + $0xd0] sm:$0xff] %vm726, %v715
      %754 = vst.msk [vmem:[%s208 + $0xd8] sm:$0xff] %vm726, %v717
      %755 = vst.msk [vmem:[%s208 + $0xe0] sm:$0xff] %vm726, %v719
      %756 = vst.msk [vmem:[%s208 + $0xe8] sm:$0xff] %vm726, %v721
      %757 = vst.msk [vmem:[%s208 + $0xf0] sm:$0xff] %vm726, %v723
      %758 = vst.msk [vmem:[%s208 + $0xf8] sm:$0xff] %vm726, %v725
      %s759 = smul.u32 32, %s19
      %p760 = scmp.lt.s32.totalorder %s18, 1
      %s761 = scalar_select %p760, %s18, 1
      %p762 = scmp.lt.s32.totalorder %s759, 31
      %s763 = scalar_select %p762, %s759, 31
      %s764 = smul.addr %s761, 32
      %s765 = sadd.s32 %s763, %s764
      %s766 = smul.addr %s765, 8
      %s767 = scalar_lea.vmem %s3, %s766
      // Predicated region
      $region33: #{bottleneck_forward.21} parent=31 // pred_check
        %p768 = pneg %p116
      $region34: #{bottleneck_forward.21} parent=31 // pred_check_branch
        %770 = sbr.rel (%p768) target = $region36
      $region35: #{bottleneck_forward.21} parent=31 // pred_region
        %s771 = smul.u32 32, %s19
      $region36: #{bottleneck_forward.21} parent=31 // pred_fallthru
        _
    $region32: #{bottleneck_forward.21} parent=5 // pred_fallthru
      _
    %p772 = scmp.le.s32.totalorder 2, %s9
    // Predicated region
    $region37: #{bottleneck_forward.21} parent=5 // pred_check
      %p773 = pneg %p772
    $region38: #{bottleneck_forward.21} parent=5 // pred_check_branch
      %775 = sbr.rel (%p773) target = $region40
    $region39: #{bottleneck_forward.21} parent=5 // pred_region
      %s776 = ssub.s32 %s9, 2
      // Predicated region
      $region41: #{bottleneck_forward.21} parent=39 // pred_check
        %p777 = pneg %p122
      $region42: #{bottleneck_forward.21} parent=39 // pred_check_branch
        %779 = sbr.rel (%p777) target = $region44
      $region43: #{bottleneck_forward.21} parent=39 // pred_region
        %s780 = smul.u32 32, %s21
        %p781 = scmp.lt.s32.totalorder %s20, 1
        %s782 = scalar_select %p781, %s20, 1
        %p783 = scmp.lt.s32.totalorder %s780, 31
        %s784 = scalar_select %p783, %s780, 31
        %s785 = smul.addr %s782, 32
        %s786 = sadd.s32 %s784, %s785
        %s787 = smul.addr %s786, 8
        %s788 = scalar_lea.vmem %s3, %s787
      $region44: #{bottleneck_forward.21} parent=39 // pred_fallthru
        _
    $region40: #{bottleneck_forward.21} parent=5 // pred_fallthru
      _
  $region6: #{bottleneck_forward.21} parent=0 // loop_footer
    %s13 = sadd.s32 1, %s9
  $region7: #{bottleneck_forward.21} parent=0 // loop_footer_branch
    %8 = sbr.rel target = $region3
  $region8: #{bottleneck_forward.21} parent=0 // loop_exit
    _

// kernel: bottleneck_forward.22
$region0: #{bottleneck_forward.22}
  #allocation0 [shape = 'u32[]', space=smem, size = 0x4, offset = 0x4, fixed_abs, tag = 'smem constant byte address 0x4 - core index']
  #allocation1 [shape = 'u32[72,128]{1,0:T(1,128)}', space=vmem, size = 0x9000, scoped, tag = 'internal scratch']
  %s0 = inlined_call_operand.vmem [shape: f32[2,32,256], index: 0, kind: input, shape index: {}]
  %s1 = inlined_call_operand.vmem [shape: f32[2,32,1], index: 1, kind: output, shape index: {0}]
  %s2 = inlined_call_operand.vmem [shape: f32[2,32,1], index: 2, kind: output, shape index: {1}]
  %3 = xla_tuple %s1, %s2
  %s4 = sld [smem:[#allocation0]]
  $region49: #{bottleneck_forward.22} parent=0
    _
  %s6 = ssub.s32 1, %s4
  %s7 = scalar_select 0, %s6, %s4
  loop: start=0, step=1, limit=4
  $region2: #{bottleneck_forward.22} parent=0 // loop_pre_header
    _
  $region3: #{bottleneck_forward.22} parent=0 // loop_header
    %s9 = sphi 0, %s13
    %p10 = scmp.ge.s32.totalorder %s9, 4
    %s16 = sphi 0, %s28
    %s17 = sphi 0, %s24
    %s18 = sphi 0, %s16
    %s19 = sphi 0, %s17
    %s20 = sphi 0, %s18
    %s21 = sphi 0, %s19
    %s33 = sphi 0, %s35
    %s36 = sphi 0, %s33
    %s37 = sphi 0, %s36
    %s53 = sphi 0, %s37
    %s59 = sphi 0, %s61
    %s62 = sphi 0, %s59
    %s63 = sphi 0, %s62
    %s79 = sphi 0, %s63
    %s85 = sphi 0, %s87
    %s88 = sphi 0, %s85
    %s89 = sphi 0, %s88
    %s105 = sphi 0, %s89
  $region4: #{bottleneck_forward.22} parent=0 // loop_header_branch
    %12 = sbr.rel (%p10) target = $region8
  $region5: #{bottleneck_forward.22} parent=0 // loop_body
    %s14 = ssub.s32 %s9, 1
    %s15 = ssub.s32 %s9, 2
    %s22 = sadd.s32 1, %s17
    %p23 = scmp.ge.s32.totalorder %s22, 1
    %s24 = scalar_select %p23, 0, %s22
    %s25 = sadd.s32 1, %s16
    %s26 = scalar_select %p23, %s25, %s16
    %p27 = scmp.ge.s32.totalorder %s26, 2
    %s28 = scalar_select %p27, 0, %s26
    %s29 = ssub.s32 %s16, %s28
    %s30 = ssub.s32 %s17, %s24
    %s31 = sor.u32 %s29, %s30
    %p32 = scmp.eq.s32.totalorder %s31, 0
    %s34 = sadd.s32 %s33, 1
    %s35 = scalar_select %p32, %s33, %s34
    %p38 = pneg %p32
    %p39 = scmp.eq.s32.totalorder %s9, 1
    %p40 = por %p38, %p39
    %p41 = scmp.ne.s32.totalorder %s33, %s36
    %p42 = scmp.eq.s32.totalorder %s9, 0
    %p43 = por %p41, %p42
    %p44 = scmp.ne.s32.totalorder %s33, %s36
    %p45 = scmp.eq.s32.totalorder %s14, 1
    %p46 = por %p44, %p45
    %p47 = scmp.ne.s32.totalorder %s36, %s37
    %p48 = scmp.eq.s32.totalorder %s14, 0
    %p49 = por %p47, %p48
    %p50 = scmp.ne.s32.totalorder %s36, %s37
    %p51 = scmp.eq.s32.totalorder %s15, 1
    %p52 = por %p50, %p51
    %p54 = scmp.ne.s32.totalorder %s37, %s53
    %p55 = scmp.eq.s32.totalorder %s15, 0
    %p56 = por %p54, %p55
    %s57 = ssub.s32 %s16, %s28
    %p58 = scmp.eq.s32.totalorder %s57, 0
    %s60 = sadd.s32 %s59, 1
    %s61 = scalar_select %p58, %s59, %s60
    %p64 = pneg %p58
    %p65 = scmp.eq.s32.totalorder %s9, 1
    %p66 = por %p64, %p65
    %p67 = scmp.ne.s32.totalorder %s59, %s62
    %p68 = scmp.eq.s32.totalorder %s9, 0
    %p69 = por %p67, %p68
    %p70 = scmp.ne.s32.totalorder %s59, %s62
    %p71 = scmp.eq.s32.totalorder %s14, 1
    %p72 = por %p70, %p71
    %p73 = scmp.ne.s32.totalorder %s62, %s63
    %p74 = scmp.eq.s32.totalorder %s14, 0
    %p75 = por %p73, %p74
    %p76 = scmp.ne.s32.totalorder %s62, %s63
    %p77 = scmp.eq.s32.totalorder %s15, 1
    %p78 = por %p76, %p77
    %p80 = scmp.ne.s32.totalorder %s63, %s79
    %p81 = scmp.eq.s32.totalorder %s15, 0
    %p82 = por %p80, %p81
    %s83 = ssub.s32 %s16, %s28
    %p84 = scmp.eq.s32.totalorder %s83, 0
    %s86 = sadd.s32 %s85, 1
    %s87 = scalar_select %p84, %s85, %s86
    %p90 = pneg %p84
    %p91 = scmp.eq.s32.totalorder %s9, 1
    %p92 = por %p90, %p91
    %p93 = scmp.ne.s32.totalorder %s85, %s88
    %p94 = scmp.eq.s32.totalorder %s9, 0
    %p95 = por %p93, %p94
    %p96 = scmp.ne.s32.totalorder %s85, %s88
    %p97 = scmp.eq.s32.totalorder %s14, 1
    %p98 = por %p96, %p97
    %p99 = scmp.ne.s32.totalorder %s88, %s89
    %p100 = scmp.eq.s32.totalorder %s14, 0
    %p101 = por %p99, %p100
    %p102 = scmp.ne.s32.totalorder %s88, %s89
    %p103 = scmp.eq.s32.totalorder %s15, 1
    %p104 = por %p102, %p103
    %p106 = scmp.ne.s32.totalorder %s89, %s105
    %p107 = scmp.eq.s32.totalorder %s15, 0
    %p108 = por %p106, %p107
    %p109 = scmp.le.s32.totalorder 1, %s9
    %p110 = scmp.lt.s32.totalorder %s9, 3
    %p111 = pnand %p109, %p110
    %p112 = pneg %p111
    // Predicated region
    $region9: #{bottleneck_forward.22} parent=5 // pred_check
      _
    $region10: #{bottleneck_forward.22} parent=5 // pred_check_branch
      %114 = sbr.rel (%p111) target = $region12
    $region11: #{bottleneck_forward.22} parent=5 // pred_region
      %s115 = ssub.s32 %s9, 1
    $region12: #{bottleneck_forward.22} parent=5 // pred_fallthru
      _
    %p116 = scmp.lt.s32.totalorder %s9, 2
    // Predicated region
    $region13: #{bottleneck_forward.22} parent=5 // pred_check
      %p117 = pneg %p116
    $region14: #{bottleneck_forward.22} parent=5 // pred_check_branch
      %119 = sbr.rel (%p117) target = $region16
    $region15: #{bottleneck_forward.22} parent=5 // pred_region
      // Predicated region
      $region17: #{bottleneck_forward.22} parent=15 // pred_check
        %p120 = pneg %p43
      $region18: #{bottleneck_forward.22} parent=15 // pred_check_branch
        %122 = sbr.rel (%p120) target = $region20
      $region19: #{bottleneck_forward.22} parent=15 // pred_region
        %s123 = smul.u32 2, %s17
        %p124 = scmp.lt.s32.totalorder %s16, 1
        %s125 = scalar_select %p124, %s16, 1
        %p126 = scmp.lt.s32.totalorder %s123, 1
        %s127 = scalar_select %p126, %s123, 1
        %s128 = smul.addr %s125, 8
        %s129 = sadd.s32 %s127, %s128
        %s130 = smul.addr %s129, 8
        %s131 = scalar_lea.vmem %s0, %s130
        %s132 = smul.u32 2, %s17
      $region20: #{bottleneck_forward.22} parent=15 // pred_fallthru
        _
    $region16: #{bottleneck_forward.22} parent=5 // pred_fallthru
      _
    %p133 = scmp.le.s32.totalorder 1, %s9
    %p134 = scmp.lt.s32.totalorder %s9, 3
    %p135 = pnand %p133, %p134
    %p136 = pneg %p135
    // Predicated region
    $region21: #{bottleneck_forward.22} parent=5 // pred_check
      _
    $region22: #{bottleneck_forward.22} parent=5 // pred_check_branch
      %138 = sbr.rel (%p135) target = $region24
    $region23: #{bottleneck_forward.22} parent=5 // pred_region
      %s139 = ssub.s32 %s9, 1
      %s140 = smul.u32 2, %s19
      %p141 = scmp.lt.s32.totalorder %s18, 1
      %s142 = scalar_select %p141, %s18, 1
      %p143 = scmp.lt.s32.totalorder %s140, 1
      %s144 = scalar_select %p143, %s140, 1
      %s145 = smul.addr %s142, 8
      %s146 = sadd.s32 %s144, %s145
      %s147 = smul.addr %s146, 8
      %s148 = scalar_lea.vmem %s0, %s147
      %p149 = pneg %p49
      %p150 = pneg %p46
      %p151 = pneg %p75
      %p152 = pneg %p72
      %p153 = scmp.lt.s32.totalorder %s18, 1
      %s154 = scalar_select %p153, %s18, 1
      %s155 = smul.addr %s154, 4
      %s156 = smul.addr %s155, 8
      %s157 = scalar_lea.vmem %s1, %s156
      %p158 = pneg %p101
      %p159 = pneg %p98
      %p160 = scmp.lt.s32.totalorder %s18, 1
      %s161 = scalar_select %p160, %s18, 1
      %s162 = smul.addr %s161, 4
      %s163 = smul.addr %s162, 8
      %s164 = scalar_lea.vmem %s2, %s163
      %s165 = smul.u32 2, %s19
      %p166 = scmp.lt.s32.totalorder %s18, 1
      %s167 = scalar_select %p166, %s18, 1
      %p168 = scmp.lt.s32.totalorder %s165, 1
      %s169 = scalar_select %p168, %s165, 1
      %s170 = smul.addr %s167, 8
      %s171 = sadd.s32 %s169, %s170
      %s172 = smul.addr %s171, 8
      %s173 = scalar_lea.vmem %s0, %s172
      %s174 = smul.u32 2, %s19
      %p175 = scmp.lt.s32.totalorder %s18, 1
      %s176 = scalar_select %p175, %s18, 1
      %s177 = smul.addr %s176, 4
      %s178 = smul.addr %s177, 8
      %s179 = scalar_lea.vmem %s1, %s178
      %p180 = scmp.lt.s32.totalorder %s18, 1
      %s181 = scalar_select %p180, %s18, 1
      %s182 = smul.addr %s181, 4
      %s183 = smul.addr %s182, 8
      %s184 = scalar_lea.vmem %s2, %s183
      %p185 = scmp.eq.s32.totalorder %s19, 0
      // Predicated region
      $region25: #{bottleneck_forward.22} parent=23 // pred_check
        %p186 = pneg %p185
      $region26: #{bottleneck_forward.22} parent=23 // pred_check_branch
        %188 = sbr.rel (%p186) target = $region28
      $region27: #{bottleneck_forward.22} parent=23 // pred_region
        %vm189 = vcmask 7168
        %190 = vst.msk [vmem:[%s179] sm:$0xff] %vm189, 0.0
        %191 = vst.msk [vmem:[%s179 + $0x8] sm:$0xff] %vm189, 0.0
        %192 = vst.msk [vmem:[%s179 + $0x10] sm:$0xff] %vm189, 0.0
        %193 = vst.msk [vmem:[%s179 + $0x18] sm:$0xff] %vm189, 0.0
        %194 = vst.msk [vmem:[%s184] sm:$0xff] %vm189, 0.0
        %195 = vst.msk [vmem:[%s184 + $0x8] sm:$0xff] %vm189, 0.0
        %196 = vst.msk [vmem:[%s184 + $0x10] sm:$0xff] %vm189, 0.0
        %197 = vst.msk [vmem:[%s184 + $0x18] sm:$0xff] %vm189, 0.0
      $region28: #{bottleneck_forward.22} parent=23 // pred_fallthru
        _
      %v198 = vld [vmem:[%s173] sm:$0xff]
      %v199 = vld [vmem:[%s173 + $0x8] sm:$0xff]
      %v200 = vld [vmem:[%s173 + $0x10] sm:$0xff]
      %v201 = vld [vmem:[%s173 + $0x18] sm:$0xff]
      %v202 = vld [vmem:[%s173 + $0x20] sm:$0xff]
      %v203 = vld [vmem:[%s173 + $0x28] sm:$0xff]
      %v204 = vld [vmem:[%s173 + $0x30] sm:$0xff]
      %v205 = vld [vmem:[%s173 + $0x38] sm:$0xff]
      %v206 = vld [vmem:[%s179] sm:$0xff]
      %v207 = vld [vmem:[%s179 + $0x8] sm:$0xff]
      %v208 = vld [vmem:[%s179 + $0x10] sm:$0xff]
      %v209 = vld [vmem:[%s179 + $0x18] sm:$0xff]
      %v210 = vadd.f32 %v198, %v199
      %211 = vadd.xlane.f32.xlu0 %v210
      %v212 = vpop.xlane.xlu0 %211
      %v213 = vadd.f32 %v200, %v201
      %214 = vadd.xlane.f32.xlu0 %v213
      %v215 = vpop.xlane.xlu0 %214
      %v216 = vadd.f32 %v202, %v203
      %217 = vadd.xlane.f32.xlu0 %v216
      %v218 = vpop.xlane.xlu0 %217
      %v219 = vadd.f32 %v204, %v205
      %220 = vadd.xlane.f32.xlu0 %v219
      %v221 = vpop.xlane.xlu0 %220
      %v222 = vadd.f32 %v206, %v212
      %v223 = vadd.f32 %v207, %v215
      %v224 = vadd.f32 %v208, %v218
      %v225 = vadd.f32 %v209, %v221
      %vm226 = vcmask 7168
      %227 = vst.msk [vmem:[%s179] sm:$0xff] %vm226, %v222
      %228 = vst.msk [vmem:[%s179 + $0x8] sm:$0xff] %vm226, %v223
      %229 = vst.msk [vmem:[%s179 + $0x10] sm:$0xff] %vm226, %v224
      %230 = vst.msk [vmem:[%s179 + $0x18] sm:$0xff] %vm226, %v225
      %v231 = vld [vmem:[%s184] sm:$0xff]
      %v232 = vld [vmem:[%s184 + $0x8] sm:$0xff]
      %v233 = vld [vmem:[%s184 + $0x10] sm:$0xff]
      %v234 = vld [vmem:[%s184 + $0x18] sm:$0xff]
      %v235 = vmul.f32 %v198, %v198
      %v236 = vmul.f32 %v199, %v199
      %v237 = vmul.f32 %v200, %v200
      %v238 = vmul.f32 %v201, %v201
      %v239 = vmul.f32 %v202, %v202
      %v240 = vmul.f32 %v203, %v203
      %v241 = vmul.f32 %v204, %v204
      %v242 = vmul.f32 %v205, %v205
      %v243 = vadd.f32 %v235, %v236
      %244 = vadd.xlane.f32.xlu0 %v243
      %v245 = vpop.xlane.xlu0 %244
      %v246 = vadd.f32 %v237, %v238
      %247 = vadd.xlane.f32.xlu0 %v246
      %v248 = vpop.xlane.xlu0 %247
      %v249 = vadd.f32 %v239, %v240
      %250 = vadd.xlane.f32.xlu0 %v249
      %v251 = vpop.xlane.xlu0 %250
      %v252 = vadd.f32 %v241, %v242
      %253 = vadd.xlane.f32.xlu0 %v252
      %v254 = vpop.xlane.xlu0 %253
      %v255 = vadd.f32 %v231, %v245
      %v256 = vadd.f32 %v232, %v248
      %v257 = vadd.f32 %v233, %v251
      %v258 = vadd.f32 %v234, %v254
      %259 = vst.msk [vmem:[%s184] sm:$0xff] %vm226, %v255
      %260 = vst.msk [vmem:[%s184 + $0x8] sm:$0xff] %vm226, %v256
      %261 = vst.msk [vmem:[%s184 + $0x10] sm:$0xff] %vm226, %v257
      %262 = vst.msk [vmem:[%s184 + $0x18] sm:$0xff] %vm226, %v258
      %p263 = scmp.lt.s32.totalorder %s18, 1
      %s264 = scalar_select %p263, %s18, 1
      %s265 = smul.addr %s264, 4
      %s266 = smul.addr %s265, 8
      %s267 = scalar_lea.vmem %s1, %s266
      %p268 = scmp.lt.s32.totalorder %s18, 1
      %s269 = scalar_select %p268, %s18, 1
      %s270 = smul.addr %s269, 4
      %s271 = smul.addr %s270, 8
      %s272 = scalar_lea.vmem %s2, %s271
      // Predicated region
      $region29: #{bottleneck_forward.22} parent=23 // pred_check
        %p273 = pneg %p72
      $region30: #{bottleneck_forward.22} parent=23 // pred_check_branch
        %275 = sbr.rel (%p273) target = $region32
      $region31: #{bottleneck_forward.22} parent=23 // pred_region
        _
      $region32: #{bottleneck_forward.22} parent=23 // pred_fallthru
        _
      // Predicated region
      $region33: #{bottleneck_forward.22} parent=23 // pred_check
        %p276 = pneg %p98
      $region34: #{bottleneck_forward.22} parent=23 // pred_check_branch
        %278 = sbr.rel (%p276) target = $region36
      $region35: #{bottleneck_forward.22} parent=23 // pred_region
        _
      $region36: #{bottleneck_forward.22} parent=23 // pred_fallthru
        _
    $region24: #{bottleneck_forward.22} parent=5 // pred_fallthru
      _
    %p279 = scmp.le.s32.totalorder 2, %s9
    // Predicated region
    $region37: #{bottleneck_forward.22} parent=5 // pred_check
      %p280 = pneg %p279
    $region38: #{bottleneck_forward.22} parent=5 // pred_check_branch
      %282 = sbr.rel (%p280) target = $region40
    $region39: #{bottleneck_forward.22} parent=5 // pred_region
      %s283 = ssub.s32 %s9, 2
      // Predicated region
      $region41: #{bottleneck_forward.22} parent=39 // pred_check
        %p284 = pneg %p78
      $region42: #{bottleneck_forward.22} parent=39 // pred_check_branch
        %286 = sbr.rel (%p284) target = $region44
      $region43: #{bottleneck_forward.22} parent=39 // pred_region
        %p287 = scmp.lt.s32.totalorder %s20, 1
        %s288 = scalar_select %p287, %s20, 1
        %s289 = smul.addr %s288, 4
        %s290 = smul.addr %s289, 8
        %s291 = scalar_lea.vmem %s1, %s290
      $region44: #{bottleneck_forward.22} parent=39 // pred_fallthru
        _
      // Predicated region
      $region45: #{bottleneck_forward.22} parent=39 // pred_check
        %p292 = pneg %p104
      $region46: #{bottleneck_forward.22} parent=39 // pred_check_branch
        %294 = sbr.rel (%p292) target = $region48
      $region47: #{bottleneck_forward.22} parent=39 // pred_region
        %p295 = scmp.lt.s32.totalorder %s20, 1
        %s296 = scalar_select %p295, %s20, 1
        %s297 = smul.addr %s296, 4
        %s298 = smul.addr %s297, 8
        %s299 = scalar_lea.vmem %s2, %s298
      $region48: #{bottleneck_forward.22} parent=39 // pred_fallthru
        _
    $region40: #{bottleneck_forward.22} parent=5 // pred_fallthru
      _
  $region6: #{bottleneck_forward.22} parent=0 // loop_footer
    %s13 = sadd.s32 1, %s9
  $region7: #{bottleneck_forward.22} parent=0 // loop_footer_branch
    %8 = sbr.rel target = $region3
  $region8: #{bottleneck_forward.22} parent=0 // loop_exit
    _

// kernel: bottleneck_forward.20
$region0: #{bottleneck_forward.20}
  #allocation0 [shape = 'u32[]', space=smem, size = 0x4, offset = 0x4, fixed_abs, tag = 'smem constant byte address 0x4 - core index']
  #allocation1 [shape = 'u32[72,128]{1,0:T(1,128)}', space=vmem, size = 0x9000, scoped, tag = 'internal scratch']
  %s0 = inlined_call_operand.vmem [shape: f32[2,32,256], index: 0, kind: input, shape index: {}]
  %s1 = inlined_call_operand.vmem [shape: f32[32,1], index: 1, kind: input, shape index: {}]
  %s2 = inlined_call_operand.vmem [shape: f32[32,1], index: 2, kind: input, shape index: {}]
  %s3 = inlined_call_operand.vmem [shape: f32[2,256,32], index: 3, kind: output, shape index: {}]
  %s4 = sld [smem:[#allocation0]]
  $region45: #{bottleneck_forward.20} parent=0
    _
  %s6 = ssub.s32 1, %s4
  %s7 = scalar_select 0, %s6, %s4
  loop: start=0, step=1, limit=4
  $region2: #{bottleneck_forward.20} parent=0 // loop_pre_header
    _
  $region3: #{bottleneck_forward.20} parent=0 // loop_header
    %s9 = sphi 0, %s13
    %p10 = scmp.ge.s32.totalorder %s9, 4
    %s16 = sphi 0, %s28
    %s17 = sphi 0, %s24
    %s18 = sphi 0, %s16
    %s19 = sphi 0, %s17
    %s20 = sphi 0, %s18
    %s21 = sphi 0, %s19
    %s33 = sphi 0, %s35
    %s36 = sphi 0, %s33
    %s37 = sphi 0, %s36
    %s53 = sphi 0, %s37
    %s57 = sphi 0, %s57
    %s59 = sphi 0, %s57
    %s60 = sphi 0, %s59
    %s74 = sphi 0, %s60
    %s78 = sphi 0, %s78
    %s80 = sphi 0, %s78
    %s81 = sphi 0, %s80
    %s95 = sphi 0, %s81
    %s103 = sphi 0, %s105
    %s106 = sphi 0, %s103
    %s107 = sphi 0, %s106
    %s123 = sphi 0, %s107
  $region4: #{bottleneck_forward.20} parent=0 // loop_header_branch
    %12 = sbr.rel (%p10) target = $region8
  $region5: #{bottleneck_forward.20} parent=0 // loop_body
    %s14 = ssub.s32 %s9, 1
    %s15 = ssub.s32 %s9, 2
    %s22 = sadd.s32 1, %s17
    %p23 = scmp.ge.s32.totalorder %s22, 1
    %s24 = scalar_select %p23, 0, %s22
    %s25 = sadd.s32 1, %s16
    %s26 = scalar_select %p23, %s25, %s16
    %p27 = scmp.ge.s32.totalorder %s26, 2
    %s28 = scalar_select %p27, 0, %s26
    %s29 = ssub.s32 %s16, %s28
    %s30 = ssub.s32 %s17, %s24
    %s31 = sor.u32 %s29, %s30
    %p32 = scmp.eq.s32.totalorder %s31, 0
    %s34 = sadd.s32 %s33, 1
    %s35 = scalar_select %p32, %s33, %s34
    %p38 = pneg %p32
    %p39 = scmp.eq.s32.totalorder %s9, 1
    %p40 = por %p38, %p39
    %p41 = scmp.ne.s32.totalorder %s33, %s36
    %p42 = scmp.eq.s32.totalorder %s9, 0
    %p43 = por %p41, %p42
    %p44 = scmp.ne.s32.totalorder %s33, %s36
    %p45 = scmp.eq.s32.totalorder %s14, 1
    %p46 = por %p44, %p45
    %p47 = scmp.ne.s32.totalorder %s36, %s37
    %p48 = scmp.eq.s32.totalorder %s14, 0
    %p49 = por %p47, %p48
    %p50 = scmp.ne.s32.totalorder %s36, %s37
    %p51 = scmp.eq.s32.totalorder %s15, 1
    %p52 = por %p50, %p51
    %p54 = scmp.ne.s32.totalorder %s37, %s53
    %p55 = scmp.eq.s32.totalorder %s15, 0
    %p56 = por %p54, %p55
    %s58 = sadd.s32 %s57, 1
    %p61 = scmp.eq.s32.totalorder %s9, 1
    %p62 = scmp.ne.s32.totalorder %s57, %s59
    %p63 = scmp.eq.s32.totalorder %s9, 0
    %p64 = por %p62, %p63
    %p65 = scmp.ne.s32.totalorder %s57, %s59
    %p66 = scmp.eq.s32.totalorder %s14, 1
    %p67 = por %p65, %p66
    %p68 = scmp.ne.s32.totalorder %s59, %s60
    %p69 = scmp.eq.s32.totalorder %s14, 0
    %p70 = por %p68, %p69
    %p71 = scmp.ne.s32.totalorder %s59, %s60
    %p72 = scmp.eq.s32.totalorder %s15, 1
    %p73 = por %p71, %p72
    %p75 = scmp.ne.s32.totalorder %s60, %s74
    %p76 = scmp.eq.s32.totalorder %s15, 0
    %p77 = por %p75, %p76
    %s79 = sadd.s32 %s78, 1
    %p82 = scmp.eq.s32.totalorder %s9, 1
    %p83 = scmp.ne.s32.totalorder %s78, %s80
    %p84 = scmp.eq.s32.totalorder %s9, 0
    %p85 = por %p83, %p84
    %p86 = scmp.ne.s32.totalorder %s78, %s80
    %p87 = scmp.eq.s32.totalorder %s14, 1
    %p88 = por %p86, %p87
    %p89 = scmp.ne.s32.totalorder %s80, %s81
    %p90 = scmp.eq.s32.totalorder %s14, 0
    %p91 = por %p89, %p90
    %p92 = scmp.ne.s32.totalorder %s80, %s81
    %p93 = scmp.eq.s32.totalorder %s15, 1
    %p94 = por %p92, %p93
    %p96 = scmp.ne.s32.totalorder %s81, %s95
    %p97 = scmp.eq.s32.totalorder %s15, 0
    %p98 = por %p96, %p97
    %s99 = ssub.s32 %s16, %s28
    %s100 = ssub.s32 %s17, %s24
    %s101 = sor.u32 %s99, %s100
    %p102 = scmp.eq.s32.totalorder %s101, 0
    %s104 = sadd.s32 %s103, 1
    %s105 = scalar_select %p102, %s103, %s104
    %p108 = pneg %p102
    %p109 = scmp.eq.s32.totalorder %s9, 1
    %p110 = por %p108, %p109
    %p111 = scmp.ne.s32.totalorder %s103, %s106
    %p112 = scmp.eq.s32.totalorder %s9, 0
    %p113 = por %p111, %p112
    %p114 = scmp.ne.s32.totalorder %s103, %s106
    %p115 = scmp.eq.s32.totalorder %s14, 1
    %p116 = por %p114, %p115
    %p117 = scmp.ne.s32.totalorder %s106, %s107
    %p118 = scmp.eq.s32.totalorder %s14, 0
    %p119 = por %p117, %p118
    %p120 = scmp.ne.s32.totalorder %s106, %s107
    %p121 = scmp.eq.s32.totalorder %s15, 1
    %p122 = por %p120, %p121
    %p124 = scmp.ne.s32.totalorder %s107, %s123
    %p125 = scmp.eq.s32.totalorder %s15, 0
    %p126 = por %p124, %p125
    %p127 = scmp.le.s32.totalorder 1, %s9
    %p128 = scmp.lt.s32.totalorder %s9, 3
    %p129 = pnand %p127, %p128
    %p130 = pneg %p129
    // Predicated region
    $region9: #{bottleneck_forward.20} parent=5 // pred_check
      _
    $region10: #{bottleneck_forward.20} parent=5 // pred_check_branch
      %132 = sbr.rel (%p129) target = $region12
    $region11: #{bottleneck_forward.20} parent=5 // pred_region
      %s133 = ssub.s32 %s9, 1
      // Predicated region
      $region13: #{bottleneck_forward.20} parent=11 // pred_check
        %p134 = pneg %p70
      $region14: #{bottleneck_forward.20} parent=11 // pred_check_branch
        %136 = sbr.rel (%p134) target = $region16
      $region15: #{bottleneck_forward.20} parent=11 // pred_region
        _
      $region16: #{bottleneck_forward.20} parent=11 // pred_fallthru
        _
      // Predicated region
      $region17: #{bottleneck_forward.20} parent=11 // pred_check
        %p137 = pneg %p91
      $region18: #{bottleneck_forward.20} parent=11 // pred_check_branch
        %139 = sbr.rel (%p137) target = $region20
      $region19: #{bottleneck_forward.20} parent=11 // pred_region
        _
      $region20: #{bottleneck_forward.20} parent=11 // pred_fallthru
        _
    $region12: #{bottleneck_forward.20} parent=5 // pred_fallthru
      _
    %p140 = scmp.lt.s32.totalorder %s9, 2
    // Predicated region
    $region21: #{bottleneck_forward.20} parent=5 // pred_check
      %p141 = pneg %p140
    $region22: #{bottleneck_forward.20} parent=5 // pred_check_branch
      %143 = sbr.rel (%p141) target = $region24
    $region23: #{bottleneck_forward.20} parent=5 // pred_region
      // Predicated region
      $region25: #{bottleneck_forward.20} parent=23 // pred_check
        %p144 = pneg %p43
      $region26: #{bottleneck_forward.20} parent=23 // pred_check_branch
        %146 = sbr.rel (%p144) target = $region28
      $region27: #{bottleneck_forward.20} parent=23 // pred_region
        %s147 = smul.u32 2, %s17
        %p148 = scmp.lt.s32.totalorder %s16, 1
        %s149 = scalar_select %p148, %s16, 1
        %p150 = scmp.lt.s32.totalorder %s147, 1
        %s151 = scalar_select %p150, %s147, 1
        %s152 = smul.addr %s149, 8
        %s153 = sadd.s32 %s151, %s152
        %s154 = smul.addr %s153, 8
        %s155 = scalar_lea.vmem %s0, %s154
        %s156 = smul.u32 2, %s17
      $region28: #{bottleneck_forward.20} parent=23 // pred_fallthru
        _
    $region24: #{bottleneck_forward.20} parent=5 // pred_fallthru
      _
    %p157 = scmp.le.s32.totalorder 1, %s9
    %p158 = scmp.lt.s32.totalorder %s9, 3
    %p159 = pnand %p157, %p158
    %p160 = pneg %p159
    // Predicated region
    $region29: #{bottleneck_forward.20} parent=5 // pred_check
      _
    $region30: #{bottleneck_forward.20} parent=5 // pred_check_branch
      %162 = sbr.rel (%p159) target = $region32
    $region31: #{bottleneck_forward.20} parent=5 // pred_region
      %s163 = ssub.s32 %s9, 1
      %s164 = smul.u32 2, %s19
      %p165 = scmp.lt.s32.totalorder %s18, 1
      %s166 = scalar_select %p165, %s18, 1
      %p167 = scmp.lt.s32.totalorder %s164, 1
      %s168 = scalar_select %p167, %s164, 1
      %s169 = smul.addr %s166, 8
      %s170 = sadd.s32 %s168, %s169
      %s171 = smul.addr %s170, 8
      %s172 = scalar_lea.vmem %s0, %s171
      %p173 = pneg %p49
      %p174 = pneg %p46
      %p175 = pneg %p70
      %p176 = pneg %p67
      %p177 = pneg %p91
      %p178 = pneg %p88
      %p179 = pneg %p119
      %p180 = pneg %p116
      %s181 = smul.u32 32, %s19
      %p182 = scmp.lt.s32.totalorder %s18, 1
      %s183 = scalar_select %p182, %s18, 1
      %p184 = scmp.lt.s32.totalorder %s181, 31
      %s185 = scalar_select %p184, %s181, 31
      %s186 = smul.addr %s183, 32
      %s187 = sadd.s32 %s185, %s186
      %s188 = smul.addr %s187, 8
      %s189 = scalar_lea.vmem %s3, %s188
      %s190 = smul.u32 2, %s19
      %p191 = scmp.lt.s32.totalorder %s18, 1
      %s192 = scalar_select %p191, %s18, 1
      %p193 = scmp.lt.s32.totalorder %s190, 1
      %s194 = scalar_select %p193, %s190, 1
      %s195 = smul.addr %s192, 8
      %s196 = sadd.s32 %s194, %s195
      %s197 = smul.addr %s196, 8
      %s198 = scalar_lea.vmem %s0, %s197
      %s199 = smul.u32 2, %s19
      %s200 = smul.u32 32, %s19
      %p201 = scmp.lt.s32.totalorder %s18, 1
      %s202 = scalar_select %p201, %s18, 1
      %p203 = scmp.lt.s32.totalorder %s200, 31
      %s204 = scalar_select %p203, %s200, 31
      %s205 = smul.addr %s202, 32
      %s206 = sadd.s32 %s204, %s205
      %s207 = smul.addr %s206, 8
      %s208 = scalar_lea.vmem %s3, %s207
      %s209 = smul.u32 32, %s19
      %v210 = vld [vmem:[%s198] sm:$0xff]
      %v211 = vld [vmem:[%s198 + $0x8] sm:$0xff]
      %v212 = vld [vmem:[%s198 + $0x10] sm:$0xff]
      %v213 = vld [vmem:[%s198 + $0x18] sm:$0xff]
      %v214 = vld [vmem:[%s198 + $0x20] sm:$0xff]
      %v215 = vld [vmem:[%s198 + $0x28] sm:$0xff]
      %v216 = vld [vmem:[%s198 + $0x30] sm:$0xff]
      %v217 = vld [vmem:[%s198 + $0x38] sm:$0xff]
      %v218 = vld [vmem:[%s1] sm:$0xff]
      %v219 = vld [vmem:[%s1 + $0x8] sm:$0xff]
      %v220 = vld [vmem:[%s1 + $0x10] sm:$0xff]
      %v221 = vld [vmem:[%s1 + $0x18] sm:$0xff]
      %223 = vset.pattern.permute.xlu0 0
      %224 = vperm.xlu0 %223, %v218
      %v225 = vpop.permute.xlu0 %224
      %228 = vset.pattern.permute.xlu0 0
      %229 = vperm.xlu0 %228, %v219
      %v230 = vpop.permute.xlu0 %229
      %233 = vset.pattern.permute.xlu0 0
      %234 = vperm.xlu0 %233, %v220
      %v235 = vpop.permute.xlu0 %234
      %238 = vset.pattern.permute.xlu0 0
      %239 = vperm.xlu0 %238, %v221
      %v240 = vpop.permute.xlu0 %239
      %v242 = vmul.f32 %v210, %v225
      %v243 = vmul.f32 %v211, %v225
      %v244 = vmul.f32 %v212, %v230
      %v245 = vmul.f32 %v213, %v230
      %v246 = vmul.f32 %v214, %v235
      %v247 = vmul.f32 %v215, %v235
      %v248 = vmul.f32 %v216, %v240
      %v249 = vmul.f32 %v217, %v240
      %v250 = vld [vmem:[%s2] sm:$0xff]
      %v251 = vld [vmem:[%s2 + $0x8] sm:$0xff]
      %v252 = vld [vmem:[%s2 + $0x10] sm:$0xff]
      %v253 = vld [vmem:[%s2 + $0x18] sm:$0xff]
      %255 = vset.pattern.permute.xlu0 0
      %256 = vperm.xlu0 %255, %v250
      %v257 = vpop.permute.xlu0 %256
      %260 = vset.pattern.permute.xlu0 0
      %261 = vperm.xlu0 %260, %v251
      %v262 = vpop.permute.xlu0 %261
      %265 = vset.pattern.permute.xlu0 0
      %266 = vperm.xlu0 %265, %v252
      %v267 = vpop.permute.xlu0 %266
      %270 = vset.pattern.permute.xlu0 0
      %271 = vperm.xlu0 %270, %v253
      %v272 = vpop.permute.xlu0 %271
      %v274 = vadd.f32 %v242, %v257
      %v275 = vadd.f32 %v243, %v257
      %v276 = vadd.f32 %v244, %v262
      %v277 = vadd.f32 %v245, %v262
      %v278 = vadd.f32 %v246, %v267
      %v279 = vadd.f32 %v247, %v267
      %v280 = vadd.f32 %v248, %v272
      %v281 = vadd.f32 %v249, %v272
      %282 = vxpose.xlu0.b32.start [1/16] %v274, 128
      %283 = vxpose.xlu0.b32.cont [2/16] %v276, 128
      %284 = vxpose.xlu0.b32.cont [3/16] %v278, 128
      %285 = vxpose.xlu0.b32.cont [4/16] %v280, 128
      %286 = vxpose.xlu0.b32.cont [5/16] 0.0, 128
      %287 = vxpose.xlu0.b32.cont [6/16] 0.0, 128
      %288 = vxpose.xlu0.b32.cont [7/16] 0.0, 128
      %289 = vxpose.xlu0.b32.cont [8/16] 0.0, 128
      %290 = vxpose.xlu0.b32.cont [9/16] 0.0, 128
      %291 = vxpose.xlu0.b32.cont [10/16] 0.0, 128
      %292 = vxpose.xlu0.b32.cont [11/16] 0.0, 128
      %293 = vxpose.xlu0.b32.cont [12/16] 0.0, 128
      %294 = vxpose.xlu0.b32.cont [13/16] 0.0, 128
      %295 = vxpose.xlu0.b32.cont [14/16] 0.0, 128
      %296 = vxpose.xlu0.b32.cont [15/16] 0.0, 128
      %297 = vxpose.xlu0.b32.end [16/16] 0.0, 128
      %v298 = vpop.trf.xlu0
      %v299 = vpop.trf.xlu0
      %v300 = vpop.trf.xlu0
      %v301 = vpop.trf.xlu0
      %v302 = vpop.trf.xlu0
      %v303 = vpop.trf.xlu0
      %v304 = vpop.trf.xlu0
      %v305 = vpop.trf.xlu0
      %v306 = vpop.trf.xlu0
      %v307 = vpop.trf.xlu0
      %v308 = vpop.trf.xlu0
      %v309 = vpop.trf.xlu0
      %v310 = vpop.trf.xlu0
      %v311 = vpop.trf.xlu0
      %v312 = vpop.trf.xlu0
      %v313 = vpop.trf.xlu0
      %314 = vxpose.xlu0.b32.start [1/16] %v275, 128
      %315 = vxpose.xlu0.b32.cont [2/16] %v277, 128
      %316 = vxpose.xlu0.b32.cont [3/16] %v279, 128
      %317 = vxpose.xlu0.b32.cont [4/16] %v281, 128
      %318 = vxpose.xlu0.b32.cont [5/16] 0.0, 128
      %319 = vxpose.xlu0.b32.cont [6/16] 0.0, 128
      %320 = vxpose.xlu0.b32.cont [7/16] 0.0, 128
      %321 = vxpose.xlu0.b32.cont [8/16] 0.0, 128
      %322 = vxpose.xlu0.b32.cont [9/16] 0.0, 128
      %323 = vxpose.xlu0.b32.cont [10/16] 0.0, 128
      %324 = vxpose.xlu0.b32.cont [11/16] 0.0, 128
      %325 = vxpose.xlu0.b32.cont [12/16] 0.0, 128
      %326 = vxpose.xlu0.b32.cont [13/16] 0.0, 128
      %327 = vxpose.xlu0.b32.cont [14/16] 0.0, 128
      %328 = vxpose.xlu0.b32.cont [15/16] 0.0, 128
      %329 = vxpose.xlu0.b32.end [16/16] 0.0, 128
      %v330 = vpop.trf.xlu0
      %v331 = vpop.trf.xlu0
      %v332 = vpop.trf.xlu0
      %v333 = vpop.trf.xlu0
      %v334 = vpop.trf.xlu0
      %v335 = vpop.trf.xlu0
      %v336 = vpop.trf.xlu0
      %v337 = vpop.trf.xlu0
      %v338 = vpop.trf.xlu0
      %v339 = vpop.trf.xlu0
      %v340 = vpop.trf.xlu0
      %v341 = vpop.trf.xlu0
      %v342 = vpop.trf.xlu0
      %v343 = vpop.trf.xlu0
      %v344 = vpop.trf.xlu0
      %v345 = vpop.trf.xlu0
      %vm346 = vcmask 261120
      %347 = vst.msk [vmem:[%s208] sm:$0xff] %vm346, %v298
      %348 = vst.msk [vmem:[%s208 + $0x8] sm:$0xff] %vm346, %v299
      %349 = vst.msk [vmem:[%s208 + $0x10] sm:$0xff] %vm346, %v300
      %350 = vst.msk [vmem:[%s208 + $0x18] sm:$0xff] %vm346, %v301
      %351 = vst.msk [vmem:[%s208 + $0x20] sm:$0xff] %vm346, %v302
      %352 = vst.msk [vmem:[%s208 + $0x28] sm:$0xff] %vm346, %v303
      %353 = vst.msk [vmem:[%s208 + $0x30] sm:$0xff] %vm346, %v304
      %354 = vst.msk [vmem:[%s208 + $0x38] sm:$0xff] %vm346, %v305
      %355 = vst.msk [vmem:[%s208 + $0x40] sm:$0xff] %vm346, %v306
      %356 = vst.msk [vmem:[%s208 + $0x48] sm:$0xff] %vm346, %v307
      %357 = vst.msk [vmem:[%s208 + $0x50] sm:$0xff] %vm346, %v308
      %358 = vst.msk [vmem:[%s208 + $0x58] sm:$0xff] %vm346, %v309
      %359 = vst.msk [vmem:[%s208 + $0x60] sm:$0xff] %vm346, %v310
      %360 = vst.msk [vmem:[%s208 + $0x68] sm:$0xff] %vm346, %v311
      %361 = vst.msk [vmem:[%s208 + $0x70] sm:$0xff] %vm346, %v312
      %362 = vst.msk [vmem:[%s208 + $0x78] sm:$0xff] %vm346, %v313
      %363 = vst.msk [vmem:[%s208 + $0x80] sm:$0xff] %vm346, %v330
      %364 = vst.msk [vmem:[%s208 + $0x88] sm:$0xff] %vm346, %v331
      %365 = vst.msk [vmem:[%s208 + $0x90] sm:$0xff] %vm346, %v332
      %366 = vst.msk [vmem:[%s208 + $0x98] sm:$0xff] %vm346, %v333
      %367 = vst.msk [vmem:[%s208 + $0xa0] sm:$0xff] %vm346, %v334
      %368 = vst.msk [vmem:[%s208 + $0xa8] sm:$0xff] %vm346, %v335
      %369 = vst.msk [vmem:[%s208 + $0xb0] sm:$0xff] %vm346, %v336
      %370 = vst.msk [vmem:[%s208 + $0xb8] sm:$0xff] %vm346, %v337
      %371 = vst.msk [vmem:[%s208 + $0xc0] sm:$0xff] %vm346, %v338
      %372 = vst.msk [vmem:[%s208 + $0xc8] sm:$0xff] %vm346, %v339
      %373 = vst.msk [vmem:[%s208 + $0xd0] sm:$0xff] %vm346, %v340
      %374 = vst.msk [vmem:[%s208 + $0xd8] sm:$0xff] %vm346, %v341
      %375 = vst.msk [vmem:[%s208 + $0xe0] sm:$0xff] %vm346, %v342
      %376 = vst.msk [vmem:[%s208 + $0xe8] sm:$0xff] %vm346, %v343
      %377 = vst.msk [vmem:[%s208 + $0xf0] sm:$0xff] %vm346, %v344
      %378 = vst.msk [vmem:[%s208 + $0xf8] sm:$0xff] %vm346, %v345
      %s379 = smul.u32 32, %s19
      %p380 = scmp.lt.s32.totalorder %s18, 1
      %s381 = scalar_select %p380, %s18, 1
      %p382 = scmp.lt.s32.totalorder %s379, 31
      %s383 = scalar_select %p382, %s379, 31
      %s384 = smul.addr %s381, 32
      %s385 = sadd.s32 %s383, %s384
      %s386 = smul.addr %s385, 8
      %s387 = scalar_lea.vmem %s3, %s386
      // Predicated region
      $region33: #{bottleneck_forward.20} parent=31 // pred_check
        %p388 = pneg %p116
      $region34: #{bottleneck_forward.20} parent=31 // pred_check_branch
        %390 = sbr.rel (%p388) target = $region36
      $region35: #{bottleneck_forward.20} parent=31 // pred_region
        %s391 = smul.u32 32, %s19
      $region36: #{bottleneck_forward.20} parent=31 // pred_fallthru
        _
    $region32: #{bottleneck_forward.20} parent=5 // pred_fallthru
      _
    %p392 = scmp.le.s32.totalorder 2, %s9
    // Predicated region
    $region37: #{bottleneck_forward.20} parent=5 // pred_check
      %p393 = pneg %p392
    $region38: #{bottleneck_forward.20} parent=5 // pred_check_branch
      %395 = sbr.rel (%p393) target = $region40
    $region39: #{bottleneck_forward.20} parent=5 // pred_region
      %s396 = ssub.s32 %s9, 2
      // Predicated region
      $region41: #{bottleneck_forward.20} parent=39 // pred_check
        %p397 = pneg %p122
      $region42: #{bottleneck_forward.20} parent=39 // pred_check_branch
        %399 = sbr.rel (%p397) target = $region44
      $region43: #{bottleneck_forward.20} parent=39 // pred_region
        %s400 = smul.u32 32, %s21
        %p401 = scmp.lt.s32.totalorder %s20, 1
        %s402 = scalar_select %p401, %s20, 1
        %p403 = scmp.lt.s32.totalorder %s400, 31
        %s404 = scalar_select %p403, %s400, 31
        %s405 = smul.addr %s402, 32
        %s406 = sadd.s32 %s404, %s405
        %s407 = smul.addr %s406, 8
        %s408 = scalar_lea.vmem %s3, %s407
      $region44: #{bottleneck_forward.20} parent=39 // pred_fallthru
        _
    $region40: #{bottleneck_forward.20} parent=5 // pred_fallthru
      _
  $region6: #{bottleneck_forward.20} parent=0 // loop_footer
    %s13 = sadd.s32 1, %s9
  $region7: #{bottleneck_forward.20} parent=0 // loop_footer_branch
    %8 = sbr.rel target = $region3
  $region8: #{bottleneck_forward.20} parent=0 // loop_exit
    _

// kernel: bottleneck_forward.23
$region0: #{bottleneck_forward.23}
  #allocation0 [shape = 'u32[]', space=smem, size = 0x4, offset = 0x4, fixed_abs, tag = 'smem constant byte address 0x4 - core index']
  #allocation1 [shape = 'u32[72,128]{1,0:T(1,128)}', space=vmem, size = 0x9000, scoped, tag = 'internal scratch']
  %s0 = inlined_call_operand.vmem [shape: f32[2,32,256], index: 0, kind: input, shape index: {}]
  %s1 = inlined_call_operand.vmem [shape: f32[2,256,32], index: 1, kind: input, shape index: {}]
  %s2 = inlined_call_operand.vmem [shape: f32[32,1], index: 2, kind: input, shape index: {}]
  %s3 = inlined_call_operand.vmem [shape: f32[32,1], index: 3, kind: input, shape index: {}]
  %s4 = inlined_call_operand.hbm [shape: f32[2,256,32], index: 4, kind: output, shape index: {}]
  %s5 = sld [smem:[#allocation0]]
  $region49: #{bottleneck_forward.23} parent=0
    _
  %s7 = ssub.s32 1, %s5
  %s8 = scalar_select 0, %s7, %s5
  $region1: #{bottleneck_forward.23} parent=0
    #allocation2 [shape = 'u8[262144]{0}', space=vmem, size = 0x40000, scoped, tag = 'output window, operand 0']
    #allocation3 [shape = 's32[2]{0}', space=sflag, size = 0x8, scoped, tag = 'scoped memory for bottleneck_forward.23']
    %9 = vsyncpa [#allocation3], 0
    %s10 = scalar_lea.sflag [#allocation3], 1
    %11 = vsyncpa %s10, 0
    loop: start=0, step=1, limit=4
    $region2: #{bottleneck_forward.23} parent=1 // loop_pre_header
      _
    $region3: #{bottleneck_forward.23} parent=1 // loop_header
      %s13 = sphi 0, %s17
      %p14 = scmp.ge.s32.totalorder %s13, 4
      %s20 = sphi 0, %s32
      %s21 = sphi 0, %s28
      %s22 = sphi 0, %s20
      %s23 = sphi 0, %s21
      %s24 = sphi 0, %s22
      %s25 = sphi 0, %s23
      %s37 = sphi 0, %s39
      %s40 = sphi 0, %s37
      %s41 = sphi 0, %s40
      %s57 = sphi 0, %s41
      %s65 = sphi 0, %s67
      %s68 = sphi 0, %s65
      %s69 = sphi 0, %s68
      %s85 = sphi 0, %s69
      %s89 = sphi 0, %s89
      %s91 = sphi 0, %s89
      %s92 = sphi 0, %s91
      %s106 = sphi 0, %s92
      %s110 = sphi 0, %s110
      %s112 = sphi 0, %s110
      %s113 = sphi 0, %s112
      %s127 = sphi 0, %s113
      %s135 = sphi 0, %s137
      %s138 = sphi 0, %s135
      %s139 = sphi 0, %s138
      %s155 = sphi 0, %s139
    $region4: #{bottleneck_forward.23} parent=1 // loop_header_branch
      %16 = sbr.rel (%p14) target = $region8
    $region5: #{bottleneck_forward.23} parent=1 // loop_body
      %s18 = ssub.s32 %s13, 1
      %s19 = ssub.s32 %s13, 2
      %s26 = sadd.s32 1, %s21
      %p27 = scmp.ge.s32.totalorder %s26, 1
      %s28 = scalar_select %p27, 0, %s26
      %s29 = sadd.s32 1, %s20
      %s30 = scalar_select %p27, %s29, %s20
      %p31 = scmp.ge.s32.totalorder %s30, 2
      %s32 = scalar_select %p31, 0, %s30
      %s33 = ssub.s32 %s20, %s32
      %s34 = ssub.s32 %s21, %s28
      %s35 = sor.u32 %s33, %s34
      %p36 = scmp.eq.s32.totalorder %s35, 0
      %s38 = sadd.s32 %s37, 1
      %s39 = scalar_select %p36, %s37, %s38
      %p42 = pneg %p36
      %p43 = scmp.eq.s32.totalorder %s13, 1
      %p44 = por %p42, %p43
      %p45 = scmp.ne.s32.totalorder %s37, %s40
      %p46 = scmp.eq.s32.totalorder %s13, 0
      %p47 = por %p45, %p46
      %p48 = scmp.ne.s32.totalorder %s37, %s40
      %p49 = scmp.eq.s32.totalorder %s18, 1
      %p50 = por %p48, %p49
      %p51 = scmp.ne.s32.totalorder %s40, %s41
      %p52 = scmp.eq.s32.totalorder %s18, 0
      %p53 = por %p51, %p52
      %p54 = scmp.ne.s32.totalorder %s40, %s41
      %p55 = scmp.eq.s32.totalorder %s19, 1
      %p56 = por %p54, %p55
      %p58 = scmp.ne.s32.totalorder %s41, %s57
      %p59 = scmp.eq.s32.totalorder %s19, 0
      %p60 = por %p58, %p59
      %s61 = ssub.s32 %s20, %s32
      %s62 = ssub.s32 %s21, %s28
      %s63 = sor.u32 %s61, %s62
      %p64 = scmp.eq.s32.totalorder %s63, 0
      %s66 = sadd.s32 %s65, 1
      %s67 = scalar_select %p64, %s65, %s66
      %p70 = pneg %p64
      %p71 = scmp.eq.s32.totalorder %s13, 1
      %p72 = por %p70, %p71
      %p73 = scmp.ne.s32.totalorder %s65, %s68
      %p74 = scmp.eq.s32.totalorder %s13, 0
      %p75 = por %p73, %p74
      %p76 = scmp.ne.s32.totalorder %s65, %s68
      %p77 = scmp.eq.s32.totalorder %s18, 1
      %p78 = por %p76, %p77
      %p79 = scmp.ne.s32.totalorder %s68, %s69
      %p80 = scmp.eq.s32.totalorder %s18, 0
      %p81 = por %p79, %p80
      %p82 = scmp.ne.s32.totalorder %s68, %s69
      %p83 = scmp.eq.s32.totalorder %s19, 1
      %p84 = por %p82, %p83
      %p86 = scmp.ne.s32.totalorder %s69, %s85
      %p87 = scmp.eq.s32.totalorder %s19, 0
      %p88 = por %p86, %p87
      %s90 = sadd.s32 %s89, 1
      %p93 = scmp.eq.s32.totalorder %s13, 1
      %p94 = scmp.ne.s32.totalorder %s89, %s91
      %p95 = scmp.eq.s32.totalorder %s13, 0
      %p96 = por %p94, %p95
      %p97 = scmp.ne.s32.totalorder %s89, %s91
      %p98 = scmp.eq.s32.totalorder %s18, 1
      %p99 = por %p97, %p98
      %p100 = scmp.ne.s32.totalorder %s91, %s92
      %p101 = scmp.eq.s32.totalorder %s18, 0
      %p102 = por %p100, %p101
      %p103 = scmp.ne.s32.totalorder %s91, %s92
      %p104 = scmp.eq.s32.totalorder %s19, 1
      %p105 = por %p103, %p104
      %p107 = scmp.ne.s32.totalorder %s92, %s106
      %p108 = scmp.eq.s32.totalorder %s19, 0
      %p109 = por %p107, %p108
      %s111 = sadd.s32 %s110, 1
      %p114 = scmp.eq.s32.totalorder %s13, 1
      %p115 = scmp.ne.s32.totalorder %s110, %s112
      %p116 = scmp.eq.s32.totalorder %s13, 0
      %p117 = por %p115, %p116
      %p118 = scmp.ne.s32.totalorder %s110, %s112
      %p119 = scmp.eq.s32.totalorder %s18, 1
      %p120 = por %p118, %p119
      %p121 = scmp.ne.s32.totalorder %s112, %s113
      %p122 = scmp.eq.s32.totalorder %s18, 0
      %p123 = por %p121, %p122
      %p124 = scmp.ne.s32.totalorder %s112, %s113
      %p125 = scmp.eq.s32.totalorder %s19, 1
      %p126 = por %p124, %p125
      %p128 = scmp.ne.s32.totalorder %s113, %s127
      %p129 = scmp.eq.s32.totalorder %s19, 0
      %p130 = por %p128, %p129
      %s131 = ssub.s32 %s20, %s32
      %s132 = ssub.s32 %s21, %s28
      %s133 = sor.u32 %s131, %s132
      %p134 = scmp.eq.s32.totalorder %s133, 0
      %s136 = sadd.s32 %s135, 1
      %s137 = scalar_select %p134, %s135, %s136
      %p140 = pneg %p134
      %p141 = scmp.eq.s32.totalorder %s13, 1
      %p142 = por %p140, %p141
      %p143 = scmp.ne.s32.totalorder %s135, %s138
      %p144 = scmp.eq.s32.totalorder %s13, 0
      %p145 = por %p143, %p144
      %p146 = scmp.ne.s32.totalorder %s135, %s138
      %p147 = scmp.eq.s32.totalorder %s18, 1
      %p148 = por %p146, %p147
      %p149 = scmp.ne.s32.totalorder %s138, %s139
      %p150 = scmp.eq.s32.totalorder %s18, 0
      %p151 = por %p149, %p150
      %p152 = scmp.ne.s32.totalorder %s138, %s139
      %p153 = scmp.eq.s32.totalorder %s19, 1
      %p154 = por %p152, %p153
      %p156 = scmp.ne.s32.totalorder %s139, %s155
      %p157 = scmp.eq.s32.totalorder %s19, 0
      %p158 = por %p156, %p157
      %p159 = scmp.le.s32.totalorder 1, %s13
      %p160 = scmp.lt.s32.totalorder %s13, 3
      %p161 = pnand %p159, %p160
      %p162 = pneg %p161
      // Predicated region
      $region9: #{bottleneck_forward.23} parent=5 // pred_check
        _
      $region10: #{bottleneck_forward.23} parent=5 // pred_check_branch
        %164 = sbr.rel (%p161) target = $region12
      $region11: #{bottleneck_forward.23} parent=5 // pred_region
        %s165 = ssub.s32 %s13, 1
        // Predicated region
        $region13: #{bottleneck_forward.23} parent=11 // pred_check
          %p166 = pneg %p102
        $region14: #{bottleneck_forward.23} parent=11 // pred_check_branch
          %168 = sbr.rel (%p166) target = $region16
        $region15: #{bottleneck_forward.23} parent=11 // pred_region
          _
        $region16: #{bottleneck_forward.23} parent=11 // pred_fallthru
          _
        // Predicated region
        $region17: #{bottleneck_forward.23} parent=11 // pred_check
          %p169 = pneg %p123
        $region18: #{bottleneck_forward.23} parent=11 // pred_check_branch
          %171 = sbr.rel (%p169) target = $region20
        $region19: #{bottleneck_forward.23} parent=11 // pred_region
          _
        $region20: #{bottleneck_forward.23} parent=11 // pred_fallthru
          _
      $region12: #{bottleneck_forward.23} parent=5 // pred_fallthru
        _
      %p172 = scmp.lt.s32.totalorder %s13, 2
      // Predicated region
      $region21: #{bottleneck_forward.23} parent=5 // pred_check
        %p173 = pneg %p172
      $region22: #{bottleneck_forward.23} parent=5 // pred_check_branch
        %175 = sbr.rel (%p173) target = $region24
      $region23: #{bottleneck_forward.23} parent=5 // pred_region
        // Predicated region
        $region25: #{bottleneck_forward.23} parent=23 // pred_check
          %p176 = pneg %p47
        $region26: #{bottleneck_forward.23} parent=23 // pred_check_branch
          %178 = sbr.rel (%p176) target = $region28
        $region27: #{bottleneck_forward.23} parent=23 // pred_region
          %s179 = smul.u32 2, %s21
          %p180 = scmp.lt.s32.totalorder %s20, 1
          %s181 = scalar_select %p180, %s20, 1
          %p182 = scmp.lt.s32.totalorder %s179, 1
          %s183 = scalar_select %p182, %s179, 1
          %s184 = smul.addr %s181, 8
          %s185 = sadd.s32 %s183, %s184
          %s186 = smul.addr %s185, 8
          %s187 = scalar_lea.vmem %s0, %s186
          %s188 = smul.u32 2, %s21
        $region28: #{bottleneck_forward.23} parent=23 // pred_fallthru
          _
        // Predicated region
        $region29: #{bottleneck_forward.23} parent=23 // pred_check
          %p189 = pneg %p75
        $region30: #{bottleneck_forward.23} parent=23 // pred_check_branch
          %191 = sbr.rel (%p189) target = $region32
        $region31: #{bottleneck_forward.23} parent=23 // pred_region
          %s192 = smul.u32 32, %s21
          %p193 = scmp.lt.s32.totalorder %s20, 1
          %s194 = scalar_select %p193, %s20, 1
          %p195 = scmp.lt.s32.totalorder %s192, 31
          %s196 = scalar_select %p195, %s192, 31
          %s197 = smul.addr %s194, 32
          %s198 = sadd.s32 %s196, %s197
          %s199 = smul.addr %s198, 8
          %s200 = scalar_lea.vmem %s1, %s199
          %s201 = smul.u32 32, %s21
        $region32: #{bottleneck_forward.23} parent=23 // pred_fallthru
          _
      $region24: #{bottleneck_forward.23} parent=5 // pred_fallthru
        _
      %p202 = scmp.le.s32.totalorder 1, %s13
      %p203 = scmp.lt.s32.totalorder %s13, 3
      %p204 = pnand %p202, %p203
      %p205 = pneg %p204
      // Predicated region
      $region33: #{bottleneck_forward.23} parent=5 // pred_check
        _
      $region34: #{bottleneck_forward.23} parent=5 // pred_check_branch
        %207 = sbr.rel (%p204) target = $region36
      $region35: #{bottleneck_forward.23} parent=5 // pred_region
        %s208 = ssub.s32 %s13, 1
        %s209 = smul.u32 2, %s23
        %p210 = scmp.lt.s32.totalorder %s22, 1
        %s211 = scalar_select %p210, %s22, 1
        %p212 = scmp.lt.s32.totalorder %s209, 1
        %s213 = scalar_select %p212, %s209, 1
        %s214 = smul.addr %s211, 8
        %s215 = sadd.s32 %s213, %s214
        %s216 = smul.addr %s215, 8
        %s217 = scalar_lea.vmem %s0, %s216
        %p218 = pneg %p53
        %p219 = pneg %p50
        %s220 = smul.u32 32, %s23
        %p221 = scmp.lt.s32.totalorder %s22, 1
        %s222 = scalar_select %p221, %s22, 1
        %p223 = scmp.lt.s32.totalorder %s220, 31
        %s224 = scalar_select %p223, %s220, 31
        %s225 = smul.addr %s222, 32
        %s226 = sadd.s32 %s224, %s225
        %s227 = smul.addr %s226, 8
        %s228 = scalar_lea.vmem %s1, %s227
        %p229 = pneg %p81
        %p230 = pneg %p78
        %p231 = pneg %p102
        %p232 = pneg %p99
        %p233 = pneg %p123
        %p234 = pneg %p120
        %p235 = pneg %p151
        %p236 = pneg %p148
        %s237 = sand.u32 %s138, 1
        %s238 = scalar_lea.sflag [#allocation3], %s237
        %s239 = sand.u32 %s138, 1
        %s240 = smul.addr %s239, 256
        %s241 = scalar_lea.vmem [#allocation2], %s240
        %s242 = smul.u32 2, %s23
        %p243 = scmp.lt.s32.totalorder %s22, 1
        %s244 = scalar_select %p243, %s22, 1
        %p245 = scmp.lt.s32.totalorder %s242, 1
        %s246 = scalar_select %p245, %s242, 1
        %s247 = smul.addr %s244, 8
        %s248 = sadd.s32 %s246, %s247
        %s249 = smul.addr %s248, 8
        %s250 = scalar_lea.vmem %s0, %s249
        %s251 = smul.u32 2, %s23
        %s252 = smul.u32 32, %s23
        %p253 = scmp.lt.s32.totalorder %s22, 1
        %s254 = scalar_select %p253, %s22, 1
        %p255 = scmp.lt.s32.totalorder %s252, 31
        %s256 = scalar_select %p255, %s252, 31
        %s257 = smul.addr %s254, 32
        %s258 = sadd.s32 %s256, %s257
        %s259 = smul.addr %s258, 8
        %s260 = scalar_lea.vmem %s1, %s259
        %s261 = smul.u32 32, %s23
        %s262 = smul.u32 32, %s23
        %v263 = vld [vmem:[%s250] sm:$0xff]
        %v264 = vld [vmem:[%s250 + $0x8] sm:$0xff]
        %v265 = vld [vmem:[%s250 + $0x10] sm:$0xff]
        %v266 = vld [vmem:[%s250 + $0x18] sm:$0xff]
        %v267 = vld [vmem:[%s250 + $0x20] sm:$0xff]
        %v268 = vld [vmem:[%s250 + $0x28] sm:$0xff]
        %v269 = vld [vmem:[%s250 + $0x30] sm:$0xff]
        %v270 = vld [vmem:[%s250 + $0x38] sm:$0xff]
        %v271 = vld [vmem:[%s2] sm:$0xff]
        %v272 = vld [vmem:[%s2 + $0x8] sm:$0xff]
        %v273 = vld [vmem:[%s2 + $0x10] sm:$0xff]
        %v274 = vld [vmem:[%s2 + $0x18] sm:$0xff]
        %276 = vset.pattern.permute.xlu0 0
        %277 = vperm.xlu0 %276, %v271
        %v278 = vpop.permute.xlu0 %277
        %281 = vset.pattern.permute.xlu0 0
        %282 = vperm.xlu0 %281, %v272
        %v283 = vpop.permute.xlu0 %282
        %286 = vset.pattern.permute.xlu0 0
        %287 = vperm.xlu0 %286, %v273
        %v288 = vpop.permute.xlu0 %287
        %291 = vset.pattern.permute.xlu0 0
        %292 = vperm.xlu0 %291, %v274
        %v293 = vpop.permute.xlu0 %292
        %v295 = vmul.f32 %v263, %v278
        %v296 = vmul.f32 %v264, %v278
        %v297 = vmul.f32 %v265, %v283
        %v298 = vmul.f32 %v266, %v283
        %v299 = vmul.f32 %v267, %v288
        %v300 = vmul.f32 %v268, %v288
        %v301 = vmul.f32 %v269, %v293
        %v302 = vmul.f32 %v270, %v293
        %v303 = vld [vmem:[%s3] sm:$0xff]
        %v304 = vld [vmem:[%s3 + $0x8] sm:$0xff]
        %v305 = vld [vmem:[%s3 + $0x10] sm:$0xff]
        %v306 = vld [vmem:[%s3 + $0x18] sm:$0xff]
        %308 = vset.pattern.permute.xlu0 0
        %309 = vperm.xlu0 %308, %v303
        %v310 = vpop.permute.xlu0 %309
        %313 = vset.pattern.permute.xlu0 0
        %314 = vperm.xlu0 %313, %v304
        %v315 = vpop.permute.xlu0 %314
        %318 = vset.pattern.permute.xlu0 0
        %319 = vperm.xlu0 %318, %v305
        %v320 = vpop.permute.xlu0 %319
        %323 = vset.pattern.permute.xlu0 0
        %324 = vperm.xlu0 %323, %v306
        %v325 = vpop.permute.xlu0 %324
        %v327 = vadd.f32 %v295, %v310
        %v328 = vadd.f32 %v296, %v310
        %v329 = vadd.f32 %v297, %v315
        %v330 = vadd.f32 %v298, %v315
        %v331 = vadd.f32 %v299, %v320
        %v332 = vadd.f32 %v300, %v320
        %v333 = vadd.f32 %v301, %v325
        %v334 = vadd.f32 %v302, %v325
        %335 = vxpose.xlu0.b32.start [1/16] %v327, 128
        %336 = vxpose.xlu0.b32.cont [2/16] %v329, 128
        %337 = vxpose.xlu0.b32.cont [3/16] %v331, 128
        %338 = vxpose.xlu0.b32.cont [4/16] %v333, 128
        %339 = vxpose.xlu0.b32.cont [5/16] 0.0, 128
        %340 = vxpose.xlu0.b32.cont [6/16] 0.0, 128
        %341 = vxpose.xlu0.b32.cont [7/16] 0.0, 128
        %342 = vxpose.xlu0.b32.cont [8/16] 0.0, 128
        %343 = vxpose.xlu0.b32.cont [9/16] 0.0, 128
        %344 = vxpose.xlu0.b32.cont [10/16] 0.0, 128
        %345 = vxpose.xlu0.b32.cont [11/16] 0.0, 128
        %346 = vxpose.xlu0.b32.cont [12/16] 0.0, 128
        %347 = vxpose.xlu0.b32.cont [13/16] 0.0, 128
        %348 = vxpose.xlu0.b32.cont [14/16] 0.0, 128
        %349 = vxpose.xlu0.b32.cont [15/16] 0.0, 128
        %350 = vxpose.xlu0.b32.end [16/16] 0.0, 128
        %v351 = vpop.trf.xlu0
        %v352 = vpop.trf.xlu0
        %v353 = vpop.trf.xlu0
        %v354 = vpop.trf.xlu0
        %v355 = vpop.trf.xlu0
        %v356 = vpop.trf.xlu0
        %v357 = vpop.trf.xlu0
        %v358 = vpop.trf.xlu0
        %v359 = vpop.trf.xlu0
        %v360 = vpop.trf.xlu0
        %v361 = vpop.trf.xlu0
        %v362 = vpop.trf.xlu0
        %v363 = vpop.trf.xlu0
        %v364 = vpop.trf.xlu0
        %v365 = vpop.trf.xlu0
        %v366 = vpop.trf.xlu0
        %367 = vxpose.xlu0.b32.start [1/16] %v328, 128
        %368 = vxpose.xlu0.b32.cont [2/16] %v330, 128
        %369 = vxpose.xlu0.b32.cont [3/16] %v332, 128
        %370 = vxpose.xlu0.b32.cont [4/16] %v334, 128
        %371 = vxpose.xlu0.b32.cont [5/16] 0.0, 128
        %372 = vxpose.xlu0.b32.cont [6/16] 0.0, 128
        %373 = vxpose.xlu0.b32.cont [7/16] 0.0, 128
        %374 = vxpose.xlu0.b32.cont [8/16] 0.0, 128
        %375 = vxpose.xlu0.b32.cont [9/16] 0.0, 128
        %376 = vxpose.xlu0.b32.cont [10/16] 0.0, 128
        %377 = vxpose.xlu0.b32.cont [11/16] 0.0, 128
        %378 = vxpose.xlu0.b32.cont [12/16] 0.0, 128
        %379 = vxpose.xlu0.b32.cont [13/16] 0.0, 128
        %380 = vxpose.xlu0.b32.cont [14/16] 0.0, 128
        %381 = vxpose.xlu0.b32.cont [15/16] 0.0, 128
        %382 = vxpose.xlu0.b32.end [16/16] 0.0, 128
        %v383 = vpop.trf.xlu0
        %v384 = vpop.trf.xlu0
        %v385 = vpop.trf.xlu0
        %v386 = vpop.trf.xlu0
        %v387 = vpop.trf.xlu0
        %v388 = vpop.trf.xlu0
        %v389 = vpop.trf.xlu0
        %v390 = vpop.trf.xlu0
        %v391 = vpop.trf.xlu0
        %v392 = vpop.trf.xlu0
        %v393 = vpop.trf.xlu0
        %v394 = vpop.trf.xlu0
        %v395 = vpop.trf.xlu0
        %v396 = vpop.trf.xlu0
        %v397 = vpop.trf.xlu0
        %v398 = vpop.trf.xlu0
        %v399 = vld [vmem:[%s260] sm:$0xff]
        %v400 = vld [vmem:[%s260 + $0x8] sm:$0xff]
        %v401 = vld [vmem:[%s260 + $0x10] sm:$0xff]
        %v402 = vld [vmem:[%s260 + $0x18] sm:$0xff]
        %v403 = vld [vmem:[%s260 + $0x20] sm:$0xff]
        %v404 = vld [vmem:[%s260 + $0x28] sm:$0xff]
        %v405 = vld [vmem:[%s260 + $0x30] sm:$0xff]
        %v406 = vld [vmem:[%s260 + $0x38] sm:$0xff]
        %v407 = vld [vmem:[%s260 + $0x40] sm:$0xff]
        %v408 = vld [vmem:[%s260 + $0x48] sm:$0xff]
        %v409 = vld [vmem:[%s260 + $0x50] sm:$0xff]
        %v410 = vld [vmem:[%s260 + $0x58] sm:$0xff]
        %v411 = vld [vmem:[%s260 + $0x60] sm:$0xff]
        %v412 = vld [vmem:[%s260 + $0x68] sm:$0xff]
        %v413 = vld [vmem:[%s260 + $0x70] sm:$0xff]
        %v414 = vld [vmem:[%s260 + $0x78] sm:$0xff]
        %v415 = vld [vmem:[%s260 + $0x80] sm:$0xff]
        %v416 = vld [vmem:[%s260 + $0x88] sm:$0xff]
        %v417 = vld [vmem:[%s260 + $0x90] sm:$0xff]
        %v418 = vld [vmem:[%s260 + $0x98] sm:$0xff]
        %v419 = vld [vmem:[%s260 + $0xa0] sm:$0xff]
        %v420 = vld [vmem:[%s260 + $0xa8] sm:$0xff]
        %v421 = vld [vmem:[%s260 + $0xb0] sm:$0xff]
        %v422 = vld [vmem:[%s260 + $0xb8] sm:$0xff]
        %v423 = vld [vmem:[%s260 + $0xc0] sm:$0xff]
        %v424 = vld [vmem:[%s260 + $0xc8] sm:$0xff]
        %v425 = vld [vmem:[%s260 + $0xd0] sm:$0xff]
        %v426 = vld [vmem:[%s260 + $0xd8] sm:$0xff]
        %v427 = vld [vmem:[%s260 + $0xe0] sm:$0xff]
        %v428 = vld [vmem:[%s260 + $0xe8] sm:$0xff]
        %v429 = vld [vmem:[%s260 + $0xf0] sm:$0xff]
        %v430 = vld [vmem:[%s260 + $0xf8] sm:$0xff]
        %v431 = vadd.f32 %v351, %v399
        %v432 = vadd.f32 %v352, %v400
        %v433 = vadd.f32 %v353, %v401
        %v434 = vadd.f32 %v354, %v402
        %v435 = vadd.f32 %v355, %v403
        %v436 = vadd.f32 %v356, %v404
        %v437 = vadd.f32 %v357, %v405
        %v438 = vadd.f32 %v358, %v406
        %v439 = vadd.f32 %v359, %v407
        %v440 = vadd.f32 %v360, %v408
        %v441 = vadd.f32 %v361, %v409
        %v442 = vadd.f32 %v362, %v410
        %v443 = vadd.f32 %v363, %v411
        %v444 = vadd.f32 %v364, %v412
        %v445 = vadd.f32 %v365, %v413
        %v446 = vadd.f32 %v366, %v414
        %v447 = vadd.f32 %v383, %v415
        %v448 = vadd.f32 %v384, %v416
        %v449 = vadd.f32 %v385, %v417
        %v450 = vadd.f32 %v386, %v418
        %v451 = vadd.f32 %v387, %v419
        %v452 = vadd.f32 %v388, %v420
        %v453 = vadd.f32 %v389, %v421
        %v454 = vadd.f32 %v390, %v422
        %v455 = vadd.f32 %v391, %v423
        %v456 = vadd.f32 %v392, %v424
        %v457 = vadd.f32 %v393, %v425
        %v458 = vadd.f32 %v394, %v426
        %v459 = vadd.f32 %v395, %v427
        %v460 = vadd.f32 %v396, %v428
        %v461 = vadd.f32 %v397, %v429
        %v462 = vadd.f32 %v398, %v430
        %v463 = vmax.f32 %v431, 0.0
        %v464 = vmax.f32 %v432, 0.0
        %v465 = vmax.f32 %v433, 0.0
        %v466 = vmax.f32 %v434, 0.0
        %v467 = vmax.f32 %v435, 0.0
        %v468 = vmax.f32 %v436, 0.0
        %v469 = vmax.f32 %v437, 0.0
        %v470 = vmax.f32 %v438, 0.0
        %v471 = vmax.f32 %v439, 0.0
        %v472 = vmax.f32 %v440, 0.0
        %v473 = vmax.f32 %v441, 0.0
        %v474 = vmax.f32 %v442, 0.0
        %v475 = vmax.f32 %v443, 0.0
        %v476 = vmax.f32 %v444, 0.0
        %v477 = vmax.f32 %v445, 0.0
        %v478 = vmax.f32 %v446, 0.0
        %v479 = vmax.f32 %v447, 0.0
        %v480 = vmax.f32 %v448, 0.0
        %v481 = vmax.f32 %v449, 0.0
        %v482 = vmax.f32 %v450, 0.0
        %v483 = vmax.f32 %v451, 0.0
        %v484 = vmax.f32 %v452, 0.0
        %v485 = vmax.f32 %v453, 0.0
        %v486 = vmax.f32 %v454, 0.0
        %v487 = vmax.f32 %v455, 0.0
        %v488 = vmax.f32 %v456, 0.0
        %v489 = vmax.f32 %v457, 0.0
        %v490 = vmax.f32 %v458, 0.0
        %v491 = vmax.f32 %v459, 0.0
        %v492 = vmax.f32 %v460, 0.0
        %v493 = vmax.f32 %v461, 0.0
        %v494 = vmax.f32 %v462, 0.0
        %vm495 = vcmask 261120
        %496 = vst.msk [vmem:[%s241] sm:$0xff] %vm495, %v463
        %497 = vst.msk [vmem:[%s241 + $0x8] sm:$0xff] %vm495, %v464
        %498 = vst.msk [vmem:[%s241 + $0x10] sm:$0xff] %vm495, %v465
        %499 = vst.msk [vmem:[%s241 + $0x18] sm:$0xff] %vm495, %v466
        %500 = vst.msk [vmem:[%s241 + $0x20] sm:$0xff] %vm495, %v467
        %501 = vst.msk [vmem:[%s241 + $0x28] sm:$0xff] %vm495, %v468
        %502 = vst.msk [vmem:[%s241 + $0x30] sm:$0xff] %vm495, %v469
        %503 = vst.msk [vmem:[%s241 + $0x38] sm:$0xff] %vm495, %v470
        %504 = vst.msk [vmem:[%s241 + $0x40] sm:$0xff] %vm495, %v471
        %505 = vst.msk [vmem:[%s241 + $0x48] sm:$0xff] %vm495, %v472
        %506 = vst.msk [vmem:[%s241 + $0x50] sm:$0xff] %vm495, %v473
        %507 = vst.msk [vmem:[%s241 + $0x58] sm:$0xff] %vm495, %v474
        %508 = vst.msk [vmem:[%s241 + $0x60] sm:$0xff] %vm495, %v475
        %509 = vst.msk [vmem:[%s241 + $0x68] sm:$0xff] %vm495, %v476
        %510 = vst.msk [vmem:[%s241 + $0x70] sm:$0xff] %vm495, %v477
        %511 = vst.msk [vmem:[%s241 + $0x78] sm:$0xff] %vm495, %v478
        %512 = vst.msk [vmem:[%s241 + $0x80] sm:$0xff] %vm495, %v479
        %513 = vst.msk [vmem:[%s241 + $0x88] sm:$0xff] %vm495, %v480
        %514 = vst.msk [vmem:[%s241 + $0x90] sm:$0xff] %vm495, %v481
        %515 = vst.msk [vmem:[%s241 + $0x98] sm:$0xff] %vm495, %v482
        %516 = vst.msk [vmem:[%s241 + $0xa0] sm:$0xff] %vm495, %v483
        %517 = vst.msk [vmem:[%s241 + $0xa8] sm:$0xff] %vm495, %v484
        %518 = vst.msk [vmem:[%s241 + $0xb0] sm:$0xff] %vm495, %v485
        %519 = vst.msk [vmem:[%s241 + $0xb8] sm:$0xff] %vm495, %v486
        %520 = vst.msk [vmem:[%s241 + $0xc0] sm:$0xff] %vm495, %v487
        %521 = vst.msk [vmem:[%s241 + $0xc8] sm:$0xff] %vm495, %v488
        %522 = vst.msk [vmem:[%s241 + $0xd0] sm:$0xff] %vm495, %v489
        %523 = vst.msk [vmem:[%s241 + $0xd8] sm:$0xff] %vm495, %v490
        %524 = vst.msk [vmem:[%s241 + $0xe0] sm:$0xff] %vm495, %v491
        %525 = vst.msk [vmem:[%s241 + $0xe8] sm:$0xff] %vm495, %v492
        %526 = vst.msk [vmem:[%s241 + $0xf0] sm:$0xff] %vm495, %v493
        %527 = vst.msk [vmem:[%s241 + $0xf8] sm:$0xff] %vm495, %v494
        %s528 = sand.u32 %s138, 1
        %s529 = scalar_lea.sflag [#allocation3], %s528
        %s530 = sand.u32 %s138, 1
        %s531 = smul.addr %s530, 256
        %s532 = scalar_lea.vmem [#allocation2], %s531
        // Predicated region
        $region37: #{bottleneck_forward.23} parent=35 // pred_check
          %p533 = pneg %p148
        $region38: #{bottleneck_forward.23} parent=35 // pred_check_branch
          %535 = sbr.rel (%p533) target = $region40
        $region39: #{bottleneck_forward.23} parent=35 // pred_region
          %s536 = smul.u32 32, %s23
          %538 = vsyncadd %s529, 0
          %s539 = smul.addr %s22, 32
          %s540 = sadd.s32 %s536, %s539
          %s541 = smul.addr %s540, 8
          %s542 = scalar_lea.hbm %s4, %s541
          %s543 = sshll.u32 %s532, 4
          %s544 = int_to_ptr.vmem [resolvable:$true] %s543
          %s545 = sshll.u32 %s542, 4
          %s546 = int_to_ptr.hbm [resolvable:$true] %s545
          %551 = dma.vmem_to_hbm [thread:$0]  %s544, 4096, %s546, %s529, 128, 128, 8
        $region40: #{bottleneck_forward.23} parent=35 // pred_fallthru
          _
      $region36: #{bottleneck_forward.23} parent=5 // pred_fallthru
        _
      %p552 = scmp.le.s32.totalorder 2, %s13
      // Predicated region
      $region41: #{bottleneck_forward.23} parent=5 // pred_check
        %p553 = pneg %p552
      $region42: #{bottleneck_forward.23} parent=5 // pred_check_branch
        %555 = sbr.rel (%p553) target = $region44
      $region43: #{bottleneck_forward.23} parent=5 // pred_region
        %s556 = ssub.s32 %s13, 2
        // Predicated region
        $region45: #{bottleneck_forward.23} parent=43 // pred_check
          %p557 = pneg %p154
        $region46: #{bottleneck_forward.23} parent=43 // pred_check_branch
          %559 = sbr.rel (%p557) target = $region48
        $region47: #{bottleneck_forward.23} parent=43 // pred_region
          %s560 = sand.u32 %s139, 1
          %s561 = scalar_lea.sflag [#allocation3], %s560
          %s562 = sand.u32 %s139, 1
          %s563 = smul.addr %s562, 256
          %s564 = scalar_lea.vmem [#allocation2], %s563
          %566 = dma.done %s561, 4096
        $region48: #{bottleneck_forward.23} parent=43 // pred_fallthru
          _
      $region44: #{bottleneck_forward.23} parent=5 // pred_fallthru
        _
    $region6: #{bottleneck_forward.23} parent=1 // loop_footer
      %s17 = sadd.s32 1, %s13
    $region7: #{bottleneck_forward.23} parent=1 // loop_footer_branch
      %12 = sbr.rel target = $region3
    $region8: #{bottleneck_forward.23} parent=1 // loop_exit
      _
    %567 = vsyncpa [#allocation3], 1
    %s568 = scalar_lea.sflag [#allocation3], 1
    %569 = vsyncpa %s568, 1

// kernel: bottleneck_forward.15
$region0: #{bottleneck_forward.15}
  #allocation0 [shape = 'u32[]', space=smem, size = 0x4, offset = 0x4, fixed_abs, tag = 'smem constant byte address 0x4 - core index']
  #allocation1 [shape = 'u32[72,128]{1,0:T(1,128)}', space=vmem, size = 0x9000, scoped, tag = 'internal scratch']
  %s0 = inlined_call_operand.vmem [shape: f32[2,18,18,8], index: 0, kind: input, shape index: {}]
  %s1 = inlined_call_operand.vmem [shape: bf16[9,8,8], index: 1, kind: input, shape index: {}]
  %s2 = inlined_call_operand.vmem [shape: f32[1,8], index: 2, kind: input, shape index: {}]
  %s3 = inlined_call_operand.vmem [shape: f32[2,256,8], index: 3, kind: output, shape index: {}]
  %s4 = sld [smem:[#allocation0]]
  $region45: #{bottleneck_forward.15} parent=0
    _
  %s6 = ssub.s32 1, %s4
  %s7 = scalar_select 0, %s6, %s4
  loop: start=0, step=1, limit=4
  $region2: #{bottleneck_forward.15} parent=0 // loop_pre_header
    _
  $region3: #{bottleneck_forward.15} parent=0 // loop_header
    %s9 = sphi 0, %s13
    %p10 = scmp.ge.s32.totalorder %s9, 4
    %s19 = sphi 0, %s21
    %s22 = sphi 0, %s19
    %s23 = sphi 0, %s22
    %s39 = sphi 0, %s23
    %s43 = sphi 0, %s43
    %s45 = sphi 0, %s43
    %s46 = sphi 0, %s45
    %s60 = sphi 0, %s46
    %s64 = sphi 0, %s64
    %s66 = sphi 0, %s64
    %s67 = sphi 0, %s66
    %s81 = sphi 0, %s67
    %s87 = sphi 0, %s89
    %s90 = sphi 0, %s87
    %s91 = sphi 0, %s90
    %s107 = sphi 0, %s91
  $region4: #{bottleneck_forward.15} parent=0 // loop_header_branch
    %12 = sbr.rel (%p10) target = $region8
  $region5: #{bottleneck_forward.15} parent=0 // loop_body
    %s14 = ssub.s32 %s9, 1
    %s15 = ssub.s32 %s9, 2
    %s16 = sadd.s32 %s9, 1
    %s17 = ssub.s32 %s9, %s16
    %p18 = scmp.eq.s32.totalorder %s17, 0
    %s20 = sadd.s32 %s19, 1
    %s21 = scalar_select %p18, %s19, %s20
    %p24 = pneg %p18
    %p25 = scmp.eq.s32.totalorder %s9, 1
    %p26 = por %p24, %p25
    %p27 = scmp.ne.s32.totalorder %s19, %s22
    %p28 = scmp.eq.s32.totalorder %s9, 0
    %p29 = por %p27, %p28
    %p30 = scmp.ne.s32.totalorder %s19, %s22
    %p31 = scmp.eq.s32.totalorder %s14, 1
    %p32 = por %p30, %p31
    %p33 = scmp.ne.s32.totalorder %s22, %s23
    %p34 = scmp.eq.s32.totalorder %s14, 0
    %p35 = por %p33, %p34
    %p36 = scmp.ne.s32.totalorder %s22, %s23
    %p37 = scmp.eq.s32.totalorder %s15, 1
    %p38 = por %p36, %p37
    %p40 = scmp.ne.s32.totalorder %s23, %s39
    %p41 = scmp.eq.s32.totalorder %s15, 0
    %p42 = por %p40, %p41
    %s44 = sadd.s32 %s43, 1
    %p47 = scmp.eq.s32.totalorder %s9, 1
    %p48 = scmp.ne.s32.totalorder %s43, %s45
    %p49 = scmp.eq.s32.totalorder %s9, 0
    %p50 = por %p48, %p49
    %p51 = scmp.ne.s32.totalorder %s43, %s45
    %p52 = scmp.eq.s32.totalorder %s14, 1
    %p53 = por %p51, %p52
    %p54 = scmp.ne.s32.totalorder %s45, %s46
    %p55 = scmp.eq.s32.totalorder %s14, 0
    %p56 = por %p54, %p55
    %p57 = scmp.ne.s32.totalorder %s45, %s46
    %p58 = scmp.eq.s32.totalorder %s15, 1
    %p59 = por %p57, %p58
    %p61 = scmp.ne.s32.totalorder %s46, %s60
    %p62 = scmp.eq.s32.totalorder %s15, 0
    %p63 = por %p61, %p62
    %s65 = sadd.s32 %s64, 1
    %p68 = scmp.eq.s32.totalorder %s9, 1
    %p69 = scmp.ne.s32.totalorder %s64, %s66
    %p70 = scmp.eq.s32.totalorder %s9, 0
    %p71 = por %p69, %p70
    %p72 = scmp.ne.s32.totalorder %s64, %s66
    %p73 = scmp.eq.s32.totalorder %s14, 1
    %p74 = por %p72, %p73
    %p75 = scmp.ne.s32.totalorder %s66, %s67
    %p76 = scmp.eq.s32.totalorder %s14, 0
    %p77 = por %p75, %p76
    %p78 = scmp.ne.s32.totalorder %s66, %s67
    %p79 = scmp.eq.s32.totalorder %s15, 1
    %p80 = por %p78, %p79
    %p82 = scmp.ne.s32.totalorder %s67, %s81
    %p83 = scmp.eq.s32.totalorder %s15, 0
    %p84 = por %p82, %p83
    %s85 = ssub.s32 %s9, %s16
    %p86 = scmp.eq.s32.totalorder %s85, 0
    %s88 = sadd.s32 %s87, 1
    %s89 = scalar_select %p86, %s87, %s88
    %p92 = pneg %p86
    %p93 = scmp.eq.s32.totalorder %s9, 1
    %p94 = por %p92, %p93
    %p95 = scmp.ne.s32.totalorder %s87, %s90
    %p96 = scmp.eq.s32.totalorder %s9, 0
    %p97 = por %p95, %p96
    %p98 = scmp.ne.s32.totalorder %s87, %s90
    %p99 = scmp.eq.s32.totalorder %s14, 1
    %p100 = por %p98, %p99
    %p101 = scmp.ne.s32.totalorder %s90, %s91
    %p102 = scmp.eq.s32.totalorder %s14, 0
    %p103 = por %p101, %p102
    %p104 = scmp.ne.s32.totalorder %s90, %s91
    %p105 = scmp.eq.s32.totalorder %s15, 1
    %p106 = por %p104, %p105
    %p108 = scmp.ne.s32.totalorder %s91, %s107
    %p109 = scmp.eq.s32.totalorder %s15, 0
    %p110 = por %p108, %p109
    %p111 = scmp.le.s32.totalorder 1, %s9
    %p112 = scmp.lt.s32.totalorder %s9, 3
    %p113 = pnand %p111, %p112
    %p114 = pneg %p113
    // Predicated region
    $region9: #{bottleneck_forward.15} parent=5 // pred_check
      _
    $region10: #{bottleneck_forward.15} parent=5 // pred_check_branch
      %116 = sbr.rel (%p113) target = $region12
    $region11: #{bottleneck_forward.15} parent=5 // pred_region
      %s117 = ssub.s32 %s9, 1
      // Predicated region
      $region13: #{bottleneck_forward.15} parent=11 // pred_check
        %p118 = pneg %p56
      $region14: #{bottleneck_forward.15} parent=11 // pred_check_branch
        %120 = sbr.rel (%p118) target = $region16
      $region15: #{bottleneck_forward.15} parent=11 // pred_region
        _
      $region16: #{bottleneck_forward.15} parent=11 // pred_fallthru
        _
      // Predicated region
      $region17: #{bottleneck_forward.15} parent=11 // pred_check
        %p121 = pneg %p77
      $region18: #{bottleneck_forward.15} parent=11 // pred_check_branch
        %123 = sbr.rel (%p121) target = $region20
      $region19: #{bottleneck_forward.15} parent=11 // pred_region
        _
      $region20: #{bottleneck_forward.15} parent=11 // pred_fallthru
        _
    $region12: #{bottleneck_forward.15} parent=5 // pred_fallthru
      _
    %p124 = scmp.lt.s32.totalorder %s9, 2
    // Predicated region
    $region21: #{bottleneck_forward.15} parent=5 // pred_check
      %p125 = pneg %p124
    $region22: #{bottleneck_forward.15} parent=5 // pred_check_branch
      %127 = sbr.rel (%p125) target = $region24
    $region23: #{bottleneck_forward.15} parent=5 // pred_region
      // Predicated region
      $region25: #{bottleneck_forward.15} parent=23 // pred_check
        %p128 = pneg %p29
      $region26: #{bottleneck_forward.15} parent=23 // pred_check_branch
        %130 = sbr.rel (%p128) target = $region28
      $region27: #{bottleneck_forward.15} parent=23 // pred_region
        %p131 = scmp.lt.s32.totalorder %s9, 1
        %s132 = scalar_select %p131, %s9, 1
        %s133 = smul.addr %s132, 54
        %s134 = smul.addr %s133, 8
        %s135 = scalar_lea.vmem %s0, %s134
      $region28: #{bottleneck_forward.15} parent=23 // pred_fallthru
        _
    $region24: #{bottleneck_forward.15} parent=5 // pred_fallthru
      _
    %p136 = scmp.le.s32.totalorder 1, %s9
    %p137 = scmp.lt.s32.totalorder %s9, 3
    %p138 = pnand %p136, %p137
    %p139 = pneg %p138
    // Predicated region
    $region29: #{bottleneck_forward.15} parent=5 // pred_check
      _
    $region30: #{bottleneck_forward.15} parent=5 // pred_check_branch
      %141 = sbr.rel (%p138) target = $region32
    $region31: #{bottleneck_forward.15} parent=5 // pred_region
      %s142 = ssub.s32 %s9, 1
      %p143 = scmp.lt.s32.totalorder %s14, 1
      %s144 = scalar_select %p143, %s14, 1
      %s145 = smul.addr %s144, 54
      %s146 = smul.addr %s145, 8
      %s147 = scalar_lea.vmem %s0, %s146
      %p148 = pneg %p35
      %p149 = pneg %p32
      %p150 = pneg %p56
      %p151 = pneg %p53
      %p152 = pneg %p77
      %p153 = pneg %p74
      %p154 = pneg %p103
      %p155 = pneg %p100
      %p156 = scmp.lt.s32.totalorder %s14, 1
      %s157 = scalar_select %p156, %s14, 1
      %s158 = smul.addr %s157, 32
      %s159 = smul.addr %s158, 8
      %s160 = scalar_lea.vmem %s3, %s159
      %p161 = scmp.lt.s32.totalorder %s14, 1
      %s162 = scalar_select %p161, %s14, 1
      %s163 = smul.addr %s162, 54
      %s164 = smul.addr %s163, 8
      %s165 = scalar_lea.vmem %s0, %s164
      %p166 = scmp.lt.s32.totalorder %s14, 1
      %s167 = scalar_select %p166, %s14, 1
      %s168 = smul.addr %s167, 32
      %s169 = smul.addr %s168, 8
      %s170 = scalar_lea.vmem %s3, %s169
      %v172 = vld [vmem:[%s165] sm:$0xff]
      %v173 = vld [vmem:[%s165 + $0x8] sm:$0xff]
      %v174 = vld [vmem:[%s165 + $0x10] sm:$0x3]
      %v175 = vld [vmem:[%s165 + $0x18] sm:$0xff]
      %v176 = vld [vmem:[%s165 + $0x20] sm:$0xff]
      %v177 = vld [vmem:[%s165 + $0x28] sm:$0x3]
      %v178 = vld [vmem:[%s165 + $0x30] sm:$0xff]
      %v179 = vld [vmem:[%s165 + $0x38] sm:$0xff]
      %v180 = vld [vmem:[%s165 + $0x40] sm:$0x3]
      %v181 = vld [vmem:[%s165 + $0x48] sm:$0xff]
      %v182 = vld [vmem:[%s165 + $0x50] sm:$0xff]
      %v183 = vld [vmem:[%s165 + $0x58] sm:$0x3]
      %v184 = vld [vmem:[%s165 + $0x60] sm:$0xff]
      %v185 = vld [vmem:[%s165 + $0x68] sm:$0xff]
      %v186 = vld [vmem:[%s165 + $0x70] sm:$0x3]
      %v187 = vld [vmem:[%s165 + $0x78] sm:$0xff]
      %v188 = vld [vmem:[%s165 + $0x80] sm:$0xff]
      %v189 = vld [vmem:[%s165 + $0x88] sm:$0x3]
      %v190 = vld [vmem:[%s165 + $0x90] sm:$0xff]
      %v191 = vld [vmem:[%s165 + $0x98] sm:$0xff]
      %v192 = vld [vmem:[%s165 + $0xa0] sm:$0x3]
      %v193 = vld [vmem:[%s165 + $0xa8] sm:$0xff]
      %v194 = vld [vmem:[%s165 + $0xb0] sm:$0xff]
      %v195 = vld [vmem:[%s165 + $0xb8] sm:$0x3]
      %v196 = vld [vmem:[%s165 + $0xc0] sm:$0xff]
      %v197 = vld [vmem:[%s165 + $0xc8] sm:$0xff]
      %v198 = vld [vmem:[%s165 + $0xd0] sm:$0x3]
      %v199 = vld [vmem:[%s165 + $0xd8] sm:$0xff]
      %v200 = vld [vmem:[%s165 + $0xe0] sm:$0xff]
      %v201 = vld [vmem:[%s165 + $0xe8] sm:$0x3]
      %v202 = vld [vmem:[%s165 + $0xf0] sm:$0xff]
      %v203 = vld [vmem:[%s165 + $0xf8] sm:$0xff]
      %v204 = vld [vmem:[%s165 + $0x100] sm:$0x3]
      %v205 = vld [vmem:[%s165 + $0x108] sm:$0xff]
      %v206 = vld [vmem:[%s165 + $0x110] sm:$0xff]
      %v207 = vld [vmem:[%s165 + $0x118] sm:$0x3]
      %v208 = vld [vmem:[%s165 + $0x120] sm:$0xff]
      %v209 = vld [vmem:[%s165 + $0x128] sm:$0xff]
      %v210 = vld [vmem:[%s165 + $0x130] sm:$0x3]
      %v211 = vld [vmem:[%s165 + $0x138] sm:$0xff]
      %v212 = vld [vmem:[%s165 + $0x140] sm:$0xff]
      %v213 = vld [vmem:[%s165 + $0x148] sm:$0x3]
      %v214 = vld [vmem:[%s165 + $0x150] sm:$0xff]
      %v215 = vld [vmem:[%s165 + $0x158] sm:$0xff]
      %v216 = vld [vmem:[%s165 + $0x160] sm:$0x3]
      %v217 = vld [vmem:[%s165 + $0x168] sm:$0xff]
      %v218 = vld [vmem:[%s165 + $0x170] sm:$0xff]
      %v219 = vld [vmem:[%s165 + $0x178] sm:$0x3]
      %v220 = vld [vmem:[%s165 + $0x180] sm:$0xff]
      %v221 = vld [vmem:[%s165 + $0x188] sm:$0xff]
      %v222 = vld [vmem:[%s165 + $0x190] sm:$0x3]
      %v223 = vld [vmem:[%s165 + $0x198] sm:$0xff]
      %v224 = vld [vmem:[%s165 + $0x1a0] sm:$0xff]
      %v225 = vld [vmem:[%s165 + $0x1a8] sm:$0x3]
      %v226 = vld [vmem:[%s1] sm:$0xf]
      %v227 = vld [vmem:[%s1 + $0x4] sm:$0xf]
      %v228 = vld [vmem:[%s1 + $0x8] sm:$0xf]
      %v229 = vld [vmem:[%s1 + $0xc] sm:$0xf]
      %v230 = vld [vmem:[%s1 + $0x10] sm:$0xf]
      %v231 = vld [vmem:[%s1 + $0x14] sm:$0xf]
      %v232 = vld [vmem:[%s1 + $0x18] sm:$0xf]
      %v233 = vld [vmem:[%s1 + $0x1c] sm:$0xf]
      %v234 = vld [vmem:[%s1 + $0x20] sm:$0xf]
      %v235 = vmul.f32 %v172, %v172
      %v236 = vmul.f32 %v173, %v173
      %v237 = vmul.f32 %v175, %v175
      %v238 = vmul.f32 %v176, %v176
      %v239 = vmul.f32 %v178, %v178
      %v240 = vmul.f32 %v179, %v179
      %v241 = vmul.f32 %v181, %v181
      %v242 = vmul.f32 %v182, %v182
      %v243 = vmul.f32 %v184, %v184
      %v244 = vmul.f32 %v185, %v185
      %v245 = vmul.f32 %v187, %v187
      %v246 = vmul.f32 %v188, %v188
      %v247 = vmul.f32 %v190, %v190
      %v248 = vmul.f32 %v191, %v191
      %v249 = vmul.f32 %v193, %v193
      %v250 = vmul.f32 %v194, %v194
      %v251 = vmul.f32 %v196, %v196
      %v252 = vmul.f32 %v197, %v197
      %v253 = vmul.f32 %v199, %v199
      %v254 = vmul.f32 %v200, %v200
      %v255 = vmul.f32 %v202, %v202
      %v256 = vmul.f32 %v203, %v203
      %v257 = vmul.f32 %v205, %v205
      %v258 = vmul.f32 %v206, %v206
      %v259 = vmul.f32 %v208, %v208
      %v260 = vmul.f32 %v209, %v209
      %v261 = vmul.f32 %v211, %v211
      %v262 = vmul.f32 %v212, %v212
      %v263 = vmul.f32 %v214, %v214
      %v264 = vmul.f32 %v215, %v215
      %v265 = vmul.f32 %v217, %v217
      %v266 = vmul.f32 %v218, %v218
      %vm267 = vcmask 64512
      %v268 = vsel %vm267, %v235, 0.0
      %269 = vadd.xlane.f32.xlu0 %v268
      %v270 = vpop.xlane.xlu0 %269
      %v271 = vsel %vm267, %v236, 0.0
      %272 = vadd.xlane.f32.xlu0 %v271
      %v273 = vpop.xlane.xlu0 %272
      %v274 = vsel %vm267, %v237, 0.0
      %275 = vadd.xlane.f32.xlu0 %v274
      %v276 = vpop.xlane.xlu0 %275
      %v277 = vsel %vm267, %v238, 0.0
      %278 = vadd.xlane.f32.xlu0 %v277
      %v279 = vpop.xlane.xlu0 %278
      %v280 = vsel %vm267, %v239, 0.0
      %281 = vadd.xlane.f32.xlu0 %v280
      %v282 = vpop.xlane.xlu0 %281
      %v283 = vsel %vm267, %v240, 0.0
      %284 = vadd.xlane.f32.xlu0 %v283
      %v285 = vpop.xlane.xlu0 %284
      %v286 = vsel %vm267, %v241, 0.0
      %287 = vadd.xlane.f32.xlu0 %v286
      %v288 = vpop.xlane.xlu0 %287
      %v289 = vsel %vm267, %v242, 0.0
      %290 = vadd.xlane.f32.xlu0 %v289
      %v291 = vpop.xlane.xlu0 %290
      %v292 = vsel %vm267, %v243, 0.0
      %293 = vadd.xlane.f32.xlu0 %v292
      %v294 = vpop.xlane.xlu0 %293
      %v295 = vsel %vm267, %v244, 0.0
      %296 = vadd.xlane.f32.xlu0 %v295
      %v297 = vpop.xlane.xlu0 %296
      %v298 = vsel %vm267, %v245, 0.0
      %299 = vadd.xlane.f32.xlu0 %v298
      %v300 = vpop.xlane.xlu0 %299
      %v301 = vsel %vm267, %v246, 0.0
      %302 = vadd.xlane.f32.xlu0 %v301
      %v303 = vpop.xlane.xlu0 %302
      %v304 = vsel %vm267, %v247, 0.0
      %305 = vadd.xlane.f32.xlu0 %v304
      %v306 = vpop.xlane.xlu0 %305
      %v307 = vsel %vm267, %v248, 0.0
      %308 = vadd.xlane.f32.xlu0 %v307
      %v309 = vpop.xlane.xlu0 %308
      %v310 = vsel %vm267, %v249, 0.0
      %311 = vadd.xlane.f32.xlu0 %v310
      %v312 = vpop.xlane.xlu0 %311
      %v313 = vsel %vm267, %v250, 0.0
      %314 = vadd.xlane.f32.xlu0 %v313
      %v315 = vpop.xlane.xlu0 %314
      %v316 = vsel %vm267, %v251, 0.0
      %317 = vadd.xlane.f32.xlu0 %v316
      %v318 = vpop.xlane.xlu0 %317
      %v319 = vsel %vm267, %v252, 0.0
      %320 = vadd.xlane.f32.xlu0 %v319
      %v321 = vpop.xlane.xlu0 %320
      %v322 = vsel %vm267, %v253, 0.0
      %323 = vadd.xlane.f32.xlu0 %v322
      %v324 = vpop.xlane.xlu0 %323
      %v325 = vsel %vm267, %v254, 0.0
      %326 = vadd.xlane.f32.xlu0 %v325
      %v327 = vpop.xlane.xlu0 %326
      %v328 = vsel %vm267, %v255, 0.0
      %329 = vadd.xlane.f32.xlu0 %v328
      %v330 = vpop.xlane.xlu0 %329
      %v331 = vsel %vm267, %v256, 0.0
      %332 = vadd.xlane.f32.xlu0 %v331
      %v333 = vpop.xlane.xlu0 %332
      %v334 = vsel %vm267, %v257, 0.0
      %335 = vadd.xlane.f32.xlu0 %v334
      %v336 = vpop.xlane.xlu0 %335
      %v337 = vsel %vm267, %v258, 0.0
      %338 = vadd.xlane.f32.xlu0 %v337
      %v339 = vpop.xlane.xlu0 %338
      %v340 = vsel %vm267, %v259, 0.0
      %341 = vadd.xlane.f32.xlu0 %v340
      %v342 = vpop.xlane.xlu0 %341
      %v343 = vsel %vm267, %v260, 0.0
      %344 = vadd.xlane.f32.xlu0 %v343
      %v345 = vpop.xlane.xlu0 %344
      %v346 = vsel %vm267, %v261, 0.0
      %347 = vadd.xlane.f32.xlu0 %v346
      %v348 = vpop.xlane.xlu0 %347
      %v349 = vsel %vm267, %v262, 0.0
      %350 = vadd.xlane.f32.xlu0 %v349
      %v351 = vpop.xlane.xlu0 %350
      %v352 = vsel %vm267, %v263, 0.0
      %353 = vadd.xlane.f32.xlu0 %v352
      %v354 = vpop.xlane.xlu0 %353
      %v355 = vsel %vm267, %v264, 0.0
      %356 = vadd.xlane.f32.xlu0 %v355
      %v357 = vpop.xlane.xlu0 %356
      %v358 = vsel %vm267, %v265, 0.0
      %359 = vadd.xlane.f32.xlu0 %v358
      %v360 = vpop.xlane.xlu0 %359
      %v361 = vsel %vm267, %v266, 0.0
      %362 = vadd.xlane.f32.xlu0 %v361
      %v363 = vpop.xlane.xlu0 %362
      %v364 = vadd.f32 %v270, 0.0
      %v365 = vadd.f32 %v273, 0.0
      %v366 = vadd.f32 %v276, 0.0
      %v367 = vadd.f32 %v279, 0.0
      %v368 = vadd.f32 %v282, 0.0
      %v369 = vadd.f32 %v285, 0.0
      %v370 = vadd.f32 %v288, 0.0
      %v371 = vadd.f32 %v291, 0.0
      %v372 = vadd.f32 %v294, 0.0
      %v373 = vadd.f32 %v297, 0.0
      %v374 = vadd.f32 %v300, 0.0
      %v375 = vadd.f32 %v303, 0.0
      %v376 = vadd.f32 %v306, 0.0
      %v377 = vadd.f32 %v309, 0.0
      %v378 = vadd.f32 %v312, 0.0
      %v379 = vadd.f32 %v315, 0.0
      %v380 = vadd.f32 %v318, 0.0
      %v381 = vadd.f32 %v321, 0.0
      %v382 = vadd.f32 %v324, 0.0
      %v383 = vadd.f32 %v327, 0.0
      %v384 = vadd.f32 %v330, 0.0
      %v385 = vadd.f32 %v333, 0.0
      %v386 = vadd.f32 %v336, 0.0
      %v387 = vadd.f32 %v339, 0.0
      %v388 = vadd.f32 %v342, 0.0
      %v389 = vadd.f32 %v345, 0.0
      %v390 = vadd.f32 %v348, 0.0
      %v391 = vadd.f32 %v351, 0.0
      %v392 = vadd.f32 %v354, 0.0
      %v393 = vadd.f32 %v357, 0.0
      %v394 = vadd.f32 %v360, 0.0
      %v395 = vadd.f32 %v363, 0.0
      %v396 = vpack.c.bf16 %v173, %v172
      %v397 = vpack.c.bf16 %v176, %v175
      %v398 = vpack.c.bf16 %v179, %v178
      %v399 = vpack.c.bf16 %v182, %v181
      %v400 = vpack.c.bf16 %v185, %v184
      %v401 = vpack.c.bf16 %v188, %v187
      %v402 = vpack.c.bf16 %v191, %v190
      %v403 = vpack.c.bf16 %v194, %v193
      %v404 = vpack.c.bf16 %v197, %v196
      %v405 = vpack.c.bf16 %v200, %v199
      %v406 = vpack.c.bf16 %v203, %v202
      %v407 = vpack.c.bf16 %v206, %v205
      %v408 = vpack.c.bf16 %v209, %v208
      %v409 = vpack.c.bf16 %v212, %v211
      %v410 = vpack.c.bf16 %v215, %v214
      %v411 = vpack.c.bf16 %v218, %v217
      %vm460 = vcmask 1046528
      %v461 = vrot.slane %v172, 1
      %v462 = vrot.slane %v173, 1
      %v463 = vsel %vm460, %v461, %v462
      %v464 = vrot.slane %v174, 1
      %v465 = vsel %vm460, %v462, %v464
      %v466 = vrot.slane %v175, 1
      %v467 = vrot.slane %v176, 1
      %v468 = vsel %vm460, %v466, %v467
      %v469 = vrot.slane %v177, 1
      %v470 = vsel %vm460, %v467, %v469
      %v471 = vrot.slane %v178, 1
      %v472 = vrot.slane %v179, 1
      %v473 = vsel %vm460, %v471, %v472
      %v474 = vrot.slane %v180, 1
      %v475 = vsel %vm460, %v472, %v474
      %v476 = vrot.slane %v181, 1
      %v477 = vrot.slane %v182, 1
      %v478 = vsel %vm460, %v476, %v477
      %v479 = vrot.slane %v183, 1
      %v480 = vsel %vm460, %v477, %v479
      %v481 = vrot.slane %v184, 1
      %v482 = vrot.slane %v185, 1
      %v483 = vsel %vm460, %v481, %v482
      %v484 = vrot.slane %v186, 1
      %v485 = vsel %vm460, %v482, %v484
      %v486 = vrot.slane %v187, 1
      %v487 = vrot.slane %v188, 1
      %v488 = vsel %vm460, %v486, %v487
      %v489 = vrot.slane %v189, 1
      %v490 = vsel %vm460, %v487, %v489
      %v491 = vrot.slane %v190, 1
      %v492 = vrot.slane %v191, 1
      %v493 = vsel %vm460, %v491, %v492
      %v494 = vrot.slane %v192, 1
      %v495 = vsel %vm460, %v492, %v494
      %v496 = vrot.slane %v193, 1
      %v497 = vrot.slane %v194, 1
      %v498 = vsel %vm460, %v496, %v497
      %v499 = vrot.slane %v195, 1
      %v500 = vsel %vm460, %v497, %v499
      %v501 = vrot.slane %v196, 1
      %v502 = vrot.slane %v197, 1
      %v503 = vsel %vm460, %v501, %v502
      %v504 = vrot.slane %v198, 1
      %v505 = vsel %vm460, %v502, %v504
      %v506 = vrot.slane %v199, 1
      %v507 = vrot.slane %v200, 1
      %v508 = vsel %vm460, %v506, %v507
      %v509 = vrot.slane %v201, 1
      %v510 = vsel %vm460, %v507, %v509
      %v511 = vrot.slane %v202, 1
      %v512 = vrot.slane %v203, 1
      %v513 = vsel %vm460, %v511, %v512
      %v514 = vrot.slane %v204, 1
      %v515 = vsel %vm460, %v512, %v514
      %v516 = vrot.slane %v205, 1
      %v517 = vrot.slane %v206, 1
      %v518 = vsel %vm460, %v516, %v517
      %v519 = vrot.slane %v207, 1
      %v520 = vsel %vm460, %v517, %v519
      %v521 = vrot.slane %v208, 1
      %v522 = vrot.slane %v209, 1
      %v523 = vsel %vm460, %v521, %v522
      %v524 = vrot.slane %v210, 1
      %v525 = vsel %vm460, %v522, %v524
      %v526 = vrot.slane %v211, 1
      %v527 = vrot.slane %v212, 1
      %v528 = vsel %vm460, %v526, %v527
      %v529 = vrot.slane %v213, 1
      %v530 = vsel %vm460, %v527, %v529
      %v531 = vrot.slane %v214, 1
      %v532 = vrot.slane %v215, 1
      %v533 = vsel %vm460, %v531, %v532
      %v534 = vrot.slane %v216, 1
      %v535 = vsel %vm460, %v532, %v534
      %v536 = vrot.slane %v217, 1
      %v537 = vrot.slane %v218, 1
      %v538 = vsel %vm460, %v536, %v537
      %v539 = vrot.slane %v219, 1
      %v540 = vsel %vm460, %v537, %v539
      %v573 = vmul.f32 %v463, %v463
      %v574 = vmul.f32 %v465, %v465
      %v575 = vmul.f32 %v468, %v468
      %v576 = vmul.f32 %v470, %v470
      %v577 = vmul.f32 %v473, %v473
      %v578 = vmul.f32 %v475, %v475
      %v579 = vmul.f32 %v478, %v478
      %v580 = vmul.f32 %v480, %v480
      %v581 = vmul.f32 %v483, %v483
      %v582 = vmul.f32 %v485, %v485
      %v583 = vmul.f32 %v488, %v488
      %v584 = vmul.f32 %v490, %v490
      %v585 = vmul.f32 %v493, %v493
      %v586 = vmul.f32 %v495, %v495
      %v587 = vmul.f32 %v498, %v498
      %v588 = vmul.f32 %v500, %v500
      %v589 = vmul.f32 %v503, %v503
      %v590 = vmul.f32 %v505, %v505
      %v591 = vmul.f32 %v508, %v508
      %v592 = vmul.f32 %v510, %v510
      %v593 = vmul.f32 %v513, %v513
      %v594 = vmul.f32 %v515, %v515
      %v595 = vmul.f32 %v518, %v518
      %v596 = vmul.f32 %v520, %v520
      %v597 = vmul.f32 %v523, %v523
      %v598 = vmul.f32 %v525, %v525
      %v599 = vmul.f32 %v528, %v528
      %v600 = vmul.f32 %v530, %v530
      %v601 = vmul.f32 %v533, %v533
      %v602 = vmul.f32 %v535, %v535
      %v603 = vmul.f32 %v538, %v538
      %v604 = vmul.f32 %v540, %v540
      %v605 = vsel %vm267, %v573, 0.0
      %606 = vadd.xlane.f32.xlu0 %v605
      %v607 = vpop.xlane.xlu0 %606
      %v608 = vsel %vm267, %v574, 0.0
      %609 = vadd.xlane.f32.xlu0 %v608
      %v610 = vpop.xlane.xlu0 %609
      %v611 = vsel %vm267, %v575, 0.0
      %612 = vadd.xlane.f32.xlu0 %v611
      %v613 = vpop.xlane.xlu0 %612
      %v614 = vsel %vm267, %v576, 0.0
      %615 = vadd.xlane.f32.xlu0 %v614
      %v616 = vpop.xlane.xlu0 %615
      %v617 = vsel %vm267, %v577, 0.0
      %618 = vadd.xlane.f32.xlu0 %v617
      %v619 = vpop.xlane.xlu0 %618
      %v620 = vsel %vm267, %v578, 0.0
      %621 = vadd.xlane.f32.xlu0 %v620
      %v622 = vpop.xlane.xlu0 %621
      %v623 = vsel %vm267, %v579, 0.0
      %624 = vadd.xlane.f32.xlu0 %v623
      %v625 = vpop.xlane.xlu0 %624
      %v626 = vsel %vm267, %v580, 0.0
      %627 = vadd.xlane.f32.xlu0 %v626
      %v628 = vpop.xlane.xlu0 %627
      %v629 = vsel %vm267, %v581, 0.0
      %630 = vadd.xlane.f32.xlu0 %v629
      %v631 = vpop.xlane.xlu0 %630
      %v632 = vsel %vm267, %v582, 0.0
      %633 = vadd.xlane.f32.xlu0 %v632
      %v634 = vpop.xlane.xlu0 %633
      %v635 = vsel %vm267, %v583, 0.0
      %636 = vadd.xlane.f32.xlu0 %v635
      %v637 = vpop.xlane.xlu0 %636
      %v638 = vsel %vm267, %v584, 0.0
      %639 = vadd.xlane.f32.xlu0 %v638
      %v640 = vpop.xlane.xlu0 %639
      %v641 = vsel %vm267, %v585, 0.0
      %642 = vadd.xlane.f32.xlu0 %v641
      %v643 = vpop.xlane.xlu0 %642
      %v644 = vsel %vm267, %v586, 0.0
      %645 = vadd.xlane.f32.xlu0 %v644
      %v646 = vpop.xlane.xlu0 %645
      %v647 = vsel %vm267, %v587, 0.0
      %648 = vadd.xlane.f32.xlu0 %v647
      %v649 = vpop.xlane.xlu0 %648
      %v650 = vsel %vm267, %v588, 0.0
      %651 = vadd.xlane.f32.xlu0 %v650
      %v652 = vpop.xlane.xlu0 %651
      %v653 = vsel %vm267, %v589, 0.0
      %654 = vadd.xlane.f32.xlu0 %v653
      %v655 = vpop.xlane.xlu0 %654
      %v656 = vsel %vm267, %v590, 0.0
      %657 = vadd.xlane.f32.xlu0 %v656
      %v658 = vpop.xlane.xlu0 %657
      %v659 = vsel %vm267, %v591, 0.0
      %660 = vadd.xlane.f32.xlu0 %v659
      %v661 = vpop.xlane.xlu0 %660
      %v662 = vsel %vm267, %v592, 0.0
      %663 = vadd.xlane.f32.xlu0 %v662
      %v664 = vpop.xlane.xlu0 %663
      %v665 = vsel %vm267, %v593, 0.0
      %666 = vadd.xlane.f32.xlu0 %v665
      %v667 = vpop.xlane.xlu0 %666
      %v668 = vsel %vm267, %v594, 0.0
      %669 = vadd.xlane.f32.xlu0 %v668
      %v670 = vpop.xlane.xlu0 %669
      %v671 = vsel %vm267, %v595, 0.0
      %672 = vadd.xlane.f32.xlu0 %v671
      %v673 = vpop.xlane.xlu0 %672
      %v674 = vsel %vm267, %v596, 0.0
      %675 = vadd.xlane.f32.xlu0 %v674
      %v676 = vpop.xlane.xlu0 %675
      %v677 = vsel %vm267, %v597, 0.0
      %678 = vadd.xlane.f32.xlu0 %v677
      %v679 = vpop.xlane.xlu0 %678
      %v680 = vsel %vm267, %v598, 0.0
      %681 = vadd.xlane.f32.xlu0 %v680
      %v682 = vpop.xlane.xlu0 %681
      %v683 = vsel %vm267, %v599, 0.0
      %684 = vadd.xlane.f32.xlu0 %v683
      %v685 = vpop.xlane.xlu0 %684
      %v686 = vsel %vm267, %v600, 0.0
      %687 = vadd.xlane.f32.xlu0 %v686
      %v688 = vpop.xlane.xlu0 %687
      %v689 = vsel %vm267, %v601, 0.0
      %690 = vadd.xlane.f32.xlu0 %v689
      %v691 = vpop.xlane.xlu0 %690
      %v692 = vsel %vm267, %v602, 0.0
      %693 = vadd.xlane.f32.xlu0 %v692
      %v694 = vpop.xlane.xlu0 %693
      %v695 = vsel %vm267, %v603, 0.0
      %696 = vadd.xlane.f32.xlu0 %v695
      %v697 = vpop.xlane.xlu0 %696
      %v698 = vsel %vm267, %v604, 0.0
      %699 = vadd.xlane.f32.xlu0 %v698
      %v700 = vpop.xlane.xlu0 %699
      %v701 = vadd.f32 %v364, %v607
      %v702 = vadd.f32 %v365, %v610
      %v703 = vadd.f32 %v366, %v613
      %v704 = vadd.f32 %v367, %v616
      %v705 = vadd.f32 %v368, %v619
      %v706 = vadd.f32 %v369, %v622
      %v707 = vadd.f32 %v370, %v625
      %v708 = vadd.f32 %v371, %v628
      %v709 = vadd.f32 %v372, %v631
      %v710 = vadd.f32 %v373, %v634
      %v711 = vadd.f32 %v374, %v637
      %v712 = vadd.f32 %v375, %v640
      %v713 = vadd.f32 %v376, %v643
      %v714 = vadd.f32 %v377, %v646
      %v715 = vadd.f32 %v378, %v649
      %v716 = vadd.f32 %v379, %v652
      %v717 = vadd.f32 %v380, %v655
      %v718 = vadd.f32 %v381, %v658
      %v719 = vadd.f32 %v382, %v661
      %v720 = vadd.f32 %v383, %v664
      %v721 = vadd.f32 %v384, %v667
      %v722 = vadd.f32 %v385, %v670
      %v723 = vadd.f32 %v386, %v673
      %v724 = vadd.f32 %v387, %v676
      %v725 = vadd.f32 %v388, %v679
      %v726 = vadd.f32 %v389, %v682
      %v727 = vadd.f32 %v390, %v685
      %v728 = vadd.f32 %v391, %v688
      %v729 = vadd.f32 %v392, %v691
      %v730 = vadd.f32 %v393, %v694
      %v731 = vadd.f32 %v394, %v697
      %v732 = vadd.f32 %v395, %v700
      %v733 = vpack.c.bf16 %v465, %v463
      %v734 = vpack.c.bf16 %v470, %v468
      %v735 = vpack.c.bf16 %v475, %v473
      %v736 = vpack.c.bf16 %v480, %v478
      %v737 = vpack.c.bf16 %v485, %v483
      %v738 = vpack.c.bf16 %v490, %v488
      %v739 = vpack.c.bf16 %v495, %v493
      %v740 = vpack.c.bf16 %v500, %v498
      %v741 = vpack.c.bf16 %v505, %v503
      %v742 = vpack.c.bf16 %v510, %v508
      %v743 = vpack.c.bf16 %v515, %v513
      %v744 = vpack.c.bf16 %v520, %v518
      %v745 = vpack.c.bf16 %v525, %v523
      %v746 = vpack.c.bf16 %v530, %v528
      %v747 = vpack.c.bf16 %v535, %v533
      %v748 = vpack.c.bf16 %v540, %v538
      %v750 = vsel %vm267, %v733, 0
      %v753 = vsel %vm267, %v734, 0
      %v756 = vsel %vm267, %v735, 0
      %v759 = vsel %vm267, %v736, 0
      %v762 = vsel %vm267, %v737, 0
      %v765 = vsel %vm267, %v738, 0
      %v768 = vsel %vm267, %v739, 0
      %v771 = vsel %vm267, %v740, 0
      %v774 = vsel %vm267, %v741, 0
      %v777 = vsel %vm267, %v742, 0
      %v780 = vsel %vm267, %v743, 0
      %v783 = vsel %vm267, %v744, 0
      %v786 = vsel %vm267, %v745, 0
      %v789 = vsel %vm267, %v746, 0
      %v792 = vsel %vm267, %v747, 0
      %v795 = vsel %vm267, %v748, 0
      %vm797 = vcmask 1043456
      %v799 = vsel %vm797, %v227, 0
      %801 = vmatpush.bf16.msra.mxu0 0
      %802 = vmatpush.bf16.msra.mxu0 0
      %803 = vmatpush.bf16.msra.mxu0 0
      %804 = vmatpush.bf16.msra.mxu0 0
      %805 = vmatpush.bf16.msra.mxu0 0
      %806 = vmatpush.bf16.msra.mxu0 0
      %807 = vmatpush.bf16.msra.mxu0 0
      %808 = vmatpush.bf16.msra.mxu0 %v799
      %809 = vmatmul.bf16.gmra.mxu0 %v750
      %v810 = vpop.f32.mrf.mxu0
      %v811 = vadd.f32 0.0, %v810
      %v812 = vpop.f32.mrf.mxu0
      %v813 = vadd.f32 0.0, %v812
      %814 = vmatmul.bf16.gmra.mxu0 %v753
      %v815 = vpop.f32.mrf.mxu0
      %v816 = vadd.f32 0.0, %v815
      %v817 = vpop.f32.mrf.mxu0
      %v818 = vadd.f32 0.0, %v817
      %819 = vmatmul.bf16.gmra.mxu0 %v756
      %v820 = vpop.f32.mrf.mxu0
      %v821 = vadd.f32 0.0, %v820
      %v822 = vpop.f32.mrf.mxu0
      %v823 = vadd.f32 0.0, %v822
      %824 = vmatmul.bf16.gmra.mxu0 %v759
      %v825 = vpop.f32.mrf.mxu0
      %v826 = vadd.f32 0.0, %v825
      %v827 = vpop.f32.mrf.mxu0
      %v828 = vadd.f32 0.0, %v827
      %829 = vmatmul.bf16.gmra.mxu0 %v762
      %v830 = vpop.f32.mrf.mxu0
      %v831 = vadd.f32 0.0, %v830
      %v832 = vpop.f32.mrf.mxu0
      %v833 = vadd.f32 0.0, %v832
      %834 = vmatmul.bf16.gmra.mxu0 %v765
      %v835 = vpop.f32.mrf.mxu0
      %v836 = vadd.f32 0.0, %v835
      %v837 = vpop.f32.mrf.mxu0
      %v838 = vadd.f32 0.0, %v837
      %839 = vmatmul.bf16.gmra.mxu0 %v768
      %v840 = vpop.f32.mrf.mxu0
      %v841 = vadd.f32 0.0, %v840
      %v842 = vpop.f32.mrf.mxu0
      %v843 = vadd.f32 0.0, %v842
      %844 = vmatmul.bf16.gmra.mxu0 %v771
      %v845 = vpop.f32.mrf.mxu0
      %v846 = vadd.f32 0.0, %v845
      %v847 = vpop.f32.mrf.mxu0
      %v848 = vadd.f32 0.0, %v847
      %849 = vmatmul.bf16.gmra.mxu0 %v774
      %v850 = vpop.f32.mrf.mxu0
      %v851 = vadd.f32 0.0, %v850
      %v852 = vpop.f32.mrf.mxu0
      %v853 = vadd.f32 0.0, %v852
      %854 = vmatmul.bf16.gmra.mxu0 %v777
      %v855 = vpop.f32.mrf.mxu0
      %v856 = vadd.f32 0.0, %v855
      %v857 = vpop.f32.mrf.mxu0
      %v858 = vadd.f32 0.0, %v857
      %859 = vmatmul.bf16.gmra.mxu0 %v780
      %v860 = vpop.f32.mrf.mxu0
      %v861 = vadd.f32 0.0, %v860
      %v862 = vpop.f32.mrf.mxu0
      %v863 = vadd.f32 0.0, %v862
      %864 = vmatmul.bf16.gmra.mxu0 %v783
      %v865 = vpop.f32.mrf.mxu0
      %v866 = vadd.f32 0.0, %v865
      %v867 = vpop.f32.mrf.mxu0
      %v868 = vadd.f32 0.0, %v867
      %869 = vmatmul.bf16.gmra.mxu0 %v786
      %v870 = vpop.f32.mrf.mxu0
      %v871 = vadd.f32 0.0, %v870
      %v872 = vpop.f32.mrf.mxu0
      %v873 = vadd.f32 0.0, %v872
      %874 = vmatmul.bf16.gmra.mxu0 %v789
      %v875 = vpop.f32.mrf.mxu0
      %v876 = vadd.f32 0.0, %v875
      %v877 = vpop.f32.mrf.mxu0
      %v878 = vadd.f32 0.0, %v877
      %879 = vmatmul.bf16.gmra.mxu0 %v792
      %v880 = vpop.f32.mrf.mxu0
      %v881 = vadd.f32 0.0, %v880
      %v882 = vpop.f32.mrf.mxu0
      %v883 = vadd.f32 0.0, %v882
      %884 = vmatmul.bf16.gmra.mxu0 %v795
      %v885 = vpop.f32.mrf.mxu0
      %v886 = vadd.f32 0.0, %v885
      %v887 = vpop.f32.mrf.mxu0
      %v888 = vadd.f32 0.0, %v887
      %889 = vdwg.mxu0
      %v891 = vsel %vm267, %v396, 0
      %v894 = vsel %vm267, %v397, 0
      %v897 = vsel %vm267, %v398, 0
      %v900 = vsel %vm267, %v399, 0
      %v903 = vsel %vm267, %v400, 0
      %v906 = vsel %vm267, %v401, 0
      %v909 = vsel %vm267, %v402, 0
      %v912 = vsel %vm267, %v403, 0
      %v915 = vsel %vm267, %v404, 0
      %v918 = vsel %vm267, %v405, 0
      %v921 = vsel %vm267, %v406, 0
      %v924 = vsel %vm267, %v407, 0
      %v927 = vsel %vm267, %v408, 0
      %v930 = vsel %vm267, %v409, 0
      %v933 = vsel %vm267, %v410, 0
      %v936 = vsel %vm267, %v411, 0
      %v939 = vsel %vm797, %v226, 0
      %941 = vmatpush.bf16.msra.mxu0 0
      %942 = vmatpush.bf16.msra.mxu0 0
      %943 = vmatpush.bf16.msra.mxu0 0
      %944 = vmatpush.bf16.msra.mxu0 0
      %945 = vmatpush.bf16.msra.mxu0 0
      %946 = vmatpush.bf16.msra.mxu0 0
      %947 = vmatpush.bf16.msra.mxu0 0
      %948 = vmatpush.bf16.msra.mxu0 %v939
      %949 = vmatmul.bf16.gmra.mxu0 %v891
      %v950 = vpop.f32.mrf.mxu0
      %v951 = vadd.f32 %v811, %v950
      %v952 = vpop.f32.mrf.mxu0
      %v953 = vadd.f32 %v813, %v952
      %954 = vmatmul.bf16.gmra.mxu0 %v894
      %v955 = vpop.f32.mrf.mxu0
      %v956 = vadd.f32 %v816, %v955
      %v957 = vpop.f32.mrf.mxu0
      %v958 = vadd.f32 %v818, %v957
      %959 = vmatmul.bf16.gmra.mxu0 %v897
      %v960 = vpop.f32.mrf.mxu0
      %v961 = vadd.f32 %v821, %v960
      %v962 = vpop.f32.mrf.mxu0
      %v963 = vadd.f32 %v823, %v962
      %964 = vmatmul.bf16.gmra.mxu0 %v900
      %v965 = vpop.f32.mrf.mxu0
      %v966 = vadd.f32 %v826, %v965
      %v967 = vpop.f32.mrf.mxu0
      %v968 = vadd.f32 %v828, %v967
      %969 = vmatmul.bf16.gmra.mxu0 %v903
      %v970 = vpop.f32.mrf.mxu0
      %v971 = vadd.f32 %v831, %v970
      %v972 = vpop.f32.mrf.mxu0
      %v973 = vadd.f32 %v833, %v972
      %974 = vmatmul.bf16.gmra.mxu0 %v906
      %v975 = vpop.f32.mrf.mxu0
      %v976 = vadd.f32 %v836, %v975
      %v977 = vpop.f32.mrf.mxu0
      %v978 = vadd.f32 %v838, %v977
      %979 = vmatmul.bf16.gmra.mxu0 %v909
      %v980 = vpop.f32.mrf.mxu0
      %v981 = vadd.f32 %v841, %v980
      %v982 = vpop.f32.mrf.mxu0
      %v983 = vadd.f32 %v843, %v982
      %984 = vmatmul.bf16.gmra.mxu0 %v912
      %v985 = vpop.f32.mrf.mxu0
      %v986 = vadd.f32 %v846, %v985
      %v987 = vpop.f32.mrf.mxu0
      %v988 = vadd.f32 %v848, %v987
      %989 = vmatmul.bf16.gmra.mxu0 %v915
      %v990 = vpop.f32.mrf.mxu0
      %v991 = vadd.f32 %v851, %v990
      %v992 = vpop.f32.mrf.mxu0
      %v993 = vadd.f32 %v853, %v992
      %994 = vmatmul.bf16.gmra.mxu0 %v918
      %v995 = vpop.f32.mrf.mxu0
      %v996 = vadd.f32 %v856, %v995
      %v997 = vpop.f32.mrf.mxu0
      %v998 = vadd.f32 %v858, %v997
      %999 = vmatmul.bf16.gmra.mxu0 %v921
      %v1000 = vpop.f32.mrf.mxu0
      %v1001 = vadd.f32 %v861, %v1000
      %v1002 = vpop.f32.mrf.mxu0
      %v1003 = vadd.f32 %v863, %v1002
      %1004 = vmatmul.bf16.gmra.mxu0 %v924
      %v1005 = vpop.f32.mrf.mxu0
      %v1006 = vadd.f32 %v866, %v1005
      %v1007 = vpop.f32.mrf.mxu0
      %v1008 = vadd.f32 %v868, %v1007
      %1009 = vmatmul.bf16.gmra.mxu0 %v927
      %v1010 = vpop.f32.mrf.mxu0
      %v1011 = vadd.f32 %v871, %v1010
      %v1012 = vpop.f32.mrf.mxu0
      %v1013 = vadd.f32 %v873, %v1012
      %1014 = vmatmul.bf16.gmra.mxu0 %v930
      %v1015 = vpop.f32.mrf.mxu0
      %v1016 = vadd.f32 %v876, %v1015
      %v1017 = vpop.f32.mrf.mxu0
      %v1018 = vadd.f32 %v878, %v1017
      %1019 = vmatmul.bf16.gmra.mxu0 %v933
      %v1020 = vpop.f32.mrf.mxu0
      %v1021 = vadd.f32 %v881, %v1020
      %v1022 = vpop.f32.mrf.mxu0
      %v1023 = vadd.f32 %v883, %v1022
      %1024 = vmatmul.bf16.gmra.mxu0 %v936
      %v1025 = vpop.f32.mrf.mxu0
      %v1026 = vadd.f32 %v886, %v1025
      %v1027 = vpop.f32.mrf.mxu0
      %v1028 = vadd.f32 %v888, %v1027
      %1029 = vdwg.mxu0
      %vm1030 = vcmask 1045504
      %v1031 = vrot.slane %v172, 2
      %v1032 = vrot.slane %v173, 2
      %v1033 = vsel %vm1030, %v1031, %v1032
      %v1034 = vrot.slane %v174, 2
      %v1035 = vsel %vm1030, %v1032, %v1034
      %v1036 = vrot.slane %v175, 2
      %v1037 = vrot.slane %v176, 2
      %v1038 = vsel %vm1030, %v1036, %v1037
      %v1039 = vrot.slane %v177, 2
      %v1040 = vsel %vm1030, %v1037, %v1039
      %v1041 = vrot.slane %v178, 2
      %v1042 = vrot.slane %v179, 2
      %v1043 = vsel %vm1030, %v1041, %v1042
      %v1044 = vrot.slane %v180, 2
      %v1045 = vsel %vm1030, %v1042, %v1044
      %v1046 = vrot.slane %v181, 2
      %v1047 = vrot.slane %v182, 2
      %v1048 = vsel %vm1030, %v1046, %v1047
      %v1049 = vrot.slane %v183, 2
      %v1050 = vsel %vm1030, %v1047, %v1049
      %v1051 = vrot.slane %v184, 2
      %v1052 = vrot.slane %v185, 2
      %v1053 = vsel %vm1030, %v1051, %v1052
      %v1054 = vrot.slane %v186, 2
      %v1055 = vsel %vm1030, %v1052, %v1054
      %v1056 = vrot.slane %v187, 2
      %v1057 = vrot.slane %v188, 2
      %v1058 = vsel %vm1030, %v1056, %v1057
      %v1059 = vrot.slane %v189, 2
      %v1060 = vsel %vm1030, %v1057, %v1059
      %v1061 = vrot.slane %v190, 2
      %v1062 = vrot.slane %v191, 2
      %v1063 = vsel %vm1030, %v1061, %v1062
      %v1064 = vrot.slane %v192, 2
      %v1065 = vsel %vm1030, %v1062, %v1064
      %v1066 = vrot.slane %v193, 2
      %v1067 = vrot.slane %v194, 2
      %v1068 = vsel %vm1030, %v1066, %v1067
      %v1069 = vrot.slane %v195, 2
      %v1070 = vsel %vm1030, %v1067, %v1069
      %v1071 = vrot.slane %v196, 2
      %v1072 = vrot.slane %v197, 2
      %v1073 = vsel %vm1030, %v1071, %v1072
      %v1074 = vrot.slane %v198, 2
      %v1075 = vsel %vm1030, %v1072, %v1074
      %v1076 = vrot.slane %v199, 2
      %v1077 = vrot.slane %v200, 2
      %v1078 = vsel %vm1030, %v1076, %v1077
      %v1079 = vrot.slane %v201, 2
      %v1080 = vsel %vm1030, %v1077, %v1079
      %v1081 = vrot.slane %v202, 2
      %v1082 = vrot.slane %v203, 2
      %v1083 = vsel %vm1030, %v1081, %v1082
      %v1084 = vrot.slane %v204, 2
      %v1085 = vsel %vm1030, %v1082, %v1084
      %v1086 = vrot.slane %v205, 2
      %v1087 = vrot.slane %v206, 2
      %v1088 = vsel %vm1030, %v1086, %v1087
      %v1089 = vrot.slane %v207, 2
      %v1090 = vsel %vm1030, %v1087, %v1089
      %v1091 = vrot.slane %v208, 2
      %v1092 = vrot.slane %v209, 2
      %v1093 = vsel %vm1030, %v1091, %v1092
      %v1094 = vrot.slane %v210, 2
      %v1095 = vsel %vm1030, %v1092, %v1094
      %v1096 = vrot.slane %v211, 2
      %v1097 = vrot.slane %v212, 2
      %v1098 = vsel %vm1030, %v1096, %v1097
      %v1099 = vrot.slane %v213, 2
      %v1100 = vsel %vm1030, %v1097, %v1099
      %v1101 = vrot.slane %v214, 2
      %v1102 = vrot.slane %v215, 2
      %v1103 = vsel %vm1030, %v1101, %v1102
      %v1104 = vrot.slane %v216, 2
      %v1105 = vsel %vm1030, %v1102, %v1104
      %v1106 = vrot.slane %v217, 2
      %v1107 = vrot.slane %v218, 2
      %v1108 = vsel %vm1030, %v1106, %v1107
      %v1109 = vrot.slane %v219, 2
      %v1110 = vsel %vm1030, %v1107, %v1109
      %v1143 = vmul.f32 %v1033, %v1033
      %v1144 = vmul.f32 %v1035, %v1035
      %v1145 = vmul.f32 %v1038, %v1038
      %v1146 = vmul.f32 %v1040, %v1040
      %v1147 = vmul.f32 %v1043, %v1043
      %v1148 = vmul.f32 %v1045, %v1045
      %v1149 = vmul.f32 %v1048, %v1048
      %v1150 = vmul.f32 %v1050, %v1050
      %v1151 = vmul.f32 %v1053, %v1053
      %v1152 = vmul.f32 %v1055, %v1055
      %v1153 = vmul.f32 %v1058, %v1058
      %v1154 = vmul.f32 %v1060, %v1060
      %v1155 = vmul.f32 %v1063, %v1063
      %v1156 = vmul.f32 %v1065, %v1065
      %v1157 = vmul.f32 %v1068, %v1068
      %v1158 = vmul.f32 %v1070, %v1070
      %v1159 = vmul.f32 %v1073, %v1073
      %v1160 = vmul.f32 %v1075, %v1075
      %v1161 = vmul.f32 %v1078, %v1078
      %v1162 = vmul.f32 %v1080, %v1080
      %v1163 = vmul.f32 %v1083, %v1083
      %v1164 = vmul.f32 %v1085, %v1085
      %v1165 = vmul.f32 %v1088, %v1088
      %v1166 = vmul.f32 %v1090, %v1090
      %v1167 = vmul.f32 %v1093, %v1093
      %v1168 = vmul.f32 %v1095, %v1095
      %v1169 = vmul.f32 %v1098, %v1098
      %v1170 = vmul.f32 %v1100, %v1100
      %v1171 = vmul.f32 %v1103, %v1103
      %v1172 = vmul.f32 %v1105, %v1105
      %v1173 = vmul.f32 %v1108, %v1108
      %v1174 = vmul.f32 %v1110, %v1110
      %v1175 = vsel %vm267, %v1143, 0.0
      %1176 = vadd.xlane.f32.xlu0 %v1175
      %v1177 = vpop.xlane.xlu0 %1176
      %v1178 = vsel %vm267, %v1144, 0.0
      %1179 = vadd.xlane.f32.xlu0 %v1178
      %v1180 = vpop.xlane.xlu0 %1179
      %v1181 = vsel %vm267, %v1145, 0.0
      %1182 = vadd.xlane.f32.xlu0 %v1181
      %v1183 = vpop.xlane.xlu0 %1182
      %v1184 = vsel %vm267, %v1146, 0.0
      %1185 = vadd.xlane.f32.xlu0 %v1184
      %v1186 = vpop.xlane.xlu0 %1185
      %v1187 = vsel %vm267, %v1147, 0.0
      %1188 = vadd.xlane.f32.xlu0 %v1187
      %v1189 = vpop.xlane.xlu0 %1188
      %v1190 = vsel %vm267, %v1148, 0.0
      %1191 = vadd.xlane.f32.xlu0 %v1190
      %v1192 = vpop.xlane.xlu0 %1191
      %v1193 = vsel %vm267, %v1149, 0.0
      %1194 = vadd.xlane.f32.xlu0 %v1193
      %v1195 = vpop.xlane.xlu0 %1194
      %v1196 = vsel %vm267, %v1150, 0.0
      %1197 = vadd.xlane.f32.xlu0 %v1196
      %v1198 = vpop.xlane.xlu0 %1197
      %v1199 = vsel %vm267, %v1151, 0.0
      %1200 = vadd.xlane.f32.xlu0 %v1199
      %v1201 = vpop.xlane.xlu0 %1200
      %v1202 = vsel %vm267, %v1152, 0.0
      %1203 = vadd.xlane.f32.xlu0 %v1202
      %v1204 = vpop.xlane.xlu0 %1203
      %v1205 = vsel %vm267, %v1153, 0.0
      %1206 = vadd.xlane.f32.xlu0 %v1205
      %v1207 = vpop.xlane.xlu0 %1206
      %v1208 = vsel %vm267, %v1154, 0.0
      %1209 = vadd.xlane.f32.xlu0 %v1208
      %v1210 = vpop.xlane.xlu0 %1209
      %v1211 = vsel %vm267, %v1155, 0.0
      %1212 = vadd.xlane.f32.xlu0 %v1211
      %v1213 = vpop.xlane.xlu0 %1212
      %v1214 = vsel %vm267, %v1156, 0.0
      %1215 = vadd.xlane.f32.xlu0 %v1214
      %v1216 = vpop.xlane.xlu0 %1215
      %v1217 = vsel %vm267, %v1157, 0.0
      %1218 = vadd.xlane.f32.xlu0 %v1217
      %v1219 = vpop.xlane.xlu0 %1218
      %v1220 = vsel %vm267, %v1158, 0.0
      %1221 = vadd.xlane.f32.xlu0 %v1220
      %v1222 = vpop.xlane.xlu0 %1221
      %v1223 = vsel %vm267, %v1159, 0.0
      %1224 = vadd.xlane.f32.xlu0 %v1223
      %v1225 = vpop.xlane.xlu0 %1224
      %v1226 = vsel %vm267, %v1160, 0.0
      %1227 = vadd.xlane.f32.xlu0 %v1226
      %v1228 = vpop.xlane.xlu0 %1227
      %v1229 = vsel %vm267, %v1161, 0.0
      %1230 = vadd.xlane.f32.xlu0 %v1229
      %v1231 = vpop.xlane.xlu0 %1230
      %v1232 = vsel %vm267, %v1162, 0.0
      %1233 = vadd.xlane.f32.xlu0 %v1232
      %v1234 = vpop.xlane.xlu0 %1233
      %v1235 = vsel %vm267, %v1163, 0.0
      %1236 = vadd.xlane.f32.xlu0 %v1235
      %v1237 = vpop.xlane.xlu0 %1236
      %v1238 = vsel %vm267, %v1164, 0.0
      %1239 = vadd.xlane.f32.xlu0 %v1238
      %v1240 = vpop.xlane.xlu0 %1239
      %v1241 = vsel %vm267, %v1165, 0.0
      %1242 = vadd.xlane.f32.xlu0 %v1241
      %v1243 = vpop.xlane.xlu0 %1242
      %v1244 = vsel %vm267, %v1166, 0.0
      %1245 = vadd.xlane.f32.xlu0 %v1244
      %v1246 = vpop.xlane.xlu0 %1245
      %v1247 = vsel %vm267, %v1167, 0.0
      %1248 = vadd.xlane.f32.xlu0 %v1247
      %v1249 = vpop.xlane.xlu0 %1248
      %v1250 = vsel %vm267, %v1168, 0.0
      %1251 = vadd.xlane.f32.xlu0 %v1250
      %v1252 = vpop.xlane.xlu0 %1251
      %v1253 = vsel %vm267, %v1169, 0.0
      %1254 = vadd.xlane.f32.xlu0 %v1253
      %v1255 = vpop.xlane.xlu0 %1254
      %v1256 = vsel %vm267, %v1170, 0.0
      %1257 = vadd.xlane.f32.xlu0 %v1256
      %v1258 = vpop.xlane.xlu0 %1257
      %v1259 = vsel %vm267, %v1171, 0.0
      %1260 = vadd.xlane.f32.xlu0 %v1259
      %v1261 = vpop.xlane.xlu0 %1260
      %v1262 = vsel %vm267, %v1172, 0.0
      %1263 = vadd.xlane.f32.xlu0 %v1262
      %v1264 = vpop.xlane.xlu0 %1263
      %v1265 = vsel %vm267, %v1173, 0.0
      %1266 = vadd.xlane.f32.xlu0 %v1265
      %v1267 = vpop.xlane.xlu0 %1266
      %v1268 = vsel %vm267, %v1174, 0.0
      %1269 = vadd.xlane.f32.xlu0 %v1268
      %v1270 = vpop.xlane.xlu0 %1269
      %v1271 = vadd.f32 %v701, %v1177
      %v1272 = vadd.f32 %v702, %v1180
      %v1273 = vadd.f32 %v703, %v1183
      %v1274 = vadd.f32 %v704, %v1186
      %v1275 = vadd.f32 %v705, %v1189
      %v1276 = vadd.f32 %v706, %v1192
      %v1277 = vadd.f32 %v707, %v1195
      %v1278 = vadd.f32 %v708, %v1198
      %v1279 = vadd.f32 %v709, %v1201
      %v1280 = vadd.f32 %v710, %v1204
      %v1281 = vadd.f32 %v711, %v1207
      %v1282 = vadd.f32 %v712, %v1210
      %v1283 = vadd.f32 %v713, %v1213
      %v1284 = vadd.f32 %v714, %v1216
      %v1285 = vadd.f32 %v715, %v1219
      %v1286 = vadd.f32 %v716, %v1222
      %v1287 = vadd.f32 %v717, %v1225
      %v1288 = vadd.f32 %v718, %v1228
      %v1289 = vadd.f32 %v719, %v1231
      %v1290 = vadd.f32 %v720, %v1234
      %v1291 = vadd.f32 %v721, %v1237
      %v1292 = vadd.f32 %v722, %v1240
      %v1293 = vadd.f32 %v723, %v1243
      %v1294 = vadd.f32 %v724, %v1246
      %v1295 = vadd.f32 %v725, %v1249
      %v1296 = vadd.f32 %v726, %v1252
      %v1297 = vadd.f32 %v727, %v1255
      %v1298 = vadd.f32 %v728, %v1258
      %v1299 = vadd.f32 %v729, %v1261
      %v1300 = vadd.f32 %v730, %v1264
      %v1301 = vadd.f32 %v731, %v1267
      %v1302 = vadd.f32 %v732, %v1270
      %v1303 = vpack.c.bf16 %v1035, %v1033
      %v1304 = vpack.c.bf16 %v1040, %v1038
      %v1305 = vpack.c.bf16 %v1045, %v1043
      %v1306 = vpack.c.bf16 %v1050, %v1048
      %v1307 = vpack.c.bf16 %v1055, %v1053
      %v1308 = vpack.c.bf16 %v1060, %v1058
      %v1309 = vpack.c.bf16 %v1065, %v1063
      %v1310 = vpack.c.bf16 %v1070, %v1068
      %v1311 = vpack.c.bf16 %v1075, %v1073
      %v1312 = vpack.c.bf16 %v1080, %v1078
      %v1313 = vpack.c.bf16 %v1085, %v1083
      %v1314 = vpack.c.bf16 %v1090, %v1088
      %v1315 = vpack.c.bf16 %v1095, %v1093
      %v1316 = vpack.c.bf16 %v1100, %v1098
      %v1317 = vpack.c.bf16 %v1105, %v1103
      %v1318 = vpack.c.bf16 %v1110, %v1108
      %v1320 = vsel %vm267, %v1303, 0
      %v1323 = vsel %vm267, %v1304, 0
      %v1326 = vsel %vm267, %v1305, 0
      %v1329 = vsel %vm267, %v1306, 0
      %v1332 = vsel %vm267, %v1307, 0
      %v1335 = vsel %vm267, %v1308, 0
      %v1338 = vsel %vm267, %v1309, 0
      %v1341 = vsel %vm267, %v1310, 0
      %v1344 = vsel %vm267, %v1311, 0
      %v1347 = vsel %vm267, %v1312, 0
      %v1350 = vsel %vm267, %v1313, 0
      %v1353 = vsel %vm267, %v1314, 0
      %v1356 = vsel %vm267, %v1315, 0
      %v1359 = vsel %vm267, %v1316, 0
      %v1362 = vsel %vm267, %v1317, 0
      %v1365 = vsel %vm267, %v1318, 0
      %v1368 = vsel %vm797, %v228, 0
      %1370 = vmatpush.bf16.msra.mxu0 0
      %1371 = vmatpush.bf16.msra.mxu0 0
      %1372 = vmatpush.bf16.msra.mxu0 0
      %1373 = vmatpush.bf16.msra.mxu0 0
      %1374 = vmatpush.bf16.msra.mxu0 0
      %1375 = vmatpush.bf16.msra.mxu0 0
      %1376 = vmatpush.bf16.msra.mxu0 0
      %1377 = vmatpush.bf16.msra.mxu0 %v1368
      %1378 = vmatmul.bf16.gmra.mxu0 %v1320
      %v1379 = vpop.f32.mrf.mxu0
      %v1380 = vadd.f32 0.0, %v1379
      %v1381 = vpop.f32.mrf.mxu0
      %v1382 = vadd.f32 0.0, %v1381
      %1383 = vmatmul.bf16.gmra.mxu0 %v1323
      %v1384 = vpop.f32.mrf.mxu0
      %v1385 = vadd.f32 0.0, %v1384
      %v1386 = vpop.f32.mrf.mxu0
      %v1387 = vadd.f32 0.0, %v1386
      %1388 = vmatmul.bf16.gmra.mxu0 %v1326
      %v1389 = vpop.f32.mrf.mxu0
      %v1390 = vadd.f32 0.0, %v1389
      %v1391 = vpop.f32.mrf.mxu0
      %v1392 = vadd.f32 0.0, %v1391
      %1393 = vmatmul.bf16.gmra.mxu0 %v1329
      %v1394 = vpop.f32.mrf.mxu0
      %v1395 = vadd.f32 0.0, %v1394
      %v1396 = vpop.f32.mrf.mxu0
      %v1397 = vadd.f32 0.0, %v1396
      %1398 = vmatmul.bf16.gmra.mxu0 %v1332
      %v1399 = vpop.f32.mrf.mxu0
      %v1400 = vadd.f32 0.0, %v1399
      %v1401 = vpop.f32.mrf.mxu0
      %v1402 = vadd.f32 0.0, %v1401
      %1403 = vmatmul.bf16.gmra.mxu0 %v1335
      %v1404 = vpop.f32.mrf.mxu0
      %v1405 = vadd.f32 0.0, %v1404
      %v1406 = vpop.f32.mrf.mxu0
      %v1407 = vadd.f32 0.0, %v1406
      %1408 = vmatmul.bf16.gmra.mxu0 %v1338
      %v1409 = vpop.f32.mrf.mxu0
      %v1410 = vadd.f32 0.0, %v1409
      %v1411 = vpop.f32.mrf.mxu0
      %v1412 = vadd.f32 0.0, %v1411
      %1413 = vmatmul.bf16.gmra.mxu0 %v1341
      %v1414 = vpop.f32.mrf.mxu0
      %v1415 = vadd.f32 0.0, %v1414
      %v1416 = vpop.f32.mrf.mxu0
      %v1417 = vadd.f32 0.0, %v1416
      %1418 = vmatmul.bf16.gmra.mxu0 %v1344
      %v1419 = vpop.f32.mrf.mxu0
      %v1420 = vadd.f32 0.0, %v1419
      %v1421 = vpop.f32.mrf.mxu0
      %v1422 = vadd.f32 0.0, %v1421
      %1423 = vmatmul.bf16.gmra.mxu0 %v1347
      %v1424 = vpop.f32.mrf.mxu0
      %v1425 = vadd.f32 0.0, %v1424
      %v1426 = vpop.f32.mrf.mxu0
      %v1427 = vadd.f32 0.0, %v1426
      %1428 = vmatmul.bf16.gmra.mxu0 %v1350
      %v1429 = vpop.f32.mrf.mxu0
      %v1430 = vadd.f32 0.0, %v1429
      %v1431 = vpop.f32.mrf.mxu0
      %v1432 = vadd.f32 0.0, %v1431
      %1433 = vmatmul.bf16.gmra.mxu0 %v1353
      %v1434 = vpop.f32.mrf.mxu0
      %v1435 = vadd.f32 0.0, %v1434
      %v1436 = vpop.f32.mrf.mxu0
      %v1437 = vadd.f32 0.0, %v1436
      %1438 = vmatmul.bf16.gmra.mxu0 %v1356
      %v1439 = vpop.f32.mrf.mxu0
      %v1440 = vadd.f32 0.0, %v1439
      %v1441 = vpop.f32.mrf.mxu0
      %v1442 = vadd.f32 0.0, %v1441
      %1443 = vmatmul.bf16.gmra.mxu0 %v1359
      %v1444 = vpop.f32.mrf.mxu0
      %v1445 = vadd.f32 0.0, %v1444
      %v1446 = vpop.f32.mrf.mxu0
      %v1447 = vadd.f32 0.0, %v1446
      %1448 = vmatmul.bf16.gmra.mxu0 %v1362
      %v1449 = vpop.f32.mrf.mxu0
      %v1450 = vadd.f32 0.0, %v1449
      %v1451 = vpop.f32.mrf.mxu0
      %v1452 = vadd.f32 0.0, %v1451
      %1453 = vmatmul.bf16.gmra.mxu0 %v1365
      %v1454 = vpop.f32.mrf.mxu0
      %v1455 = vadd.f32 0.0, %v1454
      %v1456 = vpop.f32.mrf.mxu0
      %v1457 = vadd.f32 0.0, %v1456
      %1458 = vdwg.mxu0
      %v1459 = vadd.f32 %v951, %v1380
      %v1460 = vadd.f32 %v953, %v1382
      %v1461 = vadd.f32 %v956, %v1385
      %v1462 = vadd.f32 %v958, %v1387
      %v1463 = vadd.f32 %v961, %v1390
      %v1464 = vadd.f32 %v963, %v1392
      %v1465 = vadd.f32 %v966, %v1395
      %v1466 = vadd.f32 %v968, %v1397
      %v1467 = vadd.f32 %v971, %v1400
      %v1468 = vadd.f32 %v973, %v1402
      %v1469 = vadd.f32 %v976, %v1405
      %v1470 = vadd.f32 %v978, %v1407
      %v1471 = vadd.f32 %v981, %v1410
      %v1472 = vadd.f32 %v983, %v1412
      %v1473 = vadd.f32 %v986, %v1415
      %v1474 = vadd.f32 %v988, %v1417
      %v1475 = vadd.f32 %v991, %v1420
      %v1476 = vadd.f32 %v993, %v1422
      %v1477 = vadd.f32 %v996, %v1425
      %v1478 = vadd.f32 %v998, %v1427
      %v1479 = vadd.f32 %v1001, %v1430
      %v1480 = vadd.f32 %v1003, %v1432
      %v1481 = vadd.f32 %v1006, %v1435
      %v1482 = vadd.f32 %v1008, %v1437
      %v1483 = vadd.f32 %v1011, %v1440
      %v1484 = vadd.f32 %v1013, %v1442
      %v1485 = vadd.f32 %v1016, %v1445
      %v1486 = vadd.f32 %v1018, %v1447
      %v1487 = vadd.f32 %v1021, %v1450
      %v1488 = vadd.f32 %v1023, %v1452
      %v1489 = vadd.f32 %v1026, %v1455
      %v1490 = vadd.f32 %v1028, %v1457
      %v1491 = vmul.f32 %v220, %v220
      %v1492 = vmul.f32 %v221, %v221
      %v1493 = vsel %vm267, %v1491, 0.0
      %1494 = vadd.xlane.f32.xlu0 %v1493
      %v1495 = vpop.xlane.xlu0 %1494
      %v1496 = vsel %vm267, %v1492, 0.0
      %1497 = vadd.xlane.f32.xlu0 %v1496
      %v1498 = vpop.xlane.xlu0 %1497
      %v1499 = vadd.f32 %v1271, %v276
      %v1500 = vadd.f32 %v1272, %v279
      %v1501 = vadd.f32 %v1273, %v282
      %v1502 = vadd.f32 %v1274, %v285
      %v1503 = vadd.f32 %v1275, %v288
      %v1504 = vadd.f32 %v1276, %v291
      %v1505 = vadd.f32 %v1277, %v294
      %v1506 = vadd.f32 %v1278, %v297
      %v1507 = vadd.f32 %v1279, %v300
      %v1508 = vadd.f32 %v1280, %v303
      %v1509 = vadd.f32 %v1281, %v306
      %v1510 = vadd.f32 %v1282, %v309
      %v1511 = vadd.f32 %v1283, %v312
      %v1512 = vadd.f32 %v1284, %v315
      %v1513 = vadd.f32 %v1285, %v318
      %v1514 = vadd.f32 %v1286, %v321
      %v1515 = vadd.f32 %v1287, %v324
      %v1516 = vadd.f32 %v1288, %v327
      %v1517 = vadd.f32 %v1289, %v330
      %v1518 = vadd.f32 %v1290, %v333
      %v1519 = vadd.f32 %v1291, %v336
      %v1520 = vadd.f32 %v1292, %v339
      %v1521 = vadd.f32 %v1293, %v342
      %v1522 = vadd.f32 %v1294, %v345
      %v1523 = vadd.f32 %v1295, %v348
      %v1524 = vadd.f32 %v1296, %v351
      %v1525 = vadd.f32 %v1297, %v354
      %v1526 = vadd.f32 %v1298, %v357
      %v1527 = vadd.f32 %v1299, %v360
      %v1528 = vadd.f32 %v1300, %v363
      %v1529 = vadd.f32 %v1301, %v1495
      %v1530 = vadd.f32 %v1302, %v1498
      %v1531 = vpack.c.bf16 %v221, %v220
      %v1533 = vsel %vm267, %v1531, 0
      %v1536 = vsel %vm797, %v229, 0
      %1538 = vmatpush.bf16.msra.mxu0 0
      %1539 = vmatpush.bf16.msra.mxu0 0
      %1540 = vmatpush.bf16.msra.mxu0 0
      %1541 = vmatpush.bf16.msra.mxu0 0
      %1542 = vmatpush.bf16.msra.mxu0 0
      %1543 = vmatpush.bf16.msra.mxu0 0
      %1544 = vmatpush.bf16.msra.mxu0 0
      %1545 = vmatpush.bf16.msra.mxu0 %v1536
      %1546 = vmatmul.bf16.gmra.mxu0 %v894
      %v1547 = vpop.f32.mrf.mxu0
      %v1548 = vadd.f32 0.0, %v1547
      %v1549 = vpop.f32.mrf.mxu0
      %v1550 = vadd.f32 0.0, %v1549
      %1551 = vmatmul.bf16.gmra.mxu0 %v897
      %v1552 = vpop.f32.mrf.mxu0
      %v1553 = vadd.f32 0.0, %v1552
      %v1554 = vpop.f32.mrf.mxu0
      %v1555 = vadd.f32 0.0, %v1554
      %1556 = vmatmul.bf16.gmra.mxu0 %v900
      %v1557 = vpop.f32.mrf.mxu0
      %v1558 = vadd.f32 0.0, %v1557
      %v1559 = vpop.f32.mrf.mxu0
      %v1560 = vadd.f32 0.0, %v1559
      %1561 = vmatmul.bf16.gmra.mxu0 %v903
      %v1562 = vpop.f32.mrf.mxu0
      %v1563 = vadd.f32 0.0, %v1562
      %v1564 = vpop.f32.mrf.mxu0
      %v1565 = vadd.f32 0.0, %v1564
      %1566 = vmatmul.bf16.gmra.mxu0 %v906
      %v1567 = vpop.f32.mrf.mxu0
      %v1568 = vadd.f32 0.0, %v1567
      %v1569 = vpop.f32.mrf.mxu0
      %v1570 = vadd.f32 0.0, %v1569
      %1571 = vmatmul.bf16.gmra.mxu0 %v909
      %v1572 = vpop.f32.mrf.mxu0
      %v1573 = vadd.f32 0.0, %v1572
      %v1574 = vpop.f32.mrf.mxu0
      %v1575 = vadd.f32 0.0, %v1574
      %1576 = vmatmul.bf16.gmra.mxu0 %v912
      %v1577 = vpop.f32.mrf.mxu0
      %v1578 = vadd.f32 0.0, %v1577
      %v1579 = vpop.f32.mrf.mxu0
      %v1580 = vadd.f32 0.0, %v1579
      %1581 = vmatmul.bf16.gmra.mxu0 %v915
      %v1582 = vpop.f32.mrf.mxu0
      %v1583 = vadd.f32 0.0, %v1582
      %v1584 = vpop.f32.mrf.mxu0
      %v1585 = vadd.f32 0.0, %v1584
      %1586 = vmatmul.bf16.gmra.mxu0 %v918
      %v1587 = vpop.f32.mrf.mxu0
      %v1588 = vadd.f32 0.0, %v1587
      %v1589 = vpop.f32.mrf.mxu0
      %v1590 = vadd.f32 0.0, %v1589
      %1591 = vmatmul.bf16.gmra.mxu0 %v921
      %v1592 = vpop.f32.mrf.mxu0
      %v1593 = vadd.f32 0.0, %v1592
      %v1594 = vpop.f32.mrf.mxu0
      %v1595 = vadd.f32 0.0, %v1594
      %1596 = vmatmul.bf16.gmra.mxu0 %v924
      %v1597 = vpop.f32.mrf.mxu0
      %v1598 = vadd.f32 0.0, %v1597
      %v1599 = vpop.f32.mrf.mxu0
      %v1600 = vadd.f32 0.0, %v1599
      %1601 = vmatmul.bf16.gmra.mxu0 %v927
      %v1602 = vpop.f32.mrf.mxu0
      %v1603 = vadd.f32 0.0, %v1602
      %v1604 = vpop.f32.mrf.mxu0
      %v1605 = vadd.f32 0.0, %v1604
      %1606 = vmatmul.bf16.gmra.mxu0 %v930
      %v1607 = vpop.f32.mrf.mxu0
      %v1608 = vadd.f32 0.0, %v1607
      %v1609 = vpop.f32.mrf.mxu0
      %v1610 = vadd.f32 0.0, %v1609
      %1611 = vmatmul.bf16.gmra.mxu0 %v933
      %v1612 = vpop.f32.mrf.mxu0
      %v1613 = vadd.f32 0.0, %v1612
      %v1614 = vpop.f32.mrf.mxu0
      %v1615 = vadd.f32 0.0, %v1614
      %1616 = vmatmul.bf16.gmra.mxu0 %v936
      %v1617 = vpop.f32.mrf.mxu0
      %v1618 = vadd.f32 0.0, %v1617
      %v1619 = vpop.f32.mrf.mxu0
      %v1620 = vadd.f32 0.0, %v1619
      %1621 = vmatmul.bf16.gmra.mxu0 %v1533
      %v1622 = vpop.f32.mrf.mxu0
      %v1623 = vadd.f32 0.0, %v1622
      %v1624 = vpop.f32.mrf.mxu0
      %v1625 = vadd.f32 0.0, %v1624
      %1626 = vdwg.mxu0
      %v1627 = vadd.f32 %v1459, %v1548
      %v1628 = vadd.f32 %v1460, %v1550
      %v1629 = vadd.f32 %v1461, %v1553
      %v1630 = vadd.f32 %v1462, %v1555
      %v1631 = vadd.f32 %v1463, %v1558
      %v1632 = vadd.f32 %v1464, %v1560
      %v1633 = vadd.f32 %v1465, %v1563
      %v1634 = vadd.f32 %v1466, %v1565
      %v1635 = vadd.f32 %v1467, %v1568
      %v1636 = vadd.f32 %v1468, %v1570
      %v1637 = vadd.f32 %v1469, %v1573
      %v1638 = vadd.f32 %v1470, %v1575
      %v1639 = vadd.f32 %v1471, %v1578
      %v1640 = vadd.f32 %v1472, %v1580
      %v1641 = vadd.f32 %v1473, %v1583
      %v1642 = vadd.f32 %v1474, %v1585
      %v1643 = vadd.f32 %v1475, %v1588
      %v1644 = vadd.f32 %v1476, %v1590
      %v1645 = vadd.f32 %v1477, %v1593
      %v1646 = vadd.f32 %v1478, %v1595
      %v1647 = vadd.f32 %v1479, %v1598
      %v1648 = vadd.f32 %v1480, %v1600
      %v1649 = vadd.f32 %v1481, %v1603
      %v1650 = vadd.f32 %v1482, %v1605
      %v1651 = vadd.f32 %v1483, %v1608
      %v1652 = vadd.f32 %v1484, %v1610
      %v1653 = vadd.f32 %v1485, %v1613
      %v1654 = vadd.f32 %v1486, %v1615
      %v1655 = vadd.f32 %v1487, %v1618
      %v1656 = vadd.f32 %v1488, %v1620
      %v1657 = vadd.f32 %v1489, %v1623
      %v1658 = vadd.f32 %v1490, %v1625
      %v1662 = vrot.slane %v220, 1
      %v1663 = vrot.slane %v221, 1
      %v1664 = vsel %vm460, %v1662, %v1663
      %v1665 = vrot.slane %v222, 1
      %v1666 = vsel %vm460, %v1663, %v1665
      %v1669 = vmul.f32 %v1664, %v1664
      %v1670 = vmul.f32 %v1666, %v1666
      %v1671 = vsel %vm267, %v1669, 0.0
      %1672 = vadd.xlane.f32.xlu0 %v1671
      %v1673 = vpop.xlane.xlu0 %1672
      %v1674 = vsel %vm267, %v1670, 0.0
      %1675 = vadd.xlane.f32.xlu0 %v1674
      %v1676 = vpop.xlane.xlu0 %1675
      %v1677 = vadd.f32 %v1499, %v613
      %v1678 = vadd.f32 %v1500, %v616
      %v1679 = vadd.f32 %v1501, %v619
      %v1680 = vadd.f32 %v1502, %v622
      %v1681 = vadd.f32 %v1503, %v625
      %v1682 = vadd.f32 %v1504, %v628
      %v1683 = vadd.f32 %v1505, %v631
      %v1684 = vadd.f32 %v1506, %v634
      %v1685 = vadd.f32 %v1507, %v637
      %v1686 = vadd.f32 %v1508, %v640
      %v1687 = vadd.f32 %v1509, %v643
      %v1688 = vadd.f32 %v1510, %v646
      %v1689 = vadd.f32 %v1511, %v649
      %v1690 = vadd.f32 %v1512, %v652
      %v1691 = vadd.f32 %v1513, %v655
      %v1692 = vadd.f32 %v1514, %v658
      %v1693 = vadd.f32 %v1515, %v661
      %v1694 = vadd.f32 %v1516, %v664
      %v1695 = vadd.f32 %v1517, %v667
      %v1696 = vadd.f32 %v1518, %v670
      %v1697 = vadd.f32 %v1519, %v673
      %v1698 = vadd.f32 %v1520, %v676
      %v1699 = vadd.f32 %v1521, %v679
      %v1700 = vadd.f32 %v1522, %v682
      %v1701 = vadd.f32 %v1523, %v685
      %v1702 = vadd.f32 %v1524, %v688
      %v1703 = vadd.f32 %v1525, %v691
      %v1704 = vadd.f32 %v1526, %v694
      %v1705 = vadd.f32 %v1527, %v697
      %v1706 = vadd.f32 %v1528, %v700
      %v1707 = vadd.f32 %v1529, %v1673
      %v1708 = vadd.f32 %v1530, %v1676
      %v1709 = vpack.c.bf16 %v1666, %v1664
      %v1711 = vsel %vm267, %v1709, 0
      %v1714 = vsel %vm797, %v230, 0
      %1716 = vmatpush.bf16.msra.mxu0 0
      %1717 = vmatpush.bf16.msra.mxu0 0
      %1718 = vmatpush.bf16.msra.mxu0 0
      %1719 = vmatpush.bf16.msra.mxu0 0
      %1720 = vmatpush.bf16.msra.mxu0 0
      %1721 = vmatpush.bf16.msra.mxu0 0
      %1722 = vmatpush.bf16.msra.mxu0 0
      %1723 = vmatpush.bf16.msra.mxu0 %v1714
      %1724 = vmatmul.bf16.gmra.mxu0 %v753
      %v1725 = vpop.f32.mrf.mxu0
      %v1726 = vadd.f32 0.0, %v1725
      %v1727 = vpop.f32.mrf.mxu0
      %v1728 = vadd.f32 0.0, %v1727
      %1729 = vmatmul.bf16.gmra.mxu0 %v756
      %v1730 = vpop.f32.mrf.mxu0
      %v1731 = vadd.f32 0.0, %v1730
      %v1732 = vpop.f32.mrf.mxu0
      %v1733 = vadd.f32 0.0, %v1732
      %1734 = vmatmul.bf16.gmra.mxu0 %v759
      %v1735 = vpop.f32.mrf.mxu0
      %v1736 = vadd.f32 0.0, %v1735
      %v1737 = vpop.f32.mrf.mxu0
      %v1738 = vadd.f32 0.0, %v1737
      %1739 = vmatmul.bf16.gmra.mxu0 %v762
      %v1740 = vpop.f32.mrf.mxu0
      %v1741 = vadd.f32 0.0, %v1740
      %v1742 = vpop.f32.mrf.mxu0
      %v1743 = vadd.f32 0.0, %v1742
      %1744 = vmatmul.bf16.gmra.mxu0 %v765
      %v1745 = vpop.f32.mrf.mxu0
      %v1746 = vadd.f32 0.0, %v1745
      %v1747 = vpop.f32.mrf.mxu0
      %v1748 = vadd.f32 0.0, %v1747
      %1749 = vmatmul.bf16.gmra.mxu0 %v768
      %v1750 = vpop.f32.mrf.mxu0
      %v1751 = vadd.f32 0.0, %v1750
      %v1752 = vpop.f32.mrf.mxu0
      %v1753 = vadd.f32 0.0, %v1752
      %1754 = vmatmul.bf16.gmra.mxu0 %v771
      %v1755 = vpop.f32.mrf.mxu0
      %v1756 = vadd.f32 0.0, %v1755
      %v1757 = vpop.f32.mrf.mxu0
      %v1758 = vadd.f32 0.0, %v1757
      %1759 = vmatmul.bf16.gmra.mxu0 %v774
      %v1760 = vpop.f32.mrf.mxu0
      %v1761 = vadd.f32 0.0, %v1760
      %v1762 = vpop.f32.mrf.mxu0
      %v1763 = vadd.f32 0.0, %v1762
      %1764 = vmatmul.bf16.gmra.mxu0 %v777
      %v1765 = vpop.f32.mrf.mxu0
      %v1766 = vadd.f32 0.0, %v1765
      %v1767 = vpop.f32.mrf.mxu0
      %v1768 = vadd.f32 0.0, %v1767
      %1769 = vmatmul.bf16.gmra.mxu0 %v780
      %v1770 = vpop.f32.mrf.mxu0
      %v1771 = vadd.f32 0.0, %v1770
      %v1772 = vpop.f32.mrf.mxu0
      %v1773 = vadd.f32 0.0, %v1772
      %1774 = vmatmul.bf16.gmra.mxu0 %v783
      %v1775 = vpop.f32.mrf.mxu0
      %v1776 = vadd.f32 0.0, %v1775
      %v1777 = vpop.f32.mrf.mxu0
      %v1778 = vadd.f32 0.0, %v1777
      %1779 = vmatmul.bf16.gmra.mxu0 %v786
      %v1780 = vpop.f32.mrf.mxu0
      %v1781 = vadd.f32 0.0, %v1780
      %v1782 = vpop.f32.mrf.mxu0
      %v1783 = vadd.f32 0.0, %v1782
      %1784 = vmatmul.bf16.gmra.mxu0 %v789
      %v1785 = vpop.f32.mrf.mxu0
      %v1786 = vadd.f32 0.0, %v1785
      %v1787 = vpop.f32.mrf.mxu0
      %v1788 = vadd.f32 0.0, %v1787
      %1789 = vmatmul.bf16.gmra.mxu0 %v792
      %v1790 = vpop.f32.mrf.mxu0
      %v1791 = vadd.f32 0.0, %v1790
      %v1792 = vpop.f32.mrf.mxu0
      %v1793 = vadd.f32 0.0, %v1792
      %1794 = vmatmul.bf16.gmra.mxu0 %v795
      %v1795 = vpop.f32.mrf.mxu0
      %v1796 = vadd.f32 0.0, %v1795
      %v1797 = vpop.f32.mrf.mxu0
      %v1798 = vadd.f32 0.0, %v1797
      %1799 = vmatmul.bf16.gmra.mxu0 %v1711
      %v1800 = vpop.f32.mrf.mxu0
      %v1801 = vadd.f32 0.0, %v1800
      %v1802 = vpop.f32.mrf.mxu0
      %v1803 = vadd.f32 0.0, %v1802
      %1804 = vdwg.mxu0
      %v1805 = vadd.f32 %v1627, %v1726
      %v1806 = vadd.f32 %v1628, %v1728
      %v1807 = vadd.f32 %v1629, %v1731
      %v1808 = vadd.f32 %v1630, %v1733
      %v1809 = vadd.f32 %v1631, %v1736
      %v1810 = vadd.f32 %v1632, %v1738
      %v1811 = vadd.f32 %v1633, %v1741
      %v1812 = vadd.f32 %v1634, %v1743
      %v1813 = vadd.f32 %v1635, %v1746
      %v1814 = vadd.f32 %v1636, %v1748
      %v1815 = vadd.f32 %v1637, %v1751
      %v1816 = vadd.f32 %v1638, %v1753
      %v1817 = vadd.f32 %v1639, %v1756
      %v1818 = vadd.f32 %v1640, %v1758
      %v1819 = vadd.f32 %v1641, %v1761
      %v1820 = vadd.f32 %v1642, %v1763
      %v1821 = vadd.f32 %v1643, %v1766
      %v1822 = vadd.f32 %v1644, %v1768
      %v1823 = vadd.f32 %v1645, %v1771
      %v1824 = vadd.f32 %v1646, %v1773
      %v1825 = vadd.f32 %v1647, %v1776
      %v1826 = vadd.f32 %v1648, %v1778
      %v1827 = vadd.f32 %v1649, %v1781
      %v1828 = vadd.f32 %v1650, %v1783
      %v1829 = vadd.f32 %v1651, %v1786
      %v1830 = vadd.f32 %v1652, %v1788
      %v1831 = vadd.f32 %v1653, %v1791
      %v1832 = vadd.f32 %v1654, %v1793
      %v1833 = vadd.f32 %v1655, %v1796
      %v1834 = vadd.f32 %v1656, %v1798
      %v1835 = vadd.f32 %v1657, %v1801
      %v1836 = vadd.f32 %v1658, %v1803
      %v1837 = vrot.slane %v220, 2
      %v1838 = vrot.slane %v221, 2
      %v1839 = vsel %vm1030, %v1837, %v1838
      %v1840 = vrot.slane %v222, 2
      %v1841 = vsel %vm1030, %v1838, %v1840
      %v1844 = vmul.f32 %v1839, %v1839
      %v1845 = vmul.f32 %v1841, %v1841
      %v1846 = vsel %vm267, %v1844, 0.0
      %1847 = vadd.xlane.f32.xlu0 %v1846
      %v1848 = vpop.xlane.xlu0 %1847
      %v1849 = vsel %vm267, %v1845, 0.0
      %1850 = vadd.xlane.f32.xlu0 %v1849
      %v1851 = vpop.xlane.xlu0 %1850
      %v1852 = vadd.f32 %v1677, %v1183
      %v1853 = vadd.f32 %v1678, %v1186
      %v1854 = vadd.f32 %v1679, %v1189
      %v1855 = vadd.f32 %v1680, %v1192
      %v1856 = vadd.f32 %v1681, %v1195
      %v1857 = vadd.f32 %v1682, %v1198
      %v1858 = vadd.f32 %v1683, %v1201
      %v1859 = vadd.f32 %v1684, %v1204
      %v1860 = vadd.f32 %v1685, %v1207
      %v1861 = vadd.f32 %v1686, %v1210
      %v1862 = vadd.f32 %v1687, %v1213
      %v1863 = vadd.f32 %v1688, %v1216
      %v1864 = vadd.f32 %v1689, %v1219
      %v1865 = vadd.f32 %v1690, %v1222
      %v1866 = vadd.f32 %v1691, %v1225
      %v1867 = vadd.f32 %v1692, %v1228
      %v1868 = vadd.f32 %v1693, %v1231
      %v1869 = vadd.f32 %v1694, %v1234
      %v1870 = vadd.f32 %v1695, %v1237
      %v1871 = vadd.f32 %v1696, %v1240
      %v1872 = vadd.f32 %v1697, %v1243
      %v1873 = vadd.f32 %v1698, %v1246
      %v1874 = vadd.f32 %v1699, %v1249
      %v1875 = vadd.f32 %v1700, %v1252
      %v1876 = vadd.f32 %v1701, %v1255
      %v1877 = vadd.f32 %v1702, %v1258
      %v1878 = vadd.f32 %v1703, %v1261
      %v1879 = vadd.f32 %v1704, %v1264
      %v1880 = vadd.f32 %v1705, %v1267
      %v1881 = vadd.f32 %v1706, %v1270
      %v1882 = vadd.f32 %v1707, %v1848
      %v1883 = vadd.f32 %v1708, %v1851
      %v1884 = vpack.c.bf16 %v1841, %v1839
      %v1886 = vsel %vm267, %v1884, 0
      %v1889 = vsel %vm797, %v231, 0
      %1891 = vmatpush.bf16.msra.mxu0 0
      %1892 = vmatpush.bf16.msra.mxu0 0
      %1893 = vmatpush.bf16.msra.mxu0 0
      %1894 = vmatpush.bf16.msra.mxu0 0
      %1895 = vmatpush.bf16.msra.mxu0 0
      %1896 = vmatpush.bf16.msra.mxu0 0
      %1897 = vmatpush.bf16.msra.mxu0 0
      %1898 = vmatpush.bf16.msra.mxu0 %v1889
      %1899 = vmatmul.bf16.gmra.mxu0 %v1323
      %v1900 = vpop.f32.mrf.mxu0
      %v1901 = vadd.f32 0.0, %v1900
      %v1902 = vpop.f32.mrf.mxu0
      %v1903 = vadd.f32 0.0, %v1902
      %1904 = vmatmul.bf16.gmra.mxu0 %v1326
      %v1905 = vpop.f32.mrf.mxu0
      %v1906 = vadd.f32 0.0, %v1905
      %v1907 = vpop.f32.mrf.mxu0
      %v1908 = vadd.f32 0.0, %v1907
      %1909 = vmatmul.bf16.gmra.mxu0 %v1329
      %v1910 = vpop.f32.mrf.mxu0
      %v1911 = vadd.f32 0.0, %v1910
      %v1912 = vpop.f32.mrf.mxu0
      %v1913 = vadd.f32 0.0, %v1912
      %1914 = vmatmul.bf16.gmra.mxu0 %v1332
      %v1915 = vpop.f32.mrf.mxu0
      %v1916 = vadd.f32 0.0, %v1915
      %v1917 = vpop.f32.mrf.mxu0
      %v1918 = vadd.f32 0.0, %v1917
      %1919 = vmatmul.bf16.gmra.mxu0 %v1335
      %v1920 = vpop.f32.mrf.mxu0
      %v1921 = vadd.f32 0.0, %v1920
      %v1922 = vpop.f32.mrf.mxu0
      %v1923 = vadd.f32 0.0, %v1922
      %1924 = vmatmul.bf16.gmra.mxu0 %v1338
      %v1925 = vpop.f32.mrf.mxu0
      %v1926 = vadd.f32 0.0, %v1925
      %v1927 = vpop.f32.mrf.mxu0
      %v1928 = vadd.f32 0.0, %v1927
      %1929 = vmatmul.bf16.gmra.mxu0 %v1341
      %v1930 = vpop.f32.mrf.mxu0
      %v1931 = vadd.f32 0.0, %v1930
      %v1932 = vpop.f32.mrf.mxu0
      %v1933 = vadd.f32 0.0, %v1932
      %1934 = vmatmul.bf16.gmra.mxu0 %v1344
      %v1935 = vpop.f32.mrf.mxu0
      %v1936 = vadd.f32 0.0, %v1935
      %v1937 = vpop.f32.mrf.mxu0
      %v1938 = vadd.f32 0.0, %v1937
      %1939 = vmatmul.bf16.gmra.mxu0 %v1347
      %v1940 = vpop.f32.mrf.mxu0
      %v1941 = vadd.f32 0.0, %v1940
      %v1942 = vpop.f32.mrf.mxu0
      %v1943 = vadd.f32 0.0, %v1942
      %1944 = vmatmul.bf16.gmra.mxu0 %v1350
      %v1945 = vpop.f32.mrf.mxu0
      %v1946 = vadd.f32 0.0, %v1945
      %v1947 = vpop.f32.mrf.mxu0
      %v1948 = vadd.f32 0.0, %v1947
      %1949 = vmatmul.bf16.gmra.mxu0 %v1353
      %v1950 = vpop.f32.mrf.mxu0
      %v1951 = vadd.f32 0.0, %v1950
      %v1952 = vpop.f32.mrf.mxu0
      %v1953 = vadd.f32 0.0, %v1952
      %1954 = vmatmul.bf16.gmra.mxu0 %v1356
      %v1955 = vpop.f32.mrf.mxu0
      %v1956 = vadd.f32 0.0, %v1955
      %v1957 = vpop.f32.mrf.mxu0
      %v1958 = vadd.f32 0.0, %v1957
      %1959 = vmatmul.bf16.gmra.mxu0 %v1359
      %v1960 = vpop.f32.mrf.mxu0
      %v1961 = vadd.f32 0.0, %v1960
      %v1962 = vpop.f32.mrf.mxu0
      %v1963 = vadd.f32 0.0, %v1962
      %1964 = vmatmul.bf16.gmra.mxu0 %v1362
      %v1965 = vpop.f32.mrf.mxu0
      %v1966 = vadd.f32 0.0, %v1965
      %v1967 = vpop.f32.mrf.mxu0
      %v1968 = vadd.f32 0.0, %v1967
      %1969 = vmatmul.bf16.gmra.mxu0 %v1365
      %v1970 = vpop.f32.mrf.mxu0
      %v1971 = vadd.f32 0.0, %v1970
      %v1972 = vpop.f32.mrf.mxu0
      %v1973 = vadd.f32 0.0, %v1972
      %1974 = vmatmul.bf16.gmra.mxu0 %v1886
      %v1975 = vpop.f32.mrf.mxu0
      %v1976 = vadd.f32 0.0, %v1975
      %v1977 = vpop.f32.mrf.mxu0
      %v1978 = vadd.f32 0.0, %v1977
      %1979 = vdwg.mxu0
      %v1980 = vadd.f32 %v1805, %v1901
      %v1981 = vadd.f32 %v1806, %v1903
      %v1982 = vadd.f32 %v1807, %v1906
      %v1983 = vadd.f32 %v1808, %v1908
      %v1984 = vadd.f32 %v1809, %v1911
      %v1985 = vadd.f32 %v1810, %v1913
      %v1986 = vadd.f32 %v1811, %v1916
      %v1987 = vadd.f32 %v1812, %v1918
      %v1988 = vadd.f32 %v1813, %v1921
      %v1989 = vadd.f32 %v1814, %v1923
      %v1990 = vadd.f32 %v1815, %v1926
      %v1991 = vadd.f32 %v1816, %v1928
      %v1992 = vadd.f32 %v1817, %v1931
      %v1993 = vadd.f32 %v1818, %v1933
      %v1994 = vadd.f32 %v1819, %v1936
      %v1995 = vadd.f32 %v1820, %v1938
      %v1996 = vadd.f32 %v1821, %v1941
      %v1997 = vadd.f32 %v1822, %v1943
      %v1998 = vadd.f32 %v1823, %v1946
      %v1999 = vadd.f32 %v1824, %v1948
      %v2000 = vadd.f32 %v1825, %v1951
      %v2001 = vadd.f32 %v1826, %v1953
      %v2002 = vadd.f32 %v1827, %v1956
      %v2003 = vadd.f32 %v1828, %v1958
      %v2004 = vadd.f32 %v1829, %v1961
      %v2005 = vadd.f32 %v1830, %v1963
      %v2006 = vadd.f32 %v1831, %v1966
      %v2007 = vadd.f32 %v1832, %v1968
      %v2008 = vadd.f32 %v1833, %v1971
      %v2009 = vadd.f32 %v1834, %v1973
      %v2010 = vadd.f32 %v1835, %v1976
      %v2011 = vadd.f32 %v1836, %v1978
      %v2012 = vmul.f32 %v223, %v223
      %v2013 = vmul.f32 %v224, %v224
      %v2014 = vsel %vm267, %v2012, 0.0
      %2015 = vadd.xlane.f32.xlu0 %v2014
      %v2016 = vpop.xlane.xlu0 %2015
      %v2017 = vsel %vm267, %v2013, 0.0
      %2018 = vadd.xlane.f32.xlu0 %v2017
      %v2019 = vpop.xlane.xlu0 %2018
      %v2020 = vadd.f32 %v1852, %v282
      %v2021 = vadd.f32 %v1853, %v285
      %v2022 = vadd.f32 %v1854, %v288
      %v2023 = vadd.f32 %v1855, %v291
      %v2024 = vadd.f32 %v1856, %v294
      %v2025 = vadd.f32 %v1857, %v297
      %v2026 = vadd.f32 %v1858, %v300
      %v2027 = vadd.f32 %v1859, %v303
      %v2028 = vadd.f32 %v1860, %v306
      %v2029 = vadd.f32 %v1861, %v309
      %v2030 = vadd.f32 %v1862, %v312
      %v2031 = vadd.f32 %v1863, %v315
      %v2032 = vadd.f32 %v1864, %v318
      %v2033 = vadd.f32 %v1865, %v321
      %v2034 = vadd.f32 %v1866, %v324
      %v2035 = vadd.f32 %v1867, %v327
      %v2036 = vadd.f32 %v1868, %v330
      %v2037 = vadd.f32 %v1869, %v333
      %v2038 = vadd.f32 %v1870, %v336
      %v2039 = vadd.f32 %v1871, %v339
      %v2040 = vadd.f32 %v1872, %v342
      %v2041 = vadd.f32 %v1873, %v345
      %v2042 = vadd.f32 %v1874, %v348
      %v2043 = vadd.f32 %v1875, %v351
      %v2044 = vadd.f32 %v1876, %v354
      %v2045 = vadd.f32 %v1877, %v357
      %v2046 = vadd.f32 %v1878, %v360
      %v2047 = vadd.f32 %v1879, %v363
      %v2048 = vadd.f32 %v1880, %v1495
      %v2049 = vadd.f32 %v1881, %v1498
      %v2050 = vadd.f32 %v1882, %v2016
      %v2051 = vadd.f32 %v1883, %v2019
      %v2052 = vpack.c.bf16 %v224, %v223
      %v2054 = vsel %vm267, %v2052, 0
      %v2057 = vsel %vm797, %v232, 0
      %2059 = vmatpush.bf16.msra.mxu0 0
      %2060 = vmatpush.bf16.msra.mxu0 0
      %2061 = vmatpush.bf16.msra.mxu0 0
      %2062 = vmatpush.bf16.msra.mxu0 0
      %2063 = vmatpush.bf16.msra.mxu0 0
      %2064 = vmatpush.bf16.msra.mxu0 0
      %2065 = vmatpush.bf16.msra.mxu0 0
      %2066 = vmatpush.bf16.msra.mxu0 %v2057
      %2067 = vmatmul.bf16.gmra.mxu0 %v897
      %v2068 = vpop.f32.mrf.mxu0
      %v2069 = vadd.f32 0.0, %v2068
      %v2070 = vpop.f32.mrf.mxu0
      %v2071 = vadd.f32 0.0, %v2070
      %2072 = vmatmul.bf16.gmra.mxu0 %v900
      %v2073 = vpop.f32.mrf.mxu0
      %v2074 = vadd.f32 0.0, %v2073
      %v2075 = vpop.f32.mrf.mxu0
      %v2076 = vadd.f32 0.0, %v2075
      %2077 = vmatmul.bf16.gmra.mxu0 %v903
      %v2078 = vpop.f32.mrf.mxu0
      %v2079 = vadd.f32 0.0, %v2078
      %v2080 = vpop.f32.mrf.mxu0
      %v2081 = vadd.f32 0.0, %v2080
      %2082 = vmatmul.bf16.gmra.mxu0 %v906
      %v2083 = vpop.f32.mrf.mxu0
      %v2084 = vadd.f32 0.0, %v2083
      %v2085 = vpop.f32.mrf.mxu0
      %v2086 = vadd.f32 0.0, %v2085
      %2087 = vmatmul.bf16.gmra.mxu0 %v909
      %v2088 = vpop.f32.mrf.mxu0
      %v2089 = vadd.f32 0.0, %v2088
      %v2090 = vpop.f32.mrf.mxu0
      %v2091 = vadd.f32 0.0, %v2090
      %2092 = vmatmul.bf16.gmra.mxu0 %v912
      %v2093 = vpop.f32.mrf.mxu0
      %v2094 = vadd.f32 0.0, %v2093
      %v2095 = vpop.f32.mrf.mxu0
      %v2096 = vadd.f32 0.0, %v2095
      %2097 = vmatmul.bf16.gmra.mxu0 %v915
      %v2098 = vpop.f32.mrf.mxu0
      %v2099 = vadd.f32 0.0, %v2098
      %v2100 = vpop.f32.mrf.mxu0
      %v2101 = vadd.f32 0.0, %v2100
      %2102 = vmatmul.bf16.gmra.mxu0 %v918
      %v2103 = vpop.f32.mrf.mxu0
      %v2104 = vadd.f32 0.0, %v2103
      %v2105 = vpop.f32.mrf.mxu0
      %v2106 = vadd.f32 0.0, %v2105
      %2107 = vmatmul.bf16.gmra.mxu0 %v921
      %v2108 = vpop.f32.mrf.mxu0
      %v2109 = vadd.f32 0.0, %v2108
      %v2110 = vpop.f32.mrf.mxu0
      %v2111 = vadd.f32 0.0, %v2110
      %2112 = vmatmul.bf16.gmra.mxu0 %v924
      %v2113 = vpop.f32.mrf.mxu0
      %v2114 = vadd.f32 0.0, %v2113
      %v2115 = vpop.f32.mrf.mxu0
      %v2116 = vadd.f32 0.0, %v2115
      %2117 = vmatmul.bf16.gmra.mxu0 %v927
      %v2118 = vpop.f32.mrf.mxu0
      %v2119 = vadd.f32 0.0, %v2118
      %v2120 = vpop.f32.mrf.mxu0
      %v2121 = vadd.f32 0.0, %v2120
      %2122 = vmatmul.bf16.gmra.mxu0 %v930
      %v2123 = vpop.f32.mrf.mxu0
      %v2124 = vadd.f32 0.0, %v2123
      %v2125 = vpop.f32.mrf.mxu0
      %v2126 = vadd.f32 0.0, %v2125
      %2127 = vmatmul.bf16.gmra.mxu0 %v933
      %v2128 = vpop.f32.mrf.mxu0
      %v2129 = vadd.f32 0.0, %v2128
      %v2130 = vpop.f32.mrf.mxu0
      %v2131 = vadd.f32 0.0, %v2130
      %2132 = vmatmul.bf16.gmra.mxu0 %v936
      %v2133 = vpop.f32.mrf.mxu0
      %v2134 = vadd.f32 0.0, %v2133
      %v2135 = vpop.f32.mrf.mxu0
      %v2136 = vadd.f32 0.0, %v2135
      %2137 = vmatmul.bf16.gmra.mxu0 %v1533
      %v2138 = vpop.f32.mrf.mxu0
      %v2139 = vadd.f32 0.0, %v2138
      %v2140 = vpop.f32.mrf.mxu0
      %v2141 = vadd.f32 0.0, %v2140
      %2142 = vmatmul.bf16.gmra.mxu0 %v2054
      %v2143 = vpop.f32.mrf.mxu0
      %v2144 = vadd.f32 0.0, %v2143
      %v2145 = vpop.f32.mrf.mxu0
      %v2146 = vadd.f32 0.0, %v2145
      %2147 = vdwg.mxu0
      %v2148 = vadd.f32 %v1980, %v2069
      %v2149 = vadd.f32 %v1981, %v2071
      %v2150 = vadd.f32 %v1982, %v2074
      %v2151 = vadd.f32 %v1983, %v2076
      %v2152 = vadd.f32 %v1984, %v2079
      %v2153 = vadd.f32 %v1985, %v2081
      %v2154 = vadd.f32 %v1986, %v2084
      %v2155 = vadd.f32 %v1987, %v2086
      %v2156 = vadd.f32 %v1988, %v2089
      %v2157 = vadd.f32 %v1989, %v2091
      %v2158 = vadd.f32 %v1990, %v2094
      %v2159 = vadd.f32 %v1991, %v2096
      %v2160 = vadd.f32 %v1992, %v2099
      %v2161 = vadd.f32 %v1993, %v2101
      %v2162 = vadd.f32 %v1994, %v2104
      %v2163 = vadd.f32 %v1995, %v2106
      %v2164 = vadd.f32 %v1996, %v2109
      %v2165 = vadd.f32 %v1997, %v2111
      %v2166 = vadd.f32 %v1998, %v2114
      %v2167 = vadd.f32 %v1999, %v2116
      %v2168 = vadd.f32 %v2000, %v2119
      %v2169 = vadd.f32 %v2001, %v2121
      %v2170 = vadd.f32 %v2002, %v2124
      %v2171 = vadd.f32 %v2003, %v2126
      %v2172 = vadd.f32 %v2004, %v2129
      %v2173 = vadd.f32 %v2005, %v2131
      %v2174 = vadd.f32 %v2006, %v2134
      %v2175 = vadd.f32 %v2007, %v2136
      %v2176 = vadd.f32 %v2008, %v2139
      %v2177 = vadd.f32 %v2009, %v2141
      %v2178 = vadd.f32 %v2010, %v2144
      %v2179 = vadd.f32 %v2011, %v2146
      %v2183 = vrot.slane %v223, 1
      %v2184 = vrot.slane %v224, 1
      %v2185 = vsel %vm460, %v2183, %v2184
      %v2186 = vrot.slane %v225, 1
      %v2187 = vsel %vm460, %v2184, %v2186
      %v2190 = vmul.f32 %v2185, %v2185
      %v2191 = vmul.f32 %v2187, %v2187
      %v2192 = vsel %vm267, %v2190, 0.0
      %2193 = vadd.xlane.f32.xlu0 %v2192
      %v2194 = vpop.xlane.xlu0 %2193
      %v2195 = vsel %vm267, %v2191, 0.0
      %2196 = vadd.xlane.f32.xlu0 %v2195
      %v2197 = vpop.xlane.xlu0 %2196
      %v2198 = vadd.f32 %v2020, %v619
      %v2199 = vadd.f32 %v2021, %v622
      %v2200 = vadd.f32 %v2022, %v625
      %v2201 = vadd.f32 %v2023, %v628
      %v2202 = vadd.f32 %v2024, %v631
      %v2203 = vadd.f32 %v2025, %v634
      %v2204 = vadd.f32 %v2026, %v637
      %v2205 = vadd.f32 %v2027, %v640
      %v2206 = vadd.f32 %v2028, %v643
      %v2207 = vadd.f32 %v2029, %v646
      %v2208 = vadd.f32 %v2030, %v649
      %v2209 = vadd.f32 %v2031, %v652
      %v2210 = vadd.f32 %v2032, %v655
      %v2211 = vadd.f32 %v2033, %v658
      %v2212 = vadd.f32 %v2034, %v661
      %v2213 = vadd.f32 %v2035, %v664
      %v2214 = vadd.f32 %v2036, %v667
      %v2215 = vadd.f32 %v2037, %v670
      %v2216 = vadd.f32 %v2038, %v673
      %v2217 = vadd.f32 %v2039, %v676
      %v2218 = vadd.f32 %v2040, %v679
      %v2219 = vadd.f32 %v2041, %v682
      %v2220 = vadd.f32 %v2042, %v685
      %v2221 = vadd.f32 %v2043, %v688
      %v2222 = vadd.f32 %v2044, %v691
      %v2223 = vadd.f32 %v2045, %v694
      %v2224 = vadd.f32 %v2046, %v697
      %v2225 = vadd.f32 %v2047, %v700
      %v2226 = vadd.f32 %v2048, %v1673
      %v2227 = vadd.f32 %v2049, %v1676
      %v2228 = vadd.f32 %v2050, %v2194
      %v2229 = vadd.f32 %v2051, %v2197
      %v2230 = vpack.c.bf16 %v2187, %v2185
      %v2232 = vsel %vm267, %v2230, 0
      %v2235 = vsel %vm797, %v233, 0
      %2237 = vmatpush.bf16.msra.mxu0 0
      %2238 = vmatpush.bf16.msra.mxu0 0
      %2239 = vmatpush.bf16.msra.mxu0 0
      %2240 = vmatpush.bf16.msra.mxu0 0
      %2241 = vmatpush.bf16.msra.mxu0 0
      %2242 = vmatpush.bf16.msra.mxu0 0
      %2243 = vmatpush.bf16.msra.mxu0 0
      %2244 = vmatpush.bf16.msra.mxu0 %v2235
      %2245 = vmatmul.bf16.gmra.mxu0 %v756
      %v2246 = vpop.f32.mrf.mxu0
      %v2247 = vadd.f32 0.0, %v2246
      %v2248 = vpop.f32.mrf.mxu0
      %v2249 = vadd.f32 0.0, %v2248
      %2250 = vmatmul.bf16.gmra.mxu0 %v759
      %v2251 = vpop.f32.mrf.mxu0
      %v2252 = vadd.f32 0.0, %v2251
      %v2253 = vpop.f32.mrf.mxu0
      %v2254 = vadd.f32 0.0, %v2253
      %2255 = vmatmul.bf16.gmra.mxu0 %v762
      %v2256 = vpop.f32.mrf.mxu0
      %v2257 = vadd.f32 0.0, %v2256
      %v2258 = vpop.f32.mrf.mxu0
      %v2259 = vadd.f32 0.0, %v2258
      %2260 = vmatmul.bf16.gmra.mxu0 %v765
      %v2261 = vpop.f32.mrf.mxu0
      %v2262 = vadd.f32 0.0, %v2261
      %v2263 = vpop.f32.mrf.mxu0
      %v2264 = vadd.f32 0.0, %v2263
      %2265 = vmatmul.bf16.gmra.mxu0 %v768
      %v2266 = vpop.f32.mrf.mxu0
      %v2267 = vadd.f32 0.0, %v2266
      %v2268 = vpop.f32.mrf.mxu0
      %v2269 = vadd.f32 0.0, %v2268
      %2270 = vmatmul.bf16.gmra.mxu0 %v771
      %v2271 = vpop.f32.mrf.mxu0
      %v2272 = vadd.f32 0.0, %v2271
      %v2273 = vpop.f32.mrf.mxu0
      %v2274 = vadd.f32 0.0, %v2273
      %2275 = vmatmul.bf16.gmra.mxu0 %v774
      %v2276 = vpop.f32.mrf.mxu0
      %v2277 = vadd.f32 0.0, %v2276
      %v2278 = vpop.f32.mrf.mxu0
      %v2279 = vadd.f32 0.0, %v2278
      %2280 = vmatmul.bf16.gmra.mxu0 %v777
      %v2281 = vpop.f32.mrf.mxu0
      %v2282 = vadd.f32 0.0, %v2281
      %v2283 = vpop.f32.mrf.mxu0
      %v2284 = vadd.f32 0.0, %v2283
      %2285 = vmatmul.bf16.gmra.mxu0 %v780
      %v2286 = vpop.f32.mrf.mxu0
      %v2287 = vadd.f32 0.0, %v2286
      %v2288 = vpop.f32.mrf.mxu0
      %v2289 = vadd.f32 0.0, %v2288
      %2290 = vmatmul.bf16.gmra.mxu0 %v783
      %v2291 = vpop.f32.mrf.mxu0
      %v2292 = vadd.f32 0.0, %v2291
      %v2293 = vpop.f32.mrf.mxu0
      %v2294 = vadd.f32 0.0, %v2293
      %2295 = vmatmul.bf16.gmra.mxu0 %v786
      %v2296 = vpop.f32.mrf.mxu0
      %v2297 = vadd.f32 0.0, %v2296
      %v2298 = vpop.f32.mrf.mxu0
      %v2299 = vadd.f32 0.0, %v2298
      %2300 = vmatmul.bf16.gmra.mxu0 %v789
      %v2301 = vpop.f32.mrf.mxu0
      %v2302 = vadd.f32 0.0, %v2301
      %v2303 = vpop.f32.mrf.mxu0
      %v2304 = vadd.f32 0.0, %v2303
      %2305 = vmatmul.bf16.gmra.mxu0 %v792
      %v2306 = vpop.f32.mrf.mxu0
      %v2307 = vadd.f32 0.0, %v2306
      %v2308 = vpop.f32.mrf.mxu0
      %v2309 = vadd.f32 0.0, %v2308
      %2310 = vmatmul.bf16.gmra.mxu0 %v795
      %v2311 = vpop.f32.mrf.mxu0
      %v2312 = vadd.f32 0.0, %v2311
      %v2313 = vpop.f32.mrf.mxu0
      %v2314 = vadd.f32 0.0, %v2313
      %2315 = vmatmul.bf16.gmra.mxu0 %v1711
      %v2316 = vpop.f32.mrf.mxu0
      %v2317 = vadd.f32 0.0, %v2316
      %v2318 = vpop.f32.mrf.mxu0
      %v2319 = vadd.f32 0.0, %v2318
      %2320 = vmatmul.bf16.gmra.mxu0 %v2232
      %v2321 = vpop.f32.mrf.mxu0
      %v2322 = vadd.f32 0.0, %v2321
      %v2323 = vpop.f32.mrf.mxu0
      %v2324 = vadd.f32 0.0, %v2323
      %2325 = vdwg.mxu0
      %v2326 = vadd.f32 %v2148, %v2247
      %v2327 = vadd.f32 %v2149, %v2249
      %v2328 = vadd.f32 %v2150, %v2252
      %v2329 = vadd.f32 %v2151, %v2254
      %v2330 = vadd.f32 %v2152, %v2257
      %v2331 = vadd.f32 %v2153, %v2259
      %v2332 = vadd.f32 %v2154, %v2262
      %v2333 = vadd.f32 %v2155, %v2264
      %v2334 = vadd.f32 %v2156, %v2267
      %v2335 = vadd.f32 %v2157, %v2269
      %v2336 = vadd.f32 %v2158, %v2272
      %v2337 = vadd.f32 %v2159, %v2274
      %v2338 = vadd.f32 %v2160, %v2277
      %v2339 = vadd.f32 %v2161, %v2279
      %v2340 = vadd.f32 %v2162, %v2282
      %v2341 = vadd.f32 %v2163, %v2284
      %v2342 = vadd.f32 %v2164, %v2287
      %v2343 = vadd.f32 %v2165, %v2289
      %v2344 = vadd.f32 %v2166, %v2292
      %v2345 = vadd.f32 %v2167, %v2294
      %v2346 = vadd.f32 %v2168, %v2297
      %v2347 = vadd.f32 %v2169, %v2299
      %v2348 = vadd.f32 %v2170, %v2302
      %v2349 = vadd.f32 %v2171, %v2304
      %v2350 = vadd.f32 %v2172, %v2307
      %v2351 = vadd.f32 %v2173, %v2309
      %v2352 = vadd.f32 %v2174, %v2312
      %v2353 = vadd.f32 %v2175, %v2314
      %v2354 = vadd.f32 %v2176, %v2317
      %v2355 = vadd.f32 %v2177, %v2319
      %v2356 = vadd.f32 %v2178, %v2322
      %v2357 = vadd.f32 %v2179, %v2324
      %v2358 = vrot.slane %v223, 2
      %v2359 = vrot.slane %v224, 2
      %v2360 = vsel %vm1030, %v2358, %v2359
      %v2361 = vrot.slane %v225, 2
      %v2362 = vsel %vm1030, %v2359, %v2361
      %v2365 = vmul.f32 %v2360, %v2360
      %v2366 = vmul.f32 %v2362, %v2362
      %v2367 = vsel %vm267, %v2365, 0.0
      %2368 = vadd.xlane.f32.xlu0 %v2367
      %v2369 = vpop.xlane.xlu0 %2368
      %v2370 = vsel %vm267, %v2366, 0.0
      %2371 = vadd.xlane.f32.xlu0 %v2370
      %v2372 = vpop.xlane.xlu0 %2371
      %v2373 = vadd.f32 %v2198, %v1189
      %v2374 = vadd.f32 %v2199, %v1192
      %v2375 = vadd.f32 %v2200, %v1195
      %v2376 = vadd.f32 %v2201, %v1198
      %v2377 = vadd.f32 %v2202, %v1201
      %v2378 = vadd.f32 %v2203, %v1204
      %v2379 = vadd.f32 %v2204, %v1207
      %v2380 = vadd.f32 %v2205, %v1210
      %v2381 = vadd.f32 %v2206, %v1213
      %v2382 = vadd.f32 %v2207, %v1216
      %v2383 = vadd.f32 %v2208, %v1219
      %v2384 = vadd.f32 %v2209, %v1222
      %v2385 = vadd.f32 %v2210, %v1225
      %v2386 = vadd.f32 %v2211, %v1228
      %v2387 = vadd.f32 %v2212, %v1231
      %v2388 = vadd.f32 %v2213, %v1234
      %v2389 = vadd.f32 %v2214, %v1237
      %v2390 = vadd.f32 %v2215, %v1240
      %v2391 = vadd.f32 %v2216, %v1243
      %v2392 = vadd.f32 %v2217, %v1246
      %v2393 = vadd.f32 %v2218, %v1249
      %v2394 = vadd.f32 %v2219, %v1252
      %v2395 = vadd.f32 %v2220, %v1255
      %v2396 = vadd.f32 %v2221, %v1258
      %v2397 = vadd.f32 %v2222, %v1261
      %v2398 = vadd.f32 %v2223, %v1264
      %v2399 = vadd.f32 %v2224, %v1267
      %v2400 = vadd.f32 %v2225, %v1270
      %v2401 = vadd.f32 %v2226, %v1848
      %v2402 = vadd.f32 %v2227, %v1851
      %v2403 = vadd.f32 %v2228, %v2369
      %v2404 = vadd.f32 %v2229, %v2372
      %v2405 = vpack.c.bf16 %v2362, %v2360
      %v2407 = vsel %vm267, %v2405, 0
      %v2410 = vsel %vm797, %v234, 0
      %2412 = vmatpush.bf16.msra.mxu0 0
      %2413 = vmatpush.bf16.msra.mxu0 0
      %2414 = vmatpush.bf16.msra.mxu0 0
      %2415 = vmatpush.bf16.msra.mxu0 0
      %2416 = vmatpush.bf16.msra.mxu0 0
      %2417 = vmatpush.bf16.msra.mxu0 0
      %2418 = vmatpush.bf16.msra.mxu0 0
      %2419 = vmatpush.bf16.msra.mxu0 %v2410
      %2420 = vmatmul.bf16.gmra.mxu0 %v1326
      %v2421 = vpop.f32.mrf.mxu0
      %v2422 = vadd.f32 0.0, %v2421
      %v2423 = vpop.f32.mrf.mxu0
      %v2424 = vadd.f32 0.0, %v2423
      %2425 = vmatmul.bf16.gmra.mxu0 %v1329
      %v2426 = vpop.f32.mrf.mxu0
      %v2427 = vadd.f32 0.0, %v2426
      %v2428 = vpop.f32.mrf.mxu0
      %v2429 = vadd.f32 0.0, %v2428
      %2430 = vmatmul.bf16.gmra.mxu0 %v1332
      %v2431 = vpop.f32.mrf.mxu0
      %v2432 = vadd.f32 0.0, %v2431
      %v2433 = vpop.f32.mrf.mxu0
      %v2434 = vadd.f32 0.0, %v2433
      %2435 = vmatmul.bf16.gmra.mxu0 %v1335
      %v2436 = vpop.f32.mrf.mxu0
      %v2437 = vadd.f32 0.0, %v2436
      %v2438 = vpop.f32.mrf.mxu0
      %v2439 = vadd.f32 0.0, %v2438
      %2440 = vmatmul.bf16.gmra.mxu0 %v1338
      %v2441 = vpop.f32.mrf.mxu0
      %v2442 = vadd.f32 0.0, %v2441
      %v2443 = vpop.f32.mrf.mxu0
      %v2444 = vadd.f32 0.0, %v2443
      %2445 = vmatmul.bf16.gmra.mxu0 %v1341
      %v2446 = vpop.f32.mrf.mxu0
      %v2447 = vadd.f32 0.0, %v2446
      %v2448 = vpop.f32.mrf.mxu0
      %v2449 = vadd.f32 0.0, %v2448
      %2450 = vmatmul.bf16.gmra.mxu0 %v1344
      %v2451 = vpop.f32.mrf.mxu0
      %v2452 = vadd.f32 0.0, %v2451
      %v2453 = vpop.f32.mrf.mxu0
      %v2454 = vadd.f32 0.0, %v2453
      %2455 = vmatmul.bf16.gmra.mxu0 %v1347
      %v2456 = vpop.f32.mrf.mxu0
      %v2457 = vadd.f32 0.0, %v2456
      %v2458 = vpop.f32.mrf.mxu0
      %v2459 = vadd.f32 0.0, %v2458
      %2460 = vmatmul.bf16.gmra.mxu0 %v1350
      %v2461 = vpop.f32.mrf.mxu0
      %v2462 = vadd.f32 0.0, %v2461
      %v2463 = vpop.f32.mrf.mxu0
      %v2464 = vadd.f32 0.0, %v2463
      %2465 = vmatmul.bf16.gmra.mxu0 %v1353
      %v2466 = vpop.f32.mrf.mxu0
      %v2467 = vadd.f32 0.0, %v2466
      %v2468 = vpop.f32.mrf.mxu0
      %v2469 = vadd.f32 0.0, %v2468
      %2470 = vmatmul.bf16.gmra.mxu0 %v1356
      %v2471 = vpop.f32.mrf.mxu0
      %v2472 = vadd.f32 0.0, %v2471
      %v2473 = vpop.f32.mrf.mxu0
      %v2474 = vadd.f32 0.0, %v2473
      %2475 = vmatmul.bf16.gmra.mxu0 %v1359
      %v2476 = vpop.f32.mrf.mxu0
      %v2477 = vadd.f32 0.0, %v2476
      %v2478 = vpop.f32.mrf.mxu0
      %v2479 = vadd.f32 0.0, %v2478
      %2480 = vmatmul.bf16.gmra.mxu0 %v1362
      %v2481 = vpop.f32.mrf.mxu0
      %v2482 = vadd.f32 0.0, %v2481
      %v2483 = vpop.f32.mrf.mxu0
      %v2484 = vadd.f32 0.0, %v2483
      %2485 = vmatmul.bf16.gmra.mxu0 %v1365
      %v2486 = vpop.f32.mrf.mxu0
      %v2487 = vadd.f32 0.0, %v2486
      %v2488 = vpop.f32.mrf.mxu0
      %v2489 = vadd.f32 0.0, %v2488
      %2490 = vmatmul.bf16.gmra.mxu0 %v1886
      %v2491 = vpop.f32.mrf.mxu0
      %v2492 = vadd.f32 0.0, %v2491
      %v2493 = vpop.f32.mrf.mxu0
      %v2494 = vadd.f32 0.0, %v2493
      %2495 = vmatmul.bf16.gmra.mxu0 %v2407
      %v2496 = vpop.f32.mrf.mxu0
      %v2497 = vadd.f32 0.0, %v2496
      %v2498 = vpop.f32.mrf.mxu0
      %v2499 = vadd.f32 0.0, %v2498
      %2500 = vdwg.mxu0
      %v2501 = vadd.f32 %v2326, %v2422
      %v2502 = vadd.f32 %v2327, %v2424
      %v2503 = vadd.f32 %v2328, %v2427
      %v2504 = vadd.f32 %v2329, %v2429
      %v2505 = vadd.f32 %v2330, %v2432
      %v2506 = vadd.f32 %v2331, %v2434
      %v2507 = vadd.f32 %v2332, %v2437
      %v2508 = vadd.f32 %v2333, %v2439
      %v2509 = vadd.f32 %v2334, %v2442
      %v2510 = vadd.f32 %v2335, %v2444
      %v2511 = vadd.f32 %v2336, %v2447
      %v2512 = vadd.f32 %v2337, %v2449
      %v2513 = vadd.f32 %v2338, %v2452
      %v2514 = vadd.f32 %v2339, %v2454
      %v2515 = vadd.f32 %v2340, %v2457
      %v2516 = vadd.f32 %v2341, %v2459
      %v2517 = vadd.f32 %v2342, %v2462
      %v2518 = vadd.f32 %v2343, %v2464
      %v2519 = vadd.f32 %v2344, %v2467
      %v2520 = vadd.f32 %v2345, %v2469
      %v2521 = vadd.f32 %v2346, %v2472
      %v2522 = vadd.f32 %v2347, %v2474
      %v2523 = vadd.f32 %v2348, %v2477
      %v2524 = vadd.f32 %v2349, %v2479
      %v2525 = vadd.f32 %v2350, %v2482
      %v2526 = vadd.f32 %v2351, %v2484
      %v2527 = vadd.f32 %v2352, %v2487
      %v2528 = vadd.f32 %v2353, %v2489
      %v2529 = vadd.f32 %v2354, %v2492
      %v2530 = vadd.f32 %v2355, %v2494
      %v2531 = vadd.f32 %v2356, %v2497
      %v2532 = vadd.f32 %v2357, %v2499
      %v2533 = vld [vmem:[%s2] sm:$0x1]
      %v2534 = vmul.f32 %v2373, -0.05
      %v2535 = vmul.f32 %v2374, -0.05
      %v2536 = vmul.f32 %v2375, -0.05
      %v2537 = vmul.f32 %v2376, -0.05
      %v2538 = vmul.f32 %v2377, -0.05
      %v2539 = vmul.f32 %v2378, -0.05
      %v2540 = vmul.f32 %v2379, -0.05
      %v2541 = vmul.f32 %v2380, -0.05
      %v2542 = vmul.f32 %v2381, -0.05
      %v2543 = vmul.f32 %v2382, -0.05
      %v2544 = vmul.f32 %v2383, -0.05
      %v2545 = vmul.f32 %v2384, -0.05
      %v2546 = vmul.f32 %v2385, -0.05
      %v2547 = vmul.f32 %v2386, -0.05
      %v2548 = vmul.f32 %v2387, -0.05
      %v2549 = vmul.f32 %v2388, -0.05
      %v2550 = vmul.f32 %v2389, -0.05
      %v2551 = vmul.f32 %v2390, -0.05
      %v2552 = vmul.f32 %v2391, -0.05
      %v2553 = vmul.f32 %v2392, -0.05
      %v2554 = vmul.f32 %v2393, -0.05
      %v2555 = vmul.f32 %v2394, -0.05
      %v2556 = vmul.f32 %v2395, -0.05
      %v2557 = vmul.f32 %v2396, -0.05
      %v2558 = vmul.f32 %v2397, -0.05
      %v2559 = vmul.f32 %v2398, -0.05
      %v2560 = vmul.f32 %v2399, -0.05
      %v2561 = vmul.f32 %v2400, -0.05
      %v2562 = vmul.f32 %v2401, -0.05
      %v2563 = vmul.f32 %v2402, -0.05
      %v2564 = vmul.f32 %v2403, -0.05
      %v2565 = vmul.f32 %v2404, -0.05
      %v2567 = vperm.slane %v2533, 0
      %v2569 = vadd.f32 %v2567, %v2534
      %v2570 = vadd.f32 %v2567, %v2535
      %v2571 = vadd.f32 %v2567, %v2536
      %v2572 = vadd.f32 %v2567, %v2537
      %v2573 = vadd.f32 %v2567, %v2538
      %v2574 = vadd.f32 %v2567, %v2539
      %v2575 = vadd.f32 %v2567, %v2540
      %v2576 = vadd.f32 %v2567, %v2541
      %v2577 = vadd.f32 %v2567, %v2542
      %v2578 = vadd.f32 %v2567, %v2543
      %v2579 = vadd.f32 %v2567, %v2544
      %v2580 = vadd.f32 %v2567, %v2545
      %v2581 = vadd.f32 %v2567, %v2546
      %v2582 = vadd.f32 %v2567, %v2547
      %v2583 = vadd.f32 %v2567, %v2548
      %v2584 = vadd.f32 %v2567, %v2549
      %v2585 = vadd.f32 %v2567, %v2550
      %v2586 = vadd.f32 %v2567, %v2551
      %v2587 = vadd.f32 %v2567, %v2552
      %v2588 = vadd.f32 %v2567, %v2553
      %v2589 = vadd.f32 %v2567, %v2554
      %v2590 = vadd.f32 %v2567, %v2555
      %v2591 = vadd.f32 %v2567, %v2556
      %v2592 = vadd.f32 %v2567, %v2557
      %v2593 = vadd.f32 %v2567, %v2558
      %v2594 = vadd.f32 %v2567, %v2559
      %v2595 = vadd.f32 %v2567, %v2560
      %v2596 = vadd.f32 %v2567, %v2561
      %v2597 = vadd.f32 %v2567, %v2562
      %v2598 = vadd.f32 %v2567, %v2563
      %v2599 = vadd.f32 %v2567, %v2564
      %v2600 = vadd.f32 %v2567, %v2565
      %v2601 = vadd.f32 %v2569, %v2501
      %v2602 = vadd.f32 %v2570, %v2502
      %v2603 = vadd.f32 %v2571, %v2503
      %v2604 = vadd.f32 %v2572, %v2504
      %v2605 = vadd.f32 %v2573, %v2505
      %v2606 = vadd.f32 %v2574, %v2506
      %v2607 = vadd.f32 %v2575, %v2507
      %v2608 = vadd.f32 %v2576, %v2508
      %v2609 = vadd.f32 %v2577, %v2509
      %v2610 = vadd.f32 %v2578, %v2510
      %v2611 = vadd.f32 %v2579, %v2511
      %v2612 = vadd.f32 %v2580, %v2512
      %v2613 = vadd.f32 %v2581, %v2513
      %v2614 = vadd.f32 %v2582, %v2514
      %v2615 = vadd.f32 %v2583, %v2515
      %v2616 = vadd.f32 %v2584, %v2516
      %v2617 = vadd.f32 %v2585, %v2517
      %v2618 = vadd.f32 %v2586, %v2518
      %v2619 = vadd.f32 %v2587, %v2519
      %v2620 = vadd.f32 %v2588, %v2520
      %v2621 = vadd.f32 %v2589, %v2521
      %v2622 = vadd.f32 %v2590, %v2522
      %v2623 = vadd.f32 %v2591, %v2523
      %v2624 = vadd.f32 %v2592, %v2524
      %v2625 = vadd.f32 %v2593, %v2525
      %v2626 = vadd.f32 %v2594, %v2526
      %v2627 = vadd.f32 %v2595, %v2527
      %v2628 = vadd.f32 %v2596, %v2528
      %v2629 = vadd.f32 %v2597, %v2529
      %v2630 = vadd.f32 %v2598, %v2530
      %v2631 = vadd.f32 %v2599, %v2531
      %v2632 = vadd.f32 %v2600, %v2532
      %v2633 = vmin.f32 %v2601, 0.0
      %v2634 = vmin.f32 %v2602, 0.0
      %v2635 = vmin.f32 %v2603, 0.0
      %v2636 = vmin.f32 %v2604, 0.0
      %v2637 = vmin.f32 %v2605, 0.0
      %v2638 = vmin.f32 %v2606, 0.0
      %v2639 = vmin.f32 %v2607, 0.0
      %v2640 = vmin.f32 %v2608, 0.0
      %v2641 = vmin.f32 %v2609, 0.0
      %v2642 = vmin.f32 %v2610, 0.0
      %v2643 = vmin.f32 %v2611, 0.0
      %v2644 = vmin.f32 %v2612, 0.0
      %v2645 = vmin.f32 %v2613, 0.0
      %v2646 = vmin.f32 %v2614, 0.0
      %v2647 = vmin.f32 %v2615, 0.0
      %v2648 = vmin.f32 %v2616, 0.0
      %v2649 = vmin.f32 %v2617, 0.0
      %v2650 = vmin.f32 %v2618, 0.0
      %v2651 = vmin.f32 %v2619, 0.0
      %v2652 = vmin.f32 %v2620, 0.0
      %v2653 = vmin.f32 %v2621, 0.0
      %v2654 = vmin.f32 %v2622, 0.0
      %v2655 = vmin.f32 %v2623, 0.0
      %v2656 = vmin.f32 %v2624, 0.0
      %v2657 = vmin.f32 %v2625, 0.0
      %v2658 = vmin.f32 %v2626, 0.0
      %v2659 = vmin.f32 %v2627, 0.0
      %v2660 = vmin.f32 %v2628, 0.0
      %v2661 = vmin.f32 %v2629, 0.0
      %v2662 = vmin.f32 %v2630, 0.0
      %v2663 = vmin.f32 %v2631, 0.0
      %v2664 = vmin.f32 %v2632, 0.0
      %v2665 = vmul.f32 %v2633, 1.442695
      %v2666 = vpow.pop %v2665
      %v2667 = vmul.f32 %v2634, 1.442695
      %v2668 = vpow.pop %v2667
      %v2669 = vmul.f32 %v2635, 1.442695
      %v2670 = vpow.pop %v2669
      %v2671 = vmul.f32 %v2636, 1.442695
      %v2672 = vpow.pop %v2671
      %v2673 = vmul.f32 %v2637, 1.442695
      %v2674 = vpow.pop %v2673
      %v2675 = vmul.f32 %v2638, 1.442695
      %v2676 = vpow.pop %v2675
      %v2677 = vmul.f32 %v2639, 1.442695
      %v2678 = vpow.pop %v2677
      %v2679 = vmul.f32 %v2640, 1.442695
      %v2680 = vpow.pop %v2679
      %v2681 = vmul.f32 %v2641, 1.442695
      %v2682 = vpow.pop %v2681
      %v2683 = vmul.f32 %v2642, 1.442695
      %v2684 = vpow.pop %v2683
      %v2685 = vmul.f32 %v2643, 1.442695
      %v2686 = vpow.pop %v2685
      %v2687 = vmul.f32 %v2644, 1.442695
      %v2688 = vpow.pop %v2687
      %v2689 = vmul.f32 %v2645, 1.442695
      %v2690 = vpow.pop %v2689
      %v2691 = vmul.f32 %v2646, 1.442695
      %v2692 = vpow.pop %v2691
      %v2693 = vmul.f32 %v2647, 1.442695
      %v2694 = vpow.pop %v2693
      %v2695 = vmul.f32 %v2648, 1.442695
      %v2696 = vpow.pop %v2695
      %v2697 = vmul.f32 %v2649, 1.442695
      %v2698 = vpow.pop %v2697
      %v2699 = vmul.f32 %v2650, 1.442695
      %v2700 = vpow.pop %v2699
      %v2701 = vmul.f32 %v2651, 1.442695
      %v2702 = vpow.pop %v2701
      %v2703 = vmul.f32 %v2652, 1.442695
      %v2704 = vpow.pop %v2703
      %v2705 = vmul.f32 %v2653, 1.442695
      %v2706 = vpow.pop %v2705
      %v2707 = vmul.f32 %v2654, 1.442695
      %v2708 = vpow.pop %v2707
      %v2709 = vmul.f32 %v2655, 1.442695
      %v2710 = vpow.pop %v2709
      %v2711 = vmul.f32 %v2656, 1.442695
      %v2712 = vpow.pop %v2711
      %v2713 = vmul.f32 %v2657, 1.442695
      %v2714 = vpow.pop %v2713
      %v2715 = vmul.f32 %v2658, 1.442695
      %v2716 = vpow.pop %v2715
      %v2717 = vmul.f32 %v2659, 1.442695
      %v2718 = vpow.pop %v2717
      %v2719 = vmul.f32 %v2660, 1.442695
      %v2720 = vpow.pop %v2719
      %v2721 = vmul.f32 %v2661, 1.442695
      %v2722 = vpow.pop %v2721
      %v2723 = vmul.f32 %v2662, 1.442695
      %v2724 = vpow.pop %v2723
      %v2725 = vmul.f32 %v2663, 1.442695
      %v2726 = vpow.pop %v2725
      %v2727 = vmul.f32 %v2664, 1.442695
      %v2728 = vpow.pop %v2727
      %2729 = vst.msk [vmem:[%s170] sm:$0xff] %vm267, %v2666
      %2730 = vst.msk [vmem:[%s170 + $0x8] sm:$0xff] %vm267, %v2668
      %2731 = vst.msk [vmem:[%s170 + $0x10] sm:$0xff] %vm267, %v2670
      %2732 = vst.msk [vmem:[%s170 + $0x18] sm:$0xff] %vm267, %v2672
      %2733 = vst.msk [vmem:[%s170 + $0x20] sm:$0xff] %vm267, %v2674
      %2734 = vst.msk [vmem:[%s170 + $0x28] sm:$0xff] %vm267, %v2676
      %2735 = vst.msk [vmem:[%s170 + $0x30] sm:$0xff] %vm267, %v2678
      %2736 = vst.msk [vmem:[%s170 + $0x38] sm:$0xff] %vm267, %v2680
      %2737 = vst.msk [vmem:[%s170 + $0x40] sm:$0xff] %vm267, %v2682
      %2738 = vst.msk [vmem:[%s170 + $0x48] sm:$0xff] %vm267, %v2684
      %2739 = vst.msk [vmem:[%s170 + $0x50] sm:$0xff] %vm267, %v2686
      %2740 = vst.msk [vmem:[%s170 + $0x58] sm:$0xff] %vm267, %v2688
      %2741 = vst.msk [vmem:[%s170 + $0x60] sm:$0xff] %vm267, %v2690
      %2742 = vst.msk [vmem:[%s170 + $0x68] sm:$0xff] %vm267, %v2692
      %2743 = vst.msk [vmem:[%s170 + $0x70] sm:$0xff] %vm267, %v2694
      %2744 = vst.msk [vmem:[%s170 + $0x78] sm:$0xff] %vm267, %v2696
      %2745 = vst.msk [vmem:[%s170 + $0x80] sm:$0xff] %vm267, %v2698
      %2746 = vst.msk [vmem:[%s170 + $0x88] sm:$0xff] %vm267, %v2700
      %2747 = vst.msk [vmem:[%s170 + $0x90] sm:$0xff] %vm267, %v2702
      %2748 = vst.msk [vmem:[%s170 + $0x98] sm:$0xff] %vm267, %v2704
      %2749 = vst.msk [vmem:[%s170 + $0xa0] sm:$0xff] %vm267, %v2706
      %2750 = vst.msk [vmem:[%s170 + $0xa8] sm:$0xff] %vm267, %v2708
      %2751 = vst.msk [vmem:[%s170 + $0xb0] sm:$0xff] %vm267, %v2710
      %2752 = vst.msk [vmem:[%s170 + $0xb8] sm:$0xff] %vm267, %v2712
      %2753 = vst.msk [vmem:[%s170 + $0xc0] sm:$0xff] %vm267, %v2714
      %2754 = vst.msk [vmem:[%s170 + $0xc8] sm:$0xff] %vm267, %v2716
      %2755 = vst.msk [vmem:[%s170 + $0xd0] sm:$0xff] %vm267, %v2718
      %2756 = vst.msk [vmem:[%s170 + $0xd8] sm:$0xff] %vm267, %v2720
      %2757 = vst.msk [vmem:[%s170 + $0xe0] sm:$0xff] %vm267, %v2722
      %2758 = vst.msk [vmem:[%s170 + $0xe8] sm:$0xff] %vm267, %v2724
      %2759 = vst.msk [vmem:[%s170 + $0xf0] sm:$0xff] %vm267, %v2726
      %2760 = vst.msk [vmem:[%s170 + $0xf8] sm:$0xff] %vm267, %v2728
      %p2761 = scmp.lt.s32.totalorder %s14, 1
      %s2762 = scalar_select %p2761, %s14, 1
      %s2763 = smul.addr %s2762, 32
      %s2764 = smul.addr %s2763, 8
      %s2765 = scalar_lea.vmem %s3, %s2764
      // Predicated region
      $region33: #{bottleneck_forward.15} parent=31 // pred_check
        %p2766 = pneg %p100
      $region34: #{bottleneck_forward.15} parent=31 // pred_check_branch
        %2768 = sbr.rel (%p2766) target = $region36
      $region35: #{bottleneck_forward.15} parent=31 // pred_region
        _
      $region36: #{bottleneck_forward.15} parent=31 // pred_fallthru
        _
    $region32: #{bottleneck_forward.15} parent=5 // pred_fallthru
      _
    %p2769 = scmp.le.s32.totalorder 2, %s9
    // Predicated region
    $region37: #{bottleneck_forward.15} parent=5 // pred_check
      %p2770 = pneg %p2769
    $region38: #{bottleneck_forward.15} parent=5 // pred_check_branch
      %2772 = sbr.rel (%p2770) target = $region40
    $region39: #{bottleneck_forward.15} parent=5 // pred_region
      %s2773 = ssub.s32 %s9, 2
      // Predicated region
      $region41: #{bottleneck_forward.15} parent=39 // pred_check
        %p2774 = pneg %p106
      $region42: #{bottleneck_forward.15} parent=39 // pred_check_branch
        %2776 = sbr.rel (%p2774) target = $region44
      $region43: #{bottleneck_forward.15} parent=39 // pred_region
        %p2777 = scmp.lt.s32.totalorder %s15, 1
        %s2778 = scalar_select %p2777, %s15, 1
        %s2779 = smul.addr %s2778, 32
        %s2780 = smul.addr %s2779, 8
        %s2781 = scalar_lea.vmem %s3, %s2780
      $region44: #{bottleneck_forward.15} parent=39 // pred_fallthru
        _
    $region40: #{bottleneck_forward.15} parent=5 // pred_fallthru
      _
  $region6: #{bottleneck_forward.15} parent=0 // loop_footer
    %s13 = sadd.s32 1, %s9
  $region7: #{bottleneck_forward.15} parent=0 // loop_footer_branch
    %8 = sbr.rel target = $region3
  $region8: #{bottleneck_forward.15} parent=0 // loop_exit
    _

</llo_original>
